<compile_context>
chip_gen: v7x
topology: tpu7x:2x2x1
jax: 0.10.0
libtpu: 0.0.40
codegen_flags: <defaults>
</compile_context>

<pallas_src>
import functools

import jax
import jax.numpy as jnp
from jax.experimental import pallas as pl
from jax.experimental.pallas import tpu as pltpu

NEG_SLOPE = 0.01   # F.leaky_relu default
LN_EPS = 1e-5      # torch LayerNorm default


# ----------------------------------------------------------------------------
# Shared forward math (used by the Pallas kernel with refs and by the pure-JAX
# reference with plain arrays; `x[...]` works for both).
# ----------------------------------------------------------------------------
def _leaky(x):
    # max(x, 0.01*x) == leaky_relu(x) for 0 < slope < 1; one mul + one max.
    return jnp.maximum(x, NEG_SLOPE * x)


def _bf16(x):
    return x.astype(jnp.bfloat16)


def _mlp_apply(parts, p, normalize):
    """MLP(in, latent, out, n_h_layers=1).  `parts` is the list of activations
    whose lane-concatenation is the MLP input; the first layer is evaluated as
    a sum of sub-matmuls against the pre-split (bf16) weights p['w0s'].
    All matmuls run bf16 x bf16 -> f32 accumulation on the MXU; LN / activations
    stay f32 on the VPU."""
    h = p['b0'][...]
    for x, w in zip(parts, p['w0s']):
        h = h + jnp.dot(_bf16(x), w[...], preferred_element_type=jnp.float32)
    h = _leaky(h)
    h = _leaky(jnp.dot(_bf16(h), p['w1'][...],
                       preferred_element_type=jnp.float32) + p['b1'][...])
    y = jnp.dot(_bf16(h), p['w2'][...],
                preferred_element_type=jnp.float32) + p['b2'][...]
    if normalize:
        mean = jnp.mean(y, axis=-1, keepdims=True)
        # one-pass variance; clamp at 0 to kill cancellation-induced negatives
        var = jnp.maximum(jnp.mean(y * y, axis=-1, keepdims=True) - mean * mean, 0.0)
        y = (y - mean) * jax.lax.rsqrt(var + LN_EPS) * p['gamma'][...] + p['beta'][...]
    return y


def _forward_body(graph, params, process_iters):
    # load graph operands once (hoisted out of the processor loop)
    in_feat = graph['in_feat'][...]
    e_inner = graph['e_features_inner'][...]
    srcdst_oh = graph['srcdst_onehot_inner'][...]      # (2E, N) bf16 (src rows then dst rows)
    dst_oh_T = graph['dst_onehot_inner_T'][...]        # (N, E)  bf16
    n_edges = e_inner.shape[0]

    # encode_nodes / encode_edges
    proc_node = _mlp_apply([in_feat], params['encoder_nodes'], True)
    proc_edge = _mlp_apply([e_inner], params['encoder_edges'], True)

    # encode_inlet_edge + update_all(copy_e, sum) on in_to_inner
    src_feat_in = jnp.dot(graph['src_onehot_in'][...],
                          _bf16(graph['n_features_in'][...]),
                          preferred_element_type=jnp.float32)
    inlet_edge = _mlp_apply([graph['e_features_in'][...], src_feat_in],
                            params['encoder_inlet_edge'], True)
    # NOTE: padded (all-zero one-hot) boundary edge rows produce LN garbage but are
    # exactly zeroed here because their columns in dst_onehot_in_T are all zero
    # (asserted at graph construction time).
    inlet_info = jnp.dot(graph['dst_onehot_in_T'][...], _bf16(inlet_edge),
                         preferred_element_type=jnp.float32)

    # encode_outlet_edge + update_all(copy_e, sum) on out_to_inner
    src_feat_out = jnp.dot(graph['src_onehot_out'][...],
                           _bf16(graph['n_features_out'][...]),
                           preferred_element_type=jnp.float32)
    outlet_edge = _mlp_apply([graph['e_features_out'][...], src_feat_out],
                             params['encoder_outlet_edge'], True)
    outlet_info = jnp.dot(graph['dst_onehot_out_T'][...], _bf16(outlet_edge),
                          preferred_element_type=jnp.float32)

    # processor iterations (static unroll; each iteration has its own weights)
    for i in range(process_iters):
        # merged src/dst gather: one (2E,N)x(N,L) matmul, split by static row slice
        gathered = jnp.dot(srcdst_oh, _bf16(proc_node),
                           preferred_element_type=jnp.float32)
        f2 = gathered[:n_edges]      # src proc_node per edge
        f3 = gathered[n_edges:]      # dst proc_node per edge
        proc_edge = _mlp_apply([proc_edge, f2, f3],
                               params['processor_edges'][i], True) + proc_edge
        pe_sum = jnp.dot(dst_oh_T, _bf16(proc_edge),
                         preferred_element_type=jnp.float32)
        proc_node = _mlp_apply([proc_node, pe_sum, inlet_info, outlet_info],
                               params['processor_nodes'][i], True) + proc_node

    # decode (no LayerNorm)
    return _mlp_apply([proc_node], params['output'], False)


# ----------------------------------------------------------------------------
# Fused Pallas kernel + wrapper
# ----------------------------------------------------------------------------
def _full_spec(shape):
    nd = len(shape)
    return pl.BlockSpec(shape, lambda i, _nd=nd: (0,) * _nd)


def _fused_kernel(treedef, process_iters, *refs):
    *in_refs, out_ref = refs
    graph, params = jax.tree_util.tree_unflatten(treedef, list(in_refs))
    out_ref[...] = _forward_body(graph, params, process_iters)


def _mlp_flops(rows, p):
    f = 0
    for w in p['w0s']:
        f += 2 * rows * w.shape[0] * w.shape[1]
    f += 2 * rows * p['w1'].shape[0] * p['w1'].shape[1]
    f += 2 * rows * p['w2'].shape[0] * p['w2'].shape[1]
    return f


def _cost_estimate(params, graph, process_iters, out_rows, out_cols):
    n = graph['in_feat'].shape[0]
    e = graph['e_features_inner'].shape[0]
    e2 = graph['srcdst_onehot_inner'].shape[0]
    ein = graph['e_features_in'].shape[0]
    eout = graph['e_features_out'].shape[0]
    lgnn = params['encoder_nodes']['w2'].shape[1]
    out_bc = params['encoder_inlet_edge']['w2'].shape[1]

    flops = (_mlp_flops(n, params['encoder_nodes'])
             + _mlp_flops(e, params['encoder_edges'])
             + _mlp_flops(ein, params['encoder_inlet_edge'])
             + _mlp_flops(eout, params['encoder_outlet_edge'])
             + _mlp_flops(n, params['output']))
    # boundary gathers + scatters
    flops += 2 * ein * graph['src_onehot_in'].shape[1] * graph['n_features_in'].shape[1]
    flops += 2 * eout * graph['src_onehot_out'].shape[1] * graph['n_features_out'].shape[1]
    flops += 2 * n * ein * out_bc + 2 * n * eout * out_bc
    for i in range(process_iters):
        flops += _mlp_flops(e, params['processor_edges'][i])
        flops += _mlp_flops(n, params['processor_nodes'][i])
        flops += 2 * e2 * n * lgnn      # merged src/dst gather
        flops += 2 * n * e * lgnn       # pe_sum scatter
    # one rsqrt per LayerNorm'd row
    transcendentals = (n + e) * (1 + 2 * process_iters) + ein + eout
    flat, _ = jax.tree_util.tree_flatten((graph, params))
    bytes_accessed = sum(int(a.size) * a.dtype.itemsize for a in flat)
    bytes_accessed += out_rows * out_cols * 4
    return pl.CostEstimate(flops=int(flops),
                           transcendentals=int(transcendentals),
                           bytes_accessed=int(bytes_accessed))


@functools.partial(jax.jit, static_argnames='process_iters')
def graphnet_forward(params, graph, in_feat, process_iters):
    full_graph = dict(graph, in_feat=in_feat)
    flat, treedef = jax.tree_util.tree_flatten((full_graph, params))
    out_size = params['output']['w2'].shape[1]
    n_nodes = in_feat.shape[0]
    out_shape = jax.ShapeDtypeStruct((n_nodes, out_size), jnp.float32)

    # Size scoped VMEM from the resident working set (inputs + output + slack);
    # cap at 64 MiB so the request stays within v7x physical VMEM.
    resident_bytes = sum(int(a.size) * a.dtype.itemsize for a in flat)
    resident_bytes += n_nodes * out_size * 4
    vmem_limit = int(min(64 << 20, max(32 << 20, 6 * resident_bytes)))

    cost = _cost_estimate(params, full_graph, process_iters, n_nodes, out_size)

    return pl.pallas_call(
        functools.partial(_fused_kernel, treedef, process_iters),
        grid=(1,),
        in_specs=[_full_spec(a.shape) for a in flat],
        out_specs=_full_spec(out_shape.shape),
        out_shape=out_shape,
        compiler_params=pltpu.CompilerParams(
            dimension_semantics=("arbitrary",),
            vmem_limit_bytes=vmem_limit),
        cost_estimate=cost,
    )(*flat)


def reference_forward(params, graph, in_feat, process_iters):
    """Pure-JAX reference: exact same math on plain arrays."""
    return _forward_body(dict(graph, in_feat=in_feat), params, process_iters)


# ----------------------------------------------------------------------------
# Parameter construction (deterministic, torch-style uniform init)
# ----------------------------------------------------------------------------
def init_linear(key, in_f, out_f):
    kw, kb = jax.random.split(key)
    bound = 1.0 / (in_f ** 0.5)
    w = jax.random.uniform(kw, (in_f, out_f), jnp.float32, -bound, bound)
    b = jax.random.uniform(kb, (1, out_f), jnp.float32, -bound, bound)
    return w, b


def init_mlp(key, in_splits, latent, out_f, normalize=True):
    """in_splits: widths of the activations that are concatenated as input.
    First-layer weight initialized as one Linear(sum(in_splits), latent)
    (matching torch) then split row-wise so the kernel never concatenates.
    Matmul weights stored bf16 (MXU-native); biases/LN params stay f32."""
    in_f = sum(in_splits)
    k0, k1, k2 = jax.random.split(key, 3)
    w0, b0 = init_linear(k0, in_f, latent)
    w1, b1 = init_linear(k1, latent, latent)      # n_h_layers = 1 hidden layer
    w2, b2 = init_linear(k2, latent, out_f)
    w0s, off = [], 0
    for s in in_splits:                           # concat(x_i)@w0 == sum_i x_i@w0s[i]
        w0s.append(w0[off:off + s, :].astype(jnp.bfloat16))
        off += s
    p = dict(w0s=w0s, b0=b0,
             w1=w1.astype(jnp.bfloat16), b1=b1,
             w2=w2.astype(jnp.bfloat16), b2=b2)
    if normalize:
        p['gamma'] = jnp.ones((1, out_f), jnp.float32)
        p['beta'] = jnp.zeros((1, out_f), jnp.float32)
    return p


# ----------------------------------------------------------------------------
if __name__ == "__main__":
    key = jax.random.PRNGKey(0)

    # GraphNet hyper-parameters (small, consistent with the module)
    hp = dict(infeat_nodes=8, infeat_edges=5, latent_size_mlp=32,
              latent_size_gnn=16, hl_mlp=1, normalize=True,
              process_iterations=2, out_size=4)
    out_bc = 8  # out_bc_encoder
    lgnn, lmlp = hp['latent_size_gnn'], hp['latent_size_mlp']

    keys = jax.random.split(key, 16)
    params = {
        'encoder_inlet_edge': init_mlp(keys[0], (4, 3), 16, out_bc, True),
        'encoder_outlet_edge': init_mlp(keys[1], (4, 3), 16, out_bc, True),
        'encoder_nodes': init_mlp(keys[2], (hp['infeat_nodes'],), lmlp, lgnn, True),
        'encoder_edges': init_mlp(keys[3], (hp['infeat_edges'],), lmlp, lgnn, True),
        'processor_edges': [init_mlp(keys[4 + i], (lgnn, lgnn, lgnn), lmlp, lgnn, True)
                            for i in range(hp['process_iterations'])],
        'processor_nodes': [init_mlp(keys[8 + i], (lgnn, lgnn, out_bc, out_bc),
                                     lmlp, lgnn, True)
                            for i in range(hp['process_iterations'])],
        'output': init_mlp(keys[12], (lgnn,), lmlp, hp['out_size'], False),
    }

    # Small deterministic heterograph: inner / inlet ('in') / outlet ('out') nodes
    N_inner, N_in, N_out = 16, 2, 2
    E_inner, E_in, E_out = 32, 3, 3
    N_in_p = N_out_p = 8   # pad tiny boundary node sets to a full sublane group
    E_in_p = E_out_p = 8   # pad tiny boundary edge sets (zero one-hot rows -> exact)

    gk = jax.random.split(keys[13], 11)
    src_inner = jax.random.randint(gk[0], (E_inner,), 0, N_inner)
    dst_inner = jax.random.randint(gk[1], (E_inner,), 0, N_inner)
    src_in = jax.random.randint(gk[2], (E_in,), 0, N_in)
    dst_in = jax.random.randint(gk[3], (E_in,), 0, N_inner)
    src_out = jax.random.randint(gk[4], (E_out,), 0, N_out)
    dst_out = jax.random.randint(gk[5], (E_out,), 0, N_inner)

    def pad_rows(x, n):
        return jnp.pad(x, ((0, n - x.shape[0]), (0, 0)))

    src_oh_inner = jax.nn.one_hot(src_inner, N_inner, dtype=jnp.float32)
    dst_oh_inner = jax.nn.one_hot(dst_inner, N_inner, dtype=jnp.float32)
    dst_oh_in_T = pad_rows(jax.nn.one_hot(dst_in, N_inner, dtype=jnp.float32), E_in_p).T
    dst_oh_out_T = pad_rows(jax.nn.one_hot(dst_out, N_inner, dtype=jnp.float32), E_out_p).T

    graph = dict(
        # inner -> inner incidence: src/dst gathers merged into one (2E x N) bf16
        # matrix (src rows first); scatter uses the pre-transposed dst one-hot.
        srcdst_onehot_inner=jnp.concatenate([src_oh_inner, dst_oh_inner],
                                            axis=0).astype(jnp.bfloat16),
        dst_onehot_inner_T=dst_oh_inner.T.astype(jnp.bfloat16),
        # inlet boundary (boundary edge feats 4 + boundary node feats 3 = 7)
        src_onehot_in=pad_rows(jax.nn.one_hot(src_in, N_in_p, dtype=jnp.float32),
                               E_in_p).astype(jnp.bfloat16),
        dst_onehot_in_T=dst_oh_in_T.astype(jnp.bfloat16),
        e_features_in=pad_rows(jax.random.normal(gk[7], (E_in, 4), jnp.float32), E_in_p),
        n_features_in=pad_rows(jax.random.normal(gk[9], (N_in, 3), jnp.float32), N_in_p),
        # outlet boundary
        src_onehot_out=pad_rows(jax.nn.one_hot(src_out, N_out_p, dtype=jnp.float32),
                                E_out_p).astype(jnp.bfloat16),
        dst_onehot_out_T=dst_oh_out_T.astype(jnp.bfloat16),
        e_features_out=pad_rows(jax.random.normal(gk[8], (E_out, 4), jnp.float32), E_out_p),
        n_features_out=pad_rows(jax.random.normal(gk[10], (N_out, 3), jnp.float32), N_out_p),
        # inner edge features
        e_features_inner=jax.random.normal(gk[6], (E_inner, hp['infeat_edges']), jnp.float32),
    )
    # Padding invariant: LN-garbage rows of padded boundary edges must never be
    # scattered into inner nodes -> their columns in the transposed dst one-hots
    # must be all zero.
    assert float(jnp.abs(graph['dst_onehot_in_T'][:, E_in:]).sum()) == 0.0
    assert float(jnp.abs(graph['dst_onehot_out_T'][:, E_out:]).sum()) == 0.0

    in_feat = jax.random.normal(keys[15], (N_inner, hp['infeat_nodes']), jnp.float32)

    out = graphnet_forward(params, graph, in_feat, hp['process_iterations'])
    out = jax.block_until_ready(out)

    ref = reference_forward(params, graph, in_feat, hp['process_iterations'])

    assert out.shape == (N_inner, hp['out_size'])
    assert bool(jnp.all(jnp.isfinite(out)))
    assert bool(jnp.allclose(out, ref, atol=5e-2, rtol=5e-2))
    print("KERNEL_OK")
</pallas_src>

<mosaic_0001>
module attributes {stable_mosaic.version = 11 : i64} {
  func.func @_fused_kernel(%arg0: i32, %arg1: memref<16x8xbf16, #tpu.memory_space<vmem>>, %arg2: memref<16x32xbf16, #tpu.memory_space<vmem>>, %arg3: memref<16x8xbf16, #tpu.memory_space<vmem>>, %arg4: memref<8x4xf32, #tpu.memory_space<vmem>>, %arg5: memref<32x5xf32, #tpu.memory_space<vmem>>, %arg6: memref<8x4xf32, #tpu.memory_space<vmem>>, %arg7: memref<16x8xf32, #tpu.memory_space<vmem>>, %arg8: memref<8x3xf32, #tpu.memory_space<vmem>>, %arg9: memref<8x3xf32, #tpu.memory_space<vmem>>, %arg10: memref<8x8xbf16, #tpu.memory_space<vmem>>, %arg11: memref<8x8xbf16, #tpu.memory_space<vmem>>, %arg12: memref<64x16xbf16, #tpu.memory_space<vmem>>, %arg13: memref<1x32xf32, #tpu.memory_space<vmem>>, %arg14: memref<1x32xf32, #tpu.memory_space<vmem>>, %arg15: memref<1x16xf32, #tpu.memory_space<vmem>>, %arg16: memref<1x16xf32, #tpu.memory_space<vmem>>, %arg17: memref<1x16xf32, #tpu.memory_space<vmem>>, %arg18: memref<5x32xbf16, #tpu.memory_space<vmem>>, %arg19: memref<32x32xbf16, #tpu.memory_space<vmem>>, %arg20: memref<32x16xbf16, #tpu.memory_space<vmem>>, %arg21: memref<1x16xf32, #tpu.memory_space<vmem>>, %arg22: memref<1x16xf32, #tpu.memory_space<vmem>>, %arg23: memref<1x8xf32, #tpu.memory_space<vmem>>, %arg24: memref<1x8xf32, #tpu.memory_space<vmem>>, %arg25: memref<1x8xf32, #tpu.memory_space<vmem>>, %arg26: memref<4x16xbf16, #tpu.memory_space<vmem>>, %arg27: memref<3x16xbf16, #tpu.memory_space<vmem>>, %arg28: memref<16x16xbf16, #tpu.memory_space<vmem>>, %arg29: memref<16x8xbf16, #tpu.memory_space<vmem>>, %arg30: memref<1x32xf32, #tpu.memory_space<vmem>>, %arg31: memref<1x32xf32, #tpu.memory_space<vmem>>, %arg32: memref<1x16xf32, #tpu.memory_space<vmem>>, %arg33: memref<1x16xf32, #tpu.memory_space<vmem>>, %arg34: memref<1x16xf32, #tpu.memory_space<vmem>>, %arg35: memref<8x32xbf16, #tpu.memory_space<vmem>>, %arg36: memref<32x32xbf16, #tpu.memory_space<vmem>>, %arg37: memref<32x16xbf16, #tpu.memory_space<vmem>>, %arg38: memref<1x16xf32, #tpu.memory_space<vmem>>, %arg39: memref<1x16xf32, #tpu.memory_space<vmem>>, %arg40: memref<1x8xf32, #tpu.memory_space<vmem>>, %arg41: memref<1x8xf32, #tpu.memory_space<vmem>>, %arg42: memref<1x8xf32, #tpu.memory_space<vmem>>, %arg43: memref<4x16xbf16, #tpu.memory_space<vmem>>, %arg44: memref<3x16xbf16, #tpu.memory_space<vmem>>, %arg45: memref<16x16xbf16, #tpu.memory_space<vmem>>, %arg46: memref<16x8xbf16, #tpu.memory_space<vmem>>, %arg47: memref<1x32xf32, #tpu.memory_space<vmem>>, %arg48: memref<1x32xf32, #tpu.memory_space<vmem>>, %arg49: memref<1x4xf32, #tpu.memory_space<vmem>>, %arg50: memref<16x32xbf16, #tpu.memory_space<vmem>>, %arg51: memref<32x32xbf16, #tpu.memory_space<vmem>>, %arg52: memref<32x4xbf16, #tpu.memory_space<vmem>>, %arg53: memref<1x32xf32, #tpu.memory_space<vmem>>, %arg54: memref<1x32xf32, #tpu.memory_space<vmem>>, %arg55: memref<1x16xf32, #tpu.memory_space<vmem>>, %arg56: memref<1x16xf32, #tpu.memory_space<vmem>>, %arg57: memref<1x16xf32, #tpu.memory_space<vmem>>, %arg58: memref<16x32xbf16, #tpu.memory_space<vmem>>, %arg59: memref<16x32xbf16, #tpu.memory_space<vmem>>, %arg60: memref<16x32xbf16, #tpu.memory_space<vmem>>, %arg61: memref<32x32xbf16, #tpu.memory_space<vmem>>, %arg62: memref<32x16xbf16, #tpu.memory_space<vmem>>, %arg63: memref<1x32xf32, #tpu.memory_space<vmem>>, %arg64: memref<1x32xf32, #tpu.memory_space<vmem>>, %arg65: memref<1x16xf32, #tpu.memory_space<vmem>>, %arg66: memref<1x16xf32, #tpu.memory_space<vmem>>, %arg67: memref<1x16xf32, #tpu.memory_space<vmem>>, %arg68: memref<16x32xbf16, #tpu.memory_space<vmem>>, %arg69: memref<16x32xbf16, #tpu.memory_space<vmem>>, %arg70: memref<16x32xbf16, #tpu.memory_space<vmem>>, %arg71: memref<32x32xbf16, #tpu.memory_space<vmem>>, %arg72: memref<32x16xbf16, #tpu.memory_space<vmem>>, %arg73: memref<1x32xf32, #tpu.memory_space<vmem>>, %arg74: memref<1x32xf32, #tpu.memory_space<vmem>>, %arg75: memref<1x16xf32, #tpu.memory_space<vmem>>, %arg76: memref<1x16xf32, #tpu.memory_space<vmem>>, %arg77: memref<1x16xf32, #tpu.memory_space<vmem>>, %arg78: memref<16x32xbf16, #tpu.memory_space<vmem>>, %arg79: memref<16x32xbf16, #tpu.memory_space<vmem>>, %arg80: memref<8x32xbf16, #tpu.memory_space<vmem>>, %arg81: memref<8x32xbf16, #tpu.memory_space<vmem>>, %arg82: memref<32x32xbf16, #tpu.memory_space<vmem>>, %arg83: memref<32x16xbf16, #tpu.memory_space<vmem>>, %arg84: memref<1x32xf32, #tpu.memory_space<vmem>>, %arg85: memref<1x32xf32, #tpu.memory_space<vmem>>, %arg86: memref<1x16xf32, #tpu.memory_space<vmem>>, %arg87: memref<1x16xf32, #tpu.memory_space<vmem>>, %arg88: memref<1x16xf32, #tpu.memory_space<vmem>>, %arg89: memref<16x32xbf16, #tpu.memory_space<vmem>>, %arg90: memref<16x32xbf16, #tpu.memory_space<vmem>>, %arg91: memref<8x32xbf16, #tpu.memory_space<vmem>>, %arg92: memref<8x32xbf16, #tpu.memory_space<vmem>>, %arg93: memref<32x32xbf16, #tpu.memory_space<vmem>>, %arg94: memref<32x16xbf16, #tpu.memory_space<vmem>>, %arg95: memref<16x4xf32, #tpu.memory_space<vmem>>) attributes {dimension_semantics = [#tpu.dimension_semantics<arbitrary>], iteration_bounds = array<i64: 1>, scalar_prefetch = 0 : i64, scratch_operands = 0 : i64, tpu.core_type = #tpu.core_type<tc>, window_params = [{pipeline_mode = #tpu.pipeline_mode<synchronous>, transform_indices = @transform_0, window_bounds = array<i64: 16, 8>}, {pipeline_mode = #tpu.pipeline_mode<synchronous>, transform_indices = @transform_1, window_bounds = array<i64: 16, 32>}, {pipeline_mode = #tpu.pipeline_mode<synchronous>, transform_indices = @transform_2, window_bounds = array<i64: 16, 8>}, {pipeline_mode = #tpu.pipeline_mode<synchronous>, transform_indices = @transform_3, window_bounds = array<i64: 8, 4>}, {pipeline_mode = #tpu.pipeline_mode<synchronous>, transform_indices = @transform_4, window_bounds = array<i64: 32, 5>}, {pipeline_mode = #tpu.pipeline_mode<synchronous>, transform_indices = @transform_5, window_bounds = array<i64: 8, 4>}, {pipeline_mode = #tpu.pipeline_mode<synchronous>, transform_indices = @transform_6, window_bounds = array<i64: 16, 8>}, {pipeline_mode = #tpu.pipeline_mode<synchronous>, transform_indices = @transform_7, window_bounds = array<i64: 8, 3>}, {pipeline_mode = #tpu.pipeline_mode<synchronous>, transform_indices = @transform_8, window_bounds = array<i64: 8, 3>}, {pipeline_mode = #tpu.pipeline_mode<synchronous>, transform_indices = @transform_9, window_bounds = array<i64: 8, 8>}, {pipeline_mode = #tpu.pipeline_mode<synchronous>, transform_indices = @transform_10, window_bounds = array<i64: 8, 8>}, {pipeline_mode = #tpu.pipeline_mode<synchronous>, transform_indices = @transform_11, window_bounds = array<i64: 64, 16>}, {pipeline_mode = #tpu.pipeline_mode<synchronous>, transform_indices = @transform_12, window_bounds = array<i64: 1, 32>}, {pipeline_mode = #tpu.pipeline_mode<synchronous>, transform_indices = @transform_13, window_bounds = array<i64: 1, 32>}, {pipeline_mode = #tpu.pipeline_mode<synchronous>, transform_indices = @transform_14, window_bounds = array<i64: 1, 16>}, {pipeline_mode = #tpu.pipeline_mode<synchronous>, transform_indices = @transform_15, window_bounds = array<i64: 1, 16>}, {pipeline_mode = #tpu.pipeline_mode<synchronous>, transform_indices = @transform_16, window_bounds = array<i64: 1, 16>}, {pipeline_mode = #tpu.pipeline_mode<synchronous>, transform_indices = @transform_17, window_bounds = array<i64: 5, 32>}, {pipeline_mode = #tpu.pipeline_mode<synchronous>, transform_indices = @transform_18, window_bounds = array<i64: 32, 32>}, {pipeline_mode = #tpu.pipeline_mode<synchronous>, transform_indices = @transform_19, window_bounds = array<i64: 32, 16>}, {pipeline_mode = #tpu.pipeline_mode<synchronous>, transform_indices = @transform_20, window_bounds = array<i64: 1, 16>}, {pipeline_mode = #tpu.pipeline_mode<synchronous>, transform_indices = @transform_21, window_bounds = array<i64: 1, 16>}, {pipeline_mode = #tpu.pipeline_mode<synchronous>, transform_indices = @transform_22, window_bounds = array<i64: 1, 8>}, {pipeline_mode = #tpu.pipeline_mode<synchronous>, transform_indices = @transform_23, window_bounds = array<i64: 1, 8>}, {pipeline_mode = #tpu.pipeline_mode<synchronous>, transform_indices = @transform_24, window_bounds = array<i64: 1, 8>}, {pipeline_mode = #tpu.pipeline_mode<synchronous>, transform_indices = @transform_25, window_bounds = array<i64: 4, 16>}, {pipeline_mode = #tpu.pipeline_mode<synchronous>, transform_indices = @transform_26, window_bounds = array<i64: 3, 16>}, {pipeline_mode = #tpu.pipeline_mode<synchronous>, transform_indices = @transform_27, window_bounds = array<i64: 16, 16>}, {pipeline_mode = #tpu.pipeline_mode<synchronous>, transform_indices = @transform_28, window_bounds = array<i64: 16, 8>}, {pipeline_mode = #tpu.pipeline_mode<synchronous>, transform_indices = @transform_29, window_bounds = array<i64: 1, 32>}, {pipeline_mode = #tpu.pipeline_mode<synchronous>, transform_indices = @transform_30, window_bounds = array<i64: 1, 32>}, {pipeline_mode = #tpu.pipeline_mode<synchronous>, transform_indices = @transform_31, window_bounds = array<i64: 1, 16>}, {pipeline_mode = #tpu.pipeline_mode<synchronous>, transform_indices = @transform_32, window_bounds = array<i64: 1, 16>}, {pipeline_mode = #tpu.pipeline_mode<synchronous>, transform_indices = @transform_33, window_bounds = array<i64: 1, 16>}, {pipeline_mode = #tpu.pipeline_mode<synchronous>, transform_indices = @transform_34, window_bounds = array<i64: 8, 32>}, {pipeline_mode = #tpu.pipeline_mode<synchronous>, transform_indices = @transform_35, window_bounds = array<i64: 32, 32>}, {pipeline_mode = #tpu.pipeline_mode<synchronous>, transform_indices = @transform_36, window_bounds = array<i64: 32, 16>}, {pipeline_mode = #tpu.pipeline_mode<synchronous>, transform_indices = @transform_37, window_bounds = array<i64: 1, 16>}, {pipeline_mode = #tpu.pipeline_mode<synchronous>, transform_indices = @transform_38, window_bounds = array<i64: 1, 16>}, {pipeline_mode = #tpu.pipeline_mode<synchronous>, transform_indices = @transform_39, window_bounds = array<i64: 1, 8>}, {pipeline_mode = #tpu.pipeline_mode<synchronous>, transform_indices = @transform_40, window_bounds = array<i64: 1, 8>}, {pipeline_mode = #tpu.pipeline_mode<synchronous>, transform_indices = @transform_41, window_bounds = array<i64: 1, 8>}, {pipeline_mode = #tpu.pipeline_mode<synchronous>, transform_indices = @transform_42, window_bounds = array<i64: 4, 16>}, {pipeline_mode = #tpu.pipeline_mode<synchronous>, transform_indices = @transform_43, window_bounds = array<i64: 3, 16>}, {pipeline_mode = #tpu.pipeline_mode<synchronous>, transform_indices = @transform_44, window_bounds = array<i64: 16, 16>}, {pipeline_mode = #tpu.pipeline_mode<synchronous>, transform_indices = @transform_45, window_bounds = array<i64: 16, 8>}, {pipeline_mode = #tpu.pipeline_mode<synchronous>, transform_indices = @transform_46, window_bounds = array<i64: 1, 32>}, {pipeline_mode = #tpu.pipeline_mode<synchronous>, transform_indices = @transform_47, window_bounds = array<i64: 1, 32>}, {pipeline_mode = #tpu.pipeline_mode<synchronous>, transform_indices = @transform_48, window_bounds = array<i64: 1, 4>}, {pipeline_mode = #tpu.pipeline_mode<synchronous>, transform_indices = @transform_49, window_bounds = array<i64: 16, 32>}, {pipeline_mode = #tpu.pipeline_mode<synchronous>, transform_indices = @transform_50, window_bounds = array<i64: 32, 32>}, {pipeline_mode = #tpu.pipeline_mode<synchronous>, transform_indices = @transform_51, window_bounds = array<i64: 32, 4>}, {pipeline_mode = #tpu.pipeline_mode<synchronous>, transform_indices = @transform_52, window_bounds = array<i64: 1, 32>}, {pipeline_mode = #tpu.pipeline_mode<synchronous>, transform_indices = @transform_53, window_bounds = array<i64: 1, 32>}, {pipeline_mode = #tpu.pipeline_mode<synchronous>, transform_indices = @transform_54, window_bounds = array<i64: 1, 16>}, {pipeline_mode = #tpu.pipeline_mode<synchronous>, transform_indices = @transform_55, window_bounds = array<i64: 1, 16>}, {pipeline_mode = #tpu.pipeline_mode<synchronous>, transform_indices = @transform_56, window_bounds = array<i64: 1, 16>}, {pipeline_mode = #tpu.pipeline_mode<synchronous>, transform_indices = @transform_57, window_bounds = array<i64: 16, 32>}, {pipeline_mode = #tpu.pipeline_mode<synchronous>, transform_indices = @transform_58, window_bounds = array<i64: 16, 32>}, {pipeline_mode = #tpu.pipeline_mode<synchronous>, transform_indices = @transform_59, window_bounds = array<i64: 16, 32>}, {pipeline_mode = #tpu.pipeline_mode<synchronous>, transform_indices = @transform_60, window_bounds = array<i64: 32, 32>}, {pipeline_mode = #tpu.pipeline_mode<synchronous>, transform_indices = @transform_61, window_bounds = array<i64: 32, 16>}, {pipeline_mode = #tpu.pipeline_mode<synchronous>, transform_indices = @transform_62, window_bounds = array<i64: 1, 32>}, {pipeline_mode = #tpu.pipeline_mode<synchronous>, transform_indices = @transform_63, window_bounds = array<i64: 1, 32>}, {pipeline_mode = #tpu.pipeline_mode<synchronous>, transform_indices = @transform_64, window_bounds = array<i64: 1, 16>}, {pipeline_mode = #tpu.pipeline_mode<synchronous>, transform_indices = @transform_65, window_bounds = array<i64: 1, 16>}, {pipeline_mode = #tpu.pipeline_mode<synchronous>, transform_indices = @transform_66, window_bounds = array<i64: 1, 16>}, {pipeline_mode = #tpu.pipeline_mode<synchronous>, transform_indices = @transform_67, window_bounds = array<i64: 16, 32>}, {pipeline_mode = #tpu.pipeline_mode<synchronous>, transform_indices = @transform_68, window_bounds = array<i64: 16, 32>}, {pipeline_mode = #tpu.pipeline_mode<synchronous>, transform_indices = @transform_69, window_bounds = array<i64: 16, 32>}, {pipeline_mode = #tpu.pipeline_mode<synchronous>, transform_indices = @transform_70, window_bounds = array<i64: 32, 32>}, {pipeline_mode = #tpu.pipeline_mode<synchronous>, transform_indices = @transform_71, window_bounds = array<i64: 32, 16>}, {pipeline_mode = #tpu.pipeline_mode<synchronous>, transform_indices = @transform_72, window_bounds = array<i64: 1, 32>}, {pipeline_mode = #tpu.pipeline_mode<synchronous>, transform_indices = @transform_73, window_bounds = array<i64: 1, 32>}, {pipeline_mode = #tpu.pipeline_mode<synchronous>, transform_indices = @transform_74, window_bounds = array<i64: 1, 16>}, {pipeline_mode = #tpu.pipeline_mode<synchronous>, transform_indices = @transform_75, window_bounds = array<i64: 1, 16>}, {pipeline_mode = #tpu.pipeline_mode<synchronous>, transform_indices = @transform_76, window_bounds = array<i64: 1, 16>}, {pipeline_mode = #tpu.pipeline_mode<synchronous>, transform_indices = @transform_77, window_bounds = array<i64: 16, 32>}, {pipeline_mode = #tpu.pipeline_mode<synchronous>, transform_indices = @transform_78, window_bounds = array<i64: 16, 32>}, {pipeline_mode = #tpu.pipeline_mode<synchronous>, transform_indices = @transform_79, window_bounds = array<i64: 8, 32>}, {pipeline_mode = #tpu.pipeline_mode<synchronous>, transform_indices = @transform_80, window_bounds = array<i64: 8, 32>}, {pipeline_mode = #tpu.pipeline_mode<synchronous>, transform_indices = @transform_81, window_bounds = array<i64: 32, 32>}, {pipeline_mode = #tpu.pipeline_mode<synchronous>, transform_indices = @transform_82, window_bounds = array<i64: 32, 16>}, {pipeline_mode = #tpu.pipeline_mode<synchronous>, transform_indices = @transform_83, window_bounds = array<i64: 1, 32>}, {pipeline_mode = #tpu.pipeline_mode<synchronous>, transform_indices = @transform_84, window_bounds = array<i64: 1, 32>}, {pipeline_mode = #tpu.pipeline_mode<synchronous>, transform_indices = @transform_85, window_bounds = array<i64: 1, 16>}, {pipeline_mode = #tpu.pipeline_mode<synchronous>, transform_indices = @transform_86, window_bounds = array<i64: 1, 16>}, {pipeline_mode = #tpu.pipeline_mode<synchronous>, transform_indices = @transform_87, window_bounds = array<i64: 1, 16>}, {pipeline_mode = #tpu.pipeline_mode<synchronous>, transform_indices = @transform_88, window_bounds = array<i64: 16, 32>}, {pipeline_mode = #tpu.pipeline_mode<synchronous>, transform_indices = @transform_89, window_bounds = array<i64: 16, 32>}, {pipeline_mode = #tpu.pipeline_mode<synchronous>, transform_indices = @transform_90, window_bounds = array<i64: 8, 32>}, {pipeline_mode = #tpu.pipeline_mode<synchronous>, transform_indices = @transform_91, window_bounds = array<i64: 8, 32>}, {pipeline_mode = #tpu.pipeline_mode<synchronous>, transform_indices = @transform_92, window_bounds = array<i64: 32, 32>}, {pipeline_mode = #tpu.pipeline_mode<synchronous>, transform_indices = @transform_93, window_bounds = array<i64: 32, 16>}, {pipeline_mode = #tpu.pipeline_mode<synchronous>, transform_indices = @transform_94, window_bounds = array<i64: 16, 4>}]} {
    %c0 = arith.constant 0 : index
    %c0_0 = arith.constant 0 : index
    %0 = vector.load %arg7[%c0, %c0_0] : memref<16x8xf32, #tpu.memory_space<vmem>>, vector<16x8xf32>
    %c0_1 = arith.constant 0 : index
    %c0_2 = arith.constant 0 : index
    %1 = vector.load %arg5[%c0_1, %c0_2] : memref<32x5xf32, #tpu.memory_space<vmem>>, vector<32x5xf32>
    %c0_3 = arith.constant 0 : index
    %c0_4 = arith.constant 0 : index
    %2 = vector.load %arg12[%c0_3, %c0_4] : memref<64x16xbf16, #tpu.memory_space<vmem>>, vector<64x16xbf16>
    %c0_5 = arith.constant 0 : index
    %c0_6 = arith.constant 0 : index
    %3 = vector.load %arg2[%c0_5, %c0_6] : memref<16x32xbf16, #tpu.memory_space<vmem>>, vector<16x32xbf16>
    %c0_7 = arith.constant 0 : index
    %c0_8 = arith.constant 0 : index
    %4 = vector.load %arg30[%c0_7, %c0_8] : memref<1x32xf32, #tpu.memory_space<vmem>>, vector<1x32xf32>
    %5 = arith.truncf %0 : vector<16x8xf32> to vector<16x8xbf16>
    %c0_9 = arith.constant 0 : index
    %c0_10 = arith.constant 0 : index
    %6 = vector.load %arg35[%c0_9, %c0_10] : memref<8x32xbf16, #tpu.memory_space<vmem>>, vector<8x32xbf16>
    %cst = arith.constant dense<0.000000e+00> : vector<16x32xf32>
    %7 = tpu.matmul %5, %6, %cst {dimension_numbers = #tpu.dot_dimension_numbers<[1], [0], [0], [1], [0, 0, 1, 1], [], []>} : vector<16x8xbf16>, vector<8x32xbf16>, vector<16x32xf32> -> vector<16x32xf32>
    %8 = vector.broadcast %4 : vector<1x32xf32> to vector<16x32xf32>
    %9 = arith.addf %8, %7 : vector<16x32xf32>
    %cst_11 = arith.constant 0.00999999977 : f32
    %10 = vector.broadcast %cst_11 : f32 to vector<16x32xf32>
    %11 = arith.mulf %10, %9 : vector<16x32xf32>
    %12 = arith.maximumf %9, %11 : vector<16x32xf32>
    %13 = arith.truncf %12 : vector<16x32xf32> to vector<16x32xbf16>
    %c0_12 = arith.constant 0 : index
    %c0_13 = arith.constant 0 : index
    %14 = vector.load %arg36[%c0_12, %c0_13] : memref<32x32xbf16, #tpu.memory_space<vmem>>, vector<32x32xbf16>
    %cst_14 = arith.constant dense<0.000000e+00> : vector<16x32xf32>
    %15 = tpu.matmul %13, %14, %cst_14 {dimension_numbers = #tpu.dot_dimension_numbers<[1], [0], [0], [1], [0, 0, 1, 1], [], []>} : vector<16x32xbf16>, vector<32x32xbf16>, vector<16x32xf32> -> vector<16x32xf32>
    %c0_15 = arith.constant 0 : index
    %c0_16 = arith.constant 0 : index
    %16 = vector.load %arg31[%c0_15, %c0_16] : memref<1x32xf32, #tpu.memory_space<vmem>>, vector<1x32xf32>
    %17 = vector.broadcast %16 : vector<1x32xf32> to vector<16x32xf32>
    %18 = arith.addf %15, %17 : vector<16x32xf32>
    %cst_17 = arith.constant 0.00999999977 : f32
    %19 = vector.broadcast %cst_17 : f32 to vector<16x32xf32>
    %20 = arith.mulf %19, %18 : vector<16x32xf32>
    %21 = arith.maximumf %18, %20 : vector<16x32xf32>
    %22 = arith.truncf %21 : vector<16x32xf32> to vector<16x32xbf16>
    %c0_18 = arith.constant 0 : index
    %c0_19 = arith.constant 0 : index
    %23 = vector.load %arg37[%c0_18, %c0_19] : memref<32x16xbf16, #tpu.memory_space<vmem>>, vector<32x16xbf16>
    %cst_20 = arith.constant dense<0.000000e+00> : vector<16x16xf32>
    %24 = tpu.matmul %22, %23, %cst_20 {dimension_numbers = #tpu.dot_dimension_numbers<[1], [0], [0], [1], [0, 0, 1, 1], [], []>} : vector<16x32xbf16>, vector<32x16xbf16>, vector<16x16xf32> -> vector<16x16xf32>
    %c0_21 = arith.constant 0 : index
    %c0_22 = arith.constant 0 : index
    %25 = vector.load %arg32[%c0_21, %c0_22] : memref<1x16xf32, #tpu.memory_space<vmem>>, vector<1x16xf32>
    %26 = vector.broadcast %25 : vector<1x16xf32> to vector<16x16xf32>
    %27 = arith.addf %24, %26 : vector<16x16xf32>
    %cst_23 = arith.constant dense<0.000000e+00> : vector<16xf32>
    %28 = vector.multi_reduction <add>, %27, %cst_23 [1] : vector<16x16xf32> to vector<16xf32>
    %29 = vector.shape_cast %28 : vector<16xf32> to vector<16x1xf32>
    %cst_24 = arith.constant 1.600000e+01 : f32
    %30 = vector.broadcast %cst_24 : f32 to vector<16x1xf32>
    %31 = arith.divf %29, %30 : vector<16x1xf32>
    %32 = arith.mulf %27, %27 : vector<16x16xf32>
    %cst_25 = arith.constant dense<0.000000e+00> : vector<16xf32>
    %33 = vector.multi_reduction <add>, %32, %cst_25 [1] : vector<16x16xf32> to vector<16xf32>
    %34 = vector.shape_cast %33 : vector<16xf32> to vector<16x1xf32>
    %cst_26 = arith.constant 1.600000e+01 : f32
    %35 = vector.broadcast %cst_26 : f32 to vector<16x1xf32>
    %36 = arith.divf %34, %35 : vector<16x1xf32>
    %37 = arith.mulf %31, %31 : vector<16x1xf32>
    %38 = arith.subf %36, %37 : vector<16x1xf32>
    %cst_27 = arith.constant 0.000000e+00 : f32
    %39 = vector.broadcast %cst_27 : f32 to vector<16x1xf32>
    %40 = arith.maximumf %38, %39 : vector<16x1xf32>
    %41 = vector.broadcast %31 : vector<16x1xf32> to vector<16x16xf32>
    %42 = arith.subf %27, %41 : vector<16x16xf32>
    %cst_28 = arith.constant 9.99999974E-6 : f32
    %43 = vector.broadcast %cst_28 : f32 to vector<16x1xf32>
    %44 = arith.addf %40, %43 : vector<16x1xf32>
    %45 = math.rsqrt %44 : vector<16x1xf32>
    %46 = vector.broadcast %45 : vector<16x1xf32> to vector<16x16xf32>
    %47 = arith.mulf %42, %46 : vector<16x16xf32>
    %c0_29 = arith.constant 0 : index
    %c0_30 = arith.constant 0 : index
    %48 = vector.load %arg34[%c0_29, %c0_30] : memref<1x16xf32, #tpu.memory_space<vmem>>, vector<1x16xf32>
    %49 = vector.broadcast %48 : vector<1x16xf32> to vector<16x16xf32>
    %50 = arith.mulf %47, %49 : vector<16x16xf32>
    %c0_31 = arith.constant 0 : index
    %c0_32 = arith.constant 0 : index
    %51 = vector.load %arg33[%c0_31, %c0_32] : memref<1x16xf32, #tpu.memory_space<vmem>>, vector<1x16xf32>
    %52 = vector.broadcast %51 : vector<1x16xf32> to vector<16x16xf32>
    %53 = arith.addf %50, %52 : vector<16x16xf32>
    %c0_33 = arith.constant 0 : index
    %c0_34 = arith.constant 0 : index
    %54 = vector.load %arg13[%c0_33, %c0_34] : memref<1x32xf32, #tpu.memory_space<vmem>>, vector<1x32xf32>
    %55 = arith.truncf %1 : vector<32x5xf32> to vector<32x5xbf16>
    %c0_35 = arith.constant 0 : index
    %c0_36 = arith.constant 0 : index
    %56 = vector.load %arg18[%c0_35, %c0_36] : memref<5x32xbf16, #tpu.memory_space<vmem>>, vector<5x32xbf16>
    %cst_37 = arith.constant dense<0.000000e+00> : vector<32x32xf32>
    %57 = tpu.matmul %55, %56, %cst_37 {dimension_numbers = #tpu.dot_dimension_numbers<[1], [0], [0], [1], [0, 0, 1, 1], [], []>} : vector<32x5xbf16>, vector<5x32xbf16>, vector<32x32xf32> -> vector<32x32xf32>
    %58 = vector.broadcast %54 : vector<1x32xf32> to vector<32x32xf32>
    %59 = arith.addf %58, %57 : vector<32x32xf32>
    %cst_38 = arith.constant 0.00999999977 : f32
    %60 = vector.broadcast %cst_38 : f32 to vector<32x32xf32>
    %61 = arith.mulf %60, %59 : vector<32x32xf32>
    %62 = arith.maximumf %59, %61 : vector<32x32xf32>
    %63 = arith.truncf %62 : vector<32x32xf32> to vector<32x32xbf16>
    %c0_39 = arith.constant 0 : index
    %c0_40 = arith.constant 0 : index
    %64 = vector.load %arg19[%c0_39, %c0_40] : memref<32x32xbf16, #tpu.memory_space<vmem>>, vector<32x32xbf16>
    %cst_41 = arith.constant dense<0.000000e+00> : vector<32x32xf32>
    %65 = tpu.matmul %63, %64, %cst_41 {dimension_numbers = #tpu.dot_dimension_numbers<[1], [0], [0], [1], [0, 0, 1, 1], [], []>} : vector<32x32xbf16>, vector<32x32xbf16>, vector<32x32xf32> -> vector<32x32xf32>
    %c0_42 = arith.constant 0 : index
    %c0_43 = arith.constant 0 : index
    %66 = vector.load %arg14[%c0_42, %c0_43] : memref<1x32xf32, #tpu.memory_space<vmem>>, vector<1x32xf32>
    %67 = vector.broadcast %66 : vector<1x32xf32> to vector<32x32xf32>
    %68 = arith.addf %65, %67 : vector<32x32xf32>
    %cst_44 = arith.constant 0.00999999977 : f32
    %69 = vector.broadcast %cst_44 : f32 to vector<32x32xf32>
    %70 = arith.mulf %69, %68 : vector<32x32xf32>
    %71 = arith.maximumf %68, %70 : vector<32x32xf32>
    %72 = arith.truncf %71 : vector<32x32xf32> to vector<32x32xbf16>
    %c0_45 = arith.constant 0 : index
    %c0_46 = arith.constant 0 : index
    %73 = vector.load %arg20[%c0_45, %c0_46] : memref<32x16xbf16, #tpu.memory_space<vmem>>, vector<32x16xbf16>
    %cst_47 = arith.constant dense<0.000000e+00> : vector<32x16xf32>
    %74 = tpu.matmul %72, %73, %cst_47 {dimension_numbers = #tpu.dot_dimension_numbers<[1], [0], [0], [1], [0, 0, 1, 1], [], []>} : vector<32x32xbf16>, vector<32x16xbf16>, vector<32x16xf32> -> vector<32x16xf32>
    %c0_48 = arith.constant 0 : index
    %c0_49 = arith.constant 0 : index
    %75 = vector.load %arg15[%c0_48, %c0_49] : memref<1x16xf32, #tpu.memory_space<vmem>>, vector<1x16xf32>
    %76 = vector.broadcast %75 : vector<1x16xf32> to vector<32x16xf32>
    %77 = arith.addf %74, %76 : vector<32x16xf32>
    %cst_50 = arith.constant dense<0.000000e+00> : vector<32xf32>
    %78 = vector.multi_reduction <add>, %77, %cst_50 [1] : vector<32x16xf32> to vector<32xf32>
    %79 = vector.shape_cast %78 : vector<32xf32> to vector<32x1xf32>
    %cst_51 = arith.constant 1.600000e+01 : f32
    %80 = vector.broadcast %cst_51 : f32 to vector<32x1xf32>
    %81 = arith.divf %79, %80 : vector<32x1xf32>
    %82 = arith.mulf %77, %77 : vector<32x16xf32>
    %cst_52 = arith.constant dense<0.000000e+00> : vector<32xf32>
    %83 = vector.multi_reduction <add>, %82, %cst_52 [1] : vector<32x16xf32> to vector<32xf32>
    %84 = vector.shape_cast %83 : vector<32xf32> to vector<32x1xf32>
    %cst_53 = arith.constant 1.600000e+01 : f32
    %85 = vector.broadcast %cst_53 : f32 to vector<32x1xf32>
    %86 = arith.divf %84, %85 : vector<32x1xf32>
    %87 = arith.mulf %81, %81 : vector<32x1xf32>
    %88 = arith.subf %86, %87 : vector<32x1xf32>
    %cst_54 = arith.constant 0.000000e+00 : f32
    %89 = vector.broadcast %cst_54 : f32 to vector<32x1xf32>
    %90 = arith.maximumf %88, %89 : vector<32x1xf32>
    %91 = vector.broadcast %81 : vector<32x1xf32> to vector<32x16xf32>
    %92 = arith.subf %77, %91 : vector<32x16xf32>
    %cst_55 = arith.constant 9.99999974E-6 : f32
    %93 = vector.broadcast %cst_55 : f32 to vector<32x1xf32>
    %94 = arith.addf %90, %93 : vector<32x1xf32>
    %95 = math.rsqrt %94 : vector<32x1xf32>
    %96 = vector.broadcast %95 : vector<32x1xf32> to vector<32x16xf32>
    %97 = arith.mulf %92, %96 : vector<32x16xf32>
    %c0_56 = arith.constant 0 : index
    %c0_57 = arith.constant 0 : index
    %98 = vector.load %arg17[%c0_56, %c0_57] : memref<1x16xf32, #tpu.memory_space<vmem>>, vector<1x16xf32>
    %99 = vector.broadcast %98 : vector<1x16xf32> to vector<32x16xf32>
    %100 = arith.mulf %97, %99 : vector<32x16xf32>
    %c0_58 = arith.constant 0 : index
    %c0_59 = arith.constant 0 : index
    %101 = vector.load %arg16[%c0_58, %c0_59] : memref<1x16xf32, #tpu.memory_space<vmem>>, vector<1x16xf32>
    %102 = vector.broadcast %101 : vector<1x16xf32> to vector<32x16xf32>
    %103 = arith.addf %100, %102 : vector<32x16xf32>
    %c0_60 = arith.constant 0 : index
    %c0_61 = arith.constant 0 : index
    %104 = vector.load %arg10[%c0_60, %c0_61] : memref<8x8xbf16, #tpu.memory_space<vmem>>, vector<8x8xbf16>
    %c0_62 = arith.constant 0 : index
    %c0_63 = arith.constant 0 : index
    %105 = vector.load %arg8[%c0_62, %c0_63] : memref<8x3xf32, #tpu.memory_space<vmem>>, vector<8x3xf32>
    %106 = arith.truncf %105 : vector<8x3xf32> to vector<8x3xbf16>
    %cst_64 = arith.constant dense<0.000000e+00> : vector<8x3xf32>
    %107 = tpu.matmul %104, %106, %cst_64 {dimension_numbers = #tpu.dot_dimension_numbers<[1], [0], [0], [1], [0, 0, 1, 1], [], []>} : vector<8x8xbf16>, vector<8x3xbf16>, vector<8x3xf32> -> vector<8x3xf32>
    %c0_65 = arith.constant 0 : index
    %c0_66 = arith.constant 0 : index
    %108 = vector.load %arg4[%c0_65, %c0_66] : memref<8x4xf32, #tpu.memory_space<vmem>>, vector<8x4xf32>
    %c0_67 = arith.constant 0 : index
    %c0_68 = arith.constant 0 : index
    %109 = vector.load %arg21[%c0_67, %c0_68] : memref<1x16xf32, #tpu.memory_space<vmem>>, vector<1x16xf32>
    %110 = arith.truncf %108 : vector<8x4xf32> to vector<8x4xbf16>
    %c0_69 = arith.constant 0 : index
    %c0_70 = arith.constant 0 : index
    %111 = vector.load %arg26[%c0_69, %c0_70] : memref<4x16xbf16, #tpu.memory_space<vmem>>, vector<4x16xbf16>
    %cst_71 = arith.constant dense<0.000000e+00> : vector<8x16xf32>
    %112 = tpu.matmul %110, %111, %cst_71 {dimension_numbers = #tpu.dot_dimension_numbers<[1], [0], [0], [1], [0, 0, 1, 1], [], []>} : vector<8x4xbf16>, vector<4x16xbf16>, vector<8x16xf32> -> vector<8x16xf32>
    %113 = vector.broadcast %109 : vector<1x16xf32> to vector<8x16xf32>
    %114 = arith.addf %113, %112 : vector<8x16xf32>
    %115 = arith.truncf %107 : vector<8x3xf32> to vector<8x3xbf16>
    %c0_72 = arith.constant 0 : index
    %c0_73 = arith.constant 0 : index
    %116 = vector.load %arg27[%c0_72, %c0_73] : memref<3x16xbf16, #tpu.memory_space<vmem>>, vector<3x16xbf16>
    %cst_74 = arith.constant dense<0.000000e+00> : vector<8x16xf32>
    %117 = tpu.matmul %115, %116, %cst_74 {dimension_numbers = #tpu.dot_dimension_numbers<[1], [0], [0], [1], [0, 0, 1, 1], [], []>} : vector<8x3xbf16>, vector<3x16xbf16>, vector<8x16xf32> -> vector<8x16xf32>
    %118 = arith.addf %114, %117 : vector<8x16xf32>
    %cst_75 = arith.constant 0.00999999977 : f32
    %119 = vector.broadcast %cst_75 : f32 to vector<8x16xf32>
    %120 = arith.mulf %119, %118 : vector<8x16xf32>
    %121 = arith.maximumf %118, %120 : vector<8x16xf32>
    %122 = arith.truncf %121 : vector<8x16xf32> to vector<8x16xbf16>
    %c0_76 = arith.constant 0 : index
    %c0_77 = arith.constant 0 : index
    %123 = vector.load %arg28[%c0_76, %c0_77] : memref<16x16xbf16, #tpu.memory_space<vmem>>, vector<16x16xbf16>
    %cst_78 = arith.constant dense<0.000000e+00> : vector<8x16xf32>
    %124 = tpu.matmul %122, %123, %cst_78 {dimension_numbers = #tpu.dot_dimension_numbers<[1], [0], [0], [1], [0, 0, 1, 1], [], []>} : vector<8x16xbf16>, vector<16x16xbf16>, vector<8x16xf32> -> vector<8x16xf32>
    %c0_79 = arith.constant 0 : index
    %c0_80 = arith.constant 0 : index
    %125 = vector.load %arg22[%c0_79, %c0_80] : memref<1x16xf32, #tpu.memory_space<vmem>>, vector<1x16xf32>
    %126 = vector.broadcast %125 : vector<1x16xf32> to vector<8x16xf32>
    %127 = arith.addf %124, %126 : vector<8x16xf32>
    %cst_81 = arith.constant 0.00999999977 : f32
    %128 = vector.broadcast %cst_81 : f32 to vector<8x16xf32>
    %129 = arith.mulf %128, %127 : vector<8x16xf32>
    %130 = arith.maximumf %127, %129 : vector<8x16xf32>
    %131 = arith.truncf %130 : vector<8x16xf32> to vector<8x16xbf16>
    %c0_82 = arith.constant 0 : index
    %c0_83 = arith.constant 0 : index
    %132 = vector.load %arg29[%c0_82, %c0_83] : memref<16x8xbf16, #tpu.memory_space<vmem>>, vector<16x8xbf16>
    %cst_84 = arith.constant dense<0.000000e+00> : vector<8x8xf32>
    %133 = tpu.matmul %131, %132, %cst_84 {dimension_numbers = #tpu.dot_dimension_numbers<[1], [0], [0], [1], [0, 0, 1, 1], [], []>} : vector<8x16xbf16>, vector<16x8xbf16>, vector<8x8xf32> -> vector<8x8xf32>
    %c0_85 = arith.constant 0 : index
    %c0_86 = arith.constant 0 : index
    %134 = vector.load %arg23[%c0_85, %c0_86] : memref<1x8xf32, #tpu.memory_space<vmem>>, vector<1x8xf32>
    %135 = vector.broadcast %134 : vector<1x8xf32> to vector<8x8xf32>
    %136 = arith.addf %133, %135 : vector<8x8xf32>
    %cst_87 = arith.constant dense<0.000000e+00> : vector<8xf32>
    %137 = vector.multi_reduction <add>, %136, %cst_87 [1] : vector<8x8xf32> to vector<8xf32>
    %138 = vector.shape_cast %137 : vector<8xf32> to vector<8x1xf32>
    %cst_88 = arith.constant 8.000000e+00 : f32
    %139 = vector.broadcast %cst_88 : f32 to vector<8x1xf32>
    %140 = arith.divf %138, %139 : vector<8x1xf32>
    %141 = arith.mulf %136, %136 : vector<8x8xf32>
    %cst_89 = arith.constant dense<0.000000e+00> : vector<8xf32>
    %142 = vector.multi_reduction <add>, %141, %cst_89 [1] : vector<8x8xf32> to vector<8xf32>
    %143 = vector.shape_cast %142 : vector<8xf32> to vector<8x1xf32>
    %cst_90 = arith.constant 8.000000e+00 : f32
    %144 = vector.broadcast %cst_90 : f32 to vector<8x1xf32>
    %145 = arith.divf %143, %144 : vector<8x1xf32>
    %146 = arith.mulf %140, %140 : vector<8x1xf32>
    %147 = arith.subf %145, %146 : vector<8x1xf32>
    %cst_91 = arith.constant 0.000000e+00 : f32
    %148 = vector.broadcast %cst_91 : f32 to vector<8x1xf32>
    %149 = arith.maximumf %147, %148 : vector<8x1xf32>
    %150 = vector.broadcast %140 : vector<8x1xf32> to vector<8x8xf32>
    %151 = arith.subf %136, %150 : vector<8x8xf32>
    %cst_92 = arith.constant 9.99999974E-6 : f32
    %152 = vector.broadcast %cst_92 : f32 to vector<8x1xf32>
    %153 = arith.addf %149, %152 : vector<8x1xf32>
    %154 = math.rsqrt %153 : vector<8x1xf32>
    %155 = vector.broadcast %154 : vector<8x1xf32> to vector<8x8xf32>
    %156 = arith.mulf %151, %155 : vector<8x8xf32>
    %c0_93 = arith.constant 0 : index
    %c0_94 = arith.constant 0 : index
    %157 = vector.load %arg25[%c0_93, %c0_94] : memref<1x8xf32, #tpu.memory_space<vmem>>, vector<1x8xf32>
    %158 = vector.broadcast %157 : vector<1x8xf32> to vector<8x8xf32>
    %159 = arith.mulf %156, %158 : vector<8x8xf32>
    %c0_95 = arith.constant 0 : index
    %c0_96 = arith.constant 0 : index
    %160 = vector.load %arg24[%c0_95, %c0_96] : memref<1x8xf32, #tpu.memory_space<vmem>>, vector<1x8xf32>
    %161 = vector.broadcast %160 : vector<1x8xf32> to vector<8x8xf32>
    %162 = arith.addf %159, %161 : vector<8x8xf32>
    %c0_97 = arith.constant 0 : index
    %c0_98 = arith.constant 0 : index
    %163 = vector.load %arg1[%c0_97, %c0_98] : memref<16x8xbf16, #tpu.memory_space<vmem>>, vector<16x8xbf16>
    %164 = arith.truncf %162 : vector<8x8xf32> to vector<8x8xbf16>
    %cst_99 = arith.constant dense<0.000000e+00> : vector<16x8xf32>
    %165 = tpu.matmul %163, %164, %cst_99 {dimension_numbers = #tpu.dot_dimension_numbers<[1], [0], [0], [1], [0, 0, 1, 1], [], []>} : vector<16x8xbf16>, vector<8x8xbf16>, vector<16x8xf32> -> vector<16x8xf32>
    %c0_100 = arith.constant 0 : index
    %c0_101 = arith.constant 0 : index
    %166 = vector.load %arg11[%c0_100, %c0_101] : memref<8x8xbf16, #tpu.memory_space<vmem>>, vector<8x8xbf16>
    %c0_102 = arith.constant 0 : index
    %c0_103 = arith.constant 0 : index
    %167 = vector.load %arg9[%c0_102, %c0_103] : memref<8x3xf32, #tpu.memory_space<vmem>>, vector<8x3xf32>
    %168 = arith.truncf %167 : vector<8x3xf32> to vector<8x3xbf16>
    %cst_104 = arith.constant dense<0.000000e+00> : vector<8x3xf32>
    %169 = tpu.matmul %166, %168, %cst_104 {dimension_numbers = #tpu.dot_dimension_numbers<[1], [0], [0], [1], [0, 0, 1, 1], [], []>} : vector<8x8xbf16>, vector<8x3xbf16>, vector<8x3xf32> -> vector<8x3xf32>
    %c0_105 = arith.constant 0 : index
    %c0_106 = arith.constant 0 : index
    %170 = vector.load %arg6[%c0_105, %c0_106] : memref<8x4xf32, #tpu.memory_space<vmem>>, vector<8x4xf32>
    %c0_107 = arith.constant 0 : index
    %c0_108 = arith.constant 0 : index
    %171 = vector.load %arg38[%c0_107, %c0_108] : memref<1x16xf32, #tpu.memory_space<vmem>>, vector<1x16xf32>
    %172 = arith.truncf %170 : vector<8x4xf32> to vector<8x4xbf16>
    %c0_109 = arith.constant 0 : index
    %c0_110 = arith.constant 0 : index
    %173 = vector.load %arg43[%c0_109, %c0_110] : memref<4x16xbf16, #tpu.memory_space<vmem>>, vector<4x16xbf16>
    %cst_111 = arith.constant dense<0.000000e+00> : vector<8x16xf32>
    %174 = tpu.matmul %172, %173, %cst_111 {dimension_numbers = #tpu.dot_dimension_numbers<[1], [0], [0], [1], [0, 0, 1, 1], [], []>} : vector<8x4xbf16>, vector<4x16xbf16>, vector<8x16xf32> -> vector<8x16xf32>
    %175 = vector.broadcast %171 : vector<1x16xf32> to vector<8x16xf32>
    %176 = arith.addf %175, %174 : vector<8x16xf32>
    %177 = arith.truncf %169 : vector<8x3xf32> to vector<8x3xbf16>
    %c0_112 = arith.constant 0 : index
    %c0_113 = arith.constant 0 : index
    %178 = vector.load %arg44[%c0_112, %c0_113] : memref<3x16xbf16, #tpu.memory_space<vmem>>, vector<3x16xbf16>
    %cst_114 = arith.constant dense<0.000000e+00> : vector<8x16xf32>
    %179 = tpu.matmul %177, %178, %cst_114 {dimension_numbers = #tpu.dot_dimension_numbers<[1], [0], [0], [1], [0, 0, 1, 1], [], []>} : vector<8x3xbf16>, vector<3x16xbf16>, vector<8x16xf32> -> vector<8x16xf32>
    %180 = arith.addf %176, %179 : vector<8x16xf32>
    %cst_115 = arith.constant 0.00999999977 : f32
    %181 = vector.broadcast %cst_115 : f32 to vector<8x16xf32>
    %182 = arith.mulf %181, %180 : vector<8x16xf32>
    %183 = arith.maximumf %180, %182 : vector<8x16xf32>
    %184 = arith.truncf %183 : vector<8x16xf32> to vector<8x16xbf16>
    %c0_116 = arith.constant 0 : index
    %c0_117 = arith.constant 0 : index
    %185 = vector.load %arg45[%c0_116, %c0_117] : memref<16x16xbf16, #tpu.memory_space<vmem>>, vector<16x16xbf16>
    %cst_118 = arith.constant dense<0.000000e+00> : vector<8x16xf32>
    %186 = tpu.matmul %184, %185, %cst_118 {dimension_numbers = #tpu.dot_dimension_numbers<[1], [0], [0], [1], [0, 0, 1, 1], [], []>} : vector<8x16xbf16>, vector<16x16xbf16>, vector<8x16xf32> -> vector<8x16xf32>
    %c0_119 = arith.constant 0 : index
    %c0_120 = arith.constant 0 : index
    %187 = vector.load %arg39[%c0_119, %c0_120] : memref<1x16xf32, #tpu.memory_space<vmem>>, vector<1x16xf32>
    %188 = vector.broadcast %187 : vector<1x16xf32> to vector<8x16xf32>
    %189 = arith.addf %186, %188 : vector<8x16xf32>
    %cst_121 = arith.constant 0.00999999977 : f32
    %190 = vector.broadcast %cst_121 : f32 to vector<8x16xf32>
    %191 = arith.mulf %190, %189 : vector<8x16xf32>
    %192 = arith.maximumf %189, %191 : vector<8x16xf32>
    %193 = arith.truncf %192 : vector<8x16xf32> to vector<8x16xbf16>
    %c0_122 = arith.constant 0 : index
    %c0_123 = arith.constant 0 : index
    %194 = vector.load %arg46[%c0_122, %c0_123] : memref<16x8xbf16, #tpu.memory_space<vmem>>, vector<16x8xbf16>
    %cst_124 = arith.constant dense<0.000000e+00> : vector<8x8xf32>
    %195 = tpu.matmul %193, %194, %cst_124 {dimension_numbers = #tpu.dot_dimension_numbers<[1], [0], [0], [1], [0, 0, 1, 1], [], []>} : vector<8x16xbf16>, vector<16x8xbf16>, vector<8x8xf32> -> vector<8x8xf32>
    %c0_125 = arith.constant 0 : index
    %c0_126 = arith.constant 0 : index
    %196 = vector.load %arg40[%c0_125, %c0_126] : memref<1x8xf32, #tpu.memory_space<vmem>>, vector<1x8xf32>
    %197 = vector.broadcast %196 : vector<1x8xf32> to vector<8x8xf32>
    %198 = arith.addf %195, %197 : vector<8x8xf32>
    %cst_127 = arith.constant dense<0.000000e+00> : vector<8xf32>
    %199 = vector.multi_reduction <add>, %198, %cst_127 [1] : vector<8x8xf32> to vector<8xf32>
    %200 = vector.shape_cast %199 : vector<8xf32> to vector<8x1xf32>
    %cst_128 = arith.constant 8.000000e+00 : f32
    %201 = vector.broadcast %cst_128 : f32 to vector<8x1xf32>
    %202 = arith.divf %200, %201 : vector<8x1xf32>
    %203 = arith.mulf %198, %198 : vector<8x8xf32>
    %cst_129 = arith.constant dense<0.000000e+00> : vector<8xf32>
    %204 = vector.multi_reduction <add>, %203, %cst_129 [1] : vector<8x8xf32> to vector<8xf32>
    %205 = vector.shape_cast %204 : vector<8xf32> to vector<8x1xf32>
    %cst_130 = arith.constant 8.000000e+00 : f32
    %206 = vector.broadcast %cst_130 : f32 to vector<8x1xf32>
    %207 = arith.divf %205, %206 : vector<8x1xf32>
    %208 = arith.mulf %202, %202 : vector<8x1xf32>
    %209 = arith.subf %207, %208 : vector<8x1xf32>
    %cst_131 = arith.constant 0.000000e+00 : f32
    %210 = vector.broadcast %cst_131 : f32 to vector<8x1xf32>
    %211 = arith.maximumf %209, %210 : vector<8x1xf32>
    %212 = vector.broadcast %202 : vector<8x1xf32> to vector<8x8xf32>
    %213 = arith.subf %198, %212 : vector<8x8xf32>
    %cst_132 = arith.constant 9.99999974E-6 : f32
    %214 = vector.broadcast %cst_132 : f32 to vector<8x1xf32>
    %215 = arith.addf %211, %214 : vector<8x1xf32>
    %216 = math.rsqrt %215 : vector<8x1xf32>
    %217 = vector.broadcast %216 : vector<8x1xf32> to vector<8x8xf32>
    %218 = arith.mulf %213, %217 : vector<8x8xf32>
    %c0_133 = arith.constant 0 : index
    %c0_134 = arith.constant 0 : index
    %219 = vector.load %arg42[%c0_133, %c0_134] : memref<1x8xf32, #tpu.memory_space<vmem>>, vector<1x8xf32>
    %220 = vector.broadcast %219 : vector<1x8xf32> to vector<8x8xf32>
    %221 = arith.mulf %218, %220 : vector<8x8xf32>
    %c0_135 = arith.constant 0 : index
    %c0_136 = arith.constant 0 : index
    %222 = vector.load %arg41[%c0_135, %c0_136] : memref<1x8xf32, #tpu.memory_space<vmem>>, vector<1x8xf32>
    %223 = vector.broadcast %222 : vector<1x8xf32> to vector<8x8xf32>
    %224 = arith.addf %221, %223 : vector<8x8xf32>
    %c0_137 = arith.constant 0 : index
    %c0_138 = arith.constant 0 : index
    %225 = vector.load %arg3[%c0_137, %c0_138] : memref<16x8xbf16, #tpu.memory_space<vmem>>, vector<16x8xbf16>
    %226 = arith.truncf %224 : vector<8x8xf32> to vector<8x8xbf16>
    %cst_139 = arith.constant dense<0.000000e+00> : vector<16x8xf32>
    %227 = tpu.matmul %225, %226, %cst_139 {dimension_numbers = #tpu.dot_dimension_numbers<[1], [0], [0], [1], [0, 0, 1, 1], [], []>} : vector<16x8xbf16>, vector<8x8xbf16>, vector<16x8xf32> -> vector<16x8xf32>
    %228 = arith.truncf %53 : vector<16x16xf32> to vector<16x16xbf16>
    %cst_140 = arith.constant dense<0.000000e+00> : vector<64x16xf32>
    %229 = tpu.matmul %2, %228, %cst_140 {dimension_numbers = #tpu.dot_dimension_numbers<[1], [0], [0], [1], [0, 0, 1, 1], [], []>} : vector<64x16xbf16>, vector<16x16xbf16>, vector<64x16xf32> -> vector<64x16xf32>
    %230 = vector.extract_strided_slice %229 {offsets = [0, 0], sizes = [32, 16], strides = [1, 1]} : vector<64x16xf32> to vector<32x16xf32>
    %231 = vector.extract_strided_slice %229 {offsets = [32, 0], sizes = [32, 16], strides = [1, 1]} : vector<64x16xf32> to vector<32x16xf32>
    %c0_141 = arith.constant 0 : index
    %c0_142 = arith.constant 0 : index
    %232 = vector.load %arg53[%c0_141, %c0_142] : memref<1x32xf32, #tpu.memory_space<vmem>>, vector<1x32xf32>
    %233 = arith.truncf %103 : vector<32x16xf32> to vector<32x16xbf16>
    %c0_143 = arith.constant 0 : index
    %c0_144 = arith.constant 0 : index
    %234 = vector.load %arg58[%c0_143, %c0_144] : memref<16x32xbf16, #tpu.memory_space<vmem>>, vector<16x32xbf16>
    %cst_145 = arith.constant dense<0.000000e+00> : vector<32x32xf32>
    %235 = tpu.matmul %233, %234, %cst_145 {dimension_numbers = #tpu.dot_dimension_numbers<[1], [0], [0], [1], [0, 0, 1, 1], [], []>} : vector<32x16xbf16>, vector<16x32xbf16>, vector<32x32xf32> -> vector<32x32xf32>
    %236 = vector.broadcast %232 : vector<1x32xf32> to vector<32x32xf32>
    %237 = arith.addf %236, %235 : vector<32x32xf32>
    %238 = arith.truncf %230 : vector<32x16xf32> to vector<32x16xbf16>
    %c0_146 = arith.constant 0 : index
    %c0_147 = arith.constant 0 : index
    %239 = vector.load %arg59[%c0_146, %c0_147] : memref<16x32xbf16, #tpu.memory_space<vmem>>, vector<16x32xbf16>
    %cst_148 = arith.constant dense<0.000000e+00> : vector<32x32xf32>
    %240 = tpu.matmul %238, %239, %cst_148 {dimension_numbers = #tpu.dot_dimension_numbers<[1], [0], [0], [1], [0, 0, 1, 1], [], []>} : vector<32x16xbf16>, vector<16x32xbf16>, vector<32x32xf32> -> vector<32x32xf32>
    %241 = arith.addf %237, %240 : vector<32x32xf32>
    %242 = arith.truncf %231 : vector<32x16xf32> to vector<32x16xbf16>
    %c0_149 = arith.constant 0 : index
    %c0_150 = arith.constant 0 : index
    %243 = vector.load %arg60[%c0_149, %c0_150] : memref<16x32xbf16, #tpu.memory_space<vmem>>, vector<16x32xbf16>
    %cst_151 = arith.constant dense<0.000000e+00> : vector<32x32xf32>
    %244 = tpu.matmul %242, %243, %cst_151 {dimension_numbers = #tpu.dot_dimension_numbers<[1], [0], [0], [1], [0, 0, 1, 1], [], []>} : vector<32x16xbf16>, vector<16x32xbf16>, vector<32x32xf32> -> vector<32x32xf32>
    %245 = arith.addf %241, %244 : vector<32x32xf32>
    %cst_152 = arith.constant 0.00999999977 : f32
    %246 = vector.broadcast %cst_152 : f32 to vector<32x32xf32>
    %247 = arith.mulf %246, %245 : vector<32x32xf32>
    %248 = arith.maximumf %245, %247 : vector<32x32xf32>
    %249 = arith.truncf %248 : vector<32x32xf32> to vector<32x32xbf16>
    %c0_153 = arith.constant 0 : index
    %c0_154 = arith.constant 0 : index
    %250 = vector.load %arg61[%c0_153, %c0_154] : memref<32x32xbf16, #tpu.memory_space<vmem>>, vector<32x32xbf16>
    %cst_155 = arith.constant dense<0.000000e+00> : vector<32x32xf32>
    %251 = tpu.matmul %249, %250, %cst_155 {dimension_numbers = #tpu.dot_dimension_numbers<[1], [0], [0], [1], [0, 0, 1, 1], [], []>} : vector<32x32xbf16>, vector<32x32xbf16>, vector<32x32xf32> -> vector<32x32xf32>
    %c0_156 = arith.constant 0 : index
    %c0_157 = arith.constant 0 : index
    %252 = vector.load %arg54[%c0_156, %c0_157] : memref<1x32xf32, #tpu.memory_space<vmem>>, vector<1x32xf32>
    %253 = vector.broadcast %252 : vector<1x32xf32> to vector<32x32xf32>
    %254 = arith.addf %251, %253 : vector<32x32xf32>
    %cst_158 = arith.constant 0.00999999977 : f32
    %255 = vector.broadcast %cst_158 : f32 to vector<32x32xf32>
    %256 = arith.mulf %255, %254 : vector<32x32xf32>
    %257 = arith.maximumf %254, %256 : vector<32x32xf32>
    %258 = arith.truncf %257 : vector<32x32xf32> to vector<32x32xbf16>
    %c0_159 = arith.constant 0 : index
    %c0_160 = arith.constant 0 : index
    %259 = vector.load %arg62[%c0_159, %c0_160] : memref<32x16xbf16, #tpu.memory_space<vmem>>, vector<32x16xbf16>
    %cst_161 = arith.constant dense<0.000000e+00> : vector<32x16xf32>
    %260 = tpu.matmul %258, %259, %cst_161 {dimension_numbers = #tpu.dot_dimension_numbers<[1], [0], [0], [1], [0, 0, 1, 1], [], []>} : vector<32x32xbf16>, vector<32x16xbf16>, vector<32x16xf32> -> vector<32x16xf32>
    %c0_162 = arith.constant 0 : index
    %c0_163 = arith.constant 0 : index
    %261 = vector.load %arg55[%c0_162, %c0_163] : memref<1x16xf32, #tpu.memory_space<vmem>>, vector<1x16xf32>
    %262 = vector.broadcast %261 : vector<1x16xf32> to vector<32x16xf32>
    %263 = arith.addf %260, %262 : vector<32x16xf32>
    %cst_164 = arith.constant dense<0.000000e+00> : vector<32xf32>
    %264 = vector.multi_reduction <add>, %263, %cst_164 [1] : vector<32x16xf32> to vector<32xf32>
    %265 = vector.shape_cast %264 : vector<32xf32> to vector<32x1xf32>
    %cst_165 = arith.constant 1.600000e+01 : f32
    %266 = vector.broadcast %cst_165 : f32 to vector<32x1xf32>
    %267 = arith.divf %265, %266 : vector<32x1xf32>
    %268 = arith.mulf %263, %263 : vector<32x16xf32>
    %cst_166 = arith.constant dense<0.000000e+00> : vector<32xf32>
    %269 = vector.multi_reduction <add>, %268, %cst_166 [1] : vector<32x16xf32> to vector<32xf32>
    %270 = vector.shape_cast %269 : vector<32xf32> to vector<32x1xf32>
    %cst_167 = arith.constant 1.600000e+01 : f32
    %271 = vector.broadcast %cst_167 : f32 to vector<32x1xf32>
    %272 = arith.divf %270, %271 : vector<32x1xf32>
    %273 = arith.mulf %267, %267 : vector<32x1xf32>
    %274 = arith.subf %272, %273 : vector<32x1xf32>
    %cst_168 = arith.constant 0.000000e+00 : f32
    %275 = vector.broadcast %cst_168 : f32 to vector<32x1xf32>
    %276 = arith.maximumf %274, %275 : vector<32x1xf32>
    %277 = vector.broadcast %267 : vector<32x1xf32> to vector<32x16xf32>
    %278 = arith.subf %263, %277 : vector<32x16xf32>
    %cst_169 = arith.constant 9.99999974E-6 : f32
    %279 = vector.broadcast %cst_169 : f32 to vector<32x1xf32>
    %280 = arith.addf %276, %279 : vector<32x1xf32>
    %281 = math.rsqrt %280 : vector<32x1xf32>
    %282 = vector.broadcast %281 : vector<32x1xf32> to vector<32x16xf32>
    %283 = arith.mulf %278, %282 : vector<32x16xf32>
    %c0_170 = arith.constant 0 : index
    %c0_171 = arith.constant 0 : index
    %284 = vector.load %arg57[%c0_170, %c0_171] : memref<1x16xf32, #tpu.memory_space<vmem>>, vector<1x16xf32>
    %285 = vector.broadcast %284 : vector<1x16xf32> to vector<32x16xf32>
    %286 = arith.mulf %283, %285 : vector<32x16xf32>
    %c0_172 = arith.constant 0 : index
    %c0_173 = arith.constant 0 : index
    %287 = vector.load %arg56[%c0_172, %c0_173] : memref<1x16xf32, #tpu.memory_space<vmem>>, vector<1x16xf32>
    %288 = vector.broadcast %287 : vector<1x16xf32> to vector<32x16xf32>
    %289 = arith.addf %286, %288 : vector<32x16xf32>
    %290 = arith.addf %289, %103 : vector<32x16xf32>
    %291 = arith.truncf %290 : vector<32x16xf32> to vector<32x16xbf16>
    %cst_174 = arith.constant dense<0.000000e+00> : vector<16x16xf32>
    %292 = tpu.matmul %3, %291, %cst_174 {dimension_numbers = #tpu.dot_dimension_numbers<[1], [0], [0], [1], [0, 0, 1, 1], [], []>} : vector<16x32xbf16>, vector<32x16xbf16>, vector<16x16xf32> -> vector<16x16xf32>
    %c0_175 = arith.constant 0 : index
    %c0_176 = arith.constant 0 : index
    %293 = vector.load %arg73[%c0_175, %c0_176] : memref<1x32xf32, #tpu.memory_space<vmem>>, vector<1x32xf32>
    %294 = arith.truncf %53 : vector<16x16xf32> to vector<16x16xbf16>
    %c0_177 = arith.constant 0 : index
    %c0_178 = arith.constant 0 : index
    %295 = vector.load %arg78[%c0_177, %c0_178] : memref<16x32xbf16, #tpu.memory_space<vmem>>, vector<16x32xbf16>
    %cst_179 = arith.constant dense<0.000000e+00> : vector<16x32xf32>
    %296 = tpu.matmul %294, %295, %cst_179 {dimension_numbers = #tpu.dot_dimension_numbers<[1], [0], [0], [1], [0, 0, 1, 1], [], []>} : vector<16x16xbf16>, vector<16x32xbf16>, vector<16x32xf32> -> vector<16x32xf32>
    %297 = vector.broadcast %293 : vector<1x32xf32> to vector<16x32xf32>
    %298 = arith.addf %297, %296 : vector<16x32xf32>
    %299 = arith.truncf %292 : vector<16x16xf32> to vector<16x16xbf16>
    %c0_180 = arith.constant 0 : index
    %c0_181 = arith.constant 0 : index
    %300 = vector.load %arg79[%c0_180, %c0_181] : memref<16x32xbf16, #tpu.memory_space<vmem>>, vector<16x32xbf16>
    %cst_182 = arith.constant dense<0.000000e+00> : vector<16x32xf32>
    %301 = tpu.matmul %299, %300, %cst_182 {dimension_numbers = #tpu.dot_dimension_numbers<[1], [0], [0], [1], [0, 0, 1, 1], [], []>} : vector<16x16xbf16>, vector<16x32xbf16>, vector<16x32xf32> -> vector<16x32xf32>
    %302 = arith.addf %298, %301 : vector<16x32xf32>
    %303 = arith.truncf %165 : vector<16x8xf32> to vector<16x8xbf16>
    %c0_183 = arith.constant 0 : index
    %c0_184 = arith.constant 0 : index
    %304 = vector.load %arg80[%c0_183, %c0_184] : memref<8x32xbf16, #tpu.memory_space<vmem>>, vector<8x32xbf16>
    %cst_185 = arith.constant dense<0.000000e+00> : vector<16x32xf32>
    %305 = tpu.matmul %303, %304, %cst_185 {dimension_numbers = #tpu.dot_dimension_numbers<[1], [0], [0], [1], [0, 0, 1, 1], [], []>} : vector<16x8xbf16>, vector<8x32xbf16>, vector<16x32xf32> -> vector<16x32xf32>
    %306 = arith.addf %302, %305 : vector<16x32xf32>
    %307 = arith.truncf %227 : vector<16x8xf32> to vector<16x8xbf16>
    %c0_186 = arith.constant 0 : index
    %c0_187 = arith.constant 0 : index
    %308 = vector.load %arg81[%c0_186, %c0_187] : memref<8x32xbf16, #tpu.memory_space<vmem>>, vector<8x32xbf16>
    %cst_188 = arith.constant dense<0.000000e+00> : vector<16x32xf32>
    %309 = tpu.matmul %307, %308, %cst_188 {dimension_numbers = #tpu.dot_dimension_numbers<[1], [0], [0], [1], [0, 0, 1, 1], [], []>} : vector<16x8xbf16>, vector<8x32xbf16>, vector<16x32xf32> -> vector<16x32xf32>
    %310 = arith.addf %306, %309 : vector<16x32xf32>
    %cst_189 = arith.constant 0.00999999977 : f32
    %311 = vector.broadcast %cst_189 : f32 to vector<16x32xf32>
    %312 = arith.mulf %311, %310 : vector<16x32xf32>
    %313 = arith.maximumf %310, %312 : vector<16x32xf32>
    %314 = arith.truncf %313 : vector<16x32xf32> to vector<16x32xbf16>
    %c0_190 = arith.constant 0 : index
    %c0_191 = arith.constant 0 : index
    %315 = vector.load %arg82[%c0_190, %c0_191] : memref<32x32xbf16, #tpu.memory_space<vmem>>, vector<32x32xbf16>
    %cst_192 = arith.constant dense<0.000000e+00> : vector<16x32xf32>
    %316 = tpu.matmul %314, %315, %cst_192 {dimension_numbers = #tpu.dot_dimension_numbers<[1], [0], [0], [1], [0, 0, 1, 1], [], []>} : vector<16x32xbf16>, vector<32x32xbf16>, vector<16x32xf32> -> vector<16x32xf32>
    %c0_193 = arith.constant 0 : index
    %c0_194 = arith.constant 0 : index
    %317 = vector.load %arg74[%c0_193, %c0_194] : memref<1x32xf32, #tpu.memory_space<vmem>>, vector<1x32xf32>
    %318 = vector.broadcast %317 : vector<1x32xf32> to vector<16x32xf32>
    %319 = arith.addf %316, %318 : vector<16x32xf32>
    %cst_195 = arith.constant 0.00999999977 : f32
    %320 = vector.broadcast %cst_195 : f32 to vector<16x32xf32>
    %321 = arith.mulf %320, %319 : vector<16x32xf32>
    %322 = arith.maximumf %319, %321 : vector<16x32xf32>
    %323 = arith.truncf %322 : vector<16x32xf32> to vector<16x32xbf16>
    %c0_196 = arith.constant 0 : index
    %c0_197 = arith.constant 0 : index
    %324 = vector.load %arg83[%c0_196, %c0_197] : memref<32x16xbf16, #tpu.memory_space<vmem>>, vector<32x16xbf16>
    %cst_198 = arith.constant dense<0.000000e+00> : vector<16x16xf32>
    %325 = tpu.matmul %323, %324, %cst_198 {dimension_numbers = #tpu.dot_dimension_numbers<[1], [0], [0], [1], [0, 0, 1, 1], [], []>} : vector<16x32xbf16>, vector<32x16xbf16>, vector<16x16xf32> -> vector<16x16xf32>
    %c0_199 = arith.constant 0 : index
    %c0_200 = arith.constant 0 : index
    %326 = vector.load %arg75[%c0_199, %c0_200] : memref<1x16xf32, #tpu.memory_space<vmem>>, vector<1x16xf32>
    %327 = vector.broadcast %326 : vector<1x16xf32> to vector<16x16xf32>
    %328 = arith.addf %325, %327 : vector<16x16xf32>
    %cst_201 = arith.constant dense<0.000000e+00> : vector<16xf32>
    %329 = vector.multi_reduction <add>, %328, %cst_201 [1] : vector<16x16xf32> to vector<16xf32>
    %330 = vector.shape_cast %329 : vector<16xf32> to vector<16x1xf32>
    %cst_202 = arith.constant 1.600000e+01 : f32
    %331 = vector.broadcast %cst_202 : f32 to vector<16x1xf32>
    %332 = arith.divf %330, %331 : vector<16x1xf32>
    %333 = arith.mulf %328, %328 : vector<16x16xf32>
    %cst_203 = arith.constant dense<0.000000e+00> : vector<16xf32>
    %334 = vector.multi_reduction <add>, %333, %cst_203 [1] : vector<16x16xf32> to vector<16xf32>
    %335 = vector.shape_cast %334 : vector<16xf32> to vector<16x1xf32>
    %cst_204 = arith.constant 1.600000e+01 : f32
    %336 = vector.broadcast %cst_204 : f32 to vector<16x1xf32>
    %337 = arith.divf %335, %336 : vector<16x1xf32>
    %338 = arith.mulf %332, %332 : vector<16x1xf32>
    %339 = arith.subf %337, %338 : vector<16x1xf32>
    %cst_205 = arith.constant 0.000000e+00 : f32
    %340 = vector.broadcast %cst_205 : f32 to vector<16x1xf32>
    %341 = arith.maximumf %339, %340 : vector<16x1xf32>
    %342 = vector.broadcast %332 : vector<16x1xf32> to vector<16x16xf32>
    %343 = arith.subf %328, %342 : vector<16x16xf32>
    %cst_206 = arith.constant 9.99999974E-6 : f32
    %344 = vector.broadcast %cst_206 : f32 to vector<16x1xf32>
    %345 = arith.addf %341, %344 : vector<16x1xf32>
    %346 = math.rsqrt %345 : vector<16x1xf32>
    %347 = vector.broadcast %346 : vector<16x1xf32> to vector<16x16xf32>
    %348 = arith.mulf %343, %347 : vector<16x16xf32>
    %c0_207 = arith.constant 0 : index
    %c0_208 = arith.constant 0 : index
    %349 = vector.load %arg77[%c0_207, %c0_208] : memref<1x16xf32, #tpu.memory_space<vmem>>, vector<1x16xf32>
    %350 = vector.broadcast %349 : vector<1x16xf32> to vector<16x16xf32>
    %351 = arith.mulf %348, %350 : vector<16x16xf32>
    %c0_209 = arith.constant 0 : index
    %c0_210 = arith.constant 0 : index
    %352 = vector.load %arg76[%c0_209, %c0_210] : memref<1x16xf32, #tpu.memory_space<vmem>>, vector<1x16xf32>
    %353 = vector.broadcast %352 : vector<1x16xf32> to vector<16x16xf32>
    %354 = arith.addf %351, %353 : vector<16x16xf32>
    %355 = arith.addf %354, %53 : vector<16x16xf32>
    %356 = arith.truncf %355 : vector<16x16xf32> to vector<16x16xbf16>
    %cst_211 = arith.constant dense<0.000000e+00> : vector<64x16xf32>
    %357 = tpu.matmul %2, %356, %cst_211 {dimension_numbers = #tpu.dot_dimension_numbers<[1], [0], [0], [1], [0, 0, 1, 1], [], []>} : vector<64x16xbf16>, vector<16x16xbf16>, vector<64x16xf32> -> vector<64x16xf32>
    %358 = vector.extract_strided_slice %357 {offsets = [0, 0], sizes = [32, 16], strides = [1, 1]} : vector<64x16xf32> to vector<32x16xf32>
    %359 = vector.extract_strided_slice %357 {offsets = [32, 0], sizes = [32, 16], strides = [1, 1]} : vector<64x16xf32> to vector<32x16xf32>
    %c0_212 = arith.constant 0 : index
    %c0_213 = arith.constant 0 : index
    %360 = vector.load %arg63[%c0_212, %c0_213] : memref<1x32xf32, #tpu.memory_space<vmem>>, vector<1x32xf32>
    %361 = arith.truncf %290 : vector<32x16xf32> to vector<32x16xbf16>
    %c0_214 = arith.constant 0 : index
    %c0_215 = arith.constant 0 : index
    %362 = vector.load %arg68[%c0_214, %c0_215] : memref<16x32xbf16, #tpu.memory_space<vmem>>, vector<16x32xbf16>
    %cst_216 = arith.constant dense<0.000000e+00> : vector<32x32xf32>
    %363 = tpu.matmul %361, %362, %cst_216 {dimension_numbers = #tpu.dot_dimension_numbers<[1], [0], [0], [1], [0, 0, 1, 1], [], []>} : vector<32x16xbf16>, vector<16x32xbf16>, vector<32x32xf32> -> vector<32x32xf32>
    %364 = vector.broadcast %360 : vector<1x32xf32> to vector<32x32xf32>
    %365 = arith.addf %364, %363 : vector<32x32xf32>
    %366 = arith.truncf %358 : vector<32x16xf32> to vector<32x16xbf16>
    %c0_217 = arith.constant 0 : index
    %c0_218 = arith.constant 0 : index
    %367 = vector.load %arg69[%c0_217, %c0_218] : memref<16x32xbf16, #tpu.memory_space<vmem>>, vector<16x32xbf16>
    %cst_219 = arith.constant dense<0.000000e+00> : vector<32x32xf32>
    %368 = tpu.matmul %366, %367, %cst_219 {dimension_numbers = #tpu.dot_dimension_numbers<[1], [0], [0], [1], [0, 0, 1, 1], [], []>} : vector<32x16xbf16>, vector<16x32xbf16>, vector<32x32xf32> -> vector<32x32xf32>
    %369 = arith.addf %365, %368 : vector<32x32xf32>
    %370 = arith.truncf %359 : vector<32x16xf32> to vector<32x16xbf16>
    %c0_220 = arith.constant 0 : index
    %c0_221 = arith.constant 0 : index
    %371 = vector.load %arg70[%c0_220, %c0_221] : memref<16x32xbf16, #tpu.memory_space<vmem>>, vector<16x32xbf16>
    %cst_222 = arith.constant dense<0.000000e+00> : vector<32x32xf32>
    %372 = tpu.matmul %370, %371, %cst_222 {dimension_numbers = #tpu.dot_dimension_numbers<[1], [0], [0], [1], [0, 0, 1, 1], [], []>} : vector<32x16xbf16>, vector<16x32xbf16>, vector<32x32xf32> -> vector<32x32xf32>
    %373 = arith.addf %369, %372 : vector<32x32xf32>
    %cst_223 = arith.constant 0.00999999977 : f32
    %374 = vector.broadcast %cst_223 : f32 to vector<32x32xf32>
    %375 = arith.mulf %374, %373 : vector<32x32xf32>
    %376 = arith.maximumf %373, %375 : vector<32x32xf32>
    %377 = arith.truncf %376 : vector<32x32xf32> to vector<32x32xbf16>
    %c0_224 = arith.constant 0 : index
    %c0_225 = arith.constant 0 : index
    %378 = vector.load %arg71[%c0_224, %c0_225] : memref<32x32xbf16, #tpu.memory_space<vmem>>, vector<32x32xbf16>
    %cst_226 = arith.constant dense<0.000000e+00> : vector<32x32xf32>
    %379 = tpu.matmul %377, %378, %cst_226 {dimension_numbers = #tpu.dot_dimension_numbers<[1], [0], [0], [1], [0, 0, 1, 1], [], []>} : vector<32x32xbf16>, vector<32x32xbf16>, vector<32x32xf32> -> vector<32x32xf32>
    %c0_227 = arith.constant 0 : index
    %c0_228 = arith.constant 0 : index
    %380 = vector.load %arg64[%c0_227, %c0_228] : memref<1x32xf32, #tpu.memory_space<vmem>>, vector<1x32xf32>
    %381 = vector.broadcast %380 : vector<1x32xf32> to vector<32x32xf32>
    %382 = arith.addf %379, %381 : vector<32x32xf32>
    %cst_229 = arith.constant 0.00999999977 : f32
    %383 = vector.broadcast %cst_229 : f32 to vector<32x32xf32>
    %384 = arith.mulf %383, %382 : vector<32x32xf32>
    %385 = arith.maximumf %382, %384 : vector<32x32xf32>
    %386 = arith.truncf %385 : vector<32x32xf32> to vector<32x32xbf16>
    %c0_230 = arith.constant 0 : index
    %c0_231 = arith.constant 0 : index
    %387 = vector.load %arg72[%c0_230, %c0_231] : memref<32x16xbf16, #tpu.memory_space<vmem>>, vector<32x16xbf16>
    %cst_232 = arith.constant dense<0.000000e+00> : vector<32x16xf32>
    %388 = tpu.matmul %386, %387, %cst_232 {dimension_numbers = #tpu.dot_dimension_numbers<[1], [0], [0], [1], [0, 0, 1, 1], [], []>} : vector<32x32xbf16>, vector<32x16xbf16>, vector<32x16xf32> -> vector<32x16xf32>
    %c0_233 = arith.constant 0 : index
    %c0_234 = arith.constant 0 : index
    %389 = vector.load %arg65[%c0_233, %c0_234] : memref<1x16xf32, #tpu.memory_space<vmem>>, vector<1x16xf32>
    %390 = vector.broadcast %389 : vector<1x16xf32> to vector<32x16xf32>
    %391 = arith.addf %388, %390 : vector<32x16xf32>
    %cst_235 = arith.constant dense<0.000000e+00> : vector<32xf32>
    %392 = vector.multi_reduction <add>, %391, %cst_235 [1] : vector<32x16xf32> to vector<32xf32>
    %393 = vector.shape_cast %392 : vector<32xf32> to vector<32x1xf32>
    %cst_236 = arith.constant 1.600000e+01 : f32
    %394 = vector.broadcast %cst_236 : f32 to vector<32x1xf32>
    %395 = arith.divf %393, %394 : vector<32x1xf32>
    %396 = arith.mulf %391, %391 : vector<32x16xf32>
    %cst_237 = arith.constant dense<0.000000e+00> : vector<32xf32>
    %397 = vector.multi_reduction <add>, %396, %cst_237 [1] : vector<32x16xf32> to vector<32xf32>
    %398 = vector.shape_cast %397 : vector<32xf32> to vector<32x1xf32>
    %cst_238 = arith.constant 1.600000e+01 : f32
    %399 = vector.broadcast %cst_238 : f32 to vector<32x1xf32>
    %400 = arith.divf %398, %399 : vector<32x1xf32>
    %401 = arith.mulf %395, %395 : vector<32x1xf32>
    %402 = arith.subf %400, %401 : vector<32x1xf32>
    %cst_239 = arith.constant 0.000000e+00 : f32
    %403 = vector.broadcast %cst_239 : f32 to vector<32x1xf32>
    %404 = arith.maximumf %402, %403 : vector<32x1xf32>
    %405 = vector.broadcast %395 : vector<32x1xf32> to vector<32x16xf32>
    %406 = arith.subf %391, %405 : vector<32x16xf32>
    %cst_240 = arith.constant 9.99999974E-6 : f32
    %407 = vector.broadcast %cst_240 : f32 to vector<32x1xf32>
    %408 = arith.addf %404, %407 : vector<32x1xf32>
    %409 = math.rsqrt %408 : vector<32x1xf32>
    %410 = vector.broadcast %409 : vector<32x1xf32> to vector<32x16xf32>
    %411 = arith.mulf %406, %410 : vector<32x16xf32>
    %c0_241 = arith.constant 0 : index
    %c0_242 = arith.constant 0 : index
    %412 = vector.load %arg67[%c0_241, %c0_242] : memref<1x16xf32, #tpu.memory_space<vmem>>, vector<1x16xf32>
    %413 = vector.broadcast %412 : vector<1x16xf32> to vector<32x16xf32>
    %414 = arith.mulf %411, %413 : vector<32x16xf32>
    %c0_243 = arith.constant 0 : index
    %c0_244 = arith.constant 0 : index
    %415 = vector.load %arg66[%c0_243, %c0_244] : memref<1x16xf32, #tpu.memory_space<vmem>>, vector<1x16xf32>
    %416 = vector.broadcast %415 : vector<1x16xf32> to vector<32x16xf32>
    %417 = arith.addf %414, %416 : vector<32x16xf32>
    %418 = arith.addf %417, %290 : vector<32x16xf32>
    %419 = arith.truncf %418 : vector<32x16xf32> to vector<32x16xbf16>
    %cst_245 = arith.constant dense<0.000000e+00> : vector<16x16xf32>
    %420 = tpu.matmul %3, %419, %cst_245 {dimension_numbers = #tpu.dot_dimension_numbers<[1], [0], [0], [1], [0, 0, 1, 1], [], []>} : vector<16x32xbf16>, vector<32x16xbf16>, vector<16x16xf32> -> vector<16x16xf32>
    %c0_246 = arith.constant 0 : index
    %c0_247 = arith.constant 0 : index
    %421 = vector.load %arg84[%c0_246, %c0_247] : memref<1x32xf32, #tpu.memory_space<vmem>>, vector<1x32xf32>
    %422 = arith.truncf %355 : vector<16x16xf32> to vector<16x16xbf16>
    %c0_248 = arith.constant 0 : index
    %c0_249 = arith.constant 0 : index
    %423 = vector.load %arg89[%c0_248, %c0_249] : memref<16x32xbf16, #tpu.memory_space<vmem>>, vector<16x32xbf16>
    %cst_250 = arith.constant dense<0.000000e+00> : vector<16x32xf32>
    %424 = tpu.matmul %422, %423, %cst_250 {dimension_numbers = #tpu.dot_dimension_numbers<[1], [0], [0], [1], [0, 0, 1, 1], [], []>} : vector<16x16xbf16>, vector<16x32xbf16>, vector<16x32xf32> -> vector<16x32xf32>
    %425 = vector.broadcast %421 : vector<1x32xf32> to vector<16x32xf32>
    %426 = arith.addf %425, %424 : vector<16x32xf32>
    %427 = arith.truncf %420 : vector<16x16xf32> to vector<16x16xbf16>
    %c0_251 = arith.constant 0 : index
    %c0_252 = arith.constant 0 : index
    %428 = vector.load %arg90[%c0_251, %c0_252] : memref<16x32xbf16, #tpu.memory_space<vmem>>, vector<16x32xbf16>
    %cst_253 = arith.constant dense<0.000000e+00> : vector<16x32xf32>
    %429 = tpu.matmul %427, %428, %cst_253 {dimension_numbers = #tpu.dot_dimension_numbers<[1], [0], [0], [1], [0, 0, 1, 1], [], []>} : vector<16x16xbf16>, vector<16x32xbf16>, vector<16x32xf32> -> vector<16x32xf32>
    %430 = arith.addf %426, %429 : vector<16x32xf32>
    %431 = arith.truncf %165 : vector<16x8xf32> to vector<16x8xbf16>
    %c0_254 = arith.constant 0 : index
    %c0_255 = arith.constant 0 : index
    %432 = vector.load %arg91[%c0_254, %c0_255] : memref<8x32xbf16, #tpu.memory_space<vmem>>, vector<8x32xbf16>
    %cst_256 = arith.constant dense<0.000000e+00> : vector<16x32xf32>
    %433 = tpu.matmul %431, %432, %cst_256 {dimension_numbers = #tpu.dot_dimension_numbers<[1], [0], [0], [1], [0, 0, 1, 1], [], []>} : vector<16x8xbf16>, vector<8x32xbf16>, vector<16x32xf32> -> vector<16x32xf32>
    %434 = arith.addf %430, %433 : vector<16x32xf32>
    %435 = arith.truncf %227 : vector<16x8xf32> to vector<16x8xbf16>
    %c0_257 = arith.constant 0 : index
    %c0_258 = arith.constant 0 : index
    %436 = vector.load %arg92[%c0_257, %c0_258] : memref<8x32xbf16, #tpu.memory_space<vmem>>, vector<8x32xbf16>
    %cst_259 = arith.constant dense<0.000000e+00> : vector<16x32xf32>
    %437 = tpu.matmul %435, %436, %cst_259 {dimension_numbers = #tpu.dot_dimension_numbers<[1], [0], [0], [1], [0, 0, 1, 1], [], []>} : vector<16x8xbf16>, vector<8x32xbf16>, vector<16x32xf32> -> vector<16x32xf32>
    %438 = arith.addf %434, %437 : vector<16x32xf32>
    %cst_260 = arith.constant 0.00999999977 : f32
    %439 = vector.broadcast %cst_260 : f32 to vector<16x32xf32>
    %440 = arith.mulf %439, %438 : vector<16x32xf32>
    %441 = arith.maximumf %438, %440 : vector<16x32xf32>
    %442 = arith.truncf %441 : vector<16x32xf32> to vector<16x32xbf16>
    %c0_261 = arith.constant 0 : index
    %c0_262 = arith.constant 0 : index
    %443 = vector.load %arg93[%c0_261, %c0_262] : memref<32x32xbf16, #tpu.memory_space<vmem>>, vector<32x32xbf16>
    %cst_263 = arith.constant dense<0.000000e+00> : vector<16x32xf32>
    %444 = tpu.matmul %442, %443, %cst_263 {dimension_numbers = #tpu.dot_dimension_numbers<[1], [0], [0], [1], [0, 0, 1, 1], [], []>} : vector<16x32xbf16>, vector<32x32xbf16>, vector<16x32xf32> -> vector<16x32xf32>
    %c0_264 = arith.constant 0 : index
    %c0_265 = arith.constant 0 : index
    %445 = vector.load %arg85[%c0_264, %c0_265] : memref<1x32xf32, #tpu.memory_space<vmem>>, vector<1x32xf32>
    %446 = vector.broadcast %445 : vector<1x32xf32> to vector<16x32xf32>
    %447 = arith.addf %444, %446 : vector<16x32xf32>
    %cst_266 = arith.constant 0.00999999977 : f32
    %448 = vector.broadcast %cst_266 : f32 to vector<16x32xf32>
    %449 = arith.mulf %448, %447 : vector<16x32xf32>
    %450 = arith.maximumf %447, %449 : vector<16x32xf32>
    %451 = arith.truncf %450 : vector<16x32xf32> to vector<16x32xbf16>
    %c0_267 = arith.constant 0 : index
    %c0_268 = arith.constant 0 : index
    %452 = vector.load %arg94[%c0_267, %c0_268] : memref<32x16xbf16, #tpu.memory_space<vmem>>, vector<32x16xbf16>
    %cst_269 = arith.constant dense<0.000000e+00> : vector<16x16xf32>
    %453 = tpu.matmul %451, %452, %cst_269 {dimension_numbers = #tpu.dot_dimension_numbers<[1], [0], [0], [1], [0, 0, 1, 1], [], []>} : vector<16x32xbf16>, vector<32x16xbf16>, vector<16x16xf32> -> vector<16x16xf32>
    %c0_270 = arith.constant 0 : index
    %c0_271 = arith.constant 0 : index
    %454 = vector.load %arg86[%c0_270, %c0_271] : memref<1x16xf32, #tpu.memory_space<vmem>>, vector<1x16xf32>
    %455 = vector.broadcast %454 : vector<1x16xf32> to vector<16x16xf32>
    %456 = arith.addf %453, %455 : vector<16x16xf32>
    %cst_272 = arith.constant dense<0.000000e+00> : vector<16xf32>
    %457 = vector.multi_reduction <add>, %456, %cst_272 [1] : vector<16x16xf32> to vector<16xf32>
    %458 = vector.shape_cast %457 : vector<16xf32> to vector<16x1xf32>
    %cst_273 = arith.constant 1.600000e+01 : f32
    %459 = vector.broadcast %cst_273 : f32 to vector<16x1xf32>
    %460 = arith.divf %458, %459 : vector<16x1xf32>
    %461 = arith.mulf %456, %456 : vector<16x16xf32>
    %cst_274 = arith.constant dense<0.000000e+00> : vector<16xf32>
    %462 = vector.multi_reduction <add>, %461, %cst_274 [1] : vector<16x16xf32> to vector<16xf32>
    %463 = vector.shape_cast %462 : vector<16xf32> to vector<16x1xf32>
    %cst_275 = arith.constant 1.600000e+01 : f32
    %464 = vector.broadcast %cst_275 : f32 to vector<16x1xf32>
    %465 = arith.divf %463, %464 : vector<16x1xf32>
    %466 = arith.mulf %460, %460 : vector<16x1xf32>
    %467 = arith.subf %465, %466 : vector<16x1xf32>
    %cst_276 = arith.constant 0.000000e+00 : f32
    %468 = vector.broadcast %cst_276 : f32 to vector<16x1xf32>
    %469 = arith.maximumf %467, %468 : vector<16x1xf32>
    %470 = vector.broadcast %460 : vector<16x1xf32> to vector<16x16xf32>
    %471 = arith.subf %456, %470 : vector<16x16xf32>
    %cst_277 = arith.constant 9.99999974E-6 : f32
    %472 = vector.broadcast %cst_277 : f32 to vector<16x1xf32>
    %473 = arith.addf %469, %472 : vector<16x1xf32>
    %474 = math.rsqrt %473 : vector<16x1xf32>
    %475 = vector.broadcast %474 : vector<16x1xf32> to vector<16x16xf32>
    %476 = arith.mulf %471, %475 : vector<16x16xf32>
    %c0_278 = arith.constant 0 : index
    %c0_279 = arith.constant 0 : index
    %477 = vector.load %arg88[%c0_278, %c0_279] : memref<1x16xf32, #tpu.memory_space<vmem>>, vector<1x16xf32>
    %478 = vector.broadcast %477 : vector<1x16xf32> to vector<16x16xf32>
    %479 = arith.mulf %476, %478 : vector<16x16xf32>
    %c0_280 = arith.constant 0 : index
    %c0_281 = arith.constant 0 : index
    %480 = vector.load %arg87[%c0_280, %c0_281] : memref<1x16xf32, #tpu.memory_space<vmem>>, vector<1x16xf32>
    %481 = vector.broadcast %480 : vector<1x16xf32> to vector<16x16xf32>
    %482 = arith.addf %479, %481 : vector<16x16xf32>
    %483 = arith.addf %482, %355 : vector<16x16xf32>
    %c0_282 = arith.constant 0 : index
    %c0_283 = arith.constant 0 : index
    %484 = vector.load %arg47[%c0_282, %c0_283] : memref<1x32xf32, #tpu.memory_space<vmem>>, vector<1x32xf32>
    %485 = arith.truncf %483 : vector<16x16xf32> to vector<16x16xbf16>
    %c0_284 = arith.constant 0 : index
    %c0_285 = arith.constant 0 : index
    %486 = vector.load %arg50[%c0_284, %c0_285] : memref<16x32xbf16, #tpu.memory_space<vmem>>, vector<16x32xbf16>
    %cst_286 = arith.constant dense<0.000000e+00> : vector<16x32xf32>
    %487 = tpu.matmul %485, %486, %cst_286 {dimension_numbers = #tpu.dot_dimension_numbers<[1], [0], [0], [1], [0, 0, 1, 1], [], []>} : vector<16x16xbf16>, vector<16x32xbf16>, vector<16x32xf32> -> vector<16x32xf32>
    %488 = vector.broadcast %484 : vector<1x32xf32> to vector<16x32xf32>
    %489 = arith.addf %488, %487 : vector<16x32xf32>
    %cst_287 = arith.constant 0.00999999977 : f32
    %490 = vector.broadcast %cst_287 : f32 to vector<16x32xf32>
    %491 = arith.mulf %490, %489 : vector<16x32xf32>
    %492 = arith.maximumf %489, %491 : vector<16x32xf32>
    %493 = arith.truncf %492 : vector<16x32xf32> to vector<16x32xbf16>
    %c0_288 = arith.constant 0 : index
    %c0_289 = arith.constant 0 : index
    %494 = vector.load %arg51[%c0_288, %c0_289] : memref<32x32xbf16, #tpu.memory_space<vmem>>, vector<32x32xbf16>
    %cst_290 = arith.constant dense<0.000000e+00> : vector<16x32xf32>
    %495 = tpu.matmul %493, %494, %cst_290 {dimension_numbers = #tpu.dot_dimension_numbers<[1], [0], [0], [1], [0, 0, 1, 1], [], []>} : vector<16x32xbf16>, vector<32x32xbf16>, vector<16x32xf32> -> vector<16x32xf32>
    %c0_291 = arith.constant 0 : index
    %c0_292 = arith.constant 0 : index
    %496 = vector.load %arg48[%c0_291, %c0_292] : memref<1x32xf32, #tpu.memory_space<vmem>>, vector<1x32xf32>
    %497 = vector.broadcast %496 : vector<1x32xf32> to vector<16x32xf32>
    %498 = arith.addf %495, %497 : vector<16x32xf32>
    %cst_293 = arith.constant 0.00999999977 : f32
    %499 = vector.broadcast %cst_293 : f32 to vector<16x32xf32>
    %500 = arith.mulf %499, %498 : vector<16x32xf32>
    %501 = arith.maximumf %498, %500 : vector<16x32xf32>
    %502 = arith.truncf %501 : vector<16x32xf32> to vector<16x32xbf16>
    %c0_294 = arith.constant 0 : index
    %c0_295 = arith.constant 0 : index
    %503 = vector.load %arg52[%c0_294, %c0_295] : memref<32x4xbf16, #tpu.memory_space<vmem>>, vector<32x4xbf16>
    %cst_296 = arith.constant dense<0.000000e+00> : vector<16x4xf32>
    %504 = tpu.matmul %502, %503, %cst_296 {dimension_numbers = #tpu.dot_dimension_numbers<[1], [0], [0], [1], [0, 0, 1, 1], [], []>} : vector<16x32xbf16>, vector<32x4xbf16>, vector<16x4xf32> -> vector<16x4xf32>
    %c0_297 = arith.constant 0 : index
    %c0_298 = arith.constant 0 : index
    %505 = vector.load %arg49[%c0_297, %c0_298] : memref<1x4xf32, #tpu.memory_space<vmem>>, vector<1x4xf32>
    %506 = vector.broadcast %505 : vector<1x4xf32> to vector<16x4xf32>
    %507 = arith.addf %504, %506 : vector<16x4xf32>
    %c0_299 = arith.constant 0 : index
    %c0_300 = arith.constant 0 : index
    %508 = vector.load %arg95[%c0_299, %c0_300] : memref<16x4xf32, #tpu.memory_space<vmem>>, vector<16x4xf32>
    tpu.vector_store %arg95[%c0_299, %c0_300], %507 {strides = array<i32>} : memref<16x4xf32, #tpu.memory_space<vmem>>, vector<16x4xf32>,
    return
  }
  func.func @transform_0(%arg0: i32) -> (i32, i32) {
    %c0_i32 = arith.constant 0 : i32
    %c0_i32_0 = arith.constant 0 : i32
    %c0_i32_1 = arith.constant 0 : i32
    return %c0_i32, %c0_i32_0 : i32, i32
  }
  func.func @transform_1(%arg0: i32) -> (i32, i32) {
    %c0_i32 = arith.constant 0 : i32
    %c0_i32_0 = arith.constant 0 : i32
    %c0_i32_1 = arith.constant 0 : i32
    return %c0_i32, %c0_i32_0 : i32, i32
  }
  func.func @transform_2(%arg0: i32) -> (i32, i32) {
    %c0_i32 = arith.constant 0 : i32
    %c0_i32_0 = arith.constant 0 : i32
    %c0_i32_1 = arith.constant 0 : i32
    return %c0_i32, %c0_i32_0 : i32, i32
  }
  func.func @transform_3(%arg0: i32) -> (i32, i32) {
    %c0_i32 = arith.constant 0 : i32
    %c0_i32_0 = arith.constant 0 : i32
    %c0_i32_1 = arith.constant 0 : i32
    return %c0_i32, %c0_i32_0 : i32, i32
  }
  func.func @transform_4(%arg0: i32) -> (i32, i32) {
    %c0_i32 = arith.constant 0 : i32
    %c0_i32_0 = arith.constant 0 : i32
    %c0_i32_1 = arith.constant 0 : i32
    return %c0_i32, %c0_i32_0 : i32, i32
  }
  func.func @transform_5(%arg0: i32) -> (i32, i32) {
    %c0_i32 = arith.constant 0 : i32
    %c0_i32_0 = arith.constant 0 : i32
    %c0_i32_1 = arith.constant 0 : i32
    return %c0_i32, %c0_i32_0 : i32, i32
  }
  func.func @transform_6(%arg0: i32) -> (i32, i32) {
    %c0_i32 = arith.constant 0 : i32
    %c0_i32_0 = arith.constant 0 : i32
    %c0_i32_1 = arith.constant 0 : i32
    return %c0_i32, %c0_i32_0 : i32, i32
  }
  func.func @transform_7(%arg0: i32) -> (i32, i32) {
    %c0_i32 = arith.constant 0 : i32
    %c0_i32_0 = arith.constant 0 : i32
    %c0_i32_1 = arith.constant 0 : i32
    return %c0_i32, %c0_i32_0 : i32, i32
  }
  func.func @transform_8(%arg0: i32) -> (i32, i32) {
    %c0_i32 = arith.constant 0 : i32
    %c0_i32_0 = arith.constant 0 : i32
    %c0_i32_1 = arith.constant 0 : i32
    return %c0_i32, %c0_i32_0 : i32, i32
  }
  func.func @transform_9(%arg0: i32) -> (i32, i32) {
    %c0_i32 = arith.constant 0 : i32
    %c0_i32_0 = arith.constant 0 : i32
    %c0_i32_1 = arith.constant 0 : i32
    return %c0_i32, %c0_i32_0 : i32, i32
  }
  func.func @transform_10(%arg0: i32) -> (i32, i32) {
    %c0_i32 = arith.constant 0 : i32
    %c0_i32_0 = arith.constant 0 : i32
    %c0_i32_1 = arith.constant 0 : i32
    return %c0_i32, %c0_i32_0 : i32, i32
  }
  func.func @transform_11(%arg0: i32) -> (i32, i32) {
    %c0_i32 = arith.constant 0 : i32
    %c0_i32_0 = arith.constant 0 : i32
    %c0_i32_1 = arith.constant 0 : i32
    return %c0_i32, %c0_i32_0 : i32, i32
  }
  func.func @transform_12(%arg0: i32) -> (i32, i32) {
    %c0_i32 = arith.constant 0 : i32
    %c0_i32_0 = arith.constant 0 : i32
    %c0_i32_1 = arith.constant 0 : i32
    return %c0_i32, %c0_i32_0 : i32, i32
  }
  func.func @transform_13(%arg0: i32) -> (i32, i32) {
    %c0_i32 = arith.constant 0 : i32
    %c0_i32_0 = arith.constant 0 : i32
    %c0_i32_1 = arith.constant 0 : i32
    return %c0_i32, %c0_i32_0 : i32, i32
  }
  func.func @transform_14(%arg0: i32) -> (i32, i32) {
    %c0_i32 = arith.constant 0 : i32
    %c0_i32_0 = arith.constant 0 : i32
    %c0_i32_1 = arith.constant 0 : i32
    return %c0_i32, %c0_i32_0 : i32, i32
  }
  func.func @transform_15(%arg0: i32) -> (i32, i32) {
    %c0_i32 = arith.constant 0 : i32
    %c0_i32_0 = arith.constant 0 : i32
    %c0_i32_1 = arith.constant 0 : i32
    return %c0_i32, %c0_i32_0 : i32, i32
  }
  func.func @transform_16(%arg0: i32) -> (i32, i32) {
    %c0_i32 = arith.constant 0 : i32
    %c0_i32_0 = arith.constant 0 : i32
    %c0_i32_1 = arith.constant 0 : i32
    return %c0_i32, %c0_i32_0 : i32, i32
  }
  func.func @transform_17(%arg0: i32) -> (i32, i32) {
    %c0_i32 = arith.constant 0 : i32
    %c0_i32_0 = arith.constant 0 : i32
    %c0_i32_1 = arith.constant 0 : i32
    return %c0_i32, %c0_i32_0 : i32, i32
  }
  func.func @transform_18(%arg0: i32) -> (i32, i32) {
    %c0_i32 = arith.constant 0 : i32
    %c0_i32_0 = arith.constant 0 : i32
    %c0_i32_1 = arith.constant 0 : i32
    return %c0_i32, %c0_i32_0 : i32, i32
  }
  func.func @transform_19(%arg0: i32) -> (i32, i32) {
    %c0_i32 = arith.constant 0 : i32
    %c0_i32_0 = arith.constant 0 : i32
    %c0_i32_1 = arith.constant 0 : i32
    return %c0_i32, %c0_i32_0 : i32, i32
  }
  func.func @transform_20(%arg0: i32) -> (i32, i32) {
    %c0_i32 = arith.constant 0 : i32
    %c0_i32_0 = arith.constant 0 : i32
    %c0_i32_1 = arith.constant 0 : i32
    return %c0_i32, %c0_i32_0 : i32, i32
  }
  func.func @transform_21(%arg0: i32) -> (i32, i32) {
    %c0_i32 = arith.constant 0 : i32
    %c0_i32_0 = arith.constant 0 : i32
    %c0_i32_1 = arith.constant 0 : i32
    return %c0_i32, %c0_i32_0 : i32, i32
  }
  func.func @transform_22(%arg0: i32) -> (i32, i32) {
    %c0_i32 = arith.constant 0 : i32
    %c0_i32_0 = arith.constant 0 : i32
    %c0_i32_1 = arith.constant 0 : i32
    return %c0_i32, %c0_i32_0 : i32, i32
  }
  func.func @transform_23(%arg0: i32) -> (i32, i32) {
    %c0_i32 = arith.constant 0 : i32
    %c0_i32_0 = arith.constant 0 : i32
    %c0_i32_1 = arith.constant 0 : i32
    return %c0_i32, %c0_i32_0 : i32, i32
  }
  func.func @transform_24(%arg0: i32) -> (i32, i32) {
    %c0_i32 = arith.constant 0 : i32
    %c0_i32_0 = arith.constant 0 : i32
    %c0_i32_1 = arith.constant 0 : i32
    return %c0_i32, %c0_i32_0 : i32, i32
  }
  func.func @transform_25(%arg0: i32) -> (i32, i32) {
    %c0_i32 = arith.constant 0 : i32
    %c0_i32_0 = arith.constant 0 : i32
    %c0_i32_1 = arith.constant 0 : i32
    return %c0_i32, %c0_i32_0 : i32, i32
  }
  func.func @transform_26(%arg0: i32) -> (i32, i32) {
    %c0_i32 = arith.constant 0 : i32
    %c0_i32_0 = arith.constant 0 : i32
    %c0_i32_1 = arith.constant 0 : i32
    return %c0_i32, %c0_i32_0 : i32, i32
  }
  func.func @transform_27(%arg0: i32) -> (i32, i32) {
    %c0_i32 = arith.constant 0 : i32
    %c0_i32_0 = arith.constant 0 : i32
    %c0_i32_1 = arith.constant 0 : i32
    return %c0_i32, %c0_i32_0 : i32, i32
  }
  func.func @transform_28(%arg0: i32) -> (i32, i32) {
    %c0_i32 = arith.constant 0 : i32
    %c0_i32_0 = arith.constant 0 : i32
    %c0_i32_1 = arith.constant 0 : i32
    return %c0_i32, %c0_i32_0 : i32, i32
  }
  func.func @transform_29(%arg0: i32) -> (i32, i32) {
    %c0_i32 = arith.constant 0 : i32
    %c0_i32_0 = arith.constant 0 : i32
    %c0_i32_1 = arith.constant 0 : i32
    return %c0_i32, %c0_i32_0 : i32, i32
  }
  func.func @transform_30(%arg0: i32) -> (i32, i32) {
    %c0_i32 = arith.constant 0 : i32
    %c0_i32_0 = arith.constant 0 : i32
    %c0_i32_1 = arith.constant 0 : i32
    return %c0_i32, %c0_i32_0 : i32, i32
  }
  func.func @transform_31(%arg0: i32) -> (i32, i32) {
    %c0_i32 = arith.constant 0 : i32
    %c0_i32_0 = arith.constant 0 : i32
    %c0_i32_1 = arith.constant 0 : i32
    return %c0_i32, %c0_i32_0 : i32, i32
  }
  func.func @transform_32(%arg0: i32) -> (i32, i32) {
    %c0_i32 = arith.constant 0 : i32
    %c0_i32_0 = arith.constant 0 : i32
    %c0_i32_1 = arith.constant 0 : i32
    return %c0_i32, %c0_i32_0 : i32, i32
  }
  func.func @transform_33(%arg0: i32) -> (i32, i32) {
    %c0_i32 = arith.constant 0 : i32
    %c0_i32_0 = arith.constant 0 : i32
    %c0_i32_1 = arith.constant 0 : i32
    return %c0_i32, %c0_i32_0 : i32, i32
  }
  func.func @transform_34(%arg0: i32) -> (i32, i32) {
    %c0_i32 = arith.constant 0 : i32
    %c0_i32_0 = arith.constant 0 : i32
    %c0_i32_1 = arith.constant 0 : i32
    return %c0_i32, %c0_i32_0 : i32, i32
  }
  func.func @transform_35(%arg0: i32) -> (i32, i32) {
    %c0_i32 = arith.constant 0 : i32
    %c0_i32_0 = arith.constant 0 : i32
    %c0_i32_1 = arith.constant 0 : i32
    return %c0_i32, %c0_i32_0 : i32, i32
  }
  func.func @transform_36(%arg0: i32) -> (i32, i32) {
    %c0_i32 = arith.constant 0 : i32
    %c0_i32_0 = arith.constant 0 : i32
    %c0_i32_1 = arith.constant 0 : i32
    return %c0_i32, %c0_i32_0 : i32, i32
  }
  func.func @transform_37(%arg0: i32) -> (i32, i32) {
    %c0_i32 = arith.constant 0 : i32
    %c0_i32_0 = arith.constant 0 : i32
    %c0_i32_1 = arith.constant 0 : i32
    return %c0_i32, %c0_i32_0 : i32, i32
  }
  func.func @transform_38(%arg0: i32) -> (i32, i32) {
    %c0_i32 = arith.constant 0 : i32
    %c0_i32_0 = arith.constant 0 : i32
    %c0_i32_1 = arith.constant 0 : i32
    return %c0_i32, %c0_i32_0 : i32, i32
  }
  func.func @transform_39(%arg0: i32) -> (i32, i32) {
    %c0_i32 = arith.constant 0 : i32
    %c0_i32_0 = arith.constant 0 : i32
    %c0_i32_1 = arith.constant 0 : i32
    return %c0_i32, %c0_i32_0 : i32, i32
  }
  func.func @transform_40(%arg0: i32) -> (i32, i32) {
    %c0_i32 = arith.constant 0 : i32
    %c0_i32_0 = arith.constant 0 : i32
    %c0_i32_1 = arith.constant 0 : i32
    return %c0_i32, %c0_i32_0 : i32, i32
  }
  func.func @transform_41(%arg0: i32) -> (i32, i32) {
    %c0_i32 = arith.constant 0 : i32
    %c0_i32_0 = arith.constant 0 : i32
    %c0_i32_1 = arith.constant 0 : i32
    return %c0_i32, %c0_i32_0 : i32, i32
  }
  func.func @transform_42(%arg0: i32) -> (i32, i32) {
    %c0_i32 = arith.constant 0 : i32
    %c0_i32_0 = arith.constant 0 : i32
    %c0_i32_1 = arith.constant 0 : i32
    return %c0_i32, %c0_i32_0 : i32, i32
  }
  func.func @transform_43(%arg0: i32) -> (i32, i32) {
    %c0_i32 = arith.constant 0 : i32
    %c0_i32_0 = arith.constant 0 : i32
    %c0_i32_1 = arith.constant 0 : i32
    return %c0_i32, %c0_i32_0 : i32, i32
  }
  func.func @transform_44(%arg0: i32) -> (i32, i32) {
    %c0_i32 = arith.constant 0 : i32
    %c0_i32_0 = arith.constant 0 : i32
    %c0_i32_1 = arith.constant 0 : i32
    return %c0_i32, %c0_i32_0 : i32, i32
  }
  func.func @transform_45(%arg0: i32) -> (i32, i32) {
    %c0_i32 = arith.constant 0 : i32
    %c0_i32_0 = arith.constant 0 : i32
    %c0_i32_1 = arith.constant 0 : i32
    return %c0_i32, %c0_i32_0 : i32, i32
  }
  func.func @transform_46(%arg0: i32) -> (i32, i32) {
    %c0_i32 = arith.constant 0 : i32
    %c0_i32_0 = arith.constant 0 : i32
    %c0_i32_1 = arith.constant 0 : i32
    return %c0_i32, %c0_i32_0 : i32, i32
  }
  func.func @transform_47(%arg0: i32) -> (i32, i32) {
    %c0_i32 = arith.constant 0 : i32
    %c0_i32_0 = arith.constant 0 : i32
    %c0_i32_1 = arith.constant 0 : i32
    return %c0_i32, %c0_i32_0 : i32, i32
  }
  func.func @transform_48(%arg0: i32) -> (i32, i32) {
    %c0_i32 = arith.constant 0 : i32
    %c0_i32_0 = arith.constant 0 : i32
    %c0_i32_1 = arith.constant 0 : i32
    return %c0_i32, %c0_i32_0 : i32, i32
  }
  func.func @transform_49(%arg0: i32) -> (i32, i32) {
    %c0_i32 = arith.constant 0 : i32
    %c0_i32_0 = arith.constant 0 : i32
    %c0_i32_1 = arith.constant 0 : i32
    return %c0_i32, %c0_i32_0 : i32, i32
  }
  func.func @transform_50(%arg0: i32) -> (i32, i32) {
    %c0_i32 = arith.constant 0 : i32
    %c0_i32_0 = arith.constant 0 : i32
    %c0_i32_1 = arith.constant 0 : i32
    return %c0_i32, %c0_i32_0 : i32, i32
  }
  func.func @transform_51(%arg0: i32) -> (i32, i32) {
    %c0_i32 = arith.constant 0 : i32
    %c0_i32_0 = arith.constant 0 : i32
    %c0_i32_1 = arith.constant 0 : i32
    return %c0_i32, %c0_i32_0 : i32, i32
  }
  func.func @transform_52(%arg0: i32) -> (i32, i32) {
    %c0_i32 = arith.constant 0 : i32
    %c0_i32_0 = arith.constant 0 : i32
    %c0_i32_1 = arith.constant 0 : i32
    return %c0_i32, %c0_i32_0 : i32, i32
  }
  func.func @transform_53(%arg0: i32) -> (i32, i32) {
    %c0_i32 = arith.constant 0 : i32
    %c0_i32_0 = arith.constant 0 : i32
    %c0_i32_1 = arith.constant 0 : i32
    return %c0_i32, %c0_i32_0 : i32, i32
  }
  func.func @transform_54(%arg0: i32) -> (i32, i32) {
    %c0_i32 = arith.constant 0 : i32
    %c0_i32_0 = arith.constant 0 : i32
    %c0_i32_1 = arith.constant 0 : i32
    return %c0_i32, %c0_i32_0 : i32, i32
  }
  func.func @transform_55(%arg0: i32) -> (i32, i32) {
    %c0_i32 = arith.constant 0 : i32
    %c0_i32_0 = arith.constant 0 : i32
    %c0_i32_1 = arith.constant 0 : i32
    return %c0_i32, %c0_i32_0 : i32, i32
  }
  func.func @transform_56(%arg0: i32) -> (i32, i32) {
    %c0_i32 = arith.constant 0 : i32
    %c0_i32_0 = arith.constant 0 : i32
    %c0_i32_1 = arith.constant 0 : i32
    return %c0_i32, %c0_i32_0 : i32, i32
  }
  func.func @transform_57(%arg0: i32) -> (i32, i32) {
    %c0_i32 = arith.constant 0 : i32
    %c0_i32_0 = arith.constant 0 : i32
    %c0_i32_1 = arith.constant 0 : i32
    return %c0_i32, %c0_i32_0 : i32, i32
  }
  func.func @transform_58(%arg0: i32) -> (i32, i32) {
    %c0_i32 = arith.constant 0 : i32
    %c0_i32_0 = arith.constant 0 : i32
    %c0_i32_1 = arith.constant 0 : i32
    return %c0_i32, %c0_i32_0 : i32, i32
  }
  func.func @transform_59(%arg0: i32) -> (i32, i32) {
    %c0_i32 = arith.constant 0 : i32
    %c0_i32_0 = arith.constant 0 : i32
    %c0_i32_1 = arith.constant 0 : i32
    return %c0_i32, %c0_i32_0 : i32, i32
  }
  func.func @transform_60(%arg0: i32) -> (i32, i32) {
    %c0_i32 = arith.constant 0 : i32
    %c0_i32_0 = arith.constant 0 : i32
    %c0_i32_1 = arith.constant 0 : i32
    return %c0_i32, %c0_i32_0 : i32, i32
  }
  func.func @transform_61(%arg0: i32) -> (i32, i32) {
    %c0_i32 = arith.constant 0 : i32
    %c0_i32_0 = arith.constant 0 : i32
    %c0_i32_1 = arith.constant 0 : i32
    return %c0_i32, %c0_i32_0 : i32, i32
  }
  func.func @transform_62(%arg0: i32) -> (i32, i32) {
    %c0_i32 = arith.constant 0 : i32
    %c0_i32_0 = arith.constant 0 : i32
    %c0_i32_1 = arith.constant 0 : i32
    return %c0_i32, %c0_i32_0 : i32, i32
  }
  func.func @transform_63(%arg0: i32) -> (i32, i32) {
    %c0_i32 = arith.constant 0 : i32
    %c0_i32_0 = arith.constant 0 : i32
    %c0_i32_1 = arith.constant 0 : i32
    return %c0_i32, %c0_i32_0 : i32, i32
  }
  func.func @transform_64(%arg0: i32) -> (i32, i32) {
    %c0_i32 = arith.constant 0 : i32
    %c0_i32_0 = arith.constant 0 : i32
    %c0_i32_1 = arith.constant 0 : i32
    return %c0_i32, %c0_i32_0 : i32, i32
  }
  func.func @transform_65(%arg0: i32) -> (i32, i32) {
    %c0_i32 = arith.constant 0 : i32
    %c0_i32_0 = arith.constant 0 : i32
    %c0_i32_1 = arith.constant 0 : i32
    return %c0_i32, %c0_i32_0 : i32, i32
  }
  func.func @transform_66(%arg0: i32) -> (i32, i32) {
    %c0_i32 = arith.constant 0 : i32
    %c0_i32_0 = arith.constant 0 : i32
    %c0_i32_1 = arith.constant 0 : i32
    return %c0_i32, %c0_i32_0 : i32, i32
  }
  func.func @transform_67(%arg0: i32) -> (i32, i32) {
    %c0_i32 = arith.constant 0 : i32
    %c0_i32_0 = arith.constant 0 : i32
    %c0_i32_1 = arith.constant 0 : i32
    return %c0_i32, %c0_i32_0 : i32, i32
  }
  func.func @transform_68(%arg0: i32) -> (i32, i32) {
    %c0_i32 = arith.constant 0 : i32
    %c0_i32_0 = arith.constant 0 : i32
    %c0_i32_1 = arith.constant 0 : i32
    return %c0_i32, %c0_i32_0 : i32, i32
  }
  func.func @transform_69(%arg0: i32) -> (i32, i32) {
    %c0_i32 = arith.constant 0 : i32
    %c0_i32_0 = arith.constant 0 : i32
    %c0_i32_1 = arith.constant 0 : i32
    return %c0_i32, %c0_i32_0 : i32, i32
  }
  func.func @transform_70(%arg0: i32) -> (i32, i32) {
    %c0_i32 = arith.constant 0 : i32
    %c0_i32_0 = arith.constant 0 : i32
    %c0_i32_1 = arith.constant 0 : i32
    return %c0_i32, %c0_i32_0 : i32, i32
  }
  func.func @transform_71(%arg0: i32) -> (i32, i32) {
    %c0_i32 = arith.constant 0 : i32
    %c0_i32_0 = arith.constant 0 : i32
    %c0_i32_1 = arith.constant 0 : i32
    return %c0_i32, %c0_i32_0 : i32, i32
  }
  func.func @transform_72(%arg0: i32) -> (i32, i32) {
    %c0_i32 = arith.constant 0 : i32
    %c0_i32_0 = arith.constant 0 : i32
    %c0_i32_1 = arith.constant 0 : i32
    return %c0_i32, %c0_i32_0 : i32, i32
  }
  func.func @transform_73(%arg0: i32) -> (i32, i32) {
    %c0_i32 = arith.constant 0 : i32
    %c0_i32_0 = arith.constant 0 : i32
    %c0_i32_1 = arith.constant 0 : i32
    return %c0_i32, %c0_i32_0 : i32, i32
  }
  func.func @transform_74(%arg0: i32) -> (i32, i32) {
    %c0_i32 = arith.constant 0 : i32
    %c0_i32_0 = arith.constant 0 : i32
    %c0_i32_1 = arith.constant 0 : i32
    return %c0_i32, %c0_i32_0 : i32, i32
  }
  func.func @transform_75(%arg0: i32) -> (i32, i32) {
    %c0_i32 = arith.constant 0 : i32
    %c0_i32_0 = arith.constant 0 : i32
    %c0_i32_1 = arith.constant 0 : i32
    return %c0_i32, %c0_i32_0 : i32, i32
  }
  func.func @transform_76(%arg0: i32) -> (i32, i32) {
    %c0_i32 = arith.constant 0 : i32
    %c0_i32_0 = arith.constant 0 : i32
    %c0_i32_1 = arith.constant 0 : i32
    return %c0_i32, %c0_i32_0 : i32, i32
  }
  func.func @transform_77(%arg0: i32) -> (i32, i32) {
    %c0_i32 = arith.constant 0 : i32
    %c0_i32_0 = arith.constant 0 : i32
    %c0_i32_1 = arith.constant 0 : i32
    return %c0_i32, %c0_i32_0 : i32, i32
  }
  func.func @transform_78(%arg0: i32) -> (i32, i32) {
    %c0_i32 = arith.constant 0 : i32
    %c0_i32_0 = arith.constant 0 : i32
    %c0_i32_1 = arith.constant 0 : i32
    return %c0_i32, %c0_i32_0 : i32, i32
  }
  func.func @transform_79(%arg0: i32) -> (i32, i32) {
    %c0_i32 = arith.constant 0 : i32
    %c0_i32_0 = arith.constant 0 : i32
    %c0_i32_1 = arith.constant 0 : i32
    return %c0_i32, %c0_i32_0 : i32, i32
  }
  func.func @transform_80(%arg0: i32) -> (i32, i32) {
    %c0_i32 = arith.constant 0 : i32
    %c0_i32_0 = arith.constant 0 : i32
    %c0_i32_1 = arith.constant 0 : i32
    return %c0_i32, %c0_i32_0 : i32, i32
  }
  func.func @transform_81(%arg0: i32) -> (i32, i32) {
    %c0_i32 = arith.constant 0 : i32
    %c0_i32_0 = arith.constant 0 : i32
    %c0_i32_1 = arith.constant 0 : i32
    return %c0_i32, %c0_i32_0 : i32, i32
  }
  func.func @transform_82(%arg0: i32) -> (i32, i32) {
    %c0_i32 = arith.constant 0 : i32
    %c0_i32_0 = arith.constant 0 : i32
    %c0_i32_1 = arith.constant 0 : i32
    return %c0_i32, %c0_i32_0 : i32, i32
  }
  func.func @transform_83(%arg0: i32) -> (i32, i32) {
    %c0_i32 = arith.constant 0 : i32
    %c0_i32_0 = arith.constant 0 : i32
    %c0_i32_1 = arith.constant 0 : i32
    return %c0_i32, %c0_i32_0 : i32, i32
  }
  func.func @transform_84(%arg0: i32) -> (i32, i32) {
    %c0_i32 = arith.constant 0 : i32
    %c0_i32_0 = arith.constant 0 : i32
    %c0_i32_1 = arith.constant 0 : i32
    return %c0_i32, %c0_i32_0 : i32, i32
  }
  func.func @transform_85(%arg0: i32) -> (i32, i32) {
    %c0_i32 = arith.constant 0 : i32
    %c0_i32_0 = arith.constant 0 : i32
    %c0_i32_1 = arith.constant 0 : i32
    return %c0_i32, %c0_i32_0 : i32, i32
  }
  func.func @transform_86(%arg0: i32) -> (i32, i32) {
    %c0_i32 = arith.constant 0 : i32
    %c0_i32_0 = arith.constant 0 : i32
    %c0_i32_1 = arith.constant 0 : i32
    return %c0_i32, %c0_i32_0 : i32, i32
  }
  func.func @transform_87(%arg0: i32) -> (i32, i32) {
    %c0_i32 = arith.constant 0 : i32
    %c0_i32_0 = arith.constant 0 : i32
    %c0_i32_1 = arith.constant 0 : i32
    return %c0_i32, %c0_i32_0 : i32, i32
  }
  func.func @transform_88(%arg0: i32) -> (i32, i32) {
    %c0_i32 = arith.constant 0 : i32
    %c0_i32_0 = arith.constant 0 : i32
    %c0_i32_1 = arith.constant 0 : i32
    return %c0_i32, %c0_i32_0 : i32, i32
  }
  func.func @transform_89(%arg0: i32) -> (i32, i32) {
    %c0_i32 = arith.constant 0 : i32
    %c0_i32_0 = arith.constant 0 : i32
    %c0_i32_1 = arith.constant 0 : i32
    return %c0_i32, %c0_i32_0 : i32, i32
  }
  func.func @transform_90(%arg0: i32) -> (i32, i32) {
    %c0_i32 = arith.constant 0 : i32
    %c0_i32_0 = arith.constant 0 : i32
    %c0_i32_1 = arith.constant 0 : i32
    return %c0_i32, %c0_i32_0 : i32, i32
  }
  func.func @transform_91(%arg0: i32) -> (i32, i32) {
    %c0_i32 = arith.constant 0 : i32
    %c0_i32_0 = arith.constant 0 : i32
    %c0_i32_1 = arith.constant 0 : i32
    return %c0_i32, %c0_i32_0 : i32, i32
  }
  func.func @transform_92(%arg0: i32) -> (i32, i32) {
    %c0_i32 = arith.constant 0 : i32
    %c0_i32_0 = arith.constant 0 : i32
    %c0_i32_1 = arith.constant 0 : i32
    return %c0_i32, %c0_i32_0 : i32, i32
  }
  func.func @transform_93(%arg0: i32) -> (i32, i32) {
    %c0_i32 = arith.constant 0 : i32
    %c0_i32_0 = arith.constant 0 : i32
    %c0_i32_1 = arith.constant 0 : i32
    return %c0_i32, %c0_i32_0 : i32, i32
  }
  func.func @transform_94(%arg0: i32) -> (i32, i32) {
    %c0_i32 = arith.constant 0 : i32
    %c0_i32_0 = arith.constant 0 : i32
    %c0_i32_1 = arith.constant 0 : i32
    return %c0_i32, %c0_i32_0 : i32, i32
  }
}

</mosaic_0001>

<llo_original>
// kernel: graphnet_forward.1
$region0: #{graphnet_forward.1}
  #allocation0 [shape = 'u32[]', space=smem, size = 0x4, offset = 0x4, fixed_abs, tag = 'smem constant byte address 0x4 - core index']
  #allocation1 [shape = 'u32[144,128]{1,0:T(1,128)}', space=vmem, size = 0x12000, scoped, tag = 'internal scratch']
  %s0 = inlined_call_operand.smem [shape: u32[95], index: -1, kind: input, shape index: {}]
  %s1 = sld [smem:[%s0]]
  %s2 = scalar_lea.smem %s0, 1
  %s3 = sld [smem:[%s2]]
  %s4 = scalar_lea.smem %s0, 2
  %s5 = sld [smem:[%s4]]
  %s6 = scalar_lea.smem %s0, 3
  %s7 = sld [smem:[%s6]]
  %s8 = scalar_lea.smem %s0, 4
  %s9 = sld [smem:[%s8]]
  %s10 = scalar_lea.smem %s0, 5
  %s11 = sld [smem:[%s10]]
  %s12 = scalar_lea.smem %s0, 6
  %s13 = sld [smem:[%s12]]
  %s14 = scalar_lea.smem %s0, 7
  %s15 = sld [smem:[%s14]]
  %s16 = scalar_lea.smem %s0, 8
  %s17 = sld [smem:[%s16]]
  %s18 = scalar_lea.smem %s0, 9
  %s19 = sld [smem:[%s18]]
  %s20 = scalar_lea.smem %s0, 10
  %s21 = sld [smem:[%s20]]
  %s22 = scalar_lea.smem %s0, 11
  %s23 = sld [smem:[%s22]]
  %s24 = scalar_lea.smem %s0, 12
  %s25 = sld [smem:[%s24]]
  %s26 = scalar_lea.smem %s0, 13
  %s27 = sld [smem:[%s26]]
  %s28 = scalar_lea.smem %s0, 14
  %s29 = sld [smem:[%s28]]
  %s30 = scalar_lea.smem %s0, 15
  %s31 = sld [smem:[%s30]]
  %s32 = scalar_lea.smem %s0, 16
  %s33 = sld [smem:[%s32]]
  %s34 = scalar_lea.smem %s0, 17
  %s35 = sld [smem:[%s34]]
  %s36 = scalar_lea.smem %s0, 18
  %s37 = sld [smem:[%s36]]
  %s38 = scalar_lea.smem %s0, 19
  %s39 = sld [smem:[%s38]]
  %s40 = scalar_lea.smem %s0, 20
  %s41 = sld [smem:[%s40]]
  %s42 = scalar_lea.smem %s0, 21
  %s43 = sld [smem:[%s42]]
  %s44 = scalar_lea.smem %s0, 22
  %s45 = sld [smem:[%s44]]
  %s46 = scalar_lea.smem %s0, 23
  %s47 = sld [smem:[%s46]]
  %s48 = scalar_lea.smem %s0, 24
  %s49 = sld [smem:[%s48]]
  %s50 = scalar_lea.smem %s0, 25
  %s51 = sld [smem:[%s50]]
  %s52 = scalar_lea.smem %s0, 26
  %s53 = sld [smem:[%s52]]
  %s54 = scalar_lea.smem %s0, 27
  %s55 = sld [smem:[%s54]]
  %s56 = scalar_lea.smem %s0, 28
  %s57 = sld [smem:[%s56]]
  %s58 = scalar_lea.smem %s0, 29
  %s59 = sld [smem:[%s58]]
  %s60 = scalar_lea.smem %s0, 30
  %s61 = sld [smem:[%s60]]
  %s62 = scalar_lea.smem %s0, 31
  %s63 = sld [smem:[%s62]]
  %s64 = scalar_lea.smem %s0, 32
  %s65 = sld [smem:[%s64]]
  %s66 = scalar_lea.smem %s0, 33
  %s67 = sld [smem:[%s66]]
  %s68 = scalar_lea.smem %s0, 34
  %s69 = sld [smem:[%s68]]
  %s70 = scalar_lea.smem %s0, 35
  %s71 = sld [smem:[%s70]]
  %s72 = scalar_lea.smem %s0, 36
  %s73 = sld [smem:[%s72]]
  %s74 = scalar_lea.smem %s0, 37
  %s75 = sld [smem:[%s74]]
  %s76 = scalar_lea.smem %s0, 38
  %s77 = sld [smem:[%s76]]
  %s78 = scalar_lea.smem %s0, 39
  %s79 = sld [smem:[%s78]]
  %s80 = scalar_lea.smem %s0, 40
  %s81 = sld [smem:[%s80]]
  %s82 = scalar_lea.smem %s0, 41
  %s83 = sld [smem:[%s82]]
  %s84 = scalar_lea.smem %s0, 42
  %s85 = sld [smem:[%s84]]
  %s86 = scalar_lea.smem %s0, 43
  %s87 = sld [smem:[%s86]]
  %s88 = scalar_lea.smem %s0, 44
  %s89 = sld [smem:[%s88]]
  %s90 = scalar_lea.smem %s0, 45
  %s91 = sld [smem:[%s90]]
  %s92 = scalar_lea.smem %s0, 46
  %s93 = sld [smem:[%s92]]
  %s94 = scalar_lea.smem %s0, 47
  %s95 = sld [smem:[%s94]]
  %s96 = scalar_lea.smem %s0, 48
  %s97 = sld [smem:[%s96]]
  %s98 = scalar_lea.smem %s0, 49
  %s99 = sld [smem:[%s98]]
  %s100 = scalar_lea.smem %s0, 50
  %s101 = sld [smem:[%s100]]
  %s102 = scalar_lea.smem %s0, 51
  %s103 = sld [smem:[%s102]]
  %s104 = scalar_lea.smem %s0, 52
  %s105 = sld [smem:[%s104]]
  %s106 = scalar_lea.smem %s0, 53
  %s107 = sld [smem:[%s106]]
  %s108 = scalar_lea.smem %s0, 54
  %s109 = sld [smem:[%s108]]
  %s110 = scalar_lea.smem %s0, 55
  %s111 = sld [smem:[%s110]]
  %s112 = scalar_lea.smem %s0, 56
  %s113 = sld [smem:[%s112]]
  %s114 = scalar_lea.smem %s0, 57
  %s115 = sld [smem:[%s114]]
  %s116 = scalar_lea.smem %s0, 58
  %s117 = sld [smem:[%s116]]
  %s118 = scalar_lea.smem %s0, 59
  %s119 = sld [smem:[%s118]]
  %s120 = scalar_lea.smem %s0, 60
  %s121 = sld [smem:[%s120]]
  %s122 = scalar_lea.smem %s0, 61
  %s123 = sld [smem:[%s122]]
  %s124 = scalar_lea.smem %s0, 62
  %s125 = sld [smem:[%s124]]
  %s126 = scalar_lea.smem %s0, 63
  %s127 = sld [smem:[%s126]]
  %s128 = scalar_lea.smem %s0, 64
  %s129 = sld [smem:[%s128]]
  %s130 = scalar_lea.smem %s0, 65
  %s131 = sld [smem:[%s130]]
  %s132 = scalar_lea.smem %s0, 66
  %s133 = sld [smem:[%s132]]
  %s134 = scalar_lea.smem %s0, 67
  %s135 = sld [smem:[%s134]]
  %s136 = scalar_lea.smem %s0, 68
  %s137 = sld [smem:[%s136]]
  %s138 = scalar_lea.smem %s0, 69
  %s139 = sld [smem:[%s138]]
  %s140 = scalar_lea.smem %s0, 70
  %s141 = sld [smem:[%s140]]
  %s142 = scalar_lea.smem %s0, 71
  %s143 = sld [smem:[%s142]]
  %s144 = scalar_lea.smem %s0, 72
  %s145 = sld [smem:[%s144]]
  %s146 = scalar_lea.smem %s0, 73
  %s147 = sld [smem:[%s146]]
  %s148 = scalar_lea.smem %s0, 74
  %s149 = sld [smem:[%s148]]
  %s150 = scalar_lea.smem %s0, 75
  %s151 = sld [smem:[%s150]]
  %s152 = scalar_lea.smem %s0, 76
  %s153 = sld [smem:[%s152]]
  %s154 = scalar_lea.smem %s0, 77
  %s155 = sld [smem:[%s154]]
  %s156 = scalar_lea.smem %s0, 78
  %s157 = sld [smem:[%s156]]
  %s158 = scalar_lea.smem %s0, 79
  %s159 = sld [smem:[%s158]]
  %s160 = scalar_lea.smem %s0, 80
  %s161 = sld [smem:[%s160]]
  %s162 = scalar_lea.smem %s0, 81
  %s163 = sld [smem:[%s162]]
  %s164 = scalar_lea.smem %s0, 82
  %s165 = sld [smem:[%s164]]
  %s166 = scalar_lea.smem %s0, 83
  %s167 = sld [smem:[%s166]]
  %s168 = scalar_lea.smem %s0, 84
  %s169 = sld [smem:[%s168]]
  %s170 = scalar_lea.smem %s0, 85
  %s171 = sld [smem:[%s170]]
  %s172 = scalar_lea.smem %s0, 86
  %s173 = sld [smem:[%s172]]
  %s174 = scalar_lea.smem %s0, 87
  %s175 = sld [smem:[%s174]]
  %s176 = scalar_lea.smem %s0, 88
  %s177 = sld [smem:[%s176]]
  %s178 = scalar_lea.smem %s0, 89
  %s179 = sld [smem:[%s178]]
  %s180 = scalar_lea.smem %s0, 90
  %s181 = sld [smem:[%s180]]
  %s182 = scalar_lea.smem %s0, 91
  %s183 = sld [smem:[%s182]]
  %s184 = scalar_lea.smem %s0, 92
  %s185 = sld [smem:[%s184]]
  %s186 = scalar_lea.smem %s0, 93
  %s187 = sld [smem:[%s186]]
  %s188 = scalar_lea.smem %s0, 94
  %s189 = sld [smem:[%s188]]
  %s190 = sld [smem:[#allocation0]]
  $region570: #{graphnet_forward.1} parent=0
    _
  %s192 = ssub.s32 1, %s190
  %s193 = scalar_select 0, %s192, %s190
  $region1: #{graphnet_forward.1} parent=0
    #allocation2 [shape = 'u8[512]{0}', space=vmem, size = 0x400, scoped, tag = 'input window, operand 12, single buffered']
    #allocation3 [shape = 's32[1]{0}', space=sflag, size = 0x4, scoped, tag = 'scoped memory for graphnet_forward.1']
    #allocation4 [shape = 'u8[512]{0}', space=vmem, size = 0x400, scoped, tag = 'input window, operand 13, single buffered']
    #allocation5 [shape = 's32[1]{0}', space=sflag, size = 0x4, scoped, tag = 'scoped memory for graphnet_forward.1']
    #allocation6 [shape = 'u8[512]{0}', space=vmem, size = 0x400, scoped, tag = 'input window, operand 14, single buffered']
    #allocation7 [shape = 'u8[512]{0}', space=vmem, size = 0x400, scoped, tag = 'input window, operand 15, single buffered']
    #allocation8 [shape = 's32[1]{0}', space=sflag, size = 0x4, scoped, tag = 'scoped memory for graphnet_forward.1']
    #allocation9 [shape = 'u8[512]{0}', space=vmem, size = 0x400, scoped, tag = 'input window, operand 16, single buffered']
    #allocation10 [shape = 'u8[512]{0}', space=vmem, size = 0x400, scoped, tag = 'input window, operand 20, single buffered']
    #allocation11 [shape = 's32[1]{0}', space=sflag, size = 0x4, scoped, tag = 'scoped memory for graphnet_forward.1']
    #allocation12 [shape = 'u8[512]{0}', space=vmem, size = 0x400, scoped, tag = 'input window, operand 21, single buffered']
    #allocation13 [shape = 'u8[512]{0}', space=vmem, size = 0x400, scoped, tag = 'input window, operand 22, single buffered']
    #allocation14 [shape = 's32[1]{0}', space=sflag, size = 0x4, scoped, tag = 'scoped memory for graphnet_forward.1']
    #allocation15 [shape = 'u8[512]{0}', space=vmem, size = 0x400, scoped, tag = 'input window, operand 23, single buffered']
    #allocation16 [shape = 'u8[512]{0}', space=vmem, size = 0x400, scoped, tag = 'input window, operand 24, single buffered']
    #allocation17 [shape = 's32[1]{0}', space=sflag, size = 0x4, scoped, tag = 'scoped memory for graphnet_forward.1']
    #allocation18 [shape = 'u8[1024]{0}', space=vmem, size = 0x400, scoped, tag = 'input window, operand 26, single buffered']
    #allocation19 [shape = 'u8[512]{0}', space=vmem, size = 0x400, scoped, tag = 'input window, operand 29, single buffered']
    #allocation20 [shape = 's32[1]{0}', space=sflag, size = 0x4, scoped, tag = 'scoped memory for graphnet_forward.1']
    #allocation21 [shape = 'u8[512]{0}', space=vmem, size = 0x400, scoped, tag = 'input window, operand 30, single buffered']
    #allocation22 [shape = 'u8[512]{0}', space=vmem, size = 0x400, scoped, tag = 'input window, operand 31, single buffered']
    #allocation23 [shape = 's32[1]{0}', space=sflag, size = 0x4, scoped, tag = 'scoped memory for graphnet_forward.1']
    #allocation24 [shape = 'u8[512]{0}', space=vmem, size = 0x400, scoped, tag = 'input window, operand 32, single buffered']
    #allocation25 [shape = 'u8[512]{0}', space=vmem, size = 0x400, scoped, tag = 'input window, operand 33, single buffered']
    #allocation26 [shape = 's32[1]{0}', space=sflag, size = 0x4, scoped, tag = 'scoped memory for graphnet_forward.1']
    #allocation27 [shape = 'u8[512]{0}', space=vmem, size = 0x400, scoped, tag = 'input window, operand 37, single buffered']
    #allocation28 [shape = 'u8[512]{0}', space=vmem, size = 0x400, scoped, tag = 'input window, operand 38, single buffered']
    #allocation29 [shape = 's32[1]{0}', space=sflag, size = 0x4, scoped, tag = 'scoped memory for graphnet_forward.1']
    #allocation30 [shape = 'u8[512]{0}', space=vmem, size = 0x400, scoped, tag = 'input window, operand 39, single buffered']
    #allocation31 [shape = 'u8[512]{0}', space=vmem, size = 0x400, scoped, tag = 'input window, operand 40, single buffered']
    #allocation32 [shape = 's32[1]{0}', space=sflag, size = 0x4, scoped, tag = 'scoped memory for graphnet_forward.1']
    #allocation33 [shape = 'u8[512]{0}', space=vmem, size = 0x400, scoped, tag = 'input window, operand 41, single buffered']
    #allocation34 [shape = 'u8[1024]{0}', space=vmem, size = 0x400, scoped, tag = 'input window, operand 42, single buffered']
    #allocation35 [shape = 's32[1]{0}', space=sflag, size = 0x4, scoped, tag = 'scoped memory for graphnet_forward.1']
    #allocation36 [shape = 'u8[1024]{0}', space=vmem, size = 0x400, scoped, tag = 'input window, operand 43, single buffered']
    #allocation37 [shape = 'u8[512]{0}', space=vmem, size = 0x400, scoped, tag = 'input window, operand 46, single buffered']
    #allocation38 [shape = 's32[1]{0}', space=sflag, size = 0x4, scoped, tag = 'scoped memory for graphnet_forward.1']
    #allocation39 [shape = 'u8[512]{0}', space=vmem, size = 0x400, scoped, tag = 'input window, operand 47, single buffered']
    #allocation40 [shape = 'u8[512]{0}', space=vmem, size = 0x400, scoped, tag = 'input window, operand 48, single buffered']
    #allocation41 [shape = 's32[1]{0}', space=sflag, size = 0x4, scoped, tag = 'scoped memory for graphnet_forward.1']
    #allocation42 [shape = 'u8[512]{0}', space=vmem, size = 0x400, scoped, tag = 'input window, operand 52, single buffered']
    #allocation43 [shape = 'u8[512]{0}', space=vmem, size = 0x400, scoped, tag = 'input window, operand 53, single buffered']
    #allocation44 [shape = 's32[1]{0}', space=sflag, size = 0x4, scoped, tag = 'scoped memory for graphnet_forward.1']
    #allocation45 [shape = 'u8[512]{0}', space=vmem, size = 0x400, scoped, tag = 'input window, operand 54, single buffered']
    #allocation46 [shape = 'u8[512]{0}', space=vmem, size = 0x400, scoped, tag = 'input window, operand 55, single buffered']
    #allocation47 [shape = 's32[1]{0}', space=sflag, size = 0x4, scoped, tag = 'scoped memory for graphnet_forward.1']
    #allocation48 [shape = 'u8[512]{0}', space=vmem, size = 0x400, scoped, tag = 'input window, operand 56, single buffered']
    #allocation49 [shape = 'u8[512]{0}', space=vmem, size = 0x400, scoped, tag = 'input window, operand 62, single buffered']
    #allocation50 [shape = 's32[1]{0}', space=sflag, size = 0x4, scoped, tag = 'scoped memory for graphnet_forward.1']
    #allocation51 [shape = 'u8[512]{0}', space=vmem, size = 0x400, scoped, tag = 'input window, operand 63, single buffered']
    #allocation52 [shape = 'u8[512]{0}', space=vmem, size = 0x400, scoped, tag = 'input window, operand 64, single buffered']
    #allocation53 [shape = 's32[1]{0}', space=sflag, size = 0x4, scoped, tag = 'scoped memory for graphnet_forward.1']
    #allocation54 [shape = 'u8[512]{0}', space=vmem, size = 0x400, scoped, tag = 'input window, operand 65, single buffered']
    #allocation55 [shape = 'u8[512]{0}', space=vmem, size = 0x400, scoped, tag = 'input window, operand 66, single buffered']
    #allocation56 [shape = 's32[1]{0}', space=sflag, size = 0x4, scoped, tag = 'scoped memory for graphnet_forward.1']
    #allocation57 [shape = 'u8[512]{0}', space=vmem, size = 0x400, scoped, tag = 'input window, operand 72, single buffered']
    #allocation58 [shape = 'u8[512]{0}', space=vmem, size = 0x400, scoped, tag = 'input window, operand 73, single buffered']
    #allocation59 [shape = 's32[1]{0}', space=sflag, size = 0x4, scoped, tag = 'scoped memory for graphnet_forward.1']
    #allocation60 [shape = 'u8[512]{0}', space=vmem, size = 0x400, scoped, tag = 'input window, operand 74, single buffered']
    #allocation61 [shape = 'u8[512]{0}', space=vmem, size = 0x400, scoped, tag = 'input window, operand 75, single buffered']
    #allocation62 [shape = 's32[1]{0}', space=sflag, size = 0x4, scoped, tag = 'scoped memory for graphnet_forward.1']
    #allocation63 [shape = 'u8[512]{0}', space=vmem, size = 0x400, scoped, tag = 'input window, operand 76, single buffered']
    #allocation64 [shape = 'u8[512]{0}', space=vmem, size = 0x400, scoped, tag = 'input window, operand 83, single buffered']
    #allocation65 [shape = 's32[1]{0}', space=sflag, size = 0x4, scoped, tag = 'scoped memory for graphnet_forward.1']
    #allocation66 [shape = 'u8[512]{0}', space=vmem, size = 0x400, scoped, tag = 'input window, operand 84, single buffered']
    #allocation67 [shape = 'u8[512]{0}', space=vmem, size = 0x400, scoped, tag = 'input window, operand 85, single buffered']
    #allocation68 [shape = 's32[1]{0}', space=sflag, size = 0x4, scoped, tag = 'scoped memory for graphnet_forward.1']
    #allocation69 [shape = 'u8[512]{0}', space=vmem, size = 0x400, scoped, tag = 'input window, operand 86, single buffered']
    #allocation70 [shape = 'u8[512]{0}', space=vmem, size = 0x400, scoped, tag = 'input window, operand 87, single buffered']
    #allocation71 [shape = 's32[1]{0}', space=sflag, size = 0x4, scoped, tag = 'scoped memory for graphnet_forward.1']
    %194 = vsyncpa [#allocation3], 0
    %195 = vsyncpa [#allocation5], 0
    %196 = vsyncpa [#allocation8], 0
    %197 = vsyncpa [#allocation11], 0
    %198 = vsyncpa [#allocation14], 0
    %199 = vsyncpa [#allocation17], 0
    %200 = vsyncpa [#allocation20], 0
    %201 = vsyncpa [#allocation23], 0
    %202 = vsyncpa [#allocation26], 0
    %203 = vsyncpa [#allocation29], 0
    %204 = vsyncpa [#allocation32], 0
    %205 = vsyncpa [#allocation35], 0
    %206 = vsyncpa [#allocation38], 0
    %207 = vsyncpa [#allocation41], 0
    %208 = vsyncpa [#allocation44], 0
    %209 = vsyncpa [#allocation47], 0
    %210 = vsyncpa [#allocation50], 0
    %211 = vsyncpa [#allocation53], 0
    %212 = vsyncpa [#allocation56], 0
    %213 = vsyncpa [#allocation59], 0
    %214 = vsyncpa [#allocation62], 0
    %215 = vsyncpa [#allocation65], 0
    %216 = vsyncpa [#allocation68], 0
    %217 = vsyncpa [#allocation71], 0
    // Predicated region
    $region2: #{graphnet_forward.1} parent=1 // pred_check
      _
    $region3: #{graphnet_forward.1} parent=1 // pred_check_branch
      %219 = sbr.rel (0) target = $region5
    $region4: #{graphnet_forward.1} parent=1 // pred_region
      _
    $region5: #{graphnet_forward.1} parent=1 // pred_fallthru
      _
    // Predicated region
    $region6: #{graphnet_forward.1} parent=1 // pred_check
      _
    $region7: #{graphnet_forward.1} parent=1 // pred_check_branch
      %221 = sbr.rel (0) target = $region9
    $region8: #{graphnet_forward.1} parent=1 // pred_region
      _
    $region9: #{graphnet_forward.1} parent=1 // pred_fallthru
      _
    // Predicated region
    $region10: #{graphnet_forward.1} parent=1 // pred_check
      _
    $region11: #{graphnet_forward.1} parent=1 // pred_check_branch
      %223 = sbr.rel (0) target = $region13
    $region12: #{graphnet_forward.1} parent=1 // pred_region
      _
    $region13: #{graphnet_forward.1} parent=1 // pred_fallthru
      _
    // Predicated region
    $region14: #{graphnet_forward.1} parent=1 // pred_check
      _
    $region15: #{graphnet_forward.1} parent=1 // pred_check_branch
      %225 = sbr.rel (0) target = $region17
    $region16: #{graphnet_forward.1} parent=1 // pred_region
      _
    $region17: #{graphnet_forward.1} parent=1 // pred_fallthru
      _
    // Predicated region
    $region18: #{graphnet_forward.1} parent=1 // pred_check
      _
    $region19: #{graphnet_forward.1} parent=1 // pred_check_branch
      %227 = sbr.rel (0) target = $region21
    $region20: #{graphnet_forward.1} parent=1 // pred_region
      _
    $region21: #{graphnet_forward.1} parent=1 // pred_fallthru
      _
    // Predicated region
    $region22: #{graphnet_forward.1} parent=1 // pred_check
      _
    $region23: #{graphnet_forward.1} parent=1 // pred_check_branch
      %229 = sbr.rel (0) target = $region25
    $region24: #{graphnet_forward.1} parent=1 // pred_region
      _
    $region25: #{graphnet_forward.1} parent=1 // pred_fallthru
      _
    // Predicated region
    $region26: #{graphnet_forward.1} parent=1 // pred_check
      _
    $region27: #{graphnet_forward.1} parent=1 // pred_check_branch
      %231 = sbr.rel (0) target = $region29
    $region28: #{graphnet_forward.1} parent=1 // pred_region
      _
    $region29: #{graphnet_forward.1} parent=1 // pred_fallthru
      _
    // Predicated region
    $region30: #{graphnet_forward.1} parent=1 // pred_check
      _
    $region31: #{graphnet_forward.1} parent=1 // pred_check_branch
      %233 = sbr.rel (0) target = $region33
    $region32: #{graphnet_forward.1} parent=1 // pred_region
      _
    $region33: #{graphnet_forward.1} parent=1 // pred_fallthru
      _
    // Predicated region
    $region34: #{graphnet_forward.1} parent=1 // pred_check
      _
    $region35: #{graphnet_forward.1} parent=1 // pred_check_branch
      %235 = sbr.rel (0) target = $region37
    $region36: #{graphnet_forward.1} parent=1 // pred_region
      _
    $region37: #{graphnet_forward.1} parent=1 // pred_fallthru
      _
    // Predicated region
    $region38: #{graphnet_forward.1} parent=1 // pred_check
      _
    $region39: #{graphnet_forward.1} parent=1 // pred_check_branch
      %237 = sbr.rel (0) target = $region41
    $region40: #{graphnet_forward.1} parent=1 // pred_region
      _
    $region41: #{graphnet_forward.1} parent=1 // pred_fallthru
      _
    // Predicated region
    $region42: #{graphnet_forward.1} parent=1 // pred_check
      _
    $region43: #{graphnet_forward.1} parent=1 // pred_check_branch
      %239 = sbr.rel (0) target = $region45
    $region44: #{graphnet_forward.1} parent=1 // pred_region
      _
    $region45: #{graphnet_forward.1} parent=1 // pred_fallthru
      _
    // Predicated region
    $region46: #{graphnet_forward.1} parent=1 // pred_check
      _
    $region47: #{graphnet_forward.1} parent=1 // pred_check_branch
      %241 = sbr.rel (0) target = $region49
    $region48: #{graphnet_forward.1} parent=1 // pred_region
      _
    $region49: #{graphnet_forward.1} parent=1 // pred_fallthru
      _
    // Predicated region
    $region50: #{graphnet_forward.1} parent=1 // pred_check
      _
    $region51: #{graphnet_forward.1} parent=1 // pred_check_branch
      %243 = sbr.rel (0) target = $region53
    $region52: #{graphnet_forward.1} parent=1 // pred_region
      %s245 = ssub.s32 16, 16
      %246 = vsyncadd [#allocation3], %s245
      %s248 = sshll.u32 [#allocation2], 4
      %s249 = int_to_ptr.vmem [resolvable:$true] %s248
      %251 = dma.hbm_to_vmem [thread:$0]  %s25, 16, %s249, [#allocation3]
    $region53: #{graphnet_forward.1} parent=1 // pred_fallthru
      _
    // Predicated region
    $region54: #{graphnet_forward.1} parent=1 // pred_check
      _
    $region55: #{graphnet_forward.1} parent=1 // pred_check_branch
      %253 = sbr.rel (0) target = $region57
    $region56: #{graphnet_forward.1} parent=1 // pred_region
      %s255 = ssub.s32 16, 16
      %256 = vsyncadd [#allocation5], %s255
      %s258 = sshll.u32 [#allocation4], 4
      %s259 = int_to_ptr.vmem [resolvable:$true] %s258
      %261 = dma.hbm_to_vmem [thread:$0]  %s27, 16, %s259, [#allocation5]
    $region57: #{graphnet_forward.1} parent=1 // pred_fallthru
      _
    // Predicated region
    $region58: #{graphnet_forward.1} parent=1 // pred_check
      _
    $region59: #{graphnet_forward.1} parent=1 // pred_check_branch
      %263 = sbr.rel (0) target = $region61
    $region60: #{graphnet_forward.1} parent=1 // pred_region
      %s265 = ssub.s32 16, 16
      %266 = vsyncadd [#allocation5], %s265
      %s268 = sshll.u32 [#allocation6], 4
      %s269 = int_to_ptr.vmem [resolvable:$true] %s268
      %271 = dma.hbm_to_vmem [thread:$0]  %s29, 16, %s269, [#allocation5]
    $region61: #{graphnet_forward.1} parent=1 // pred_fallthru
      _
    // Predicated region
    $region62: #{graphnet_forward.1} parent=1 // pred_check
      _
    $region63: #{graphnet_forward.1} parent=1 // pred_check_branch
      %273 = sbr.rel (0) target = $region65
    $region64: #{graphnet_forward.1} parent=1 // pred_region
      %s275 = ssub.s32 16, 16
      %276 = vsyncadd [#allocation8], %s275
      %s278 = sshll.u32 [#allocation7], 4
      %s279 = int_to_ptr.vmem [resolvable:$true] %s278
      %281 = dma.hbm_to_vmem [thread:$0]  %s31, 16, %s279, [#allocation8]
    $region65: #{graphnet_forward.1} parent=1 // pred_fallthru
      _
    // Predicated region
    $region66: #{graphnet_forward.1} parent=1 // pred_check
      _
    $region67: #{graphnet_forward.1} parent=1 // pred_check_branch
      %283 = sbr.rel (0) target = $region69
    $region68: #{graphnet_forward.1} parent=1 // pred_region
      %s285 = ssub.s32 16, 16
      %286 = vsyncadd [#allocation8], %s285
      %s288 = sshll.u32 [#allocation9], 4
      %s289 = int_to_ptr.vmem [resolvable:$true] %s288
      %291 = dma.hbm_to_vmem [thread:$0]  %s33, 16, %s289, [#allocation8]
    $region69: #{graphnet_forward.1} parent=1 // pred_fallthru
      _
    // Predicated region
    $region70: #{graphnet_forward.1} parent=1 // pred_check
      _
    $region71: #{graphnet_forward.1} parent=1 // pred_check_branch
      %293 = sbr.rel (0) target = $region73
    $region72: #{graphnet_forward.1} parent=1 // pred_region
      _
    $region73: #{graphnet_forward.1} parent=1 // pred_fallthru
      _
    // Predicated region
    $region74: #{graphnet_forward.1} parent=1 // pred_check
      _
    $region75: #{graphnet_forward.1} parent=1 // pred_check_branch
      %295 = sbr.rel (0) target = $region77
    $region76: #{graphnet_forward.1} parent=1 // pred_region
      _
    $region77: #{graphnet_forward.1} parent=1 // pred_fallthru
      _
    // Predicated region
    $region78: #{graphnet_forward.1} parent=1 // pred_check
      _
    $region79: #{graphnet_forward.1} parent=1 // pred_check_branch
      %297 = sbr.rel (0) target = $region81
    $region80: #{graphnet_forward.1} parent=1 // pred_region
      _
    $region81: #{graphnet_forward.1} parent=1 // pred_fallthru
      _
    // Predicated region
    $region82: #{graphnet_forward.1} parent=1 // pred_check
      _
    $region83: #{graphnet_forward.1} parent=1 // pred_check_branch
      %299 = sbr.rel (0) target = $region85
    $region84: #{graphnet_forward.1} parent=1 // pred_region
      %s301 = ssub.s32 16, 16
      %302 = vsyncadd [#allocation11], %s301
      %s304 = sshll.u32 [#allocation10], 4
      %s305 = int_to_ptr.vmem [resolvable:$true] %s304
      %307 = dma.hbm_to_vmem [thread:$0]  %s41, 16, %s305, [#allocation11]
    $region85: #{graphnet_forward.1} parent=1 // pred_fallthru
      _
    // Predicated region
    $region86: #{graphnet_forward.1} parent=1 // pred_check
      _
    $region87: #{graphnet_forward.1} parent=1 // pred_check_branch
      %309 = sbr.rel (0) target = $region89
    $region88: #{graphnet_forward.1} parent=1 // pred_region
      %s311 = ssub.s32 16, 16
      %312 = vsyncadd [#allocation11], %s311
      %s314 = sshll.u32 [#allocation12], 4
      %s315 = int_to_ptr.vmem [resolvable:$true] %s314
      %317 = dma.hbm_to_vmem [thread:$0]  %s43, 16, %s315, [#allocation11]
    $region89: #{graphnet_forward.1} parent=1 // pred_fallthru
      _
    // Predicated region
    $region90: #{graphnet_forward.1} parent=1 // pred_check
      _
    $region91: #{graphnet_forward.1} parent=1 // pred_check_branch
      %319 = sbr.rel (0) target = $region93
    $region92: #{graphnet_forward.1} parent=1 // pred_region
      %s321 = ssub.s32 16, 16
      %322 = vsyncadd [#allocation14], %s321
      %s324 = sshll.u32 [#allocation13], 4
      %s325 = int_to_ptr.vmem [resolvable:$true] %s324
      %327 = dma.hbm_to_vmem [thread:$0]  %s45, 16, %s325, [#allocation14]
    $region93: #{graphnet_forward.1} parent=1 // pred_fallthru
      _
    // Predicated region
    $region94: #{graphnet_forward.1} parent=1 // pred_check
      _
    $region95: #{graphnet_forward.1} parent=1 // pred_check_branch
      %329 = sbr.rel (0) target = $region97
    $region96: #{graphnet_forward.1} parent=1 // pred_region
      %s331 = ssub.s32 16, 16
      %332 = vsyncadd [#allocation14], %s331
      %s334 = sshll.u32 [#allocation15], 4
      %s335 = int_to_ptr.vmem [resolvable:$true] %s334
      %337 = dma.hbm_to_vmem [thread:$0]  %s47, 16, %s335, [#allocation14]
    $region97: #{graphnet_forward.1} parent=1 // pred_fallthru
      _
    // Predicated region
    $region98: #{graphnet_forward.1} parent=1 // pred_check
      _
    $region99: #{graphnet_forward.1} parent=1 // pred_check_branch
      %339 = sbr.rel (0) target = $region101
    $region100: #{graphnet_forward.1} parent=1 // pred_region
      %s341 = ssub.s32 16, 16
      %342 = vsyncadd [#allocation17], %s341
      %s344 = sshll.u32 [#allocation16], 4
      %s345 = int_to_ptr.vmem [resolvable:$true] %s344
      %347 = dma.hbm_to_vmem [thread:$0]  %s49, 16, %s345, [#allocation17]
    $region101: #{graphnet_forward.1} parent=1 // pred_fallthru
      _
    // Predicated region
    $region102: #{graphnet_forward.1} parent=1 // pred_check
      _
    $region103: #{graphnet_forward.1} parent=1 // pred_check_branch
      %349 = sbr.rel (0) target = $region105
    $region104: #{graphnet_forward.1} parent=1 // pred_region
      _
    $region105: #{graphnet_forward.1} parent=1 // pred_fallthru
      _
    // Predicated region
    $region106: #{graphnet_forward.1} parent=1 // pred_check
      _
    $region107: #{graphnet_forward.1} parent=1 // pred_check_branch
      %351 = sbr.rel (0) target = $region109
    $region108: #{graphnet_forward.1} parent=1 // pred_region
      %s353 = ssub.s32 32, 32
      %354 = vsyncadd [#allocation17], %s353
      %s356 = sshll.u32 [#allocation18], 4
      %s357 = int_to_ptr.vmem [resolvable:$true] %s356
      %359 = dma.hbm_to_vmem [thread:$0]  %s53, 32, %s357, [#allocation17]
    $region109: #{graphnet_forward.1} parent=1 // pred_fallthru
      _
    // Predicated region
    $region110: #{graphnet_forward.1} parent=1 // pred_check
      _
    $region111: #{graphnet_forward.1} parent=1 // pred_check_branch
      %361 = sbr.rel (0) target = $region113
    $region112: #{graphnet_forward.1} parent=1 // pred_region
      _
    $region113: #{graphnet_forward.1} parent=1 // pred_fallthru
      _
    // Predicated region
    $region114: #{graphnet_forward.1} parent=1 // pred_check
      _
    $region115: #{graphnet_forward.1} parent=1 // pred_check_branch
      %363 = sbr.rel (0) target = $region117
    $region116: #{graphnet_forward.1} parent=1 // pred_region
      _
    $region117: #{graphnet_forward.1} parent=1 // pred_fallthru
      _
    // Predicated region
    $region118: #{graphnet_forward.1} parent=1 // pred_check
      _
    $region119: #{graphnet_forward.1} parent=1 // pred_check_branch
      %365 = sbr.rel (0) target = $region121
    $region120: #{graphnet_forward.1} parent=1 // pred_region
      %s367 = ssub.s32 16, 16
      %368 = vsyncadd [#allocation20], %s367
      %s370 = sshll.u32 [#allocation19], 4
      %s371 = int_to_ptr.vmem [resolvable:$true] %s370
      %373 = dma.hbm_to_vmem [thread:$0]  %s59, 16, %s371, [#allocation20]
    $region121: #{graphnet_forward.1} parent=1 // pred_fallthru
      _
    // Predicated region
    $region122: #{graphnet_forward.1} parent=1 // pred_check
      _
    $region123: #{graphnet_forward.1} parent=1 // pred_check_branch
      %375 = sbr.rel (0) target = $region125
    $region124: #{graphnet_forward.1} parent=1 // pred_region
      %s377 = ssub.s32 16, 16
      %378 = vsyncadd [#allocation20], %s377
      %s380 = sshll.u32 [#allocation21], 4
      %s381 = int_to_ptr.vmem [resolvable:$true] %s380
      %383 = dma.hbm_to_vmem [thread:$0]  %s61, 16, %s381, [#allocation20]
    $region125: #{graphnet_forward.1} parent=1 // pred_fallthru
      _
    // Predicated region
    $region126: #{graphnet_forward.1} parent=1 // pred_check
      _
    $region127: #{graphnet_forward.1} parent=1 // pred_check_branch
      %385 = sbr.rel (0) target = $region129
    $region128: #{graphnet_forward.1} parent=1 // pred_region
      %s387 = ssub.s32 16, 16
      %388 = vsyncadd [#allocation23], %s387
      %s390 = sshll.u32 [#allocation22], 4
      %s391 = int_to_ptr.vmem [resolvable:$true] %s390
      %393 = dma.hbm_to_vmem [thread:$0]  %s63, 16, %s391, [#allocation23]
    $region129: #{graphnet_forward.1} parent=1 // pred_fallthru
      _
    // Predicated region
    $region130: #{graphnet_forward.1} parent=1 // pred_check
      _
    $region131: #{graphnet_forward.1} parent=1 // pred_check_branch
      %395 = sbr.rel (0) target = $region133
    $region132: #{graphnet_forward.1} parent=1 // pred_region
      %s397 = ssub.s32 16, 16
      %398 = vsyncadd [#allocation23], %s397
      %s400 = sshll.u32 [#allocation24], 4
      %s401 = int_to_ptr.vmem [resolvable:$true] %s400
      %403 = dma.hbm_to_vmem [thread:$0]  %s65, 16, %s401, [#allocation23]
    $region133: #{graphnet_forward.1} parent=1 // pred_fallthru
      _
    // Predicated region
    $region134: #{graphnet_forward.1} parent=1 // pred_check
      _
    $region135: #{graphnet_forward.1} parent=1 // pred_check_branch
      %405 = sbr.rel (0) target = $region137
    $region136: #{graphnet_forward.1} parent=1 // pred_region
      %s407 = ssub.s32 16, 16
      %408 = vsyncadd [#allocation26], %s407
      %s410 = sshll.u32 [#allocation25], 4
      %s411 = int_to_ptr.vmem [resolvable:$true] %s410
      %413 = dma.hbm_to_vmem [thread:$0]  %s67, 16, %s411, [#allocation26]
    $region137: #{graphnet_forward.1} parent=1 // pred_fallthru
      _
    // Predicated region
    $region138: #{graphnet_forward.1} parent=1 // pred_check
      _
    $region139: #{graphnet_forward.1} parent=1 // pred_check_branch
      %415 = sbr.rel (0) target = $region141
    $region140: #{graphnet_forward.1} parent=1 // pred_region
      _
    $region141: #{graphnet_forward.1} parent=1 // pred_fallthru
      _
    // Predicated region
    $region142: #{graphnet_forward.1} parent=1 // pred_check
      _
    $region143: #{graphnet_forward.1} parent=1 // pred_check_branch
      %417 = sbr.rel (0) target = $region145
    $region144: #{graphnet_forward.1} parent=1 // pred_region
      _
    $region145: #{graphnet_forward.1} parent=1 // pred_fallthru
      _
    // Predicated region
    $region146: #{graphnet_forward.1} parent=1 // pred_check
      _
    $region147: #{graphnet_forward.1} parent=1 // pred_check_branch
      %419 = sbr.rel (0) target = $region149
    $region148: #{graphnet_forward.1} parent=1 // pred_region
      _
    $region149: #{graphnet_forward.1} parent=1 // pred_fallthru
      _
    // Predicated region
    $region150: #{graphnet_forward.1} parent=1 // pred_check
      _
    $region151: #{graphnet_forward.1} parent=1 // pred_check_branch
      %421 = sbr.rel (0) target = $region153
    $region152: #{graphnet_forward.1} parent=1 // pred_region
      %s423 = ssub.s32 16, 16
      %424 = vsyncadd [#allocation26], %s423
      %s426 = sshll.u32 [#allocation27], 4
      %s427 = int_to_ptr.vmem [resolvable:$true] %s426
      %429 = dma.hbm_to_vmem [thread:$0]  %s75, 16, %s427, [#allocation26]
    $region153: #{graphnet_forward.1} parent=1 // pred_fallthru
      _
    // Predicated region
    $region154: #{graphnet_forward.1} parent=1 // pred_check
      _
    $region155: #{graphnet_forward.1} parent=1 // pred_check_branch
      %431 = sbr.rel (0) target = $region157
    $region156: #{graphnet_forward.1} parent=1 // pred_region
      %s433 = ssub.s32 16, 16
      %434 = vsyncadd [#allocation29], %s433
      %s436 = sshll.u32 [#allocation28], 4
      %s437 = int_to_ptr.vmem [resolvable:$true] %s436
      %439 = dma.hbm_to_vmem [thread:$0]  %s77, 16, %s437, [#allocation29]
    $region157: #{graphnet_forward.1} parent=1 // pred_fallthru
      _
    // Predicated region
    $region158: #{graphnet_forward.1} parent=1 // pred_check
      _
    $region159: #{graphnet_forward.1} parent=1 // pred_check_branch
      %441 = sbr.rel (0) target = $region161
    $region160: #{graphnet_forward.1} parent=1 // pred_region
      %s443 = ssub.s32 16, 16
      %444 = vsyncadd [#allocation29], %s443
      %s446 = sshll.u32 [#allocation30], 4
      %s447 = int_to_ptr.vmem [resolvable:$true] %s446
      %449 = dma.hbm_to_vmem [thread:$0]  %s79, 16, %s447, [#allocation29]
    $region161: #{graphnet_forward.1} parent=1 // pred_fallthru
      _
    // Predicated region
    $region162: #{graphnet_forward.1} parent=1 // pred_check
      _
    $region163: #{graphnet_forward.1} parent=1 // pred_check_branch
      %451 = sbr.rel (0) target = $region165
    $region164: #{graphnet_forward.1} parent=1 // pred_region
      %s453 = ssub.s32 16, 16
      %454 = vsyncadd [#allocation32], %s453
      %s456 = sshll.u32 [#allocation31], 4
      %s457 = int_to_ptr.vmem [resolvable:$true] %s456
      %459 = dma.hbm_to_vmem [thread:$0]  %s81, 16, %s457, [#allocation32]
    $region165: #{graphnet_forward.1} parent=1 // pred_fallthru
      _
    // Predicated region
    $region166: #{graphnet_forward.1} parent=1 // pred_check
      _
    $region167: #{graphnet_forward.1} parent=1 // pred_check_branch
      %461 = sbr.rel (0) target = $region169
    $region168: #{graphnet_forward.1} parent=1 // pred_region
      %s463 = ssub.s32 16, 16
      %464 = vsyncadd [#allocation32], %s463
      %s466 = sshll.u32 [#allocation33], 4
      %s467 = int_to_ptr.vmem [resolvable:$true] %s466
      %469 = dma.hbm_to_vmem [thread:$0]  %s83, 16, %s467, [#allocation32]
    $region169: #{graphnet_forward.1} parent=1 // pred_fallthru
      _
    // Predicated region
    $region170: #{graphnet_forward.1} parent=1 // pred_check
      _
    $region171: #{graphnet_forward.1} parent=1 // pred_check_branch
      %471 = sbr.rel (0) target = $region173
    $region172: #{graphnet_forward.1} parent=1 // pred_region
      %s473 = ssub.s32 32, 32
      %474 = vsyncadd [#allocation35], %s473
      %s476 = sshll.u32 [#allocation34], 4
      %s477 = int_to_ptr.vmem [resolvable:$true] %s476
      %479 = dma.hbm_to_vmem [thread:$0]  %s85, 32, %s477, [#allocation35]
    $region173: #{graphnet_forward.1} parent=1 // pred_fallthru
      _
    // Predicated region
    $region174: #{graphnet_forward.1} parent=1 // pred_check
      _
    $region175: #{graphnet_forward.1} parent=1 // pred_check_branch
      %481 = sbr.rel (0) target = $region177
    $region176: #{graphnet_forward.1} parent=1 // pred_region
      %s483 = ssub.s32 32, 32
      %484 = vsyncadd [#allocation35], %s483
      %s486 = sshll.u32 [#allocation36], 4
      %s487 = int_to_ptr.vmem [resolvable:$true] %s486
      %489 = dma.hbm_to_vmem [thread:$0]  %s87, 32, %s487, [#allocation35]
    $region177: #{graphnet_forward.1} parent=1 // pred_fallthru
      _
    // Predicated region
    $region178: #{graphnet_forward.1} parent=1 // pred_check
      _
    $region179: #{graphnet_forward.1} parent=1 // pred_check_branch
      %491 = sbr.rel (0) target = $region181
    $region180: #{graphnet_forward.1} parent=1 // pred_region
      _
    $region181: #{graphnet_forward.1} parent=1 // pred_fallthru
      _
    // Predicated region
    $region182: #{graphnet_forward.1} parent=1 // pred_check
      _
    $region183: #{graphnet_forward.1} parent=1 // pred_check_branch
      %493 = sbr.rel (0) target = $region185
    $region184: #{graphnet_forward.1} parent=1 // pred_region
      _
    $region185: #{graphnet_forward.1} parent=1 // pred_fallthru
      _
    // Predicated region
    $region186: #{graphnet_forward.1} parent=1 // pred_check
      _
    $region187: #{graphnet_forward.1} parent=1 // pred_check_branch
      %495 = sbr.rel (0) target = $region189
    $region188: #{graphnet_forward.1} parent=1 // pred_region
      %s497 = ssub.s32 16, 16
      %498 = vsyncadd [#allocation38], %s497
      %s500 = sshll.u32 [#allocation37], 4
      %s501 = int_to_ptr.vmem [resolvable:$true] %s500
      %503 = dma.hbm_to_vmem [thread:$0]  %s93, 16, %s501, [#allocation38]
    $region189: #{graphnet_forward.1} parent=1 // pred_fallthru
      _
    // Predicated region
    $region190: #{graphnet_forward.1} parent=1 // pred_check
      _
    $region191: #{graphnet_forward.1} parent=1 // pred_check_branch
      %505 = sbr.rel (0) target = $region193
    $region192: #{graphnet_forward.1} parent=1 // pred_region
      %s507 = ssub.s32 16, 16
      %508 = vsyncadd [#allocation38], %s507
      %s510 = sshll.u32 [#allocation39], 4
      %s511 = int_to_ptr.vmem [resolvable:$true] %s510
      %513 = dma.hbm_to_vmem [thread:$0]  %s95, 16, %s511, [#allocation38]
    $region193: #{graphnet_forward.1} parent=1 // pred_fallthru
      _
    // Predicated region
    $region194: #{graphnet_forward.1} parent=1 // pred_check
      _
    $region195: #{graphnet_forward.1} parent=1 // pred_check_branch
      %515 = sbr.rel (0) target = $region197
    $region196: #{graphnet_forward.1} parent=1 // pred_region
      %s517 = ssub.s32 16, 16
      %518 = vsyncadd [#allocation41], %s517
      %s520 = sshll.u32 [#allocation40], 4
      %s521 = int_to_ptr.vmem [resolvable:$true] %s520
      %523 = dma.hbm_to_vmem [thread:$0]  %s97, 16, %s521, [#allocation41]
    $region197: #{graphnet_forward.1} parent=1 // pred_fallthru
      _
    // Predicated region
    $region198: #{graphnet_forward.1} parent=1 // pred_check
      _
    $region199: #{graphnet_forward.1} parent=1 // pred_check_branch
      %525 = sbr.rel (0) target = $region201
    $region200: #{graphnet_forward.1} parent=1 // pred_region
      _
    $region201: #{graphnet_forward.1} parent=1 // pred_fallthru
      _
    // Predicated region
    $region202: #{graphnet_forward.1} parent=1 // pred_check
      _
    $region203: #{graphnet_forward.1} parent=1 // pred_check_branch
      %527 = sbr.rel (0) target = $region205
    $region204: #{graphnet_forward.1} parent=1 // pred_region
      _
    $region205: #{graphnet_forward.1} parent=1 // pred_fallthru
      _
    // Predicated region
    $region206: #{graphnet_forward.1} parent=1 // pred_check
      _
    $region207: #{graphnet_forward.1} parent=1 // pred_check_branch
      %529 = sbr.rel (0) target = $region209
    $region208: #{graphnet_forward.1} parent=1 // pred_region
      _
    $region209: #{graphnet_forward.1} parent=1 // pred_fallthru
      _
    // Predicated region
    $region210: #{graphnet_forward.1} parent=1 // pred_check
      _
    $region211: #{graphnet_forward.1} parent=1 // pred_check_branch
      %531 = sbr.rel (0) target = $region213
    $region212: #{graphnet_forward.1} parent=1 // pred_region
      %s533 = ssub.s32 16, 16
      %534 = vsyncadd [#allocation41], %s533
      %s536 = sshll.u32 [#allocation42], 4
      %s537 = int_to_ptr.vmem [resolvable:$true] %s536
      %539 = dma.hbm_to_vmem [thread:$0]  %s105, 16, %s537, [#allocation41]
    $region213: #{graphnet_forward.1} parent=1 // pred_fallthru
      _
    // Predicated region
    $region214: #{graphnet_forward.1} parent=1 // pred_check
      _
    $region215: #{graphnet_forward.1} parent=1 // pred_check_branch
      %541 = sbr.rel (0) target = $region217
    $region216: #{graphnet_forward.1} parent=1 // pred_region
      %s543 = ssub.s32 16, 16
      %544 = vsyncadd [#allocation44], %s543
      %s546 = sshll.u32 [#allocation43], 4
      %s547 = int_to_ptr.vmem [resolvable:$true] %s546
      %549 = dma.hbm_to_vmem [thread:$0]  %s107, 16, %s547, [#allocation44]
    $region217: #{graphnet_forward.1} parent=1 // pred_fallthru
      _
    // Predicated region
    $region218: #{graphnet_forward.1} parent=1 // pred_check
      _
    $region219: #{graphnet_forward.1} parent=1 // pred_check_branch
      %551 = sbr.rel (0) target = $region221
    $region220: #{graphnet_forward.1} parent=1 // pred_region
      %s553 = ssub.s32 16, 16
      %554 = vsyncadd [#allocation44], %s553
      %s556 = sshll.u32 [#allocation45], 4
      %s557 = int_to_ptr.vmem [resolvable:$true] %s556
      %559 = dma.hbm_to_vmem [thread:$0]  %s109, 16, %s557, [#allocation44]
    $region221: #{graphnet_forward.1} parent=1 // pred_fallthru
      _
    // Predicated region
    $region222: #{graphnet_forward.1} parent=1 // pred_check
      _
    $region223: #{graphnet_forward.1} parent=1 // pred_check_branch
      %561 = sbr.rel (0) target = $region225
    $region224: #{graphnet_forward.1} parent=1 // pred_region
      %s563 = ssub.s32 16, 16
      %564 = vsyncadd [#allocation47], %s563
      %s566 = sshll.u32 [#allocation46], 4
      %s567 = int_to_ptr.vmem [resolvable:$true] %s566
      %569 = dma.hbm_to_vmem [thread:$0]  %s111, 16, %s567, [#allocation47]
    $region225: #{graphnet_forward.1} parent=1 // pred_fallthru
      _
    // Predicated region
    $region226: #{graphnet_forward.1} parent=1 // pred_check
      _
    $region227: #{graphnet_forward.1} parent=1 // pred_check_branch
      %571 = sbr.rel (0) target = $region229
    $region228: #{graphnet_forward.1} parent=1 // pred_region
      %s573 = ssub.s32 16, 16
      %574 = vsyncadd [#allocation47], %s573
      %s576 = sshll.u32 [#allocation48], 4
      %s577 = int_to_ptr.vmem [resolvable:$true] %s576
      %579 = dma.hbm_to_vmem [thread:$0]  %s113, 16, %s577, [#allocation47]
    $region229: #{graphnet_forward.1} parent=1 // pred_fallthru
      _
    // Predicated region
    $region230: #{graphnet_forward.1} parent=1 // pred_check
      _
    $region231: #{graphnet_forward.1} parent=1 // pred_check_branch
      %581 = sbr.rel (0) target = $region233
    $region232: #{graphnet_forward.1} parent=1 // pred_region
      _
    $region233: #{graphnet_forward.1} parent=1 // pred_fallthru
      _
    // Predicated region
    $region234: #{graphnet_forward.1} parent=1 // pred_check
      _
    $region235: #{graphnet_forward.1} parent=1 // pred_check_branch
      %583 = sbr.rel (0) target = $region237
    $region236: #{graphnet_forward.1} parent=1 // pred_region
      _
    $region237: #{graphnet_forward.1} parent=1 // pred_fallthru
      _
    // Predicated region
    $region238: #{graphnet_forward.1} parent=1 // pred_check
      _
    $region239: #{graphnet_forward.1} parent=1 // pred_check_branch
      %585 = sbr.rel (0) target = $region241
    $region240: #{graphnet_forward.1} parent=1 // pred_region
      _
    $region241: #{graphnet_forward.1} parent=1 // pred_fallthru
      _
    // Predicated region
    $region242: #{graphnet_forward.1} parent=1 // pred_check
      _
    $region243: #{graphnet_forward.1} parent=1 // pred_check_branch
      %587 = sbr.rel (0) target = $region245
    $region244: #{graphnet_forward.1} parent=1 // pred_region
      _
    $region245: #{graphnet_forward.1} parent=1 // pred_fallthru
      _
    // Predicated region
    $region246: #{graphnet_forward.1} parent=1 // pred_check
      _
    $region247: #{graphnet_forward.1} parent=1 // pred_check_branch
      %589 = sbr.rel (0) target = $region249
    $region248: #{graphnet_forward.1} parent=1 // pred_region
      _
    $region249: #{graphnet_forward.1} parent=1 // pred_fallthru
      _
    // Predicated region
    $region250: #{graphnet_forward.1} parent=1 // pred_check
      _
    $region251: #{graphnet_forward.1} parent=1 // pred_check_branch
      %591 = sbr.rel (0) target = $region253
    $region252: #{graphnet_forward.1} parent=1 // pred_region
      %s593 = ssub.s32 16, 16
      %594 = vsyncadd [#allocation50], %s593
      %s596 = sshll.u32 [#allocation49], 4
      %s597 = int_to_ptr.vmem [resolvable:$true] %s596
      %599 = dma.hbm_to_vmem [thread:$0]  %s125, 16, %s597, [#allocation50]
    $region253: #{graphnet_forward.1} parent=1 // pred_fallthru
      _
    // Predicated region
    $region254: #{graphnet_forward.1} parent=1 // pred_check
      _
    $region255: #{graphnet_forward.1} parent=1 // pred_check_branch
      %601 = sbr.rel (0) target = $region257
    $region256: #{graphnet_forward.1} parent=1 // pred_region
      %s603 = ssub.s32 16, 16
      %604 = vsyncadd [#allocation50], %s603
      %s606 = sshll.u32 [#allocation51], 4
      %s607 = int_to_ptr.vmem [resolvable:$true] %s606
      %609 = dma.hbm_to_vmem [thread:$0]  %s127, 16, %s607, [#allocation50]
    $region257: #{graphnet_forward.1} parent=1 // pred_fallthru
      _
    // Predicated region
    $region258: #{graphnet_forward.1} parent=1 // pred_check
      _
    $region259: #{graphnet_forward.1} parent=1 // pred_check_branch
      %611 = sbr.rel (0) target = $region261
    $region260: #{graphnet_forward.1} parent=1 // pred_region
      %s613 = ssub.s32 16, 16
      %614 = vsyncadd [#allocation53], %s613
      %s616 = sshll.u32 [#allocation52], 4
      %s617 = int_to_ptr.vmem [resolvable:$true] %s616
      %619 = dma.hbm_to_vmem [thread:$0]  %s129, 16, %s617, [#allocation53]
    $region261: #{graphnet_forward.1} parent=1 // pred_fallthru
      _
    // Predicated region
    $region262: #{graphnet_forward.1} parent=1 // pred_check
      _
    $region263: #{graphnet_forward.1} parent=1 // pred_check_branch
      %621 = sbr.rel (0) target = $region265
    $region264: #{graphnet_forward.1} parent=1 // pred_region
      %s623 = ssub.s32 16, 16
      %624 = vsyncadd [#allocation53], %s623
      %s626 = sshll.u32 [#allocation54], 4
      %s627 = int_to_ptr.vmem [resolvable:$true] %s626
      %629 = dma.hbm_to_vmem [thread:$0]  %s131, 16, %s627, [#allocation53]
    $region265: #{graphnet_forward.1} parent=1 // pred_fallthru
      _
    // Predicated region
    $region266: #{graphnet_forward.1} parent=1 // pred_check
      _
    $region267: #{graphnet_forward.1} parent=1 // pred_check_branch
      %631 = sbr.rel (0) target = $region269
    $region268: #{graphnet_forward.1} parent=1 // pred_region
      %s633 = ssub.s32 16, 16
      %634 = vsyncadd [#allocation56], %s633
      %s636 = sshll.u32 [#allocation55], 4
      %s637 = int_to_ptr.vmem [resolvable:$true] %s636
      %639 = dma.hbm_to_vmem [thread:$0]  %s133, 16, %s637, [#allocation56]
    $region269: #{graphnet_forward.1} parent=1 // pred_fallthru
      _
    // Predicated region
    $region270: #{graphnet_forward.1} parent=1 // pred_check
      _
    $region271: #{graphnet_forward.1} parent=1 // pred_check_branch
      %641 = sbr.rel (0) target = $region273
    $region272: #{graphnet_forward.1} parent=1 // pred_region
      _
    $region273: #{graphnet_forward.1} parent=1 // pred_fallthru
      _
    // Predicated region
    $region274: #{graphnet_forward.1} parent=1 // pred_check
      _
    $region275: #{graphnet_forward.1} parent=1 // pred_check_branch
      %643 = sbr.rel (0) target = $region277
    $region276: #{graphnet_forward.1} parent=1 // pred_region
      _
    $region277: #{graphnet_forward.1} parent=1 // pred_fallthru
      _
    // Predicated region
    $region278: #{graphnet_forward.1} parent=1 // pred_check
      _
    $region279: #{graphnet_forward.1} parent=1 // pred_check_branch
      %645 = sbr.rel (0) target = $region281
    $region280: #{graphnet_forward.1} parent=1 // pred_region
      _
    $region281: #{graphnet_forward.1} parent=1 // pred_fallthru
      _
    // Predicated region
    $region282: #{graphnet_forward.1} parent=1 // pred_check
      _
    $region283: #{graphnet_forward.1} parent=1 // pred_check_branch
      %647 = sbr.rel (0) target = $region285
    $region284: #{graphnet_forward.1} parent=1 // pred_region
      _
    $region285: #{graphnet_forward.1} parent=1 // pred_fallthru
      _
    // Predicated region
    $region286: #{graphnet_forward.1} parent=1 // pred_check
      _
    $region287: #{graphnet_forward.1} parent=1 // pred_check_branch
      %649 = sbr.rel (0) target = $region289
    $region288: #{graphnet_forward.1} parent=1 // pred_region
      _
    $region289: #{graphnet_forward.1} parent=1 // pred_fallthru
      _
    // Predicated region
    $region290: #{graphnet_forward.1} parent=1 // pred_check
      _
    $region291: #{graphnet_forward.1} parent=1 // pred_check_branch
      %651 = sbr.rel (0) target = $region293
    $region292: #{graphnet_forward.1} parent=1 // pred_region
      %s653 = ssub.s32 16, 16
      %654 = vsyncadd [#allocation56], %s653
      %s656 = sshll.u32 [#allocation57], 4
      %s657 = int_to_ptr.vmem [resolvable:$true] %s656
      %659 = dma.hbm_to_vmem [thread:$0]  %s145, 16, %s657, [#allocation56]
    $region293: #{graphnet_forward.1} parent=1 // pred_fallthru
      _
    // Predicated region
    $region294: #{graphnet_forward.1} parent=1 // pred_check
      _
    $region295: #{graphnet_forward.1} parent=1 // pred_check_branch
      %661 = sbr.rel (0) target = $region297
    $region296: #{graphnet_forward.1} parent=1 // pred_region
      %s663 = ssub.s32 16, 16
      %664 = vsyncadd [#allocation59], %s663
      %s666 = sshll.u32 [#allocation58], 4
      %s667 = int_to_ptr.vmem [resolvable:$true] %s666
      %669 = dma.hbm_to_vmem [thread:$0]  %s147, 16, %s667, [#allocation59]
    $region297: #{graphnet_forward.1} parent=1 // pred_fallthru
      _
    // Predicated region
    $region298: #{graphnet_forward.1} parent=1 // pred_check
      _
    $region299: #{graphnet_forward.1} parent=1 // pred_check_branch
      %671 = sbr.rel (0) target = $region301
    $region300: #{graphnet_forward.1} parent=1 // pred_region
      %s673 = ssub.s32 16, 16
      %674 = vsyncadd [#allocation59], %s673
      %s676 = sshll.u32 [#allocation60], 4
      %s677 = int_to_ptr.vmem [resolvable:$true] %s676
      %679 = dma.hbm_to_vmem [thread:$0]  %s149, 16, %s677, [#allocation59]
    $region301: #{graphnet_forward.1} parent=1 // pred_fallthru
      _
    // Predicated region
    $region302: #{graphnet_forward.1} parent=1 // pred_check
      _
    $region303: #{graphnet_forward.1} parent=1 // pred_check_branch
      %681 = sbr.rel (0) target = $region305
    $region304: #{graphnet_forward.1} parent=1 // pred_region
      %s683 = ssub.s32 16, 16
      %684 = vsyncadd [#allocation62], %s683
      %s686 = sshll.u32 [#allocation61], 4
      %s687 = int_to_ptr.vmem [resolvable:$true] %s686
      %689 = dma.hbm_to_vmem [thread:$0]  %s151, 16, %s687, [#allocation62]
    $region305: #{graphnet_forward.1} parent=1 // pred_fallthru
      _
    // Predicated region
    $region306: #{graphnet_forward.1} parent=1 // pred_check
      _
    $region307: #{graphnet_forward.1} parent=1 // pred_check_branch
      %691 = sbr.rel (0) target = $region309
    $region308: #{graphnet_forward.1} parent=1 // pred_region
      %s693 = ssub.s32 16, 16
      %694 = vsyncadd [#allocation62], %s693
      %s696 = sshll.u32 [#allocation63], 4
      %s697 = int_to_ptr.vmem [resolvable:$true] %s696
      %699 = dma.hbm_to_vmem [thread:$0]  %s153, 16, %s697, [#allocation62]
    $region309: #{graphnet_forward.1} parent=1 // pred_fallthru
      _
    // Predicated region
    $region310: #{graphnet_forward.1} parent=1 // pred_check
      _
    $region311: #{graphnet_forward.1} parent=1 // pred_check_branch
      %701 = sbr.rel (0) target = $region313
    $region312: #{graphnet_forward.1} parent=1 // pred_region
      _
    $region313: #{graphnet_forward.1} parent=1 // pred_fallthru
      _
    // Predicated region
    $region314: #{graphnet_forward.1} parent=1 // pred_check
      _
    $region315: #{graphnet_forward.1} parent=1 // pred_check_branch
      %703 = sbr.rel (0) target = $region317
    $region316: #{graphnet_forward.1} parent=1 // pred_region
      _
    $region317: #{graphnet_forward.1} parent=1 // pred_fallthru
      _
    // Predicated region
    $region318: #{graphnet_forward.1} parent=1 // pred_check
      _
    $region319: #{graphnet_forward.1} parent=1 // pred_check_branch
      %705 = sbr.rel (0) target = $region321
    $region320: #{graphnet_forward.1} parent=1 // pred_region
      _
    $region321: #{graphnet_forward.1} parent=1 // pred_fallthru
      _
    // Predicated region
    $region322: #{graphnet_forward.1} parent=1 // pred_check
      _
    $region323: #{graphnet_forward.1} parent=1 // pred_check_branch
      %707 = sbr.rel (0) target = $region325
    $region324: #{graphnet_forward.1} parent=1 // pred_region
      _
    $region325: #{graphnet_forward.1} parent=1 // pred_fallthru
      _
    // Predicated region
    $region326: #{graphnet_forward.1} parent=1 // pred_check
      _
    $region327: #{graphnet_forward.1} parent=1 // pred_check_branch
      %709 = sbr.rel (0) target = $region329
    $region328: #{graphnet_forward.1} parent=1 // pred_region
      _
    $region329: #{graphnet_forward.1} parent=1 // pred_fallthru
      _
    // Predicated region
    $region330: #{graphnet_forward.1} parent=1 // pred_check
      _
    $region331: #{graphnet_forward.1} parent=1 // pred_check_branch
      %711 = sbr.rel (0) target = $region333
    $region332: #{graphnet_forward.1} parent=1 // pred_region
      _
    $region333: #{graphnet_forward.1} parent=1 // pred_fallthru
      _
    // Predicated region
    $region334: #{graphnet_forward.1} parent=1 // pred_check
      _
    $region335: #{graphnet_forward.1} parent=1 // pred_check_branch
      %713 = sbr.rel (0) target = $region337
    $region336: #{graphnet_forward.1} parent=1 // pred_region
      %s715 = ssub.s32 16, 16
      %716 = vsyncadd [#allocation65], %s715
      %s718 = sshll.u32 [#allocation64], 4
      %s719 = int_to_ptr.vmem [resolvable:$true] %s718
      %721 = dma.hbm_to_vmem [thread:$0]  %s167, 16, %s719, [#allocation65]
    $region337: #{graphnet_forward.1} parent=1 // pred_fallthru
      _
    // Predicated region
    $region338: #{graphnet_forward.1} parent=1 // pred_check
      _
    $region339: #{graphnet_forward.1} parent=1 // pred_check_branch
      %723 = sbr.rel (0) target = $region341
    $region340: #{graphnet_forward.1} parent=1 // pred_region
      %s725 = ssub.s32 16, 16
      %726 = vsyncadd [#allocation65], %s725
      %s728 = sshll.u32 [#allocation66], 4
      %s729 = int_to_ptr.vmem [resolvable:$true] %s728
      %731 = dma.hbm_to_vmem [thread:$0]  %s169, 16, %s729, [#allocation65]
    $region341: #{graphnet_forward.1} parent=1 // pred_fallthru
      _
    // Predicated region
    $region342: #{graphnet_forward.1} parent=1 // pred_check
      _
    $region343: #{graphnet_forward.1} parent=1 // pred_check_branch
      %733 = sbr.rel (0) target = $region345
    $region344: #{graphnet_forward.1} parent=1 // pred_region
      %s735 = ssub.s32 16, 16
      %736 = vsyncadd [#allocation68], %s735
      %s738 = sshll.u32 [#allocation67], 4
      %s739 = int_to_ptr.vmem [resolvable:$true] %s738
      %741 = dma.hbm_to_vmem [thread:$0]  %s171, 16, %s739, [#allocation68]
    $region345: #{graphnet_forward.1} parent=1 // pred_fallthru
      _
    // Predicated region
    $region346: #{graphnet_forward.1} parent=1 // pred_check
      _
    $region347: #{graphnet_forward.1} parent=1 // pred_check_branch
      %743 = sbr.rel (0) target = $region349
    $region348: #{graphnet_forward.1} parent=1 // pred_region
      %s745 = ssub.s32 16, 16
      %746 = vsyncadd [#allocation68], %s745
      %s748 = sshll.u32 [#allocation69], 4
      %s749 = int_to_ptr.vmem [resolvable:$true] %s748
      %751 = dma.hbm_to_vmem [thread:$0]  %s173, 16, %s749, [#allocation68]
    $region349: #{graphnet_forward.1} parent=1 // pred_fallthru
      _
    // Predicated region
    $region350: #{graphnet_forward.1} parent=1 // pred_check
      _
    $region351: #{graphnet_forward.1} parent=1 // pred_check_branch
      %753 = sbr.rel (0) target = $region353
    $region352: #{graphnet_forward.1} parent=1 // pred_region
      %s755 = ssub.s32 16, 16
      %756 = vsyncadd [#allocation71], %s755
      %s758 = sshll.u32 [#allocation70], 4
      %s759 = int_to_ptr.vmem [resolvable:$true] %s758
      %761 = dma.hbm_to_vmem [thread:$0]  %s175, 16, %s759, [#allocation71]
    $region353: #{graphnet_forward.1} parent=1 // pred_fallthru
      _
    // Predicated region
    $region354: #{graphnet_forward.1} parent=1 // pred_check
      _
    $region355: #{graphnet_forward.1} parent=1 // pred_check_branch
      %763 = sbr.rel (0) target = $region357
    $region356: #{graphnet_forward.1} parent=1 // pred_region
      _
    $region357: #{graphnet_forward.1} parent=1 // pred_fallthru
      _
    // Predicated region
    $region358: #{graphnet_forward.1} parent=1 // pred_check
      _
    $region359: #{graphnet_forward.1} parent=1 // pred_check_branch
      %765 = sbr.rel (0) target = $region361
    $region360: #{graphnet_forward.1} parent=1 // pred_region
      _
    $region361: #{graphnet_forward.1} parent=1 // pred_fallthru
      _
    // Predicated region
    $region362: #{graphnet_forward.1} parent=1 // pred_check
      _
    $region363: #{graphnet_forward.1} parent=1 // pred_check_branch
      %767 = sbr.rel (0) target = $region365
    $region364: #{graphnet_forward.1} parent=1 // pred_region
      _
    $region365: #{graphnet_forward.1} parent=1 // pred_fallthru
      _
    // Predicated region
    $region366: #{graphnet_forward.1} parent=1 // pred_check
      _
    $region367: #{graphnet_forward.1} parent=1 // pred_check_branch
      %769 = sbr.rel (0) target = $region369
    $region368: #{graphnet_forward.1} parent=1 // pred_region
      _
    $region369: #{graphnet_forward.1} parent=1 // pred_fallthru
      _
    // Predicated region
    $region370: #{graphnet_forward.1} parent=1 // pred_check
      _
    $region371: #{graphnet_forward.1} parent=1 // pred_check_branch
      %771 = sbr.rel (0) target = $region373
    $region372: #{graphnet_forward.1} parent=1 // pred_region
      _
    $region373: #{graphnet_forward.1} parent=1 // pred_fallthru
      _
    // Predicated region
    $region374: #{graphnet_forward.1} parent=1 // pred_check
      _
    $region375: #{graphnet_forward.1} parent=1 // pred_check_branch
      %773 = sbr.rel (0) target = $region377
    $region376: #{graphnet_forward.1} parent=1 // pred_region
      _
    $region377: #{graphnet_forward.1} parent=1 // pred_fallthru
      _
    // Predicated region
    $region378: #{graphnet_forward.1} parent=1 // pred_check
      _
    $region379: #{graphnet_forward.1} parent=1 // pred_check_branch
      %775 = sbr.rel (0) target = $region381
    $region380: #{graphnet_forward.1} parent=1 // pred_region
      %776 = dma.done [#allocation3], 16
    $region381: #{graphnet_forward.1} parent=1 // pred_fallthru
      _
    // Predicated region
    $region382: #{graphnet_forward.1} parent=1 // pred_check
      _
    $region383: #{graphnet_forward.1} parent=1 // pred_check_branch
      %778 = sbr.rel (0) target = $region385
    $region384: #{graphnet_forward.1} parent=1 // pred_region
      %779 = dma.done [#allocation5], 16
    $region385: #{graphnet_forward.1} parent=1 // pred_fallthru
      _
    // Predicated region
    $region386: #{graphnet_forward.1} parent=1 // pred_check
      _
    $region387: #{graphnet_forward.1} parent=1 // pred_check_branch
      %781 = sbr.rel (0) target = $region389
    $region388: #{graphnet_forward.1} parent=1 // pred_region
      %782 = dma.done [#allocation5], 16
    $region389: #{graphnet_forward.1} parent=1 // pred_fallthru
      _
    // Predicated region
    $region390: #{graphnet_forward.1} parent=1 // pred_check
      _
    $region391: #{graphnet_forward.1} parent=1 // pred_check_branch
      %784 = sbr.rel (0) target = $region393
    $region392: #{graphnet_forward.1} parent=1 // pred_region
      %785 = dma.done [#allocation8], 16
    $region393: #{graphnet_forward.1} parent=1 // pred_fallthru
      _
    // Predicated region
    $region394: #{graphnet_forward.1} parent=1 // pred_check
      _
    $region395: #{graphnet_forward.1} parent=1 // pred_check_branch
      %787 = sbr.rel (0) target = $region397
    $region396: #{graphnet_forward.1} parent=1 // pred_region
      %788 = dma.done [#allocation8], 16
    $region397: #{graphnet_forward.1} parent=1 // pred_fallthru
      _
    // Predicated region
    $region398: #{graphnet_forward.1} parent=1 // pred_check
      _
    $region399: #{graphnet_forward.1} parent=1 // pred_check_branch
      %790 = sbr.rel (0) target = $region401
    $region400: #{graphnet_forward.1} parent=1 // pred_region
      %791 = dma.done [#allocation11], 16
    $region401: #{graphnet_forward.1} parent=1 // pred_fallthru
      _
    // Predicated region
    $region402: #{graphnet_forward.1} parent=1 // pred_check
      _
    $region403: #{graphnet_forward.1} parent=1 // pred_check_branch
      %793 = sbr.rel (0) target = $region405
    $region404: #{graphnet_forward.1} parent=1 // pred_region
      %794 = dma.done [#allocation11], 16
    $region405: #{graphnet_forward.1} parent=1 // pred_fallthru
      _
    // Predicated region
    $region406: #{graphnet_forward.1} parent=1 // pred_check
      _
    $region407: #{graphnet_forward.1} parent=1 // pred_check_branch
      %796 = sbr.rel (0) target = $region409
    $region408: #{graphnet_forward.1} parent=1 // pred_region
      %797 = dma.done [#allocation14], 16
    $region409: #{graphnet_forward.1} parent=1 // pred_fallthru
      _
    // Predicated region
    $region410: #{graphnet_forward.1} parent=1 // pred_check
      _
    $region411: #{graphnet_forward.1} parent=1 // pred_check_branch
      %799 = sbr.rel (0) target = $region413
    $region412: #{graphnet_forward.1} parent=1 // pred_region
      %800 = dma.done [#allocation14], 16
    $region413: #{graphnet_forward.1} parent=1 // pred_fallthru
      _
    // Predicated region
    $region414: #{graphnet_forward.1} parent=1 // pred_check
      _
    $region415: #{graphnet_forward.1} parent=1 // pred_check_branch
      %802 = sbr.rel (0) target = $region417
    $region416: #{graphnet_forward.1} parent=1 // pred_region
      %803 = dma.done [#allocation17], 16
    $region417: #{graphnet_forward.1} parent=1 // pred_fallthru
      _
    // Predicated region
    $region418: #{graphnet_forward.1} parent=1 // pred_check
      _
    $region419: #{graphnet_forward.1} parent=1 // pred_check_branch
      %805 = sbr.rel (0) target = $region421
    $region420: #{graphnet_forward.1} parent=1 // pred_region
      %806 = dma.done [#allocation17], 32
    $region421: #{graphnet_forward.1} parent=1 // pred_fallthru
      _
    // Predicated region
    $region422: #{graphnet_forward.1} parent=1 // pred_check
      _
    $region423: #{graphnet_forward.1} parent=1 // pred_check_branch
      %808 = sbr.rel (0) target = $region425
    $region424: #{graphnet_forward.1} parent=1 // pred_region
      %809 = dma.done [#allocation20], 16
    $region425: #{graphnet_forward.1} parent=1 // pred_fallthru
      _
    // Predicated region
    $region426: #{graphnet_forward.1} parent=1 // pred_check
      _
    $region427: #{graphnet_forward.1} parent=1 // pred_check_branch
      %811 = sbr.rel (0) target = $region429
    $region428: #{graphnet_forward.1} parent=1 // pred_region
      %812 = dma.done [#allocation20], 16
    $region429: #{graphnet_forward.1} parent=1 // pred_fallthru
      _
    // Predicated region
    $region430: #{graphnet_forward.1} parent=1 // pred_check
      _
    $region431: #{graphnet_forward.1} parent=1 // pred_check_branch
      %814 = sbr.rel (0) target = $region433
    $region432: #{graphnet_forward.1} parent=1 // pred_region
      %815 = dma.done [#allocation23], 16
    $region433: #{graphnet_forward.1} parent=1 // pred_fallthru
      _
    // Predicated region
    $region434: #{graphnet_forward.1} parent=1 // pred_check
      _
    $region435: #{graphnet_forward.1} parent=1 // pred_check_branch
      %817 = sbr.rel (0) target = $region437
    $region436: #{graphnet_forward.1} parent=1 // pred_region
      %818 = dma.done [#allocation23], 16
    $region437: #{graphnet_forward.1} parent=1 // pred_fallthru
      _
    // Predicated region
    $region438: #{graphnet_forward.1} parent=1 // pred_check
      _
    $region439: #{graphnet_forward.1} parent=1 // pred_check_branch
      %820 = sbr.rel (0) target = $region441
    $region440: #{graphnet_forward.1} parent=1 // pred_region
      %821 = dma.done [#allocation26], 16
    $region441: #{graphnet_forward.1} parent=1 // pred_fallthru
      _
    // Predicated region
    $region442: #{graphnet_forward.1} parent=1 // pred_check
      _
    $region443: #{graphnet_forward.1} parent=1 // pred_check_branch
      %823 = sbr.rel (0) target = $region445
    $region444: #{graphnet_forward.1} parent=1 // pred_region
      %824 = dma.done [#allocation26], 16
    $region445: #{graphnet_forward.1} parent=1 // pred_fallthru
      _
    // Predicated region
    $region446: #{graphnet_forward.1} parent=1 // pred_check
      _
    $region447: #{graphnet_forward.1} parent=1 // pred_check_branch
      %826 = sbr.rel (0) target = $region449
    $region448: #{graphnet_forward.1} parent=1 // pred_region
      %827 = dma.done [#allocation29], 16
    $region449: #{graphnet_forward.1} parent=1 // pred_fallthru
      _
    // Predicated region
    $region450: #{graphnet_forward.1} parent=1 // pred_check
      _
    $region451: #{graphnet_forward.1} parent=1 // pred_check_branch
      %829 = sbr.rel (0) target = $region453
    $region452: #{graphnet_forward.1} parent=1 // pred_region
      %830 = dma.done [#allocation29], 16
    $region453: #{graphnet_forward.1} parent=1 // pred_fallthru
      _
    // Predicated region
    $region454: #{graphnet_forward.1} parent=1 // pred_check
      _
    $region455: #{graphnet_forward.1} parent=1 // pred_check_branch
      %832 = sbr.rel (0) target = $region457
    $region456: #{graphnet_forward.1} parent=1 // pred_region
      %833 = dma.done [#allocation32], 16
    $region457: #{graphnet_forward.1} parent=1 // pred_fallthru
      _
    // Predicated region
    $region458: #{graphnet_forward.1} parent=1 // pred_check
      _
    $region459: #{graphnet_forward.1} parent=1 // pred_check_branch
      %835 = sbr.rel (0) target = $region461
    $region460: #{graphnet_forward.1} parent=1 // pred_region
      %836 = dma.done [#allocation32], 16
    $region461: #{graphnet_forward.1} parent=1 // pred_fallthru
      _
    // Predicated region
    $region462: #{graphnet_forward.1} parent=1 // pred_check
      _
    $region463: #{graphnet_forward.1} parent=1 // pred_check_branch
      %838 = sbr.rel (0) target = $region465
    $region464: #{graphnet_forward.1} parent=1 // pred_region
      %839 = dma.done [#allocation35], 32
    $region465: #{graphnet_forward.1} parent=1 // pred_fallthru
      _
    // Predicated region
    $region466: #{graphnet_forward.1} parent=1 // pred_check
      _
    $region467: #{graphnet_forward.1} parent=1 // pred_check_branch
      %841 = sbr.rel (0) target = $region469
    $region468: #{graphnet_forward.1} parent=1 // pred_region
      %842 = dma.done [#allocation35], 32
    $region469: #{graphnet_forward.1} parent=1 // pred_fallthru
      _
    // Predicated region
    $region470: #{graphnet_forward.1} parent=1 // pred_check
      _
    $region471: #{graphnet_forward.1} parent=1 // pred_check_branch
      %844 = sbr.rel (0) target = $region473
    $region472: #{graphnet_forward.1} parent=1 // pred_region
      %845 = dma.done [#allocation38], 16
    $region473: #{graphnet_forward.1} parent=1 // pred_fallthru
      _
    // Predicated region
    $region474: #{graphnet_forward.1} parent=1 // pred_check
      _
    $region475: #{graphnet_forward.1} parent=1 // pred_check_branch
      %847 = sbr.rel (0) target = $region477
    $region476: #{graphnet_forward.1} parent=1 // pred_region
      %848 = dma.done [#allocation38], 16
    $region477: #{graphnet_forward.1} parent=1 // pred_fallthru
      _
    // Predicated region
    $region478: #{graphnet_forward.1} parent=1 // pred_check
      _
    $region479: #{graphnet_forward.1} parent=1 // pred_check_branch
      %850 = sbr.rel (0) target = $region481
    $region480: #{graphnet_forward.1} parent=1 // pred_region
      %851 = dma.done [#allocation41], 16
    $region481: #{graphnet_forward.1} parent=1 // pred_fallthru
      _
    // Predicated region
    $region482: #{graphnet_forward.1} parent=1 // pred_check
      _
    $region483: #{graphnet_forward.1} parent=1 // pred_check_branch
      %853 = sbr.rel (0) target = $region485
    $region484: #{graphnet_forward.1} parent=1 // pred_region
      %854 = dma.done [#allocation41], 16
    $region485: #{graphnet_forward.1} parent=1 // pred_fallthru
      _
    // Predicated region
    $region486: #{graphnet_forward.1} parent=1 // pred_check
      _
    $region487: #{graphnet_forward.1} parent=1 // pred_check_branch
      %856 = sbr.rel (0) target = $region489
    $region488: #{graphnet_forward.1} parent=1 // pred_region
      %857 = dma.done [#allocation44], 16
    $region489: #{graphnet_forward.1} parent=1 // pred_fallthru
      _
    // Predicated region
    $region490: #{graphnet_forward.1} parent=1 // pred_check
      _
    $region491: #{graphnet_forward.1} parent=1 // pred_check_branch
      %859 = sbr.rel (0) target = $region493
    $region492: #{graphnet_forward.1} parent=1 // pred_region
      %860 = dma.done [#allocation44], 16
    $region493: #{graphnet_forward.1} parent=1 // pred_fallthru
      _
    // Predicated region
    $region494: #{graphnet_forward.1} parent=1 // pred_check
      _
    $region495: #{graphnet_forward.1} parent=1 // pred_check_branch
      %862 = sbr.rel (0) target = $region497
    $region496: #{graphnet_forward.1} parent=1 // pred_region
      %863 = dma.done [#allocation47], 16
    $region497: #{graphnet_forward.1} parent=1 // pred_fallthru
      _
    // Predicated region
    $region498: #{graphnet_forward.1} parent=1 // pred_check
      _
    $region499: #{graphnet_forward.1} parent=1 // pred_check_branch
      %865 = sbr.rel (0) target = $region501
    $region500: #{graphnet_forward.1} parent=1 // pred_region
      %866 = dma.done [#allocation47], 16
    $region501: #{graphnet_forward.1} parent=1 // pred_fallthru
      _
    // Predicated region
    $region502: #{graphnet_forward.1} parent=1 // pred_check
      _
    $region503: #{graphnet_forward.1} parent=1 // pred_check_branch
      %868 = sbr.rel (0) target = $region505
    $region504: #{graphnet_forward.1} parent=1 // pred_region
      %869 = dma.done [#allocation50], 16
    $region505: #{graphnet_forward.1} parent=1 // pred_fallthru
      _
    // Predicated region
    $region506: #{graphnet_forward.1} parent=1 // pred_check
      _
    $region507: #{graphnet_forward.1} parent=1 // pred_check_branch
      %871 = sbr.rel (0) target = $region509
    $region508: #{graphnet_forward.1} parent=1 // pred_region
      %872 = dma.done [#allocation50], 16
    $region509: #{graphnet_forward.1} parent=1 // pred_fallthru
      _
    // Predicated region
    $region510: #{graphnet_forward.1} parent=1 // pred_check
      _
    $region511: #{graphnet_forward.1} parent=1 // pred_check_branch
      %874 = sbr.rel (0) target = $region513
    $region512: #{graphnet_forward.1} parent=1 // pred_region
      %875 = dma.done [#allocation53], 16
    $region513: #{graphnet_forward.1} parent=1 // pred_fallthru
      _
    // Predicated region
    $region514: #{graphnet_forward.1} parent=1 // pred_check
      _
    $region515: #{graphnet_forward.1} parent=1 // pred_check_branch
      %877 = sbr.rel (0) target = $region517
    $region516: #{graphnet_forward.1} parent=1 // pred_region
      %878 = dma.done [#allocation53], 16
    $region517: #{graphnet_forward.1} parent=1 // pred_fallthru
      _
    // Predicated region
    $region518: #{graphnet_forward.1} parent=1 // pred_check
      _
    $region519: #{graphnet_forward.1} parent=1 // pred_check_branch
      %880 = sbr.rel (0) target = $region521
    $region520: #{graphnet_forward.1} parent=1 // pred_region
      %881 = dma.done [#allocation56], 16
    $region521: #{graphnet_forward.1} parent=1 // pred_fallthru
      _
    // Predicated region
    $region522: #{graphnet_forward.1} parent=1 // pred_check
      _
    $region523: #{graphnet_forward.1} parent=1 // pred_check_branch
      %883 = sbr.rel (0) target = $region525
    $region524: #{graphnet_forward.1} parent=1 // pred_region
      %884 = dma.done [#allocation56], 16
    $region525: #{graphnet_forward.1} parent=1 // pred_fallthru
      _
    // Predicated region
    $region526: #{graphnet_forward.1} parent=1 // pred_check
      _
    $region527: #{graphnet_forward.1} parent=1 // pred_check_branch
      %886 = sbr.rel (0) target = $region529
    $region528: #{graphnet_forward.1} parent=1 // pred_region
      %887 = dma.done [#allocation59], 16
    $region529: #{graphnet_forward.1} parent=1 // pred_fallthru
      _
    // Predicated region
    $region530: #{graphnet_forward.1} parent=1 // pred_check
      _
    $region531: #{graphnet_forward.1} parent=1 // pred_check_branch
      %889 = sbr.rel (0) target = $region533
    $region532: #{graphnet_forward.1} parent=1 // pred_region
      %890 = dma.done [#allocation59], 16
    $region533: #{graphnet_forward.1} parent=1 // pred_fallthru
      _
    // Predicated region
    $region534: #{graphnet_forward.1} parent=1 // pred_check
      _
    $region535: #{graphnet_forward.1} parent=1 // pred_check_branch
      %892 = sbr.rel (0) target = $region537
    $region536: #{graphnet_forward.1} parent=1 // pred_region
      %893 = dma.done [#allocation62], 16
    $region537: #{graphnet_forward.1} parent=1 // pred_fallthru
      _
    // Predicated region
    $region538: #{graphnet_forward.1} parent=1 // pred_check
      _
    $region539: #{graphnet_forward.1} parent=1 // pred_check_branch
      %895 = sbr.rel (0) target = $region541
    $region540: #{graphnet_forward.1} parent=1 // pred_region
      %896 = dma.done [#allocation62], 16
    $region541: #{graphnet_forward.1} parent=1 // pred_fallthru
      _
    // Predicated region
    $region542: #{graphnet_forward.1} parent=1 // pred_check
      _
    $region543: #{graphnet_forward.1} parent=1 // pred_check_branch
      %898 = sbr.rel (0) target = $region545
    $region544: #{graphnet_forward.1} parent=1 // pred_region
      %899 = dma.done [#allocation65], 16
    $region545: #{graphnet_forward.1} parent=1 // pred_fallthru
      _
    // Predicated region
    $region546: #{graphnet_forward.1} parent=1 // pred_check
      _
    $region547: #{graphnet_forward.1} parent=1 // pred_check_branch
      %901 = sbr.rel (0) target = $region549
    $region548: #{graphnet_forward.1} parent=1 // pred_region
      %902 = dma.done [#allocation65], 16
    $region549: #{graphnet_forward.1} parent=1 // pred_fallthru
      _
    // Predicated region
    $region550: #{graphnet_forward.1} parent=1 // pred_check
      _
    $region551: #{graphnet_forward.1} parent=1 // pred_check_branch
      %904 = sbr.rel (0) target = $region553
    $region552: #{graphnet_forward.1} parent=1 // pred_region
      %905 = dma.done [#allocation68], 16
    $region553: #{graphnet_forward.1} parent=1 // pred_fallthru
      _
    // Predicated region
    $region554: #{graphnet_forward.1} parent=1 // pred_check
      _
    $region555: #{graphnet_forward.1} parent=1 // pred_check_branch
      %907 = sbr.rel (0) target = $region557
    $region556: #{graphnet_forward.1} parent=1 // pred_region
      %908 = dma.done [#allocation68], 16
    $region557: #{graphnet_forward.1} parent=1 // pred_fallthru
      _
    // Predicated region
    $region558: #{graphnet_forward.1} parent=1 // pred_check
      _
    $region559: #{graphnet_forward.1} parent=1 // pred_check_branch
      %910 = sbr.rel (0) target = $region561
    $region560: #{graphnet_forward.1} parent=1 // pred_region
      %911 = dma.done [#allocation71], 16
    $region561: #{graphnet_forward.1} parent=1 // pred_fallthru
      _
    %v913 = vld [vmem:[%s13] sm:$0xff]
    %v914 = vld [vmem:[%s13 + $0x8] sm:$0xff]
    %v915 = vld [vmem:[%s9] sm:$0xff]
    %v916 = vld [vmem:[%s9 + $0x8] sm:$0xff]
    %v917 = vld [vmem:[%s9 + $0x10] sm:$0xff]
    %v918 = vld [vmem:[%s9 + $0x18] sm:$0xff]
    %v919 = vld [vmem:[%s23] sm:$0xf]
    %v920 = vld [vmem:[%s23 + $0x4] sm:$0xf]
    %v921 = vld [vmem:[%s23 + $0x8] sm:$0xf]
    %v922 = vld [vmem:[%s23 + $0xc] sm:$0xf]
    %v923 = vld [vmem:[%s23 + $0x10] sm:$0xf]
    %v924 = vld [vmem:[%s23 + $0x14] sm:$0xf]
    %v925 = vld [vmem:[%s23 + $0x18] sm:$0xf]
    %v926 = vld [vmem:[%s23 + $0x1c] sm:$0xf]
    %v927 = vld [vmem:[%s3] sm:$0xf]
    %v928 = vld [vmem:[%s3 + $0x4] sm:$0xf]
    %v929 = vld [vmem:[#allocation19] sm:$0x1]
    %v930 = vpack.c.bf16 %v914, %v913
    %v931 = vld [vmem:[%s69] sm:$0xf]
    %vm932 = vcmask 64512
    %v934 = vsel %vm932, %v930, 0
    %vm936 = vcmask 1043456
    %v938 = vsel %vm936, %v931, 0
    %940 = vmatprep.subr.bf16.mxu0 0
    %941 = vmatpush1.bf16.msra.mxu0 %v938
    %942 = vmatprep.subr.bf16.mxu0 0
    %943 = vmatpush1.bf16.msra.mxu0 0
    %944 = vmatprep.subr.bf16.mxu0 0
    %945 = vmatpush1.bf16.msra.mxu0 0
    %946 = vmatprep.subr.bf16.mxu0 0
    %947 = vmatpush1.bf16.msra.mxu0 0
    %948 = vmatprep.subr.bf16.mxu0 0
    %949 = vmatpush1.bf16.msra.mxu0 0
    %950 = vmatprep.subr.bf16.mxu0 0
    %951 = vmatpush1.bf16.msra.mxu0 0
    %952 = vmatprep.subr.bf16.mxu0 0
    %953 = vmatpush1.bf16.msra.mxu0 0
    %954 = vmatprep.subr.bf16.mxu0 0
    %955 = vmatpush1.bf16.msra.mxu0 0
    %956 = vmatprep.subr.bf16.mxu0 0
    %957 = vmatpush1.bf16.msra.mxu0 0
    %958 = vmatprep.subr.bf16.mxu0 0
    %959 = vmatpush1.bf16.msra.mxu0 0
    %960 = vmatprep.subr.bf16.mxu0 0
    %961 = vmatpush1.bf16.msra.mxu0 0
    %962 = vmatprep.subr.bf16.mxu0 0
    %963 = vmatpush1.bf16.msra.mxu0 0
    %964 = vmatprep.subr.bf16.mxu0 0
    %965 = vmatpush1.bf16.msra.mxu0 0
    %966 = vmatprep.subr.bf16.mxu0 0
    %967 = vmatpush1.bf16.msra.mxu0 0
    %968 = vmatprep.subr.bf16.mxu0 0
    %969 = vmatpush1.bf16.msra.mxu0 0
    %970 = vmatprep.subr.bf16.mxu0 0
    %971 = vmatpush1.bf16.msra.mxu0 0
    %972 = vmatprep.mubr.bf16.mxu0 0
    %973 = vmatmul.mubr.bf16.gmra.mrb[0].mxu0 %v934
    %v974 = vpop.f32.mrb[0].mxu0
    %v975 = vadd.f32 0.0, %v974
    %v976 = vpop.f32.mrb[0].mxu0
    %v977 = vpop.f32.mrb[0].mxu0
    %v978 = vadd.f32 0.0, %v977
    %v979 = vpop.f32.mrb[0].mxu0
    %980 = vdwg.mxu0
    %v982 = vlaneseq
    %v983 = vshrl.u32 %v982, 7
    %v984 = vsub.s32 0, %v983
    %v985 = vrot.slane %v929, %v984
    %v987 = vadd.f32 %v985, %v975
    %v988 = vadd.f32 %v985, %v978
    %v989 = vmul.f32 %v987, 0.01
    %v990 = vmul.f32 %v988, 0.01
    %v991 = vmax.f32 %v987, %v989
    %v992 = vmax.f32 %v988, %v990
    %v993 = vpack.c.bf16 %v992, %v991
    %v994 = vld [vmem:[%s71] sm:$0xf]
    %v995 = vld [vmem:[%s71 + $0x4] sm:$0xf]
    %v996 = vld [vmem:[%s71 + $0x8] sm:$0xf]
    %v997 = vld [vmem:[%s71 + $0xc] sm:$0xf]
    %v998 = vld [vmem:[#allocation21] sm:$0x1]
    %v1000 = vlaneseq
    %v1001 = vshrl.u32 %v1000, 7
    %v1002 = vsub.s32 0, %v1001
    %v1003 = vrot.slane %v998, %v1002
    %v1009 = vunpack.c.l.b16 %v994
    %v1010 = vunpack.c.l.b16 %v995
    %v1011 = vunpack.c.l.b16 %v996
    %v1012 = vunpack.c.l.b16 %v997
    %v1013 = vpack.c.b16 %v1010, %v1009
    %v1014 = vpack.c.b16 %v1012, %v1011
    %vm1017 = vcmask 261120
    %v1019 = vsel %vm1017, %v993, 0
    %1021 = vmatprep.subr.bf16.mxu0 0
    %1022 = vmatpush1.bf16.msra.mxu0 %v1013
    %1023 = vmatprep.subr.bf16.mxu0 0
    %1024 = vmatpush1.bf16.msra.mxu0 %v1014
    %1025 = vmatprep.subr.bf16.mxu0 0
    %1026 = vmatpush1.bf16.msra.mxu0 0
    %1027 = vmatprep.subr.bf16.mxu0 0
    %1028 = vmatpush1.bf16.msra.mxu0 0
    %1029 = vmatprep.subr.bf16.mxu0 0
    %1030 = vmatpush1.bf16.msra.mxu0 0
    %1031 = vmatprep.subr.bf16.mxu0 0
    %1032 = vmatpush1.bf16.msra.mxu0 0
    %1033 = vmatprep.subr.bf16.mxu0 0
    %1034 = vmatpush1.bf16.msra.mxu0 0
    %1035 = vmatprep.subr.bf16.mxu0 0
    %1036 = vmatpush1.bf16.msra.mxu0 0
    %1037 = vmatprep.subr.bf16.mxu0 0
    %1038 = vmatpush1.bf16.msra.mxu0 0
    %1039 = vmatprep.subr.bf16.mxu0 0
    %1040 = vmatpush1.bf16.msra.mxu0 0
    %1041 = vmatprep.subr.bf16.mxu0 0
    %1042 = vmatpush1.bf16.msra.mxu0 0
    %1043 = vmatprep.subr.bf16.mxu0 0
    %1044 = vmatpush1.bf16.msra.mxu0 0
    %1045 = vmatprep.subr.bf16.mxu0 0
    %1046 = vmatpush1.bf16.msra.mxu0 0
    %1047 = vmatprep.subr.bf16.mxu0 0
    %1048 = vmatpush1.bf16.msra.mxu0 0
    %1049 = vmatprep.subr.bf16.mxu0 0
    %1050 = vmatpush1.bf16.msra.mxu0 0
    %1051 = vmatprep.subr.bf16.mxu0 0
    %1052 = vmatpush1.bf16.msra.mxu0 0
    %1053 = vmatprep.mubr.bf16.mxu0 0
    %1054 = vmatmul.mubr.bf16.gmra.mrb[0].mxu0 %v1019
    %v1055 = vpop.f32.mrb[0].mxu0
    %v1056 = vadd.f32 %v1003, %v1055
    %v1057 = vpop.f32.mrb[0].mxu0
    %v1058 = vpop.f32.mrb[0].mxu0
    %v1059 = vadd.f32 %v1003, %v1058
    %v1060 = vpop.f32.mrb[0].mxu0
    %1061 = vdwg.mxu0
    %v1062 = vmul.f32 %v1056, 0.01
    %v1063 = vmul.f32 %v1059, 0.01
    %v1064 = vmax.f32 %v1056, %v1062
    %v1065 = vmax.f32 %v1059, %v1063
    %v1066 = vpack.c.bf16 %v1065, %v1064
    %v1067 = vld [vmem:[%s73] sm:$0xf]
    %v1068 = vld [vmem:[%s73 + $0x4] sm:$0xf]
    %v1069 = vld [vmem:[%s73 + $0x8] sm:$0xf]
    %v1070 = vld [vmem:[%s73 + $0xc] sm:$0xf]
    %v1071 = vld [vmem:[#allocation22] sm:$0x1]
    %v1073 = vlaneseq
    %v1074 = vshrl.u32 %v1073, 7
    %v1075 = vsub.s32 0, %v1074
    %v1076 = vrot.slane %v1071, %v1075
    %v1082 = vunpack.c.l.b16 %v1067
    %v1083 = vunpack.c.l.b16 %v1068
    %v1084 = vunpack.c.l.b16 %v1069
    %v1085 = vunpack.c.l.b16 %v1070
    %v1086 = vpack.c.b16 %v1083, %v1082
    %v1087 = vpack.c.b16 %v1085, %v1084
    %v1091 = vsel %vm1017, %v1066, 0
    %1093 = vmatprep.subr.bf16.mxu0 0
    %1094 = vmatpush1.bf16.msra.mxu0 %v1086
    %1095 = vmatprep.subr.bf16.mxu0 0
    %1096 = vmatpush1.bf16.msra.mxu0 %v1087
    %1097 = vmatprep.subr.bf16.mxu0 0
    %1098 = vmatpush1.bf16.msra.mxu0 0
    %1099 = vmatprep.subr.bf16.mxu0 0
    %1100 = vmatpush1.bf16.msra.mxu0 0
    %1101 = vmatprep.subr.bf16.mxu0 0
    %1102 = vmatpush1.bf16.msra.mxu0 0
    %1103 = vmatprep.subr.bf16.mxu0 0
    %1104 = vmatpush1.bf16.msra.mxu0 0
    %1105 = vmatprep.subr.bf16.mxu0 0
    %1106 = vmatpush1.bf16.msra.mxu0 0
    %1107 = vmatprep.subr.bf16.mxu0 0
    %1108 = vmatpush1.bf16.msra.mxu0 0
    %1109 = vmatprep.subr.bf16.mxu0 0
    %1110 = vmatpush1.bf16.msra.mxu0 0
    %1111 = vmatprep.subr.bf16.mxu0 0
    %1112 = vmatpush1.bf16.msra.mxu0 0
    %1113 = vmatprep.subr.bf16.mxu0 0
    %1114 = vmatpush1.bf16.msra.mxu0 0
    %1115 = vmatprep.subr.bf16.mxu0 0
    %1116 = vmatpush1.bf16.msra.mxu0 0
    %1117 = vmatprep.subr.bf16.mxu0 0
    %1118 = vmatpush1.bf16.msra.mxu0 0
    %1119 = vmatprep.subr.bf16.mxu0 0
    %1120 = vmatpush1.bf16.msra.mxu0 0
    %1121 = vmatprep.subr.bf16.mxu0 0
    %1122 = vmatpush1.bf16.msra.mxu0 0
    %1123 = vmatprep.subr.bf16.mxu0 0
    %1124 = vmatpush1.bf16.msra.mxu0 0
    %1125 = vmatprep.mubr.bf16.mxu0 0
    %1126 = vmatmul.mubr.bf16.gmra.mrb[0].mxu0 %v1091
    %v1127 = vpop.f32.mrb[0].mxu0
    %v1128 = vadd.f32 %v1076, %v1127
    %v1129 = vpop.f32.mrb[0].mxu0
    %v1130 = vpop.f32.mrb[0].mxu0
    %v1131 = vadd.f32 %v1076, %v1130
    %v1132 = vpop.f32.mrb[0].mxu0
    %1133 = vdwg.mxu0
    %vm1134 = vcmask 130048
    %v1135 = vsel %vm1134, %v1128, 0.0
    %1136 = vadd.xlane.f32.xlu0 %v1135
    %v1137 = vpop.xlane.xlu0 %1136
    %v1138 = vsel %vm1134, %v1131, 0.0
    %1139 = vadd.xlane.f32.xlu0 %v1138
    %v1140 = vpop.xlane.xlu0 %1139
    %v1141 = vrcp.pop 16.0
    %v1142 = vmul.f32 %v1137, %v1141
    %v1143 = vmul.f32 %v1140, %v1141
    %v1144 = vmul.f32 %v1128, %v1128
    %v1145 = vmul.f32 %v1131, %v1131
    %v1146 = vsel %vm1134, %v1144, 0.0
    %1147 = vadd.xlane.f32.xlu0 %v1146
    %v1148 = vpop.xlane.xlu0 %1147
    %v1149 = vsel %vm1134, %v1145, 0.0
    %1150 = vadd.xlane.f32.xlu0 %v1149
    %v1151 = vpop.xlane.xlu0 %1150
    %v1152 = vmul.f32 %v1148, %v1141
    %v1153 = vmul.f32 %v1151, %v1141
    %v1154 = vmul.f32 %v1142, %v1142
    %v1155 = vmul.f32 %v1143, %v1143
    %v1156 = vsub.f32 %v1152, %v1154
    %v1157 = vsub.f32 %v1153, %v1155
    %v1158 = vmax.f32 %v1156, 0.0
    %v1159 = vmax.f32 %v1157, 0.0
    %v1160 = vsub.f32 %v1128, %v1142
    %v1161 = vsub.f32 %v1131, %v1143
    %v1162 = vadd.f32 %v1158, 1e-05
    %v1163 = vadd.f32 %v1159, 1e-05
    %v1164 = vrsqrt.pop %v1162
    %v1165 = vrsqrt.pop %v1163
    %v1166 = vmul.f32 %v1160, %v1164
    %v1167 = vmul.f32 %v1161, %v1165
    %v1168 = vld [vmem:[#allocation25] sm:$0x1]
    %v1170 = vlaneseq
    %v1171 = vshrl.u32 %v1170, 7
    %v1172 = vsub.s32 0, %v1171
    %v1173 = vrot.slane %v1168, %v1172
    %v1175 = vmul.f32 %v1166, %v1173
    %v1176 = vmul.f32 %v1167, %v1173
    %v1177 = vld [vmem:[#allocation24] sm:$0x1]
    %v1179 = vlaneseq
    %v1180 = vshrl.u32 %v1179, 7
    %v1181 = vsub.s32 0, %v1180
    %v1182 = vrot.slane %v1177, %v1181
    %v1184 = vadd.f32 %v1175, %v1182
    %v1185 = vadd.f32 %v1176, %v1182
    %v1186 = vld [vmem:[#allocation2] sm:$0x1]
    %v1187 = vpack.c.bf16 %v916, %v915
    %v1188 = vpack.c.bf16 %v918, %v917
    %v1189 = vld [vmem:[%s35] sm:$0x7]
    %vm1190 = vcmask 39936
    %v1192 = vsel %vm1190, %v1187, 0
    %v1195 = vsel %vm1190, %v1188, 0
    %vm1197 = vcmask 1041408
    %vm1198 = vcmask 1042432
    %v1199 = vsel %vm1197, 4294967295, 65535
    %v1200 = vsel %vm1198, %v1199, 0
    %v1202 = vand.u32 %v1189, %v1200
    %1204 = vmatprep.subr.bf16.mxu0 0
    %1205 = vmatpush1.bf16.msra.mxu0 %v1202
    %1206 = vmatprep.subr.bf16.mxu0 0
    %1207 = vmatpush1.bf16.msra.mxu0 0
    %1208 = vmatprep.subr.bf16.mxu0 0
    %1209 = vmatpush1.bf16.msra.mxu0 0
    %1210 = vmatprep.subr.bf16.mxu0 0
    %1211 = vmatpush1.bf16.msra.mxu0 0
    %1212 = vmatprep.subr.bf16.mxu0 0
    %1213 = vmatpush1.bf16.msra.mxu0 0
    %1214 = vmatprep.subr.bf16.mxu0 0
    %1215 = vmatpush1.bf16.msra.mxu0 0
    %1216 = vmatprep.subr.bf16.mxu0 0
    %1217 = vmatpush1.bf16.msra.mxu0 0
    %1218 = vmatprep.subr.bf16.mxu0 0
    %1219 = vmatpush1.bf16.msra.mxu0 0
    %1220 = vmatprep.subr.bf16.mxu0 0
    %1221 = vmatpush1.bf16.msra.mxu0 0
    %1222 = vmatprep.subr.bf16.mxu0 0
    %1223 = vmatpush1.bf16.msra.mxu0 0
    %1224 = vmatprep.subr.bf16.mxu0 0
    %1225 = vmatpush1.bf16.msra.mxu0 0
    %1226 = vmatprep.subr.bf16.mxu0 0
    %1227 = vmatpush1.bf16.msra.mxu0 0
    %1228 = vmatprep.subr.bf16.mxu0 0
    %1229 = vmatpush1.bf16.msra.mxu0 0
    %1230 = vmatprep.subr.bf16.mxu0 0
    %1231 = vmatpush1.bf16.msra.mxu0 0
    %1232 = vmatprep.subr.bf16.mxu0 0
    %1233 = vmatpush1.bf16.msra.mxu0 0
    %1234 = vmatprep.subr.bf16.mxu0 0
    %1235 = vmatpush1.bf16.msra.mxu0 0
    %1236 = vmatprep.mubr.bf16.mxu0 0
    %1237 = vmatmul.mubr.bf16.gmra.mrb[0].mxu0 %v1192
    %v1238 = vpop.f32.mrb[0].mxu0
    %v1239 = vadd.f32 0.0, %v1238
    %v1240 = vpop.f32.mrb[0].mxu0
    %v1241 = vpop.f32.mrb[0].mxu0
    %v1242 = vadd.f32 0.0, %v1241
    %v1243 = vpop.f32.mrb[0].mxu0
    %1244 = vmatprep.mubr.bf16.mxu0 0
    %1245 = vmatmul.mubr.bf16.gmra.mrb[0].mxu0 %v1195
    %v1246 = vpop.f32.mrb[0].mxu0
    %v1247 = vadd.f32 0.0, %v1246
    %v1248 = vpop.f32.mrb[0].mxu0
    %v1249 = vpop.f32.mrb[0].mxu0
    %v1250 = vadd.f32 0.0, %v1249
    %v1251 = vpop.f32.mrb[0].mxu0
    %1252 = vdwg.mxu0
    %v1254 = vlaneseq
    %v1255 = vshrl.u32 %v1254, 7
    %v1256 = vsub.s32 0, %v1255
    %v1257 = vrot.slane %v1186, %v1256
    %v1259 = vadd.f32 %v1257, %v1239
    %v1260 = vadd.f32 %v1257, %v1242
    %v1261 = vadd.f32 %v1257, %v1247
    %v1262 = vadd.f32 %v1257, %v1250
    %v1263 = vmul.f32 %v1259, 0.01
    %v1264 = vmul.f32 %v1260, 0.01
    %v1265 = vmul.f32 %v1261, 0.01
    %v1266 = vmul.f32 %v1262, 0.01
    %v1267 = vmax.f32 %v1259, %v1263
    %v1268 = vmax.f32 %v1260, %v1264
    %v1269 = vmax.f32 %v1261, %v1265
    %v1270 = vmax.f32 %v1262, %v1266
    %v1271 = vpack.c.bf16 %v1268, %v1267
    %v1272 = vpack.c.bf16 %v1270, %v1269
    %v1273 = vld [vmem:[%s37] sm:$0xf]
    %v1274 = vld [vmem:[%s37 + $0x4] sm:$0xf]
    %v1275 = vld [vmem:[%s37 + $0x8] sm:$0xf]
    %v1276 = vld [vmem:[%s37 + $0xc] sm:$0xf]
    %v1277 = vld [vmem:[#allocation4] sm:$0x1]
    %v1279 = vlaneseq
    %v1280 = vshrl.u32 %v1279, 7
    %v1281 = vsub.s32 0, %v1280
    %v1282 = vrot.slane %v1277, %v1281
    %v1288 = vunpack.c.l.b16 %v1273
    %v1289 = vunpack.c.l.b16 %v1274
    %v1290 = vunpack.c.l.b16 %v1275
    %v1291 = vunpack.c.l.b16 %v1276
    %v1292 = vpack.c.b16 %v1289, %v1288
    %v1293 = vpack.c.b16 %v1291, %v1290
    %v1297 = vsel %vm1017, %v1271, 0
    %v1300 = vsel %vm1017, %v1272, 0
    %1302 = vmatprep.subr.bf16.mxu0 0
    %1303 = vmatpush1.bf16.msra.mxu0 %v1292
    %1304 = vmatprep.subr.bf16.mxu0 0
    %1305 = vmatpush1.bf16.msra.mxu0 %v1293
    %1306 = vmatprep.subr.bf16.mxu0 0
    %1307 = vmatpush1.bf16.msra.mxu0 0
    %1308 = vmatprep.subr.bf16.mxu0 0
    %1309 = vmatpush1.bf16.msra.mxu0 0
    %1310 = vmatprep.subr.bf16.mxu0 0
    %1311 = vmatpush1.bf16.msra.mxu0 0
    %1312 = vmatprep.subr.bf16.mxu0 0
    %1313 = vmatpush1.bf16.msra.mxu0 0
    %1314 = vmatprep.subr.bf16.mxu0 0
    %1315 = vmatpush1.bf16.msra.mxu0 0
    %1316 = vmatprep.subr.bf16.mxu0 0
    %1317 = vmatpush1.bf16.msra.mxu0 0
    %1318 = vmatprep.subr.bf16.mxu0 0
    %1319 = vmatpush1.bf16.msra.mxu0 0
    %1320 = vmatprep.subr.bf16.mxu0 0
    %1321 = vmatpush1.bf16.msra.mxu0 0
    %1322 = vmatprep.subr.bf16.mxu0 0
    %1323 = vmatpush1.bf16.msra.mxu0 0
    %1324 = vmatprep.subr.bf16.mxu0 0
    %1325 = vmatpush1.bf16.msra.mxu0 0
    %1326 = vmatprep.subr.bf16.mxu0 0
    %1327 = vmatpush1.bf16.msra.mxu0 0
    %1328 = vmatprep.subr.bf16.mxu0 0
    %1329 = vmatpush1.bf16.msra.mxu0 0
    %1330 = vmatprep.subr.bf16.mxu0 0
    %1331 = vmatpush1.bf16.msra.mxu0 0
    %1332 = vmatprep.subr.bf16.mxu0 0
    %1333 = vmatpush1.bf16.msra.mxu0 0
    %1334 = vmatprep.mubr.bf16.mxu0 0
    %1335 = vmatmul.mubr.bf16.gmra.mrb[0].mxu0 %v1297
    %v1336 = vpop.f32.mrb[0].mxu0
    %v1337 = vadd.f32 %v1282, %v1336
    %v1338 = vpop.f32.mrb[0].mxu0
    %v1339 = vpop.f32.mrb[0].mxu0
    %v1340 = vadd.f32 %v1282, %v1339
    %v1341 = vpop.f32.mrb[0].mxu0
    %1342 = vmatprep.mubr.bf16.mxu0 0
    %1343 = vmatmul.mubr.bf16.gmra.mrb[0].mxu0 %v1300
    %v1344 = vpop.f32.mrb[0].mxu0
    %v1345 = vadd.f32 %v1282, %v1344
    %v1346 = vpop.f32.mrb[0].mxu0
    %v1347 = vpop.f32.mrb[0].mxu0
    %v1348 = vadd.f32 %v1282, %v1347
    %v1349 = vpop.f32.mrb[0].mxu0
    %1350 = vdwg.mxu0
    %v1351 = vmul.f32 %v1337, 0.01
    %v1352 = vmul.f32 %v1340, 0.01
    %v1353 = vmul.f32 %v1345, 0.01
    %v1354 = vmul.f32 %v1348, 0.01
    %v1355 = vmax.f32 %v1337, %v1351
    %v1356 = vmax.f32 %v1340, %v1352
    %v1357 = vmax.f32 %v1345, %v1353
    %v1358 = vmax.f32 %v1348, %v1354
    %v1359 = vpack.c.bf16 %v1356, %v1355
    %v1360 = vpack.c.bf16 %v1358, %v1357
    %v1361 = vld [vmem:[%s39] sm:$0xf]
    %v1362 = vld [vmem:[%s39 + $0x4] sm:$0xf]
    %v1363 = vld [vmem:[%s39 + $0x8] sm:$0xf]
    %v1364 = vld [vmem:[%s39 + $0xc] sm:$0xf]
    %v1365 = vld [vmem:[#allocation6] sm:$0x1]
    %v1367 = vlaneseq
    %v1368 = vshrl.u32 %v1367, 7
    %v1369 = vsub.s32 0, %v1368
    %v1370 = vrot.slane %v1365, %v1369
    %v1376 = vunpack.c.l.b16 %v1361
    %v1377 = vunpack.c.l.b16 %v1362
    %v1378 = vunpack.c.l.b16 %v1363
    %v1379 = vunpack.c.l.b16 %v1364
    %v1380 = vpack.c.b16 %v1377, %v1376
    %v1381 = vpack.c.b16 %v1379, %v1378
    %v1385 = vsel %vm1017, %v1359, 0
    %v1388 = vsel %vm1017, %v1360, 0
    %1390 = vmatprep.subr.bf16.mxu0 0
    %1391 = vmatpush1.bf16.msra.mxu0 %v1380
    %1392 = vmatprep.subr.bf16.mxu0 0
    %1393 = vmatpush1.bf16.msra.mxu0 %v1381
    %1394 = vmatprep.subr.bf16.mxu0 0
    %1395 = vmatpush1.bf16.msra.mxu0 0
    %1396 = vmatprep.subr.bf16.mxu0 0
    %1397 = vmatpush1.bf16.msra.mxu0 0
    %1398 = vmatprep.subr.bf16.mxu0 0
    %1399 = vmatpush1.bf16.msra.mxu0 0
    %1400 = vmatprep.subr.bf16.mxu0 0
    %1401 = vmatpush1.bf16.msra.mxu0 0
    %1402 = vmatprep.subr.bf16.mxu0 0
    %1403 = vmatpush1.bf16.msra.mxu0 0
    %1404 = vmatprep.subr.bf16.mxu0 0
    %1405 = vmatpush1.bf16.msra.mxu0 0
    %1406 = vmatprep.subr.bf16.mxu0 0
    %1407 = vmatpush1.bf16.msra.mxu0 0
    %1408 = vmatprep.subr.bf16.mxu0 0
    %1409 = vmatpush1.bf16.msra.mxu0 0
    %1410 = vmatprep.subr.bf16.mxu0 0
    %1411 = vmatpush1.bf16.msra.mxu0 0
    %1412 = vmatprep.subr.bf16.mxu0 0
    %1413 = vmatpush1.bf16.msra.mxu0 0
    %1414 = vmatprep.subr.bf16.mxu0 0
    %1415 = vmatpush1.bf16.msra.mxu0 0
    %1416 = vmatprep.subr.bf16.mxu0 0
    %1417 = vmatpush1.bf16.msra.mxu0 0
    %1418 = vmatprep.subr.bf16.mxu0 0
    %1419 = vmatpush1.bf16.msra.mxu0 0
    %1420 = vmatprep.subr.bf16.mxu0 0
    %1421 = vmatpush1.bf16.msra.mxu0 0
    %1422 = vmatprep.mubr.bf16.mxu0 0
    %1423 = vmatmul.mubr.bf16.gmra.mrb[0].mxu0 %v1385
    %v1424 = vpop.f32.mrb[0].mxu0
    %v1425 = vadd.f32 %v1370, %v1424
    %v1426 = vpop.f32.mrb[0].mxu0
    %v1427 = vpop.f32.mrb[0].mxu0
    %v1428 = vadd.f32 %v1370, %v1427
    %v1429 = vpop.f32.mrb[0].mxu0
    %1430 = vmatprep.mubr.bf16.mxu0 0
    %1431 = vmatmul.mubr.bf16.gmra.mrb[0].mxu0 %v1388
    %v1432 = vpop.f32.mrb[0].mxu0
    %v1433 = vadd.f32 %v1370, %v1432
    %v1434 = vpop.f32.mrb[0].mxu0
    %v1435 = vpop.f32.mrb[0].mxu0
    %v1436 = vadd.f32 %v1370, %v1435
    %v1437 = vpop.f32.mrb[0].mxu0
    %1438 = vdwg.mxu0
    %v1439 = vsel %vm1134, %v1425, 0.0
    %1440 = vadd.xlane.f32.xlu0 %v1439
    %v1441 = vpop.xlane.xlu0 %1440
    %v1442 = vsel %vm1134, %v1428, 0.0
    %1443 = vadd.xlane.f32.xlu0 %v1442
    %v1444 = vpop.xlane.xlu0 %1443
    %v1445 = vsel %vm1134, %v1433, 0.0
    %1446 = vadd.xlane.f32.xlu0 %v1445
    %v1447 = vpop.xlane.xlu0 %1446
    %v1448 = vsel %vm1134, %v1436, 0.0
    %1449 = vadd.xlane.f32.xlu0 %v1448
    %v1450 = vpop.xlane.xlu0 %1449
    %v1451 = vmul.f32 %v1441, %v1141
    %v1452 = vmul.f32 %v1444, %v1141
    %v1453 = vmul.f32 %v1447, %v1141
    %v1454 = vmul.f32 %v1450, %v1141
    %v1455 = vmul.f32 %v1425, %v1425
    %v1456 = vmul.f32 %v1428, %v1428
    %v1457 = vmul.f32 %v1433, %v1433
    %v1458 = vmul.f32 %v1436, %v1436
    %v1459 = vsel %vm1134, %v1455, 0.0
    %1460 = vadd.xlane.f32.xlu0 %v1459
    %v1461 = vpop.xlane.xlu0 %1460
    %v1462 = vsel %vm1134, %v1456, 0.0
    %1463 = vadd.xlane.f32.xlu0 %v1462
    %v1464 = vpop.xlane.xlu0 %1463
    %v1465 = vsel %vm1134, %v1457, 0.0
    %1466 = vadd.xlane.f32.xlu0 %v1465
    %v1467 = vpop.xlane.xlu0 %1466
    %v1468 = vsel %vm1134, %v1458, 0.0
    %1469 = vadd.xlane.f32.xlu0 %v1468
    %v1470 = vpop.xlane.xlu0 %1469
    %v1471 = vmul.f32 %v1461, %v1141
    %v1472 = vmul.f32 %v1464, %v1141
    %v1473 = vmul.f32 %v1467, %v1141
    %v1474 = vmul.f32 %v1470, %v1141
    %v1475 = vmul.f32 %v1451, %v1451
    %v1476 = vmul.f32 %v1452, %v1452
    %v1477 = vmul.f32 %v1453, %v1453
    %v1478 = vmul.f32 %v1454, %v1454
    %v1479 = vsub.f32 %v1471, %v1475
    %v1480 = vsub.f32 %v1472, %v1476
    %v1481 = vsub.f32 %v1473, %v1477
    %v1482 = vsub.f32 %v1474, %v1478
    %v1483 = vmax.f32 %v1479, 0.0
    %v1484 = vmax.f32 %v1480, 0.0
    %v1485 = vmax.f32 %v1481, 0.0
    %v1486 = vmax.f32 %v1482, 0.0
    %v1487 = vsub.f32 %v1425, %v1451
    %v1488 = vsub.f32 %v1428, %v1452
    %v1489 = vsub.f32 %v1433, %v1453
    %v1490 = vsub.f32 %v1436, %v1454
    %v1491 = vadd.f32 %v1483, 1e-05
    %v1492 = vadd.f32 %v1484, 1e-05
    %v1493 = vadd.f32 %v1485, 1e-05
    %v1494 = vadd.f32 %v1486, 1e-05
    %v1495 = vrsqrt.pop %v1491
    %v1496 = vrsqrt.pop %v1492
    %v1497 = vrsqrt.pop %v1493
    %v1498 = vrsqrt.pop %v1494
    %v1499 = vmul.f32 %v1487, %v1495
    %v1500 = vmul.f32 %v1488, %v1496
    %v1501 = vmul.f32 %v1489, %v1497
    %v1502 = vmul.f32 %v1490, %v1498
    %v1503 = vld [vmem:[#allocation9] sm:$0x1]
    %v1505 = vlaneseq
    %v1506 = vshrl.u32 %v1505, 7
    %v1507 = vsub.s32 0, %v1506
    %v1508 = vrot.slane %v1503, %v1507
    %v1510 = vmul.f32 %v1499, %v1508
    %v1511 = vmul.f32 %v1500, %v1508
    %v1512 = vmul.f32 %v1501, %v1508
    %v1513 = vmul.f32 %v1502, %v1508
    %v1514 = vld [vmem:[#allocation7] sm:$0x1]
    %v1516 = vlaneseq
    %v1517 = vshrl.u32 %v1516, 7
    %v1518 = vsub.s32 0, %v1517
    %v1519 = vrot.slane %v1514, %v1518
    %v1521 = vadd.f32 %v1510, %v1519
    %v1522 = vadd.f32 %v1511, %v1519
    %v1523 = vadd.f32 %v1512, %v1519
    %v1524 = vadd.f32 %v1513, %v1519
    %v1525 = vld [vmem:[%s19] sm:$0xf]
    %v1526 = vld [vmem:[%s15] sm:$0xff]
    %v1527 = vpack.c.bf16 %v1526, %v1526
    %v1529 = vsel %vm932, %v1525, 0
    %v1532 = vsel %vm936, %v1527, 0
    %1534 = vmatprep.subr.bf16.mxu0 0
    %1535 = vmatpush1.bf16.msra.mxu0 %v1532
    %1536 = vmatprep.subr.bf16.mxu0 0
    %1537 = vmatpush1.bf16.msra.mxu0 0
    %1538 = vmatprep.subr.bf16.mxu0 0
    %1539 = vmatpush1.bf16.msra.mxu0 0
    %1540 = vmatprep.subr.bf16.mxu0 0
    %1541 = vmatpush1.bf16.msra.mxu0 0
    %1542 = vmatprep.subr.bf16.mxu0 0
    %1543 = vmatpush1.bf16.msra.mxu0 0
    %1544 = vmatprep.subr.bf16.mxu0 0
    %1545 = vmatpush1.bf16.msra.mxu0 0
    %1546 = vmatprep.subr.bf16.mxu0 0
    %1547 = vmatpush1.bf16.msra.mxu0 0
    %1548 = vmatprep.subr.bf16.mxu0 0
    %1549 = vmatpush1.bf16.msra.mxu0 0
    %1550 = vmatprep.subr.bf16.mxu0 0
    %1551 = vmatpush1.bf16.msra.mxu0 0
    %1552 = vmatprep.subr.bf16.mxu0 0
    %1553 = vmatpush1.bf16.msra.mxu0 0
    %1554 = vmatprep.subr.bf16.mxu0 0
    %1555 = vmatpush1.bf16.msra.mxu0 0
    %1556 = vmatprep.subr.bf16.mxu0 0
    %1557 = vmatpush1.bf16.msra.mxu0 0
    %1558 = vmatprep.subr.bf16.mxu0 0
    %1559 = vmatpush1.bf16.msra.mxu0 0
    %1560 = vmatprep.subr.bf16.mxu0 0
    %1561 = vmatpush1.bf16.msra.mxu0 0
    %1562 = vmatprep.subr.bf16.mxu0 0
    %1563 = vmatpush1.bf16.msra.mxu0 0
    %1564 = vmatprep.subr.bf16.mxu0 0
    %1565 = vmatpush1.bf16.msra.mxu0 0
    %1566 = vmatprep.mubr.bf16.mxu0 0
    %1567 = vmatmul.mubr.bf16.gmra.mrb[0].mxu0 %v1529
    %v1568 = vpop.f32.mrb[0].mxu0
    %v1569 = vadd.f32 0.0, %v1568
    %v1570 = vpop.f32.mrb[0].mxu0
    %v1571 = vpop.f32.mrb[0].mxu0
    %v1572 = vpop.f32.mrb[0].mxu0
    %1573 = vdwg.mxu0
    %v1574 = vld [vmem:[%s7] sm:$0xff]
    %v1575 = vld [vmem:[#allocation10] sm:$0x1]
    %v1576 = vpack.c.bf16 %v1574, %v1574
    %v1577 = vld [vmem:[%s51] sm:$0x3]
    %vm1578 = vcmask 31744
    %v1580 = vsel %vm1578, %v1576, 0
    %v1583 = vsel %vm1197, %v1577, 0
    %1585 = vmatprep.subr.bf16.mxu0 0
    %1586 = vmatpush1.bf16.msra.mxu0 %v1583
    %1587 = vmatprep.subr.bf16.mxu0 0
    %1588 = vmatpush1.bf16.msra.mxu0 0
    %1589 = vmatprep.subr.bf16.mxu0 0
    %1590 = vmatpush1.bf16.msra.mxu0 0
    %1591 = vmatprep.subr.bf16.mxu0 0
    %1592 = vmatpush1.bf16.msra.mxu0 0
    %1593 = vmatprep.subr.bf16.mxu0 0
    %1594 = vmatpush1.bf16.msra.mxu0 0
    %1595 = vmatprep.subr.bf16.mxu0 0
    %1596 = vmatpush1.bf16.msra.mxu0 0
    %1597 = vmatprep.subr.bf16.mxu0 0
    %1598 = vmatpush1.bf16.msra.mxu0 0
    %1599 = vmatprep.subr.bf16.mxu0 0
    %1600 = vmatpush1.bf16.msra.mxu0 0
    %1601 = vmatprep.subr.bf16.mxu0 0
    %1602 = vmatpush1.bf16.msra.mxu0 0
    %1603 = vmatprep.subr.bf16.mxu0 0
    %1604 = vmatpush1.bf16.msra.mxu0 0
    %1605 = vmatprep.subr.bf16.mxu0 0
    %1606 = vmatpush1.bf16.msra.mxu0 0
    %1607 = vmatprep.subr.bf16.mxu0 0
    %1608 = vmatpush1.bf16.msra.mxu0 0
    %1609 = vmatprep.subr.bf16.mxu0 0
    %1610 = vmatpush1.bf16.msra.mxu0 0
    %1611 = vmatprep.subr.bf16.mxu0 0
    %1612 = vmatpush1.bf16.msra.mxu0 0
    %1613 = vmatprep.subr.bf16.mxu0 0
    %1614 = vmatpush1.bf16.msra.mxu0 0
    %1615 = vmatprep.subr.bf16.mxu0 0
    %1616 = vmatpush1.bf16.msra.mxu0 0
    %1617 = vmatprep.mubr.bf16.mxu0 0
    %1618 = vmatmul.mubr.bf16.gmra.mrb[0].mxu0 %v1580
    %v1619 = vpop.f32.mrb[0].mxu0
    %v1620 = vadd.f32 0.0, %v1619
    %v1621 = vpop.f32.mrb[0].mxu0
    %v1622 = vpop.f32.mrb[0].mxu0
    %v1623 = vpop.f32.mrb[0].mxu0
    %1624 = vdwg.mxu0
    %v1626 = vlaneseq
    %v1627 = vshrl.u32 %v1626, 7
    %v1628 = vsub.s32 0, %v1627
    %v1629 = vrot.slane %v1575, %v1628
    %v1631 = vadd.f32 %v1629, %v1620
    %v1632 = vpack.c.bf16 %v1569, %v1569
    %v1633 = vld [vmem:[#allocation18] sm:$0x3]
    %vm1634 = vcmask 23552
    %v1636 = vsel %vm1634, %v1632, 0
    %vm1638 = vcmask 1040384
    %v1639 = vsel %vm1638, 4294967295, 65535
    %v1640 = vsel %vm1197, %v1639, 0
    %v1642 = vand.u32 %v1633, %v1640
    %1644 = vmatprep.subr.bf16.mxu0 0
    %1645 = vmatpush1.bf16.msra.mxu0 %v1642
    %1646 = vmatprep.subr.bf16.mxu0 0
    %1647 = vmatpush1.bf16.msra.mxu0 0
    %1648 = vmatprep.subr.bf16.mxu0 0
    %1649 = vmatpush1.bf16.msra.mxu0 0
    %1650 = vmatprep.subr.bf16.mxu0 0
    %1651 = vmatpush1.bf16.msra.mxu0 0
    %1652 = vmatprep.subr.bf16.mxu0 0
    %1653 = vmatpush1.bf16.msra.mxu0 0
    %1654 = vmatprep.subr.bf16.mxu0 0
    %1655 = vmatpush1.bf16.msra.mxu0 0
    %1656 = vmatprep.subr.bf16.mxu0 0
    %1657 = vmatpush1.bf16.msra.mxu0 0
    %1658 = vmatprep.subr.bf16.mxu0 0
    %1659 = vmatpush1.bf16.msra.mxu0 0
    %1660 = vmatprep.subr.bf16.mxu0 0
    %1661 = vmatpush1.bf16.msra.mxu0 0
    %1662 = vmatprep.subr.bf16.mxu0 0
    %1663 = vmatpush1.bf16.msra.mxu0 0
    %1664 = vmatprep.subr.bf16.mxu0 0
    %1665 = vmatpush1.bf16.msra.mxu0 0
    %1666 = vmatprep.subr.bf16.mxu0 0
    %1667 = vmatpush1.bf16.msra.mxu0 0
    %1668 = vmatprep.subr.bf16.mxu0 0
    %1669 = vmatpush1.bf16.msra.mxu0 0
    %1670 = vmatprep.subr.bf16.mxu0 0
    %1671 = vmatpush1.bf16.msra.mxu0 0
    %1672 = vmatprep.subr.bf16.mxu0 0
    %1673 = vmatpush1.bf16.msra.mxu0 0
    %1674 = vmatprep.subr.bf16.mxu0 0
    %1675 = vmatpush1.bf16.msra.mxu0 0
    %1676 = vmatprep.mubr.bf16.mxu0 0
    %1677 = vmatmul.mubr.bf16.gmra.mrb[0].mxu0 %v1636
    %v1678 = vpop.f32.mrb[0].mxu0
    %v1679 = vadd.f32 0.0, %v1678
    %v1680 = vpop.f32.mrb[0].mxu0
    %v1681 = vpop.f32.mrb[0].mxu0
    %v1682 = vpop.f32.mrb[0].mxu0
    %1683 = vdwg.mxu0
    %v1684 = vadd.f32 %v1631, %v1679
    %v1685 = vmul.f32 %v1684, 0.01
    %v1686 = vmax.f32 %v1684, %v1685
    %v1687 = vpack.c.bf16 %v1686, %v1686
    %v1688 = vld [vmem:[%s55] sm:$0xf]
    %v1689 = vld [vmem:[%s55 + $0x4] sm:$0xf]
    %v1690 = vld [vmem:[#allocation12] sm:$0x1]
    %v1692 = vlaneseq
    %v1693 = vshrl.u32 %v1692, 7
    %v1694 = vsub.s32 0, %v1693
    %v1695 = vrot.slane %v1690, %v1694
    %v1699 = vunpack.c.l.b16 %v1688
    %v1700 = vunpack.c.l.b16 %v1689
    %v1701 = vpack.c.b16 %v1700, %v1699
    %v1704 = vsel %vm1134, %v1687, 0
    %1706 = vmatprep.subr.bf16.mxu0 0
    %1707 = vmatpush1.bf16.msra.mxu0 %v1701
    %1708 = vmatprep.subr.bf16.mxu0 0
    %1709 = vmatpush1.bf16.msra.mxu0 0
    %1710 = vmatprep.subr.bf16.mxu0 0
    %1711 = vmatpush1.bf16.msra.mxu0 0
    %1712 = vmatprep.subr.bf16.mxu0 0
    %1713 = vmatpush1.bf16.msra.mxu0 0
    %1714 = vmatprep.subr.bf16.mxu0 0
    %1715 = vmatpush1.bf16.msra.mxu0 0
    %1716 = vmatprep.subr.bf16.mxu0 0
    %1717 = vmatpush1.bf16.msra.mxu0 0
    %1718 = vmatprep.subr.bf16.mxu0 0
    %1719 = vmatpush1.bf16.msra.mxu0 0
    %1720 = vmatprep.subr.bf16.mxu0 0
    %1721 = vmatpush1.bf16.msra.mxu0 0
    %1722 = vmatprep.subr.bf16.mxu0 0
    %1723 = vmatpush1.bf16.msra.mxu0 0
    %1724 = vmatprep.subr.bf16.mxu0 0
    %1725 = vmatpush1.bf16.msra.mxu0 0
    %1726 = vmatprep.subr.bf16.mxu0 0
    %1727 = vmatpush1.bf16.msra.mxu0 0
    %1728 = vmatprep.subr.bf16.mxu0 0
    %1729 = vmatpush1.bf16.msra.mxu0 0
    %1730 = vmatprep.subr.bf16.mxu0 0
    %1731 = vmatpush1.bf16.msra.mxu0 0
    %1732 = vmatprep.subr.bf16.mxu0 0
    %1733 = vmatpush1.bf16.msra.mxu0 0
    %1734 = vmatprep.subr.bf16.mxu0 0
    %1735 = vmatpush1.bf16.msra.mxu0 0
    %1736 = vmatprep.subr.bf16.mxu0 0
    %1737 = vmatpush1.bf16.msra.mxu0 0
    %1738 = vmatprep.mubr.bf16.mxu0 0
    %1739 = vmatmul.mubr.bf16.gmra.mrb[0].mxu0 %v1704
    %v1740 = vpop.f32.mrb[0].mxu0
    %v1741 = vadd.f32 %v1695, %v1740
    %v1742 = vpop.f32.mrb[0].mxu0
    %v1743 = vpop.f32.mrb[0].mxu0
    %v1744 = vpop.f32.mrb[0].mxu0
    %1745 = vdwg.mxu0
    %v1746 = vmul.f32 %v1741, 0.01
    %v1747 = vmax.f32 %v1741, %v1746
    %v1748 = vpack.c.bf16 %v1747, %v1747
    %v1749 = vld [vmem:[%s57] sm:$0xf]
    %v1750 = vld [vmem:[%s57 + $0x4] sm:$0xf]
    %v1751 = vld [vmem:[#allocation13] sm:$0x1]
    %v1753 = vlaneseq
    %v1754 = vshrl.u32 %v1753, 7
    %v1755 = vsub.s32 0, %v1754
    %v1756 = vrot.slane %v1751, %v1755
    %v1760 = vunpack.c.l.b16 %v1749
    %v1761 = vunpack.c.l.b16 %v1750
    %v1762 = vpack.c.b16 %v1761, %v1760
    %v1765 = vsel %vm1134, %v1748, 0
    %1767 = vmatprep.subr.bf16.mxu0 0
    %1768 = vmatpush1.bf16.msra.mxu0 %v1762
    %1769 = vmatprep.subr.bf16.mxu0 0
    %1770 = vmatpush1.bf16.msra.mxu0 0
    %1771 = vmatprep.subr.bf16.mxu0 0
    %1772 = vmatpush1.bf16.msra.mxu0 0
    %1773 = vmatprep.subr.bf16.mxu0 0
    %1774 = vmatpush1.bf16.msra.mxu0 0
    %1775 = vmatprep.subr.bf16.mxu0 0
    %1776 = vmatpush1.bf16.msra.mxu0 0
    %1777 = vmatprep.subr.bf16.mxu0 0
    %1778 = vmatpush1.bf16.msra.mxu0 0
    %1779 = vmatprep.subr.bf16.mxu0 0
    %1780 = vmatpush1.bf16.msra.mxu0 0
    %1781 = vmatprep.subr.bf16.mxu0 0
    %1782 = vmatpush1.bf16.msra.mxu0 0
    %1783 = vmatprep.subr.bf16.mxu0 0
    %1784 = vmatpush1.bf16.msra.mxu0 0
    %1785 = vmatprep.subr.bf16.mxu0 0
    %1786 = vmatpush1.bf16.msra.mxu0 0
    %1787 = vmatprep.subr.bf16.mxu0 0
    %1788 = vmatpush1.bf16.msra.mxu0 0
    %1789 = vmatprep.subr.bf16.mxu0 0
    %1790 = vmatpush1.bf16.msra.mxu0 0
    %1791 = vmatprep.subr.bf16.mxu0 0
    %1792 = vmatpush1.bf16.msra.mxu0 0
    %1793 = vmatprep.subr.bf16.mxu0 0
    %1794 = vmatpush1.bf16.msra.mxu0 0
    %1795 = vmatprep.subr.bf16.mxu0 0
    %1796 = vmatpush1.bf16.msra.mxu0 0
    %1797 = vmatprep.subr.bf16.mxu0 0
    %1798 = vmatpush1.bf16.msra.mxu0 0
    %1799 = vmatprep.mubr.bf16.mxu0 0
    %1800 = vmatmul.mubr.bf16.gmra.mrb[0].mxu0 %v1765
    %v1801 = vpop.f32.mrb[0].mxu0
    %v1802 = vadd.f32 %v1756, %v1801
    %v1803 = vpop.f32.mrb[0].mxu0
    %v1804 = vpop.f32.mrb[0].mxu0
    %v1805 = vpop.f32.mrb[0].mxu0
    %1806 = vdwg.mxu0
    %v1807 = vsel %vm932, %v1802, 0.0
    %1808 = vadd.xlane.f32.xlu0 %v1807
    %v1809 = vpop.xlane.xlu0 %1808
    %v1810 = vrcp.pop 8.0
    %v1811 = vmul.f32 %v1809, %v1810
    %v1812 = vmul.f32 %v1802, %v1802
    %v1813 = vsel %vm932, %v1812, 0.0
    %1814 = vadd.xlane.f32.xlu0 %v1813
    %v1815 = vpop.xlane.xlu0 %1814
    %v1816 = vmul.f32 %v1815, %v1810
    %v1817 = vmul.f32 %v1811, %v1811
    %v1818 = vsub.f32 %v1816, %v1817
    %v1819 = vmax.f32 %v1818, 0.0
    %v1820 = vsub.f32 %v1802, %v1811
    %v1821 = vadd.f32 %v1819, 1e-05
    %v1822 = vrsqrt.pop %v1821
    %v1823 = vmul.f32 %v1820, %v1822
    %v1824 = vld [vmem:[#allocation16] sm:$0x1]
    %v1826 = vlaneseq
    %v1827 = vshrl.u32 %v1826, 7
    %v1828 = vsub.s32 0, %v1827
    %v1829 = vrot.slane %v1824, %v1828
    %v1831 = vmul.f32 %v1823, %v1829
    %v1832 = vld [vmem:[#allocation15] sm:$0x1]
    %v1834 = vlaneseq
    %v1835 = vshrl.u32 %v1834, 7
    %v1836 = vsub.s32 0, %v1835
    %v1837 = vrot.slane %v1832, %v1836
    %v1839 = vadd.f32 %v1831, %v1837
    %v1840 = vld [vmem:[%s1] sm:$0xf]
    %v1841 = vld [vmem:[%s1 + $0x4] sm:$0xf]
    %v1842 = vpack.c.bf16 %v1839, %v1839
    %v1845 = vunpack.c.l.b16 %v1840
    %v1846 = vunpack.c.l.b16 %v1841
    %v1847 = vpack.c.b16 %v1846, %v1845
    %v1849 = vsel %vm932, %v1847, 0
    %v1852 = vsel %vm936, %v1842, 0
    %1854 = vmatprep.subr.bf16.mxu0 0
    %1855 = vmatpush1.bf16.msra.mxu0 %v1852
    %1856 = vmatprep.subr.bf16.mxu0 0
    %1857 = vmatpush1.bf16.msra.mxu0 0
    %1858 = vmatprep.subr.bf16.mxu0 0
    %1859 = vmatpush1.bf16.msra.mxu0 0
    %1860 = vmatprep.subr.bf16.mxu0 0
    %1861 = vmatpush1.bf16.msra.mxu0 0
    %1862 = vmatprep.subr.bf16.mxu0 0
    %1863 = vmatpush1.bf16.msra.mxu0 0
    %1864 = vmatprep.subr.bf16.mxu0 0
    %1865 = vmatpush1.bf16.msra.mxu0 0
    %1866 = vmatprep.subr.bf16.mxu0 0
    %1867 = vmatpush1.bf16.msra.mxu0 0
    %1868 = vmatprep.subr.bf16.mxu0 0
    %1869 = vmatpush1.bf16.msra.mxu0 0
    %1870 = vmatprep.subr.bf16.mxu0 0
    %1871 = vmatpush1.bf16.msra.mxu0 0
    %1872 = vmatprep.subr.bf16.mxu0 0
    %1873 = vmatpush1.bf16.msra.mxu0 0
    %1874 = vmatprep.subr.bf16.mxu0 0
    %1875 = vmatpush1.bf16.msra.mxu0 0
    %1876 = vmatprep.subr.bf16.mxu0 0
    %1877 = vmatpush1.bf16.msra.mxu0 0
    %1878 = vmatprep.subr.bf16.mxu0 0
    %1879 = vmatpush1.bf16.msra.mxu0 0
    %1880 = vmatprep.subr.bf16.mxu0 0
    %1881 = vmatpush1.bf16.msra.mxu0 0
    %1882 = vmatprep.subr.bf16.mxu0 0
    %1883 = vmatpush1.bf16.msra.mxu0 0
    %1884 = vmatprep.subr.bf16.mxu0 0
    %1885 = vmatpush1.bf16.msra.mxu0 0
    %1886 = vmatprep.mubr.bf16.mxu0 0
    %1887 = vmatmul.mubr.bf16.gmra.mrb[0].mxu0 %v1849
    %v1888 = vpop.f32.mrb[0].mxu0
    %v1889 = vadd.f32 0.0, %v1888
    %v1890 = vpop.f32.mrb[0].mxu0
    %v1891 = vpop.f32.mrb[0].mxu0
    %v1892 = vadd.f32 0.0, %v1891
    %v1893 = vpop.f32.mrb[0].mxu0
    %1894 = vdwg.mxu0
    %v1895 = vld [vmem:[%s21] sm:$0xf]
    %v1896 = vld [vmem:[%s17] sm:$0xff]
    %v1897 = vpack.c.bf16 %v1896, %v1896
    %v1899 = vsel %vm932, %v1895, 0
    %v1902 = vsel %vm936, %v1897, 0
    %1904 = vmatprep.subr.bf16.mxu0 0
    %1905 = vmatpush1.bf16.msra.mxu0 %v1902
    %1906 = vmatprep.subr.bf16.mxu0 0
    %1907 = vmatpush1.bf16.msra.mxu0 0
    %1908 = vmatprep.subr.bf16.mxu0 0
    %1909 = vmatpush1.bf16.msra.mxu0 0
    %1910 = vmatprep.subr.bf16.mxu0 0
    %1911 = vmatpush1.bf16.msra.mxu0 0
    %1912 = vmatprep.subr.bf16.mxu0 0
    %1913 = vmatpush1.bf16.msra.mxu0 0
    %1914 = vmatprep.subr.bf16.mxu0 0
    %1915 = vmatpush1.bf16.msra.mxu0 0
    %1916 = vmatprep.subr.bf16.mxu0 0
    %1917 = vmatpush1.bf16.msra.mxu0 0
    %1918 = vmatprep.subr.bf16.mxu0 0
    %1919 = vmatpush1.bf16.msra.mxu0 0
    %1920 = vmatprep.subr.bf16.mxu0 0
    %1921 = vmatpush1.bf16.msra.mxu0 0
    %1922 = vmatprep.subr.bf16.mxu0 0
    %1923 = vmatpush1.bf16.msra.mxu0 0
    %1924 = vmatprep.subr.bf16.mxu0 0
    %1925 = vmatpush1.bf16.msra.mxu0 0
    %1926 = vmatprep.subr.bf16.mxu0 0
    %1927 = vmatpush1.bf16.msra.mxu0 0
    %1928 = vmatprep.subr.bf16.mxu0 0
    %1929 = vmatpush1.bf16.msra.mxu0 0
    %1930 = vmatprep.subr.bf16.mxu0 0
    %1931 = vmatpush1.bf16.msra.mxu0 0
    %1932 = vmatprep.subr.bf16.mxu0 0
    %1933 = vmatpush1.bf16.msra.mxu0 0
    %1934 = vmatprep.subr.bf16.mxu0 0
    %1935 = vmatpush1.bf16.msra.mxu0 0
    %1936 = vmatprep.mubr.bf16.mxu0 0
    %1937 = vmatmul.mubr.bf16.gmra.mrb[0].mxu0 %v1899
    %v1938 = vpop.f32.mrb[0].mxu0
    %v1939 = vadd.f32 0.0, %v1938
    %v1940 = vpop.f32.mrb[0].mxu0
    %v1941 = vpop.f32.mrb[0].mxu0
    %v1942 = vpop.f32.mrb[0].mxu0
    %1943 = vdwg.mxu0
    %v1944 = vld [vmem:[%s11] sm:$0xff]
    %v1945 = vld [vmem:[#allocation27] sm:$0x1]
    %v1946 = vpack.c.bf16 %v1944, %v1944
    %v1947 = vld [vmem:[#allocation34] sm:$0x3]
    %v1949 = vsel %vm1578, %v1946, 0
    %v1952 = vsel %vm1197, %v1947, 0
    %1954 = vmatprep.subr.bf16.mxu0 0
    %1955 = vmatpush1.bf16.msra.mxu0 %v1952
    %1956 = vmatprep.subr.bf16.mxu0 0
    %1957 = vmatpush1.bf16.msra.mxu0 0
    %1958 = vmatprep.subr.bf16.mxu0 0
    %1959 = vmatpush1.bf16.msra.mxu0 0
    %1960 = vmatprep.subr.bf16.mxu0 0
    %1961 = vmatpush1.bf16.msra.mxu0 0
    %1962 = vmatprep.subr.bf16.mxu0 0
    %1963 = vmatpush1.bf16.msra.mxu0 0
    %1964 = vmatprep.subr.bf16.mxu0 0
    %1965 = vmatpush1.bf16.msra.mxu0 0
    %1966 = vmatprep.subr.bf16.mxu0 0
    %1967 = vmatpush1.bf16.msra.mxu0 0
    %1968 = vmatprep.subr.bf16.mxu0 0
    %1969 = vmatpush1.bf16.msra.mxu0 0
    %1970 = vmatprep.subr.bf16.mxu0 0
    %1971 = vmatpush1.bf16.msra.mxu0 0
    %1972 = vmatprep.subr.bf16.mxu0 0
    %1973 = vmatpush1.bf16.msra.mxu0 0
    %1974 = vmatprep.subr.bf16.mxu0 0
    %1975 = vmatpush1.bf16.msra.mxu0 0
    %1976 = vmatprep.subr.bf16.mxu0 0
    %1977 = vmatpush1.bf16.msra.mxu0 0
    %1978 = vmatprep.subr.bf16.mxu0 0
    %1979 = vmatpush1.bf16.msra.mxu0 0
    %1980 = vmatprep.subr.bf16.mxu0 0
    %1981 = vmatpush1.bf16.msra.mxu0 0
    %1982 = vmatprep.subr.bf16.mxu0 0
    %1983 = vmatpush1.bf16.msra.mxu0 0
    %1984 = vmatprep.subr.bf16.mxu0 0
    %1985 = vmatpush1.bf16.msra.mxu0 0
    %1986 = vmatprep.mubr.bf16.mxu0 0
    %1987 = vmatmul.mubr.bf16.gmra.mrb[0].mxu0 %v1949
    %v1988 = vpop.f32.mrb[0].mxu0
    %v1989 = vadd.f32 0.0, %v1988
    %v1990 = vpop.f32.mrb[0].mxu0
    %v1991 = vpop.f32.mrb[0].mxu0
    %v1992 = vpop.f32.mrb[0].mxu0
    %1993 = vdwg.mxu0
    %v1995 = vlaneseq
    %v1996 = vshrl.u32 %v1995, 7
    %v1997 = vsub.s32 0, %v1996
    %v1998 = vrot.slane %v1945, %v1997
    %v2000 = vadd.f32 %v1998, %v1989
    %v2001 = vpack.c.bf16 %v1939, %v1939
    %v2002 = vld [vmem:[#allocation36] sm:$0x3]
    %v2004 = vsel %vm1634, %v2001, 0
    %v2007 = vand.u32 %v2002, %v1640
    %2009 = vmatprep.subr.bf16.mxu0 0
    %2010 = vmatpush1.bf16.msra.mxu0 %v2007
    %2011 = vmatprep.subr.bf16.mxu0 0
    %2012 = vmatpush1.bf16.msra.mxu0 0
    %2013 = vmatprep.subr.bf16.mxu0 0
    %2014 = vmatpush1.bf16.msra.mxu0 0
    %2015 = vmatprep.subr.bf16.mxu0 0
    %2016 = vmatpush1.bf16.msra.mxu0 0
    %2017 = vmatprep.subr.bf16.mxu0 0
    %2018 = vmatpush1.bf16.msra.mxu0 0
    %2019 = vmatprep.subr.bf16.mxu0 0
    %2020 = vmatpush1.bf16.msra.mxu0 0
    %2021 = vmatprep.subr.bf16.mxu0 0
    %2022 = vmatpush1.bf16.msra.mxu0 0
    %2023 = vmatprep.subr.bf16.mxu0 0
    %2024 = vmatpush1.bf16.msra.mxu0 0
    %2025 = vmatprep.subr.bf16.mxu0 0
    %2026 = vmatpush1.bf16.msra.mxu0 0
    %2027 = vmatprep.subr.bf16.mxu0 0
    %2028 = vmatpush1.bf16.msra.mxu0 0
    %2029 = vmatprep.subr.bf16.mxu0 0
    %2030 = vmatpush1.bf16.msra.mxu0 0
    %2031 = vmatprep.subr.bf16.mxu0 0
    %2032 = vmatpush1.bf16.msra.mxu0 0
    %2033 = vmatprep.subr.bf16.mxu0 0
    %2034 = vmatpush1.bf16.msra.mxu0 0
    %2035 = vmatprep.subr.bf16.mxu0 0
    %2036 = vmatpush1.bf16.msra.mxu0 0
    %2037 = vmatprep.subr.bf16.mxu0 0
    %2038 = vmatpush1.bf16.msra.mxu0 0
    %2039 = vmatprep.subr.bf16.mxu0 0
    %2040 = vmatpush1.bf16.msra.mxu0 0
    %2041 = vmatprep.mubr.bf16.mxu0 0
    %2042 = vmatmul.mubr.bf16.gmra.mrb[0].mxu0 %v2004
    %v2043 = vpop.f32.mrb[0].mxu0
    %v2044 = vadd.f32 0.0, %v2043
    %v2045 = vpop.f32.mrb[0].mxu0
    %v2046 = vpop.f32.mrb[0].mxu0
    %v2047 = vpop.f32.mrb[0].mxu0
    %2048 = vdwg.mxu0
    %v2049 = vadd.f32 %v2000, %v2044
    %v2050 = vmul.f32 %v2049, 0.01
    %v2051 = vmax.f32 %v2049, %v2050
    %v2052 = vpack.c.bf16 %v2051, %v2051
    %v2053 = vld [vmem:[%s89] sm:$0xf]
    %v2054 = vld [vmem:[%s89 + $0x4] sm:$0xf]
    %v2055 = vld [vmem:[#allocation28] sm:$0x1]
    %v2057 = vlaneseq
    %v2058 = vshrl.u32 %v2057, 7
    %v2059 = vsub.s32 0, %v2058
    %v2060 = vrot.slane %v2055, %v2059
    %v2064 = vunpack.c.l.b16 %v2053
    %v2065 = vunpack.c.l.b16 %v2054
    %v2066 = vpack.c.b16 %v2065, %v2064
    %v2069 = vsel %vm1134, %v2052, 0
    %2071 = vmatprep.subr.bf16.mxu0 0
    %2072 = vmatpush1.bf16.msra.mxu0 %v2066
    %2073 = vmatprep.subr.bf16.mxu0 0
    %2074 = vmatpush1.bf16.msra.mxu0 0
    %2075 = vmatprep.subr.bf16.mxu0 0
    %2076 = vmatpush1.bf16.msra.mxu0 0
    %2077 = vmatprep.subr.bf16.mxu0 0
    %2078 = vmatpush1.bf16.msra.mxu0 0
    %2079 = vmatprep.subr.bf16.mxu0 0
    %2080 = vmatpush1.bf16.msra.mxu0 0
    %2081 = vmatprep.subr.bf16.mxu0 0
    %2082 = vmatpush1.bf16.msra.mxu0 0
    %2083 = vmatprep.subr.bf16.mxu0 0
    %2084 = vmatpush1.bf16.msra.mxu0 0
    %2085 = vmatprep.subr.bf16.mxu0 0
    %2086 = vmatpush1.bf16.msra.mxu0 0
    %2087 = vmatprep.subr.bf16.mxu0 0
    %2088 = vmatpush1.bf16.msra.mxu0 0
    %2089 = vmatprep.subr.bf16.mxu0 0
    %2090 = vmatpush1.bf16.msra.mxu0 0
    %2091 = vmatprep.subr.bf16.mxu0 0
    %2092 = vmatpush1.bf16.msra.mxu0 0
    %2093 = vmatprep.subr.bf16.mxu0 0
    %2094 = vmatpush1.bf16.msra.mxu0 0
    %2095 = vmatprep.subr.bf16.mxu0 0
    %2096 = vmatpush1.bf16.msra.mxu0 0
    %2097 = vmatprep.subr.bf16.mxu0 0
    %2098 = vmatpush1.bf16.msra.mxu0 0
    %2099 = vmatprep.subr.bf16.mxu0 0
    %2100 = vmatpush1.bf16.msra.mxu0 0
    %2101 = vmatprep.subr.bf16.mxu0 0
    %2102 = vmatpush1.bf16.msra.mxu0 0
    %2103 = vmatprep.mubr.bf16.mxu0 0
    %2104 = vmatmul.mubr.bf16.gmra.mrb[0].mxu0 %v2069
    %v2105 = vpop.f32.mrb[0].mxu0
    %v2106 = vadd.f32 %v2060, %v2105
    %v2107 = vpop.f32.mrb[0].mxu0
    %v2108 = vpop.f32.mrb[0].mxu0
    %v2109 = vpop.f32.mrb[0].mxu0
    %2110 = vdwg.mxu0
    %v2111 = vmul.f32 %v2106, 0.01
    %v2112 = vmax.f32 %v2106, %v2111
    %v2113 = vpack.c.bf16 %v2112, %v2112
    %v2114 = vld [vmem:[%s91] sm:$0xf]
    %v2115 = vld [vmem:[%s91 + $0x4] sm:$0xf]
    %v2116 = vld [vmem:[#allocation30] sm:$0x1]
    %v2118 = vlaneseq
    %v2119 = vshrl.u32 %v2118, 7
    %v2120 = vsub.s32 0, %v2119
    %v2121 = vrot.slane %v2116, %v2120
    %v2125 = vunpack.c.l.b16 %v2114
    %v2126 = vunpack.c.l.b16 %v2115
    %v2127 = vpack.c.b16 %v2126, %v2125
    %v2130 = vsel %vm1134, %v2113, 0
    %2132 = vmatprep.subr.bf16.mxu0 0
    %2133 = vmatpush1.bf16.msra.mxu0 %v2127
    %2134 = vmatprep.subr.bf16.mxu0 0
    %2135 = vmatpush1.bf16.msra.mxu0 0
    %2136 = vmatprep.subr.bf16.mxu0 0
    %2137 = vmatpush1.bf16.msra.mxu0 0
    %2138 = vmatprep.subr.bf16.mxu0 0
    %2139 = vmatpush1.bf16.msra.mxu0 0
    %2140 = vmatprep.subr.bf16.mxu0 0
    %2141 = vmatpush1.bf16.msra.mxu0 0
    %2142 = vmatprep.subr.bf16.mxu0 0
    %2143 = vmatpush1.bf16.msra.mxu0 0
    %2144 = vmatprep.subr.bf16.mxu0 0
    %2145 = vmatpush1.bf16.msra.mxu0 0
    %2146 = vmatprep.subr.bf16.mxu0 0
    %2147 = vmatpush1.bf16.msra.mxu0 0
    %2148 = vmatprep.subr.bf16.mxu0 0
    %2149 = vmatpush1.bf16.msra.mxu0 0
    %2150 = vmatprep.subr.bf16.mxu0 0
    %2151 = vmatpush1.bf16.msra.mxu0 0
    %2152 = vmatprep.subr.bf16.mxu0 0
    %2153 = vmatpush1.bf16.msra.mxu0 0
    %2154 = vmatprep.subr.bf16.mxu0 0
    %2155 = vmatpush1.bf16.msra.mxu0 0
    %2156 = vmatprep.subr.bf16.mxu0 0
    %2157 = vmatpush1.bf16.msra.mxu0 0
    %2158 = vmatprep.subr.bf16.mxu0 0
    %2159 = vmatpush1.bf16.msra.mxu0 0
    %2160 = vmatprep.subr.bf16.mxu0 0
    %2161 = vmatpush1.bf16.msra.mxu0 0
    %2162 = vmatprep.subr.bf16.mxu0 0
    %2163 = vmatpush1.bf16.msra.mxu0 0
    %2164 = vmatprep.mubr.bf16.mxu0 0
    %2165 = vmatmul.mubr.bf16.gmra.mrb[0].mxu0 %v2130
    %v2166 = vpop.f32.mrb[0].mxu0
    %v2167 = vadd.f32 %v2121, %v2166
    %v2168 = vpop.f32.mrb[0].mxu0
    %v2169 = vpop.f32.mrb[0].mxu0
    %v2170 = vpop.f32.mrb[0].mxu0
    %2171 = vdwg.mxu0
    %v2172 = vsel %vm932, %v2167, 0.0
    %2173 = vadd.xlane.f32.xlu0 %v2172
    %v2174 = vpop.xlane.xlu0 %2173
    %v2175 = vmul.f32 %v2174, %v1810
    %v2176 = vmul.f32 %v2167, %v2167
    %v2177 = vsel %vm932, %v2176, 0.0
    %2178 = vadd.xlane.f32.xlu0 %v2177
    %v2179 = vpop.xlane.xlu0 %2178
    %v2180 = vmul.f32 %v2179, %v1810
    %v2181 = vmul.f32 %v2175, %v2175
    %v2182 = vsub.f32 %v2180, %v2181
    %v2183 = vmax.f32 %v2182, 0.0
    %v2184 = vsub.f32 %v2167, %v2175
    %v2185 = vadd.f32 %v2183, 1e-05
    %v2186 = vrsqrt.pop %v2185
    %v2187 = vmul.f32 %v2184, %v2186
    %v2188 = vld [vmem:[#allocation33] sm:$0x1]
    %v2190 = vlaneseq
    %v2191 = vshrl.u32 %v2190, 7
    %v2192 = vsub.s32 0, %v2191
    %v2193 = vrot.slane %v2188, %v2192
    %v2195 = vmul.f32 %v2187, %v2193
    %v2196 = vld [vmem:[#allocation31] sm:$0x1]
    %v2198 = vlaneseq
    %v2199 = vshrl.u32 %v2198, 7
    %v2200 = vsub.s32 0, %v2199
    %v2201 = vrot.slane %v2196, %v2200
    %v2203 = vadd.f32 %v2195, %v2201
    %v2204 = vld [vmem:[%s5] sm:$0xf]
    %v2205 = vld [vmem:[%s5 + $0x4] sm:$0xf]
    %v2206 = vpack.c.bf16 %v2203, %v2203
    %v2209 = vunpack.c.l.b16 %v2204
    %v2210 = vunpack.c.l.b16 %v2205
    %v2211 = vpack.c.b16 %v2210, %v2209
    %v2213 = vsel %vm932, %v2211, 0
    %v2216 = vsel %vm936, %v2206, 0
    %2218 = vmatprep.subr.bf16.mxu0 0
    %2219 = vmatpush1.bf16.msra.mxu0 %v2216
    %2220 = vmatprep.subr.bf16.mxu0 0
    %2221 = vmatpush1.bf16.msra.mxu0 0
    %2222 = vmatprep.subr.bf16.mxu0 0
    %2223 = vmatpush1.bf16.msra.mxu0 0
    %2224 = vmatprep.subr.bf16.mxu0 0
    %2225 = vmatpush1.bf16.msra.mxu0 0
    %2226 = vmatprep.subr.bf16.mxu0 0
    %2227 = vmatpush1.bf16.msra.mxu0 0
    %2228 = vmatprep.subr.bf16.mxu0 0
    %2229 = vmatpush1.bf16.msra.mxu0 0
    %2230 = vmatprep.subr.bf16.mxu0 0
    %2231 = vmatpush1.bf16.msra.mxu0 0
    %2232 = vmatprep.subr.bf16.mxu0 0
    %2233 = vmatpush1.bf16.msra.mxu0 0
    %2234 = vmatprep.subr.bf16.mxu0 0
    %2235 = vmatpush1.bf16.msra.mxu0 0
    %2236 = vmatprep.subr.bf16.mxu0 0
    %2237 = vmatpush1.bf16.msra.mxu0 0
    %2238 = vmatprep.subr.bf16.mxu0 0
    %2239 = vmatpush1.bf16.msra.mxu0 0
    %2240 = vmatprep.subr.bf16.mxu0 0
    %2241 = vmatpush1.bf16.msra.mxu0 0
    %2242 = vmatprep.subr.bf16.mxu0 0
    %2243 = vmatpush1.bf16.msra.mxu0 0
    %2244 = vmatprep.subr.bf16.mxu0 0
    %2245 = vmatpush1.bf16.msra.mxu0 0
    %2246 = vmatprep.subr.bf16.mxu0 0
    %2247 = vmatpush1.bf16.msra.mxu0 0
    %2248 = vmatprep.subr.bf16.mxu0 0
    %2249 = vmatpush1.bf16.msra.mxu0 0
    %2250 = vmatprep.mubr.bf16.mxu0 0
    %2251 = vmatmul.mubr.bf16.gmra.mrb[0].mxu0 %v2213
    %v2252 = vpop.f32.mrb[0].mxu0
    %v2253 = vadd.f32 0.0, %v2252
    %v2254 = vpop.f32.mrb[0].mxu0
    %v2255 = vpop.f32.mrb[0].mxu0
    %v2256 = vadd.f32 0.0, %v2255
    %v2257 = vpop.f32.mrb[0].mxu0
    %2258 = vdwg.mxu0
    %v2259 = vpack.c.bf16 %v1185, %v1184
    %v2268 = vunpack.c.l.b16 %v919
    %v2269 = vunpack.c.l.b16 %v920
    %v2270 = vunpack.c.l.b16 %v921
    %v2271 = vunpack.c.l.b16 %v922
    %v2272 = vunpack.c.l.b16 %v923
    %v2273 = vunpack.c.l.b16 %v924
    %v2274 = vunpack.c.l.b16 %v925
    %v2275 = vunpack.c.l.b16 %v926
    %v2276 = vpack.c.b16 %v2269, %v2268
    %v2277 = vpack.c.b16 %v2271, %v2270
    %v2278 = vpack.c.b16 %v2273, %v2272
    %v2279 = vpack.c.b16 %v2275, %v2274
    %v2281 = vsel %vm1134, %v2276, 0
    %v2284 = vsel %vm1134, %v2277, 0
    %v2287 = vsel %vm1134, %v2278, 0
    %v2290 = vsel %vm1134, %v2279, 0
    %2292 = vmatprep.subr.bf16.mxu0 0
    %2293 = vmatpush1.bf16.msra.mxu0 %v2259
    %2294 = vmatprep.subr.bf16.mxu0 0
    %2295 = vmatpush1.bf16.msra.mxu0 0
    %2296 = vmatprep.subr.bf16.mxu0 0
    %2297 = vmatpush1.bf16.msra.mxu0 0
    %2298 = vmatprep.subr.bf16.mxu0 0
    %2299 = vmatpush1.bf16.msra.mxu0 0
    %2300 = vmatprep.subr.bf16.mxu0 0
    %2301 = vmatpush1.bf16.msra.mxu0 0
    %2302 = vmatprep.subr.bf16.mxu0 0
    %2303 = vmatpush1.bf16.msra.mxu0 0
    %2304 = vmatprep.subr.bf16.mxu0 0
    %2305 = vmatpush1.bf16.msra.mxu0 0
    %2306 = vmatprep.subr.bf16.mxu0 0
    %2307 = vmatpush1.bf16.msra.mxu0 0
    %2308 = vmatprep.subr.bf16.mxu0 0
    %2309 = vmatpush1.bf16.msra.mxu0 0
    %2310 = vmatprep.subr.bf16.mxu0 0
    %2311 = vmatpush1.bf16.msra.mxu0 0
    %2312 = vmatprep.subr.bf16.mxu0 0
    %2313 = vmatpush1.bf16.msra.mxu0 0
    %2314 = vmatprep.subr.bf16.mxu0 0
    %2315 = vmatpush1.bf16.msra.mxu0 0
    %2316 = vmatprep.subr.bf16.mxu0 0
    %2317 = vmatpush1.bf16.msra.mxu0 0
    %2318 = vmatprep.subr.bf16.mxu0 0
    %2319 = vmatpush1.bf16.msra.mxu0 0
    %2320 = vmatprep.subr.bf16.mxu0 0
    %2321 = vmatpush1.bf16.msra.mxu0 0
    %2322 = vmatprep.subr.bf16.mxu0 0
    %2323 = vmatpush1.bf16.msra.mxu0 0
    %2324 = vmatprep.mubr.bf16.mxu0 0
    %2325 = vmatmul.mubr.bf16.gmra.mrb[0].mxu0 %v2281
    %v2326 = vpop.f32.mrb[0].mxu0
    %v2327 = vadd.f32 0.0, %v2326
    %v2328 = vpop.f32.mrb[0].mxu0
    %v2329 = vpop.f32.mrb[0].mxu0
    %v2330 = vadd.f32 0.0, %v2329
    %v2331 = vpop.f32.mrb[0].mxu0
    %2332 = vmatprep.mubr.bf16.mxu0 0
    %2333 = vmatmul.mubr.bf16.gmra.mrb[0].mxu0 %v2284
    %v2334 = vpop.f32.mrb[0].mxu0
    %v2335 = vadd.f32 0.0, %v2334
    %v2336 = vpop.f32.mrb[0].mxu0
    %v2337 = vpop.f32.mrb[0].mxu0
    %v2338 = vadd.f32 0.0, %v2337
    %v2339 = vpop.f32.mrb[0].mxu0
    %2340 = vmatprep.mubr.bf16.mxu0 0
    %2341 = vmatmul.mubr.bf16.gmra.mrb[0].mxu0 %v2287
    %v2342 = vpop.f32.mrb[0].mxu0
    %v2343 = vadd.f32 0.0, %v2342
    %v2344 = vpop.f32.mrb[0].mxu0
    %v2345 = vpop.f32.mrb[0].mxu0
    %v2346 = vadd.f32 0.0, %v2345
    %v2347 = vpop.f32.mrb[0].mxu0
    %2348 = vmatprep.mubr.bf16.mxu0 0
    %2349 = vmatmul.mubr.bf16.gmra.mrb[0].mxu0 %v2290
    %v2350 = vpop.f32.mrb[0].mxu0
    %v2351 = vadd.f32 0.0, %v2350
    %v2352 = vpop.f32.mrb[0].mxu0
    %v2353 = vpop.f32.mrb[0].mxu0
    %v2354 = vadd.f32 0.0, %v2353
    %v2355 = vpop.f32.mrb[0].mxu0
    %2356 = vdwg.mxu0
    %v2357 = vld [vmem:[#allocation42] sm:$0x1]
    %v2358 = vpack.c.bf16 %v1522, %v1521
    %v2359 = vpack.c.bf16 %v1524, %v1523
    %v2360 = vld [vmem:[%s115] sm:$0xf]
    %v2361 = vld [vmem:[%s115 + $0x4] sm:$0xf]
    %v2364 = vunpack.c.l.b16 %v2360
    %v2365 = vunpack.c.l.b16 %v2361
    %v2366 = vpack.c.b16 %v2365, %v2364
    %v2369 = vsel %vm1134, %v2358, 0
    %v2372 = vsel %vm1134, %v2359, 0
    %2374 = vmatprep.subr.bf16.mxu0 0
    %2375 = vmatpush1.bf16.msra.mxu0 %v2366
    %2376 = vmatprep.subr.bf16.mxu0 0
    %2377 = vmatpush1.bf16.msra.mxu0 0
    %2378 = vmatprep.subr.bf16.mxu0 0
    %2379 = vmatpush1.bf16.msra.mxu0 0
    %2380 = vmatprep.subr.bf16.mxu0 0
    %2381 = vmatpush1.bf16.msra.mxu0 0
    %2382 = vmatprep.subr.bf16.mxu0 0
    %2383 = vmatpush1.bf16.msra.mxu0 0
    %2384 = vmatprep.subr.bf16.mxu0 0
    %2385 = vmatpush1.bf16.msra.mxu0 0
    %2386 = vmatprep.subr.bf16.mxu0 0
    %2387 = vmatpush1.bf16.msra.mxu0 0
    %2388 = vmatprep.subr.bf16.mxu0 0
    %2389 = vmatpush1.bf16.msra.mxu0 0
    %2390 = vmatprep.subr.bf16.mxu0 0
    %2391 = vmatpush1.bf16.msra.mxu0 0
    %2392 = vmatprep.subr.bf16.mxu0 0
    %2393 = vmatpush1.bf16.msra.mxu0 0
    %2394 = vmatprep.subr.bf16.mxu0 0
    %2395 = vmatpush1.bf16.msra.mxu0 0
    %2396 = vmatprep.subr.bf16.mxu0 0
    %2397 = vmatpush1.bf16.msra.mxu0 0
    %2398 = vmatprep.subr.bf16.mxu0 0
    %2399 = vmatpush1.bf16.msra.mxu0 0
    %2400 = vmatprep.subr.bf16.mxu0 0
    %2401 = vmatpush1.bf16.msra.mxu0 0
    %2402 = vmatprep.subr.bf16.mxu0 0
    %2403 = vmatpush1.bf16.msra.mxu0 0
    %2404 = vmatprep.subr.bf16.mxu0 0
    %2405 = vmatpush1.bf16.msra.mxu0 0
    %2406 = vmatprep.mubr.bf16.mxu0 0
    %2407 = vmatmul.mubr.bf16.gmra.mrb[0].mxu0 %v2369
    %v2408 = vpop.f32.mrb[0].mxu0
    %v2409 = vadd.f32 0.0, %v2408
    %v2410 = vpop.f32.mrb[0].mxu0
    %v2411 = vpop.f32.mrb[0].mxu0
    %v2412 = vadd.f32 0.0, %v2411
    %v2413 = vpop.f32.mrb[0].mxu0
    %2414 = vmatprep.mubr.bf16.mxu0 0
    %2415 = vmatmul.mubr.bf16.gmra.mrb[0].mxu0 %v2372
    %v2416 = vpop.f32.mrb[0].mxu0
    %v2417 = vadd.f32 0.0, %v2416
    %v2418 = vpop.f32.mrb[0].mxu0
    %v2419 = vpop.f32.mrb[0].mxu0
    %v2420 = vadd.f32 0.0, %v2419
    %v2421 = vpop.f32.mrb[0].mxu0
    %2422 = vdwg.mxu0
    %v2424 = vlaneseq
    %v2425 = vshrl.u32 %v2424, 7
    %v2426 = vsub.s32 0, %v2425
    %v2427 = vrot.slane %v2357, %v2426
    %v2429 = vadd.f32 %v2427, %v2409
    %v2430 = vadd.f32 %v2427, %v2412
    %v2431 = vadd.f32 %v2427, %v2417
    %v2432 = vadd.f32 %v2427, %v2420
    %v2433 = vpack.c.bf16 %v2330, %v2327
    %v2434 = vpack.c.bf16 %v2338, %v2335
    %v2435 = vld [vmem:[%s117] sm:$0xf]
    %v2436 = vld [vmem:[%s117 + $0x4] sm:$0xf]
    %v2439 = vunpack.c.l.b16 %v2435
    %v2440 = vunpack.c.l.b16 %v2436
    %v2441 = vpack.c.b16 %v2440, %v2439
    %v2444 = vsel %vm1134, %v2433, 0
    %v2447 = vsel %vm1134, %v2434, 0
    %2449 = vmatprep.subr.bf16.mxu0 0
    %2450 = vmatpush1.bf16.msra.mxu0 %v2441
    %2451 = vmatprep.subr.bf16.mxu0 0
    %2452 = vmatpush1.bf16.msra.mxu0 0
    %2453 = vmatprep.subr.bf16.mxu0 0
    %2454 = vmatpush1.bf16.msra.mxu0 0
    %2455 = vmatprep.subr.bf16.mxu0 0
    %2456 = vmatpush1.bf16.msra.mxu0 0
    %2457 = vmatprep.subr.bf16.mxu0 0
    %2458 = vmatpush1.bf16.msra.mxu0 0
    %2459 = vmatprep.subr.bf16.mxu0 0
    %2460 = vmatpush1.bf16.msra.mxu0 0
    %2461 = vmatprep.subr.bf16.mxu0 0
    %2462 = vmatpush1.bf16.msra.mxu0 0
    %2463 = vmatprep.subr.bf16.mxu0 0
    %2464 = vmatpush1.bf16.msra.mxu0 0
    %2465 = vmatprep.subr.bf16.mxu0 0
    %2466 = vmatpush1.bf16.msra.mxu0 0
    %2467 = vmatprep.subr.bf16.mxu0 0
    %2468 = vmatpush1.bf16.msra.mxu0 0
    %2469 = vmatprep.subr.bf16.mxu0 0
    %2470 = vmatpush1.bf16.msra.mxu0 0
    %2471 = vmatprep.subr.bf16.mxu0 0
    %2472 = vmatpush1.bf16.msra.mxu0 0
    %2473 = vmatprep.subr.bf16.mxu0 0
    %2474 = vmatpush1.bf16.msra.mxu0 0
    %2475 = vmatprep.subr.bf16.mxu0 0
    %2476 = vmatpush1.bf16.msra.mxu0 0
    %2477 = vmatprep.subr.bf16.mxu0 0
    %2478 = vmatpush1.bf16.msra.mxu0 0
    %2479 = vmatprep.subr.bf16.mxu0 0
    %2480 = vmatpush1.bf16.msra.mxu0 0
    %2481 = vmatprep.mubr.bf16.mxu0 0
    %2482 = vmatmul.mubr.bf16.gmra.mrb[0].mxu0 %v2444
    %v2483 = vpop.f32.mrb[0].mxu0
    %v2484 = vadd.f32 0.0, %v2483
    %v2485 = vpop.f32.mrb[0].mxu0
    %v2486 = vpop.f32.mrb[0].mxu0
    %v2487 = vadd.f32 0.0, %v2486
    %v2488 = vpop.f32.mrb[0].mxu0
    %2489 = vmatprep.mubr.bf16.mxu0 0
    %2490 = vmatmul.mubr.bf16.gmra.mrb[0].mxu0 %v2447
    %v2491 = vpop.f32.mrb[0].mxu0
    %v2492 = vadd.f32 0.0, %v2491
    %v2493 = vpop.f32.mrb[0].mxu0
    %v2494 = vpop.f32.mrb[0].mxu0
    %v2495 = vadd.f32 0.0, %v2494
    %v2496 = vpop.f32.mrb[0].mxu0
    %2497 = vdwg.mxu0
    %v2498 = vadd.f32 %v2429, %v2484
    %v2499 = vadd.f32 %v2430, %v2487
    %v2500 = vadd.f32 %v2431, %v2492
    %v2501 = vadd.f32 %v2432, %v2495
    %v2502 = vpack.c.bf16 %v2346, %v2343
    %v2503 = vpack.c.bf16 %v2354, %v2351
    %v2504 = vld [vmem:[%s119] sm:$0xf]
    %v2505 = vld [vmem:[%s119 + $0x4] sm:$0xf]
    %v2508 = vunpack.c.l.b16 %v2504
    %v2509 = vunpack.c.l.b16 %v2505
    %v2510 = vpack.c.b16 %v2509, %v2508
    %v2513 = vsel %vm1134, %v2502, 0
    %v2516 = vsel %vm1134, %v2503, 0
    %2518 = vmatprep.subr.bf16.mxu0 0
    %2519 = vmatpush1.bf16.msra.mxu0 %v2510
    %2520 = vmatprep.subr.bf16.mxu0 0
    %2521 = vmatpush1.bf16.msra.mxu0 0
    %2522 = vmatprep.subr.bf16.mxu0 0
    %2523 = vmatpush1.bf16.msra.mxu0 0
    %2524 = vmatprep.subr.bf16.mxu0 0
    %2525 = vmatpush1.bf16.msra.mxu0 0
    %2526 = vmatprep.subr.bf16.mxu0 0
    %2527 = vmatpush1.bf16.msra.mxu0 0
    %2528 = vmatprep.subr.bf16.mxu0 0
    %2529 = vmatpush1.bf16.msra.mxu0 0
    %2530 = vmatprep.subr.bf16.mxu0 0
    %2531 = vmatpush1.bf16.msra.mxu0 0
    %2532 = vmatprep.subr.bf16.mxu0 0
    %2533 = vmatpush1.bf16.msra.mxu0 0
    %2534 = vmatprep.subr.bf16.mxu0 0
    %2535 = vmatpush1.bf16.msra.mxu0 0
    %2536 = vmatprep.subr.bf16.mxu0 0
    %2537 = vmatpush1.bf16.msra.mxu0 0
    %2538 = vmatprep.subr.bf16.mxu0 0
    %2539 = vmatpush1.bf16.msra.mxu0 0
    %2540 = vmatprep.subr.bf16.mxu0 0
    %2541 = vmatpush1.bf16.msra.mxu0 0
    %2542 = vmatprep.subr.bf16.mxu0 0
    %2543 = vmatpush1.bf16.msra.mxu0 0
    %2544 = vmatprep.subr.bf16.mxu0 0
    %2545 = vmatpush1.bf16.msra.mxu0 0
    %2546 = vmatprep.subr.bf16.mxu0 0
    %2547 = vmatpush1.bf16.msra.mxu0 0
    %2548 = vmatprep.subr.bf16.mxu0 0
    %2549 = vmatpush1.bf16.msra.mxu0 0
    %2550 = vmatprep.mubr.bf16.mxu0 0
    %2551 = vmatmul.mubr.bf16.gmra.mrb[0].mxu0 %v2513
    %v2552 = vpop.f32.mrb[0].mxu0
    %v2553 = vadd.f32 0.0, %v2552
    %v2554 = vpop.f32.mrb[0].mxu0
    %v2555 = vpop.f32.mrb[0].mxu0
    %v2556 = vadd.f32 0.0, %v2555
    %v2557 = vpop.f32.mrb[0].mxu0
    %2558 = vmatprep.mubr.bf16.mxu0 0
    %2559 = vmatmul.mubr.bf16.gmra.mrb[0].mxu0 %v2516
    %v2560 = vpop.f32.mrb[0].mxu0
    %v2561 = vadd.f32 0.0, %v2560
    %v2562 = vpop.f32.mrb[0].mxu0
    %v2563 = vpop.f32.mrb[0].mxu0
    %v2564 = vadd.f32 0.0, %v2563
    %v2565 = vpop.f32.mrb[0].mxu0
    %2566 = vdwg.mxu0
    %v2567 = vadd.f32 %v2498, %v2553
    %v2568 = vadd.f32 %v2499, %v2556
    %v2569 = vadd.f32 %v2500, %v2561
    %v2570 = vadd.f32 %v2501, %v2564
    %v2571 = vmul.f32 %v2567, 0.01
    %v2572 = vmul.f32 %v2568, 0.01
    %v2573 = vmul.f32 %v2569, 0.01
    %v2574 = vmul.f32 %v2570, 0.01
    %v2575 = vmax.f32 %v2567, %v2571
    %v2576 = vmax.f32 %v2568, %v2572
    %v2577 = vmax.f32 %v2569, %v2573
    %v2578 = vmax.f32 %v2570, %v2574
    %v2579 = vpack.c.bf16 %v2576, %v2575
    %v2580 = vpack.c.bf16 %v2578, %v2577
    %v2581 = vld [vmem:[%s121] sm:$0xf]
    %v2582 = vld [vmem:[%s121 + $0x4] sm:$0xf]
    %v2583 = vld [vmem:[%s121 + $0x8] sm:$0xf]
    %v2584 = vld [vmem:[%s121 + $0xc] sm:$0xf]
    %v2585 = vld [vmem:[#allocation43] sm:$0x1]
    %v2587 = vlaneseq
    %v2588 = vshrl.u32 %v2587, 7
    %v2589 = vsub.s32 0, %v2588
    %v2590 = vrot.slane %v2585, %v2589
    %v2596 = vunpack.c.l.b16 %v2581
    %v2597 = vunpack.c.l.b16 %v2582
    %v2598 = vunpack.c.l.b16 %v2583
    %v2599 = vunpack.c.l.b16 %v2584
    %v2600 = vpack.c.b16 %v2597, %v2596
    %v2601 = vpack.c.b16 %v2599, %v2598
    %v2605 = vsel %vm1017, %v2579, 0
    %v2608 = vsel %vm1017, %v2580, 0
    %2610 = vmatprep.subr.bf16.mxu0 0
    %2611 = vmatpush1.bf16.msra.mxu0 %v2600
    %2612 = vmatprep.subr.bf16.mxu0 0
    %2613 = vmatpush1.bf16.msra.mxu0 %v2601
    %2614 = vmatprep.subr.bf16.mxu0 0
    %2615 = vmatpush1.bf16.msra.mxu0 0
    %2616 = vmatprep.subr.bf16.mxu0 0
    %2617 = vmatpush1.bf16.msra.mxu0 0
    %2618 = vmatprep.subr.bf16.mxu0 0
    %2619 = vmatpush1.bf16.msra.mxu0 0
    %2620 = vmatprep.subr.bf16.mxu0 0
    %2621 = vmatpush1.bf16.msra.mxu0 0
    %2622 = vmatprep.subr.bf16.mxu0 0
    %2623 = vmatpush1.bf16.msra.mxu0 0
    %2624 = vmatprep.subr.bf16.mxu0 0
    %2625 = vmatpush1.bf16.msra.mxu0 0
    %2626 = vmatprep.subr.bf16.mxu0 0
    %2627 = vmatpush1.bf16.msra.mxu0 0
    %2628 = vmatprep.subr.bf16.mxu0 0
    %2629 = vmatpush1.bf16.msra.mxu0 0
    %2630 = vmatprep.subr.bf16.mxu0 0
    %2631 = vmatpush1.bf16.msra.mxu0 0
    %2632 = vmatprep.subr.bf16.mxu0 0
    %2633 = vmatpush1.bf16.msra.mxu0 0
    %2634 = vmatprep.subr.bf16.mxu0 0
    %2635 = vmatpush1.bf16.msra.mxu0 0
    %2636 = vmatprep.subr.bf16.mxu0 0
    %2637 = vmatpush1.bf16.msra.mxu0 0
    %2638 = vmatprep.subr.bf16.mxu0 0
    %2639 = vmatpush1.bf16.msra.mxu0 0
    %2640 = vmatprep.subr.bf16.mxu0 0
    %2641 = vmatpush1.bf16.msra.mxu0 0
    %2642 = vmatprep.mubr.bf16.mxu0 0
    %2643 = vmatmul.mubr.bf16.gmra.mrb[0].mxu0 %v2605
    %v2644 = vpop.f32.mrb[0].mxu0
    %v2645 = vadd.f32 %v2590, %v2644
    %v2646 = vpop.f32.mrb[0].mxu0
    %v2647 = vpop.f32.mrb[0].mxu0
    %v2648 = vadd.f32 %v2590, %v2647
    %v2649 = vpop.f32.mrb[0].mxu0
    %2650 = vmatprep.mubr.bf16.mxu0 0
    %2651 = vmatmul.mubr.bf16.gmra.mrb[0].mxu0 %v2608
    %v2652 = vpop.f32.mrb[0].mxu0
    %v2653 = vadd.f32 %v2590, %v2652
    %v2654 = vpop.f32.mrb[0].mxu0
    %v2655 = vpop.f32.mrb[0].mxu0
    %v2656 = vadd.f32 %v2590, %v2655
    %v2657 = vpop.f32.mrb[0].mxu0
    %2658 = vdwg.mxu0
    %v2659 = vmul.f32 %v2645, 0.01
    %v2660 = vmul.f32 %v2648, 0.01
    %v2661 = vmul.f32 %v2653, 0.01
    %v2662 = vmul.f32 %v2656, 0.01
    %v2663 = vmax.f32 %v2645, %v2659
    %v2664 = vmax.f32 %v2648, %v2660
    %v2665 = vmax.f32 %v2653, %v2661
    %v2666 = vmax.f32 %v2656, %v2662
    %v2667 = vpack.c.bf16 %v2664, %v2663
    %v2668 = vpack.c.bf16 %v2666, %v2665
    %v2669 = vld [vmem:[%s123] sm:$0xf]
    %v2670 = vld [vmem:[%s123 + $0x4] sm:$0xf]
    %v2671 = vld [vmem:[%s123 + $0x8] sm:$0xf]
    %v2672 = vld [vmem:[%s123 + $0xc] sm:$0xf]
    %v2673 = vld [vmem:[#allocation45] sm:$0x1]
    %v2675 = vlaneseq
    %v2676 = vshrl.u32 %v2675, 7
    %v2677 = vsub.s32 0, %v2676
    %v2678 = vrot.slane %v2673, %v2677
    %v2684 = vunpack.c.l.b16 %v2669
    %v2685 = vunpack.c.l.b16 %v2670
    %v2686 = vunpack.c.l.b16 %v2671
    %v2687 = vunpack.c.l.b16 %v2672
    %v2688 = vpack.c.b16 %v2685, %v2684
    %v2689 = vpack.c.b16 %v2687, %v2686
    %v2693 = vsel %vm1017, %v2667, 0
    %v2696 = vsel %vm1017, %v2668, 0
    %2698 = vmatprep.subr.bf16.mxu0 0
    %2699 = vmatpush1.bf16.msra.mxu0 %v2688
    %2700 = vmatprep.subr.bf16.mxu0 0
    %2701 = vmatpush1.bf16.msra.mxu0 %v2689
    %2702 = vmatprep.subr.bf16.mxu0 0
    %2703 = vmatpush1.bf16.msra.mxu0 0
    %2704 = vmatprep.subr.bf16.mxu0 0
    %2705 = vmatpush1.bf16.msra.mxu0 0
    %2706 = vmatprep.subr.bf16.mxu0 0
    %2707 = vmatpush1.bf16.msra.mxu0 0
    %2708 = vmatprep.subr.bf16.mxu0 0
    %2709 = vmatpush1.bf16.msra.mxu0 0
    %2710 = vmatprep.subr.bf16.mxu0 0
    %2711 = vmatpush1.bf16.msra.mxu0 0
    %2712 = vmatprep.subr.bf16.mxu0 0
    %2713 = vmatpush1.bf16.msra.mxu0 0
    %2714 = vmatprep.subr.bf16.mxu0 0
    %2715 = vmatpush1.bf16.msra.mxu0 0
    %2716 = vmatprep.subr.bf16.mxu0 0
    %2717 = vmatpush1.bf16.msra.mxu0 0
    %2718 = vmatprep.subr.bf16.mxu0 0
    %2719 = vmatpush1.bf16.msra.mxu0 0
    %2720 = vmatprep.subr.bf16.mxu0 0
    %2721 = vmatpush1.bf16.msra.mxu0 0
    %2722 = vmatprep.subr.bf16.mxu0 0
    %2723 = vmatpush1.bf16.msra.mxu0 0
    %2724 = vmatprep.subr.bf16.mxu0 0
    %2725 = vmatpush1.bf16.msra.mxu0 0
    %2726 = vmatprep.subr.bf16.mxu0 0
    %2727 = vmatpush1.bf16.msra.mxu0 0
    %2728 = vmatprep.subr.bf16.mxu0 0
    %2729 = vmatpush1.bf16.msra.mxu0 0
    %2730 = vmatprep.mubr.bf16.mxu0 0
    %2731 = vmatmul.mubr.bf16.gmra.mrb[0].mxu0 %v2693
    %v2732 = vpop.f32.mrb[0].mxu0
    %v2733 = vadd.f32 %v2678, %v2732
    %v2734 = vpop.f32.mrb[0].mxu0
    %v2735 = vpop.f32.mrb[0].mxu0
    %v2736 = vadd.f32 %v2678, %v2735
    %v2737 = vpop.f32.mrb[0].mxu0
    %2738 = vmatprep.mubr.bf16.mxu0 0
    %2739 = vmatmul.mubr.bf16.gmra.mrb[0].mxu0 %v2696
    %v2740 = vpop.f32.mrb[0].mxu0
    %v2741 = vadd.f32 %v2678, %v2740
    %v2742 = vpop.f32.mrb[0].mxu0
    %v2743 = vpop.f32.mrb[0].mxu0
    %v2744 = vadd.f32 %v2678, %v2743
    %v2745 = vpop.f32.mrb[0].mxu0
    %2746 = vdwg.mxu0
    %v2747 = vsel %vm1134, %v2733, 0.0
    %2748 = vadd.xlane.f32.xlu0 %v2747
    %v2749 = vpop.xlane.xlu0 %2748
    %v2750 = vsel %vm1134, %v2736, 0.0
    %2751 = vadd.xlane.f32.xlu0 %v2750
    %v2752 = vpop.xlane.xlu0 %2751
    %v2753 = vsel %vm1134, %v2741, 0.0
    %2754 = vadd.xlane.f32.xlu0 %v2753
    %v2755 = vpop.xlane.xlu0 %2754
    %v2756 = vsel %vm1134, %v2744, 0.0
    %2757 = vadd.xlane.f32.xlu0 %v2756
    %v2758 = vpop.xlane.xlu0 %2757
    %v2759 = vmul.f32 %v2749, %v1141
    %v2760 = vmul.f32 %v2752, %v1141
    %v2761 = vmul.f32 %v2755, %v1141
    %v2762 = vmul.f32 %v2758, %v1141
    %v2763 = vmul.f32 %v2733, %v2733
    %v2764 = vmul.f32 %v2736, %v2736
    %v2765 = vmul.f32 %v2741, %v2741
    %v2766 = vmul.f32 %v2744, %v2744
    %v2767 = vsel %vm1134, %v2763, 0.0
    %2768 = vadd.xlane.f32.xlu0 %v2767
    %v2769 = vpop.xlane.xlu0 %2768
    %v2770 = vsel %vm1134, %v2764, 0.0
    %2771 = vadd.xlane.f32.xlu0 %v2770
    %v2772 = vpop.xlane.xlu0 %2771
    %v2773 = vsel %vm1134, %v2765, 0.0
    %2774 = vadd.xlane.f32.xlu0 %v2773
    %v2775 = vpop.xlane.xlu0 %2774
    %v2776 = vsel %vm1134, %v2766, 0.0
    %2777 = vadd.xlane.f32.xlu0 %v2776
    %v2778 = vpop.xlane.xlu0 %2777
    %v2779 = vmul.f32 %v2769, %v1141
    %v2780 = vmul.f32 %v2772, %v1141
    %v2781 = vmul.f32 %v2775, %v1141
    %v2782 = vmul.f32 %v2778, %v1141
    %v2783 = vmul.f32 %v2759, %v2759
    %v2784 = vmul.f32 %v2760, %v2760
    %v2785 = vmul.f32 %v2761, %v2761
    %v2786 = vmul.f32 %v2762, %v2762
    %v2787 = vsub.f32 %v2779, %v2783
    %v2788 = vsub.f32 %v2780, %v2784
    %v2789 = vsub.f32 %v2781, %v2785
    %v2790 = vsub.f32 %v2782, %v2786
    %v2791 = vmax.f32 %v2787, 0.0
    %v2792 = vmax.f32 %v2788, 0.0
    %v2793 = vmax.f32 %v2789, 0.0
    %v2794 = vmax.f32 %v2790, 0.0
    %v2795 = vsub.f32 %v2733, %v2759
    %v2796 = vsub.f32 %v2736, %v2760
    %v2797 = vsub.f32 %v2741, %v2761
    %v2798 = vsub.f32 %v2744, %v2762
    %v2799 = vadd.f32 %v2791, 1e-05
    %v2800 = vadd.f32 %v2792, 1e-05
    %v2801 = vadd.f32 %v2793, 1e-05
    %v2802 = vadd.f32 %v2794, 1e-05
    %v2803 = vrsqrt.pop %v2799
    %v2804 = vrsqrt.pop %v2800
    %v2805 = vrsqrt.pop %v2801
    %v2806 = vrsqrt.pop %v2802
    %v2807 = vmul.f32 %v2795, %v2803
    %v2808 = vmul.f32 %v2796, %v2804
    %v2809 = vmul.f32 %v2797, %v2805
    %v2810 = vmul.f32 %v2798, %v2806
    %v2811 = vld [vmem:[#allocation48] sm:$0x1]
    %v2813 = vlaneseq
    %v2814 = vshrl.u32 %v2813, 7
    %v2815 = vsub.s32 0, %v2814
    %v2816 = vrot.slane %v2811, %v2815
    %v2818 = vmul.f32 %v2807, %v2816
    %v2819 = vmul.f32 %v2808, %v2816
    %v2820 = vmul.f32 %v2809, %v2816
    %v2821 = vmul.f32 %v2810, %v2816
    %v2822 = vld [vmem:[#allocation46] sm:$0x1]
    %v2824 = vlaneseq
    %v2825 = vshrl.u32 %v2824, 7
    %v2826 = vsub.s32 0, %v2825
    %v2827 = vrot.slane %v2822, %v2826
    %v2829 = vadd.f32 %v2818, %v2827
    %v2830 = vadd.f32 %v2819, %v2827
    %v2831 = vadd.f32 %v2820, %v2827
    %v2832 = vadd.f32 %v2821, %v2827
    %v2833 = vadd.f32 %v2829, %v1521
    %v2834 = vadd.f32 %v2830, %v1522
    %v2835 = vadd.f32 %v2831, %v1523
    %v2836 = vadd.f32 %v2832, %v1524
    %v2837 = vpack.c.bf16 %v2834, %v2833
    %v2838 = vpack.c.bf16 %v2836, %v2835
    %v2841 = vunpack.c.l.b16 %v927
    %v2842 = vunpack.c.l.b16 %v928
    %v2843 = vpack.c.b16 %v2842, %v2841
    %v2845 = vsel %vm1017, %v2843, 0
    %2847 = vmatprep.subr.bf16.mxu0 0
    %2848 = vmatpush1.bf16.msra.mxu0 %v2837
    %2849 = vmatprep.subr.bf16.mxu0 0
    %2850 = vmatpush1.bf16.msra.mxu0 %v2838
    %2851 = vmatprep.subr.bf16.mxu0 0
    %2852 = vmatpush1.bf16.msra.mxu0 0
    %2853 = vmatprep.subr.bf16.mxu0 0
    %2854 = vmatpush1.bf16.msra.mxu0 0
    %2855 = vmatprep.subr.bf16.mxu0 0
    %2856 = vmatpush1.bf16.msra.mxu0 0
    %2857 = vmatprep.subr.bf16.mxu0 0
    %2858 = vmatpush1.bf16.msra.mxu0 0
    %2859 = vmatprep.subr.bf16.mxu0 0
    %2860 = vmatpush1.bf16.msra.mxu0 0
    %2861 = vmatprep.subr.bf16.mxu0 0
    %2862 = vmatpush1.bf16.msra.mxu0 0
    %2863 = vmatprep.subr.bf16.mxu0 0
    %2864 = vmatpush1.bf16.msra.mxu0 0
    %2865 = vmatprep.subr.bf16.mxu0 0
    %2866 = vmatpush1.bf16.msra.mxu0 0
    %2867 = vmatprep.subr.bf16.mxu0 0
    %2868 = vmatpush1.bf16.msra.mxu0 0
    %2869 = vmatprep.subr.bf16.mxu0 0
    %2870 = vmatpush1.bf16.msra.mxu0 0
    %2871 = vmatprep.subr.bf16.mxu0 0
    %2872 = vmatpush1.bf16.msra.mxu0 0
    %2873 = vmatprep.subr.bf16.mxu0 0
    %2874 = vmatpush1.bf16.msra.mxu0 0
    %2875 = vmatprep.subr.bf16.mxu0 0
    %2876 = vmatpush1.bf16.msra.mxu0 0
    %2877 = vmatprep.subr.bf16.mxu0 0
    %2878 = vmatpush1.bf16.msra.mxu0 0
    %2879 = vmatprep.mubr.bf16.mxu0 0
    %2880 = vmatmul.mubr.bf16.gmra.mrb[0].mxu0 %v2845
    %v2881 = vpop.f32.mrb[0].mxu0
    %v2882 = vadd.f32 0.0, %v2881
    %v2883 = vpop.f32.mrb[0].mxu0
    %v2884 = vpop.f32.mrb[0].mxu0
    %v2885 = vadd.f32 0.0, %v2884
    %v2886 = vpop.f32.mrb[0].mxu0
    %2887 = vdwg.mxu0
    %v2888 = vld [vmem:[#allocation57] sm:$0x1]
    %v2889 = vld [vmem:[%s155] sm:$0xf]
    %v2890 = vld [vmem:[%s155 + $0x4] sm:$0xf]
    %v2893 = vunpack.c.l.b16 %v2889
    %v2894 = vunpack.c.l.b16 %v2890
    %v2895 = vpack.c.b16 %v2894, %v2893
    %v2898 = vsel %vm1134, %v2259, 0
    %2900 = vmatprep.subr.bf16.mxu0 0
    %2901 = vmatpush1.bf16.msra.mxu0 %v2895
    %2902 = vmatprep.subr.bf16.mxu0 0
    %2903 = vmatpush1.bf16.msra.mxu0 0
    %2904 = vmatprep.subr.bf16.mxu0 0
    %2905 = vmatpush1.bf16.msra.mxu0 0
    %2906 = vmatprep.subr.bf16.mxu0 0
    %2907 = vmatpush1.bf16.msra.mxu0 0
    %2908 = vmatprep.subr.bf16.mxu0 0
    %2909 = vmatpush1.bf16.msra.mxu0 0
    %2910 = vmatprep.subr.bf16.mxu0 0
    %2911 = vmatpush1.bf16.msra.mxu0 0
    %2912 = vmatprep.subr.bf16.mxu0 0
    %2913 = vmatpush1.bf16.msra.mxu0 0
    %2914 = vmatprep.subr.bf16.mxu0 0
    %2915 = vmatpush1.bf16.msra.mxu0 0
    %2916 = vmatprep.subr.bf16.mxu0 0
    %2917 = vmatpush1.bf16.msra.mxu0 0
    %2918 = vmatprep.subr.bf16.mxu0 0
    %2919 = vmatpush1.bf16.msra.mxu0 0
    %2920 = vmatprep.subr.bf16.mxu0 0
    %2921 = vmatpush1.bf16.msra.mxu0 0
    %2922 = vmatprep.subr.bf16.mxu0 0
    %2923 = vmatpush1.bf16.msra.mxu0 0
    %2924 = vmatprep.subr.bf16.mxu0 0
    %2925 = vmatpush1.bf16.msra.mxu0 0
    %2926 = vmatprep.subr.bf16.mxu0 0
    %2927 = vmatpush1.bf16.msra.mxu0 0
    %2928 = vmatprep.subr.bf16.mxu0 0
    %2929 = vmatpush1.bf16.msra.mxu0 0
    %2930 = vmatprep.subr.bf16.mxu0 0
    %2931 = vmatpush1.bf16.msra.mxu0 0
    %2932 = vmatprep.mubr.bf16.mxu0 0
    %2933 = vmatmul.mubr.bf16.gmra.mrb[0].mxu0 %v2898
    %v2934 = vpop.f32.mrb[0].mxu0
    %v2935 = vadd.f32 0.0, %v2934
    %v2936 = vpop.f32.mrb[0].mxu0
    %v2937 = vpop.f32.mrb[0].mxu0
    %v2938 = vadd.f32 0.0, %v2937
    %v2939 = vpop.f32.mrb[0].mxu0
    %2940 = vdwg.mxu0
    %v2942 = vlaneseq
    %v2943 = vshrl.u32 %v2942, 7
    %v2944 = vsub.s32 0, %v2943
    %v2945 = vrot.slane %v2888, %v2944
    %v2947 = vadd.f32 %v2945, %v2935
    %v2948 = vadd.f32 %v2945, %v2938
    %v2949 = vpack.c.bf16 %v2885, %v2882
    %v2950 = vld [vmem:[%s157] sm:$0xf]
    %v2951 = vld [vmem:[%s157 + $0x4] sm:$0xf]
    %v2954 = vunpack.c.l.b16 %v2950
    %v2955 = vunpack.c.l.b16 %v2951
    %v2956 = vpack.c.b16 %v2955, %v2954
    %v2959 = vsel %vm1134, %v2949, 0
    %2961 = vmatprep.subr.bf16.mxu0 0
    %2962 = vmatpush1.bf16.msra.mxu0 %v2956
    %2963 = vmatprep.subr.bf16.mxu0 0
    %2964 = vmatpush1.bf16.msra.mxu0 0
    %2965 = vmatprep.subr.bf16.mxu0 0
    %2966 = vmatpush1.bf16.msra.mxu0 0
    %2967 = vmatprep.subr.bf16.mxu0 0
    %2968 = vmatpush1.bf16.msra.mxu0 0
    %2969 = vmatprep.subr.bf16.mxu0 0
    %2970 = vmatpush1.bf16.msra.mxu0 0
    %2971 = vmatprep.subr.bf16.mxu0 0
    %2972 = vmatpush1.bf16.msra.mxu0 0
    %2973 = vmatprep.subr.bf16.mxu0 0
    %2974 = vmatpush1.bf16.msra.mxu0 0
    %2975 = vmatprep.subr.bf16.mxu0 0
    %2976 = vmatpush1.bf16.msra.mxu0 0
    %2977 = vmatprep.subr.bf16.mxu0 0
    %2978 = vmatpush1.bf16.msra.mxu0 0
    %2979 = vmatprep.subr.bf16.mxu0 0
    %2980 = vmatpush1.bf16.msra.mxu0 0
    %2981 = vmatprep.subr.bf16.mxu0 0
    %2982 = vmatpush1.bf16.msra.mxu0 0
    %2983 = vmatprep.subr.bf16.mxu0 0
    %2984 = vmatpush1.bf16.msra.mxu0 0
    %2985 = vmatprep.subr.bf16.mxu0 0
    %2986 = vmatpush1.bf16.msra.mxu0 0
    %2987 = vmatprep.subr.bf16.mxu0 0
    %2988 = vmatpush1.bf16.msra.mxu0 0
    %2989 = vmatprep.subr.bf16.mxu0 0
    %2990 = vmatpush1.bf16.msra.mxu0 0
    %2991 = vmatprep.subr.bf16.mxu0 0
    %2992 = vmatpush1.bf16.msra.mxu0 0
    %2993 = vmatprep.mubr.bf16.mxu0 0
    %2994 = vmatmul.mubr.bf16.gmra.mrb[0].mxu0 %v2959
    %v2995 = vpop.f32.mrb[0].mxu0
    %v2996 = vadd.f32 0.0, %v2995
    %v2997 = vpop.f32.mrb[0].mxu0
    %v2998 = vpop.f32.mrb[0].mxu0
    %v2999 = vadd.f32 0.0, %v2998
    %v3000 = vpop.f32.mrb[0].mxu0
    %3001 = vdwg.mxu0
    %v3002 = vadd.f32 %v2947, %v2996
    %v3003 = vadd.f32 %v2948, %v2999
    %v3004 = vpack.c.bf16 %v1892, %v1889
    %v3005 = vld [vmem:[%s159] sm:$0xf]
    %v3007 = vsel %vm932, %v3004, 0
    %v3010 = vsel %vm936, %v3005, 0
    %3012 = vmatprep.subr.bf16.mxu0 0
    %3013 = vmatpush1.bf16.msra.mxu0 %v3010
    %3014 = vmatprep.subr.bf16.mxu0 0
    %3015 = vmatpush1.bf16.msra.mxu0 0
    %3016 = vmatprep.subr.bf16.mxu0 0
    %3017 = vmatpush1.bf16.msra.mxu0 0
    %3018 = vmatprep.subr.bf16.mxu0 0
    %3019 = vmatpush1.bf16.msra.mxu0 0
    %3020 = vmatprep.subr.bf16.mxu0 0
    %3021 = vmatpush1.bf16.msra.mxu0 0
    %3022 = vmatprep.subr.bf16.mxu0 0
    %3023 = vmatpush1.bf16.msra.mxu0 0
    %3024 = vmatprep.subr.bf16.mxu0 0
    %3025 = vmatpush1.bf16.msra.mxu0 0
    %3026 = vmatprep.subr.bf16.mxu0 0
    %3027 = vmatpush1.bf16.msra.mxu0 0
    %3028 = vmatprep.subr.bf16.mxu0 0
    %3029 = vmatpush1.bf16.msra.mxu0 0
    %3030 = vmatprep.subr.bf16.mxu0 0
    %3031 = vmatpush1.bf16.msra.mxu0 0
    %3032 = vmatprep.subr.bf16.mxu0 0
    %3033 = vmatpush1.bf16.msra.mxu0 0
    %3034 = vmatprep.subr.bf16.mxu0 0
    %3035 = vmatpush1.bf16.msra.mxu0 0
    %3036 = vmatprep.subr.bf16.mxu0 0
    %3037 = vmatpush1.bf16.msra.mxu0 0
    %3038 = vmatprep.subr.bf16.mxu0 0
    %3039 = vmatpush1.bf16.msra.mxu0 0
    %3040 = vmatprep.subr.bf16.mxu0 0
    %3041 = vmatpush1.bf16.msra.mxu0 0
    %3042 = vmatprep.subr.bf16.mxu0 0
    %3043 = vmatpush1.bf16.msra.mxu0 0
    %3044 = vmatprep.mubr.bf16.mxu0 0
    %3045 = vmatmul.mubr.bf16.gmra.mrb[0].mxu0 %v3007
    %v3046 = vpop.f32.mrb[0].mxu0
    %v3047 = vadd.f32 0.0, %v3046
    %v3048 = vpop.f32.mrb[0].mxu0
    %v3049 = vpop.f32.mrb[0].mxu0
    %v3050 = vadd.f32 0.0, %v3049
    %v3051 = vpop.f32.mrb[0].mxu0
    %3052 = vdwg.mxu0
    %v3053 = vadd.f32 %v3002, %v3047
    %v3054 = vadd.f32 %v3003, %v3050
    %v3055 = vpack.c.bf16 %v2256, %v2253
    %v3056 = vld [vmem:[%s161] sm:$0xf]
    %v3058 = vsel %vm932, %v3055, 0
    %v3061 = vsel %vm936, %v3056, 0
    %3063 = vmatprep.subr.bf16.mxu0 0
    %3064 = vmatpush1.bf16.msra.mxu0 %v3061
    %3065 = vmatprep.subr.bf16.mxu0 0
    %3066 = vmatpush1.bf16.msra.mxu0 0
    %3067 = vmatprep.subr.bf16.mxu0 0
    %3068 = vmatpush1.bf16.msra.mxu0 0
    %3069 = vmatprep.subr.bf16.mxu0 0
    %3070 = vmatpush1.bf16.msra.mxu0 0
    %3071 = vmatprep.subr.bf16.mxu0 0
    %3072 = vmatpush1.bf16.msra.mxu0 0
    %3073 = vmatprep.subr.bf16.mxu0 0
    %3074 = vmatpush1.bf16.msra.mxu0 0
    %3075 = vmatprep.subr.bf16.mxu0 0
    %3076 = vmatpush1.bf16.msra.mxu0 0
    %3077 = vmatprep.subr.bf16.mxu0 0
    %3078 = vmatpush1.bf16.msra.mxu0 0
    %3079 = vmatprep.subr.bf16.mxu0 0
    %3080 = vmatpush1.bf16.msra.mxu0 0
    %3081 = vmatprep.subr.bf16.mxu0 0
    %3082 = vmatpush1.bf16.msra.mxu0 0
    %3083 = vmatprep.subr.bf16.mxu0 0
    %3084 = vmatpush1.bf16.msra.mxu0 0
    %3085 = vmatprep.subr.bf16.mxu0 0
    %3086 = vmatpush1.bf16.msra.mxu0 0
    %3087 = vmatprep.subr.bf16.mxu0 0
    %3088 = vmatpush1.bf16.msra.mxu0 0
    %3089 = vmatprep.subr.bf16.mxu0 0
    %3090 = vmatpush1.bf16.msra.mxu0 0
    %3091 = vmatprep.subr.bf16.mxu0 0
    %3092 = vmatpush1.bf16.msra.mxu0 0
    %3093 = vmatprep.subr.bf16.mxu0 0
    %3094 = vmatpush1.bf16.msra.mxu0 0
    %3095 = vmatprep.mubr.bf16.mxu0 0
    %3096 = vmatmul.mubr.bf16.gmra.mrb[0].mxu0 %v3058
    %v3097 = vpop.f32.mrb[0].mxu0
    %v3098 = vadd.f32 0.0, %v3097
    %v3099 = vpop.f32.mrb[0].mxu0
    %v3100 = vpop.f32.mrb[0].mxu0
    %v3101 = vadd.f32 0.0, %v3100
    %v3102 = vpop.f32.mrb[0].mxu0
    %3103 = vdwg.mxu0
    %v3104 = vadd.f32 %v3053, %v3098
    %v3105 = vadd.f32 %v3054, %v3101
    %v3106 = vmul.f32 %v3104, 0.01
    %v3107 = vmul.f32 %v3105, 0.01
    %v3108 = vmax.f32 %v3104, %v3106
    %v3109 = vmax.f32 %v3105, %v3107
    %v3110 = vpack.c.bf16 %v3109, %v3108
    %v3111 = vld [vmem:[%s163] sm:$0xf]
    %v3112 = vld [vmem:[%s163 + $0x4] sm:$0xf]
    %v3113 = vld [vmem:[%s163 + $0x8] sm:$0xf]
    %v3114 = vld [vmem:[%s163 + $0xc] sm:$0xf]
    %v3115 = vld [vmem:[#allocation58] sm:$0x1]
    %v3117 = vlaneseq
    %v3118 = vshrl.u32 %v3117, 7
    %v3119 = vsub.s32 0, %v3118
    %v3120 = vrot.slane %v3115, %v3119
    %v3126 = vunpack.c.l.b16 %v3111
    %v3127 = vunpack.c.l.b16 %v3112
    %v3128 = vunpack.c.l.b16 %v3113
    %v3129 = vunpack.c.l.b16 %v3114
    %v3130 = vpack.c.b16 %v3127, %v3126
    %v3131 = vpack.c.b16 %v3129, %v3128
    %v3135 = vsel %vm1017, %v3110, 0
    %3137 = vmatprep.subr.bf16.mxu0 0
    %3138 = vmatpush1.bf16.msra.mxu0 %v3130
    %3139 = vmatprep.subr.bf16.mxu0 0
    %3140 = vmatpush1.bf16.msra.mxu0 %v3131
    %3141 = vmatprep.subr.bf16.mxu0 0
    %3142 = vmatpush1.bf16.msra.mxu0 0
    %3143 = vmatprep.subr.bf16.mxu0 0
    %3144 = vmatpush1.bf16.msra.mxu0 0
    %3145 = vmatprep.subr.bf16.mxu0 0
    %3146 = vmatpush1.bf16.msra.mxu0 0
    %3147 = vmatprep.subr.bf16.mxu0 0
    %3148 = vmatpush1.bf16.msra.mxu0 0
    %3149 = vmatprep.subr.bf16.mxu0 0
    %3150 = vmatpush1.bf16.msra.mxu0 0
    %3151 = vmatprep.subr.bf16.mxu0 0
    %3152 = vmatpush1.bf16.msra.mxu0 0
    %3153 = vmatprep.subr.bf16.mxu0 0
    %3154 = vmatpush1.bf16.msra.mxu0 0
    %3155 = vmatprep.subr.bf16.mxu0 0
    %3156 = vmatpush1.bf16.msra.mxu0 0
    %3157 = vmatprep.subr.bf16.mxu0 0
    %3158 = vmatpush1.bf16.msra.mxu0 0
    %3159 = vmatprep.subr.bf16.mxu0 0
    %3160 = vmatpush1.bf16.msra.mxu0 0
    %3161 = vmatprep.subr.bf16.mxu0 0
    %3162 = vmatpush1.bf16.msra.mxu0 0
    %3163 = vmatprep.subr.bf16.mxu0 0
    %3164 = vmatpush1.bf16.msra.mxu0 0
    %3165 = vmatprep.subr.bf16.mxu0 0
    %3166 = vmatpush1.bf16.msra.mxu0 0
    %3167 = vmatprep.subr.bf16.mxu0 0
    %3168 = vmatpush1.bf16.msra.mxu0 0
    %3169 = vmatprep.mubr.bf16.mxu0 0
    %3170 = vmatmul.mubr.bf16.gmra.mrb[0].mxu0 %v3135
    %v3171 = vpop.f32.mrb[0].mxu0
    %v3172 = vadd.f32 %v3120, %v3171
    %v3173 = vpop.f32.mrb[0].mxu0
    %v3174 = vpop.f32.mrb[0].mxu0
    %v3175 = vadd.f32 %v3120, %v3174
    %v3176 = vpop.f32.mrb[0].mxu0
    %3177 = vdwg.mxu0
    %v3178 = vmul.f32 %v3172, 0.01
    %v3179 = vmul.f32 %v3175, 0.01
    %v3180 = vmax.f32 %v3172, %v3178
    %v3181 = vmax.f32 %v3175, %v3179
    %v3182 = vpack.c.bf16 %v3181, %v3180
    %v3183 = vld [vmem:[%s165] sm:$0xf]
    %v3184 = vld [vmem:[%s165 + $0x4] sm:$0xf]
    %v3185 = vld [vmem:[%s165 + $0x8] sm:$0xf]
    %v3186 = vld [vmem:[%s165 + $0xc] sm:$0xf]
    %v3187 = vld [vmem:[#allocation60] sm:$0x1]
    %v3189 = vlaneseq
    %v3190 = vshrl.u32 %v3189, 7
    %v3191 = vsub.s32 0, %v3190
    %v3192 = vrot.slane %v3187, %v3191
    %v3198 = vunpack.c.l.b16 %v3183
    %v3199 = vunpack.c.l.b16 %v3184
    %v3200 = vunpack.c.l.b16 %v3185
    %v3201 = vunpack.c.l.b16 %v3186
    %v3202 = vpack.c.b16 %v3199, %v3198
    %v3203 = vpack.c.b16 %v3201, %v3200
    %v3207 = vsel %vm1017, %v3182, 0
    %3209 = vmatprep.subr.bf16.mxu0 0
    %3210 = vmatpush1.bf16.msra.mxu0 %v3202
    %3211 = vmatprep.subr.bf16.mxu0 0
    %3212 = vmatpush1.bf16.msra.mxu0 %v3203
    %3213 = vmatprep.subr.bf16.mxu0 0
    %3214 = vmatpush1.bf16.msra.mxu0 0
    %3215 = vmatprep.subr.bf16.mxu0 0
    %3216 = vmatpush1.bf16.msra.mxu0 0
    %3217 = vmatprep.subr.bf16.mxu0 0
    %3218 = vmatpush1.bf16.msra.mxu0 0
    %3219 = vmatprep.subr.bf16.mxu0 0
    %3220 = vmatpush1.bf16.msra.mxu0 0
    %3221 = vmatprep.subr.bf16.mxu0 0
    %3222 = vmatpush1.bf16.msra.mxu0 0
    %3223 = vmatprep.subr.bf16.mxu0 0
    %3224 = vmatpush1.bf16.msra.mxu0 0
    %3225 = vmatprep.subr.bf16.mxu0 0
    %3226 = vmatpush1.bf16.msra.mxu0 0
    %3227 = vmatprep.subr.bf16.mxu0 0
    %3228 = vmatpush1.bf16.msra.mxu0 0
    %3229 = vmatprep.subr.bf16.mxu0 0
    %3230 = vmatpush1.bf16.msra.mxu0 0
    %3231 = vmatprep.subr.bf16.mxu0 0
    %3232 = vmatpush1.bf16.msra.mxu0 0
    %3233 = vmatprep.subr.bf16.mxu0 0
    %3234 = vmatpush1.bf16.msra.mxu0 0
    %3235 = vmatprep.subr.bf16.mxu0 0
    %3236 = vmatpush1.bf16.msra.mxu0 0
    %3237 = vmatprep.subr.bf16.mxu0 0
    %3238 = vmatpush1.bf16.msra.mxu0 0
    %3239 = vmatprep.subr.bf16.mxu0 0
    %3240 = vmatpush1.bf16.msra.mxu0 0
    %3241 = vmatprep.mubr.bf16.mxu0 0
    %3242 = vmatmul.mubr.bf16.gmra.mrb[0].mxu0 %v3207
    %v3243 = vpop.f32.mrb[0].mxu0
    %v3244 = vadd.f32 %v3192, %v3243
    %v3245 = vpop.f32.mrb[0].mxu0
    %v3246 = vpop.f32.mrb[0].mxu0
    %v3247 = vadd.f32 %v3192, %v3246
    %v3248 = vpop.f32.mrb[0].mxu0
    %3249 = vdwg.mxu0
    %v3250 = vsel %vm1134, %v3244, 0.0
    %3251 = vadd.xlane.f32.xlu0 %v3250
    %v3252 = vpop.xlane.xlu0 %3251
    %v3253 = vsel %vm1134, %v3247, 0.0
    %3254 = vadd.xlane.f32.xlu0 %v3253
    %v3255 = vpop.xlane.xlu0 %3254
    %v3256 = vmul.f32 %v3252, %v1141
    %v3257 = vmul.f32 %v3255, %v1141
    %v3258 = vmul.f32 %v3244, %v3244
    %v3259 = vmul.f32 %v3247, %v3247
    %v3260 = vsel %vm1134, %v3258, 0.0
    %3261 = vadd.xlane.f32.xlu0 %v3260
    %v3262 = vpop.xlane.xlu0 %3261
    %v3263 = vsel %vm1134, %v3259, 0.0
    %3264 = vadd.xlane.f32.xlu0 %v3263
    %v3265 = vpop.xlane.xlu0 %3264
    %v3266 = vmul.f32 %v3262, %v1141
    %v3267 = vmul.f32 %v3265, %v1141
    %v3268 = vmul.f32 %v3256, %v3256
    %v3269 = vmul.f32 %v3257, %v3257
    %v3270 = vsub.f32 %v3266, %v3268
    %v3271 = vsub.f32 %v3267, %v3269
    %v3272 = vmax.f32 %v3270, 0.0
    %v3273 = vmax.f32 %v3271, 0.0
    %v3274 = vsub.f32 %v3244, %v3256
    %v3275 = vsub.f32 %v3247, %v3257
    %v3276 = vadd.f32 %v3272, 1e-05
    %v3277 = vadd.f32 %v3273, 1e-05
    %v3278 = vrsqrt.pop %v3276
    %v3279 = vrsqrt.pop %v3277
    %v3280 = vmul.f32 %v3274, %v3278
    %v3281 = vmul.f32 %v3275, %v3279
    %v3282 = vld [vmem:[#allocation63] sm:$0x1]
    %v3284 = vlaneseq
    %v3285 = vshrl.u32 %v3284, 7
    %v3286 = vsub.s32 0, %v3285
    %v3287 = vrot.slane %v3282, %v3286
    %v3289 = vmul.f32 %v3280, %v3287
    %v3290 = vmul.f32 %v3281, %v3287
    %v3291 = vld [vmem:[#allocation61] sm:$0x1]
    %v3293 = vlaneseq
    %v3294 = vshrl.u32 %v3293, 7
    %v3295 = vsub.s32 0, %v3294
    %v3296 = vrot.slane %v3291, %v3295
    %v3298 = vadd.f32 %v3289, %v3296
    %v3299 = vadd.f32 %v3290, %v3296
    %v3300 = vadd.f32 %v3298, %v1184
    %v3301 = vadd.f32 %v3299, %v1185
    %v3302 = vpack.c.bf16 %v3301, %v3300
    %3303 = vmatprep.subr.bf16.mxu0 0
    %3304 = vmatpush1.bf16.msra.mxu0 %v3302
    %3305 = vmatprep.subr.bf16.mxu0 0
    %3306 = vmatpush1.bf16.msra.mxu0 0
    %3307 = vmatprep.subr.bf16.mxu0 0
    %3308 = vmatpush1.bf16.msra.mxu0 0
    %3309 = vmatprep.subr.bf16.mxu0 0
    %3310 = vmatpush1.bf16.msra.mxu0 0
    %3311 = vmatprep.subr.bf16.mxu0 0
    %3312 = vmatpush1.bf16.msra.mxu0 0
    %3313 = vmatprep.subr.bf16.mxu0 0
    %3314 = vmatpush1.bf16.msra.mxu0 0
    %3315 = vmatprep.subr.bf16.mxu0 0
    %3316 = vmatpush1.bf16.msra.mxu0 0
    %3317 = vmatprep.subr.bf16.mxu0 0
    %3318 = vmatpush1.bf16.msra.mxu0 0
    %3319 = vmatprep.subr.bf16.mxu0 0
    %3320 = vmatpush1.bf16.msra.mxu0 0
    %3321 = vmatprep.subr.bf16.mxu0 0
    %3322 = vmatpush1.bf16.msra.mxu0 0
    %3323 = vmatprep.subr.bf16.mxu0 0
    %3324 = vmatpush1.bf16.msra.mxu0 0
    %3325 = vmatprep.subr.bf16.mxu0 0
    %3326 = vmatpush1.bf16.msra.mxu0 0
    %3327 = vmatprep.subr.bf16.mxu0 0
    %3328 = vmatpush1.bf16.msra.mxu0 0
    %3329 = vmatprep.subr.bf16.mxu0 0
    %3330 = vmatpush1.bf16.msra.mxu0 0
    %3331 = vmatprep.subr.bf16.mxu0 0
    %3332 = vmatpush1.bf16.msra.mxu0 0
    %3333 = vmatprep.subr.bf16.mxu0 0
    %3334 = vmatpush1.bf16.msra.mxu0 0
    %3335 = vmatprep.mubr.bf16.mxu0 0
    %3336 = vmatmul.mubr.bf16.gmra.mrb[0].mxu0 %v2281
    %v3337 = vpop.f32.mrb[0].mxu0
    %v3338 = vadd.f32 0.0, %v3337
    %v3339 = vpop.f32.mrb[0].mxu0
    %v3340 = vpop.f32.mrb[0].mxu0
    %v3341 = vadd.f32 0.0, %v3340
    %v3342 = vpop.f32.mrb[0].mxu0
    %3343 = vmatprep.mubr.bf16.mxu0 0
    %3344 = vmatmul.mubr.bf16.gmra.mrb[0].mxu0 %v2284
    %v3345 = vpop.f32.mrb[0].mxu0
    %v3346 = vadd.f32 0.0, %v3345
    %v3347 = vpop.f32.mrb[0].mxu0
    %v3348 = vpop.f32.mrb[0].mxu0
    %v3349 = vadd.f32 0.0, %v3348
    %v3350 = vpop.f32.mrb[0].mxu0
    %3351 = vmatprep.mubr.bf16.mxu0 0
    %3352 = vmatmul.mubr.bf16.gmra.mrb[0].mxu0 %v2287
    %v3353 = vpop.f32.mrb[0].mxu0
    %v3354 = vadd.f32 0.0, %v3353
    %v3355 = vpop.f32.mrb[0].mxu0
    %v3356 = vpop.f32.mrb[0].mxu0
    %v3357 = vadd.f32 0.0, %v3356
    %v3358 = vpop.f32.mrb[0].mxu0
    %3359 = vmatprep.mubr.bf16.mxu0 0
    %3360 = vmatmul.mubr.bf16.gmra.mrb[0].mxu0 %v2290
    %v3361 = vpop.f32.mrb[0].mxu0
    %v3362 = vadd.f32 0.0, %v3361
    %v3363 = vpop.f32.mrb[0].mxu0
    %v3364 = vpop.f32.mrb[0].mxu0
    %v3365 = vadd.f32 0.0, %v3364
    %v3366 = vpop.f32.mrb[0].mxu0
    %3367 = vdwg.mxu0
    %v3368 = vld [vmem:[#allocation49] sm:$0x1]
    %v3369 = vld [vmem:[%s135] sm:$0xf]
    %v3370 = vld [vmem:[%s135 + $0x4] sm:$0xf]
    %v3373 = vunpack.c.l.b16 %v3369
    %v3374 = vunpack.c.l.b16 %v3370
    %v3375 = vpack.c.b16 %v3374, %v3373
    %v3378 = vsel %vm1134, %v2837, 0
    %v3381 = vsel %vm1134, %v2838, 0
    %3383 = vmatprep.subr.bf16.mxu0 0
    %3384 = vmatpush1.bf16.msra.mxu0 %v3375
    %3385 = vmatprep.subr.bf16.mxu0 0
    %3386 = vmatpush1.bf16.msra.mxu0 0
    %3387 = vmatprep.subr.bf16.mxu0 0
    %3388 = vmatpush1.bf16.msra.mxu0 0
    %3389 = vmatprep.subr.bf16.mxu0 0
    %3390 = vmatpush1.bf16.msra.mxu0 0
    %3391 = vmatprep.subr.bf16.mxu0 0
    %3392 = vmatpush1.bf16.msra.mxu0 0
    %3393 = vmatprep.subr.bf16.mxu0 0
    %3394 = vmatpush1.bf16.msra.mxu0 0
    %3395 = vmatprep.subr.bf16.mxu0 0
    %3396 = vmatpush1.bf16.msra.mxu0 0
    %3397 = vmatprep.subr.bf16.mxu0 0
    %3398 = vmatpush1.bf16.msra.mxu0 0
    %3399 = vmatprep.subr.bf16.mxu0 0
    %3400 = vmatpush1.bf16.msra.mxu0 0
    %3401 = vmatprep.subr.bf16.mxu0 0
    %3402 = vmatpush1.bf16.msra.mxu0 0
    %3403 = vmatprep.subr.bf16.mxu0 0
    %3404 = vmatpush1.bf16.msra.mxu0 0
    %3405 = vmatprep.subr.bf16.mxu0 0
    %3406 = vmatpush1.bf16.msra.mxu0 0
    %3407 = vmatprep.subr.bf16.mxu0 0
    %3408 = vmatpush1.bf16.msra.mxu0 0
    %3409 = vmatprep.subr.bf16.mxu0 0
    %3410 = vmatpush1.bf16.msra.mxu0 0
    %3411 = vmatprep.subr.bf16.mxu0 0
    %3412 = vmatpush1.bf16.msra.mxu0 0
    %3413 = vmatprep.subr.bf16.mxu0 0
    %3414 = vmatpush1.bf16.msra.mxu0 0
    %3415 = vmatprep.mubr.bf16.mxu0 0
    %3416 = vmatmul.mubr.bf16.gmra.mrb[0].mxu0 %v3378
    %v3417 = vpop.f32.mrb[0].mxu0
    %v3418 = vadd.f32 0.0, %v3417
    %v3419 = vpop.f32.mrb[0].mxu0
    %v3420 = vpop.f32.mrb[0].mxu0
    %v3421 = vadd.f32 0.0, %v3420
    %v3422 = vpop.f32.mrb[0].mxu0
    %3423 = vmatprep.mubr.bf16.mxu0 0
    %3424 = vmatmul.mubr.bf16.gmra.mrb[0].mxu0 %v3381
    %v3425 = vpop.f32.mrb[0].mxu0
    %v3426 = vadd.f32 0.0, %v3425
    %v3427 = vpop.f32.mrb[0].mxu0
    %v3428 = vpop.f32.mrb[0].mxu0
    %v3429 = vadd.f32 0.0, %v3428
    %v3430 = vpop.f32.mrb[0].mxu0
    %3431 = vdwg.mxu0
    %v3433 = vlaneseq
    %v3434 = vshrl.u32 %v3433, 7
    %v3435 = vsub.s32 0, %v3434
    %v3436 = vrot.slane %v3368, %v3435
    %v3438 = vadd.f32 %v3436, %v3418
    %v3439 = vadd.f32 %v3436, %v3421
    %v3440 = vadd.f32 %v3436, %v3426
    %v3441 = vadd.f32 %v3436, %v3429
    %v3442 = vpack.c.bf16 %v3341, %v3338
    %v3443 = vpack.c.bf16 %v3349, %v3346
    %v3444 = vld [vmem:[%s137] sm:$0xf]
    %v3445 = vld [vmem:[%s137 + $0x4] sm:$0xf]
    %v3448 = vunpack.c.l.b16 %v3444
    %v3449 = vunpack.c.l.b16 %v3445
    %v3450 = vpack.c.b16 %v3449, %v3448
    %v3453 = vsel %vm1134, %v3442, 0
    %v3456 = vsel %vm1134, %v3443, 0
    %3458 = vmatprep.subr.bf16.mxu0 0
    %3459 = vmatpush1.bf16.msra.mxu0 %v3450
    %3460 = vmatprep.subr.bf16.mxu0 0
    %3461 = vmatpush1.bf16.msra.mxu0 0
    %3462 = vmatprep.subr.bf16.mxu0 0
    %3463 = vmatpush1.bf16.msra.mxu0 0
    %3464 = vmatprep.subr.bf16.mxu0 0
    %3465 = vmatpush1.bf16.msra.mxu0 0
    %3466 = vmatprep.subr.bf16.mxu0 0
    %3467 = vmatpush1.bf16.msra.mxu0 0
    %3468 = vmatprep.subr.bf16.mxu0 0
    %3469 = vmatpush1.bf16.msra.mxu0 0
    %3470 = vmatprep.subr.bf16.mxu0 0
    %3471 = vmatpush1.bf16.msra.mxu0 0
    %3472 = vmatprep.subr.bf16.mxu0 0
    %3473 = vmatpush1.bf16.msra.mxu0 0
    %3474 = vmatprep.subr.bf16.mxu0 0
    %3475 = vmatpush1.bf16.msra.mxu0 0
    %3476 = vmatprep.subr.bf16.mxu0 0
    %3477 = vmatpush1.bf16.msra.mxu0 0
    %3478 = vmatprep.subr.bf16.mxu0 0
    %3479 = vmatpush1.bf16.msra.mxu0 0
    %3480 = vmatprep.subr.bf16.mxu0 0
    %3481 = vmatpush1.bf16.msra.mxu0 0
    %3482 = vmatprep.subr.bf16.mxu0 0
    %3483 = vmatpush1.bf16.msra.mxu0 0
    %3484 = vmatprep.subr.bf16.mxu0 0
    %3485 = vmatpush1.bf16.msra.mxu0 0
    %3486 = vmatprep.subr.bf16.mxu0 0
    %3487 = vmatpush1.bf16.msra.mxu0 0
    %3488 = vmatprep.subr.bf16.mxu0 0
    %3489 = vmatpush1.bf16.msra.mxu0 0
    %3490 = vmatprep.mubr.bf16.mxu0 0
    %3491 = vmatmul.mubr.bf16.gmra.mrb[0].mxu0 %v3453
    %v3492 = vpop.f32.mrb[0].mxu0
    %v3493 = vadd.f32 0.0, %v3492
    %v3494 = vpop.f32.mrb[0].mxu0
    %v3495 = vpop.f32.mrb[0].mxu0
    %v3496 = vadd.f32 0.0, %v3495
    %v3497 = vpop.f32.mrb[0].mxu0
    %3498 = vmatprep.mubr.bf16.mxu0 0
    %3499 = vmatmul.mubr.bf16.gmra.mrb[0].mxu0 %v3456
    %v3500 = vpop.f32.mrb[0].mxu0
    %v3501 = vadd.f32 0.0, %v3500
    %v3502 = vpop.f32.mrb[0].mxu0
    %v3503 = vpop.f32.mrb[0].mxu0
    %v3504 = vadd.f32 0.0, %v3503
    %v3505 = vpop.f32.mrb[0].mxu0
    %3506 = vdwg.mxu0
    %v3507 = vadd.f32 %v3438, %v3493
    %v3508 = vadd.f32 %v3439, %v3496
    %v3509 = vadd.f32 %v3440, %v3501
    %v3510 = vadd.f32 %v3441, %v3504
    %v3511 = vpack.c.bf16 %v3357, %v3354
    %v3512 = vpack.c.bf16 %v3365, %v3362
    %v3513 = vld [vmem:[%s139] sm:$0xf]
    %v3514 = vld [vmem:[%s139 + $0x4] sm:$0xf]
    %v3517 = vunpack.c.l.b16 %v3513
    %v3518 = vunpack.c.l.b16 %v3514
    %v3519 = vpack.c.b16 %v3518, %v3517
    %v3522 = vsel %vm1134, %v3511, 0
    %v3525 = vsel %vm1134, %v3512, 0
    %3527 = vmatprep.subr.bf16.mxu0 0
    %3528 = vmatpush1.bf16.msra.mxu0 %v3519
    %3529 = vmatprep.subr.bf16.mxu0 0
    %3530 = vmatpush1.bf16.msra.mxu0 0
    %3531 = vmatprep.subr.bf16.mxu0 0
    %3532 = vmatpush1.bf16.msra.mxu0 0
    %3533 = vmatprep.subr.bf16.mxu0 0
    %3534 = vmatpush1.bf16.msra.mxu0 0
    %3535 = vmatprep.subr.bf16.mxu0 0
    %3536 = vmatpush1.bf16.msra.mxu0 0
    %3537 = vmatprep.subr.bf16.mxu0 0
    %3538 = vmatpush1.bf16.msra.mxu0 0
    %3539 = vmatprep.subr.bf16.mxu0 0
    %3540 = vmatpush1.bf16.msra.mxu0 0
    %3541 = vmatprep.subr.bf16.mxu0 0
    %3542 = vmatpush1.bf16.msra.mxu0 0
    %3543 = vmatprep.subr.bf16.mxu0 0
    %3544 = vmatpush1.bf16.msra.mxu0 0
    %3545 = vmatprep.subr.bf16.mxu0 0
    %3546 = vmatpush1.bf16.msra.mxu0 0
    %3547 = vmatprep.subr.bf16.mxu0 0
    %3548 = vmatpush1.bf16.msra.mxu0 0
    %3549 = vmatprep.subr.bf16.mxu0 0
    %3550 = vmatpush1.bf16.msra.mxu0 0
    %3551 = vmatprep.subr.bf16.mxu0 0
    %3552 = vmatpush1.bf16.msra.mxu0 0
    %3553 = vmatprep.subr.bf16.mxu0 0
    %3554 = vmatpush1.bf16.msra.mxu0 0
    %3555 = vmatprep.subr.bf16.mxu0 0
    %3556 = vmatpush1.bf16.msra.mxu0 0
    %3557 = vmatprep.subr.bf16.mxu0 0
    %3558 = vmatpush1.bf16.msra.mxu0 0
    %3559 = vmatprep.mubr.bf16.mxu0 0
    %3560 = vmatmul.mubr.bf16.gmra.mrb[0].mxu0 %v3522
    %v3561 = vpop.f32.mrb[0].mxu0
    %v3562 = vadd.f32 0.0, %v3561
    %v3563 = vpop.f32.mrb[0].mxu0
    %v3564 = vpop.f32.mrb[0].mxu0
    %v3565 = vadd.f32 0.0, %v3564
    %v3566 = vpop.f32.mrb[0].mxu0
    %3567 = vmatprep.mubr.bf16.mxu0 0
    %3568 = vmatmul.mubr.bf16.gmra.mrb[0].mxu0 %v3525
    %v3569 = vpop.f32.mrb[0].mxu0
    %v3570 = vadd.f32 0.0, %v3569
    %v3571 = vpop.f32.mrb[0].mxu0
    %v3572 = vpop.f32.mrb[0].mxu0
    %v3573 = vadd.f32 0.0, %v3572
    %v3574 = vpop.f32.mrb[0].mxu0
    %3575 = vdwg.mxu0
    %v3576 = vadd.f32 %v3507, %v3562
    %v3577 = vadd.f32 %v3508, %v3565
    %v3578 = vadd.f32 %v3509, %v3570
    %v3579 = vadd.f32 %v3510, %v3573
    %v3580 = vmul.f32 %v3576, 0.01
    %v3581 = vmul.f32 %v3577, 0.01
    %v3582 = vmul.f32 %v3578, 0.01
    %v3583 = vmul.f32 %v3579, 0.01
    %v3584 = vmax.f32 %v3576, %v3580
    %v3585 = vmax.f32 %v3577, %v3581
    %v3586 = vmax.f32 %v3578, %v3582
    %v3587 = vmax.f32 %v3579, %v3583
    %v3588 = vpack.c.bf16 %v3585, %v3584
    %v3589 = vpack.c.bf16 %v3587, %v3586
    %v3590 = vld [vmem:[%s141] sm:$0xf]
    %v3591 = vld [vmem:[%s141 + $0x4] sm:$0xf]
    %v3592 = vld [vmem:[%s141 + $0x8] sm:$0xf]
    %v3593 = vld [vmem:[%s141 + $0xc] sm:$0xf]
    %v3594 = vld [vmem:[#allocation51] sm:$0x1]
    %v3596 = vlaneseq
    %v3597 = vshrl.u32 %v3596, 7
    %v3598 = vsub.s32 0, %v3597
    %v3599 = vrot.slane %v3594, %v3598
    %v3605 = vunpack.c.l.b16 %v3590
    %v3606 = vunpack.c.l.b16 %v3591
    %v3607 = vunpack.c.l.b16 %v3592
    %v3608 = vunpack.c.l.b16 %v3593
    %v3609 = vpack.c.b16 %v3606, %v3605
    %v3610 = vpack.c.b16 %v3608, %v3607
    %v3614 = vsel %vm1017, %v3588, 0
    %v3617 = vsel %vm1017, %v3589, 0
    %3619 = vmatprep.subr.bf16.mxu0 0
    %3620 = vmatpush1.bf16.msra.mxu0 %v3609
    %3621 = vmatprep.subr.bf16.mxu0 0
    %3622 = vmatpush1.bf16.msra.mxu0 %v3610
    %3623 = vmatprep.subr.bf16.mxu0 0
    %3624 = vmatpush1.bf16.msra.mxu0 0
    %3625 = vmatprep.subr.bf16.mxu0 0
    %3626 = vmatpush1.bf16.msra.mxu0 0
    %3627 = vmatprep.subr.bf16.mxu0 0
    %3628 = vmatpush1.bf16.msra.mxu0 0
    %3629 = vmatprep.subr.bf16.mxu0 0
    %3630 = vmatpush1.bf16.msra.mxu0 0
    %3631 = vmatprep.subr.bf16.mxu0 0
    %3632 = vmatpush1.bf16.msra.mxu0 0
    %3633 = vmatprep.subr.bf16.mxu0 0
    %3634 = vmatpush1.bf16.msra.mxu0 0
    %3635 = vmatprep.subr.bf16.mxu0 0
    %3636 = vmatpush1.bf16.msra.mxu0 0
    %3637 = vmatprep.subr.bf16.mxu0 0
    %3638 = vmatpush1.bf16.msra.mxu0 0
    %3639 = vmatprep.subr.bf16.mxu0 0
    %3640 = vmatpush1.bf16.msra.mxu0 0
    %3641 = vmatprep.subr.bf16.mxu0 0
    %3642 = vmatpush1.bf16.msra.mxu0 0
    %3643 = vmatprep.subr.bf16.mxu0 0
    %3644 = vmatpush1.bf16.msra.mxu0 0
    %3645 = vmatprep.subr.bf16.mxu0 0
    %3646 = vmatpush1.bf16.msra.mxu0 0
    %3647 = vmatprep.subr.bf16.mxu0 0
    %3648 = vmatpush1.bf16.msra.mxu0 0
    %3649 = vmatprep.subr.bf16.mxu0 0
    %3650 = vmatpush1.bf16.msra.mxu0 0
    %3651 = vmatprep.mubr.bf16.mxu0 0
    %3652 = vmatmul.mubr.bf16.gmra.mrb[0].mxu0 %v3614
    %v3653 = vpop.f32.mrb[0].mxu0
    %v3654 = vadd.f32 %v3599, %v3653
    %v3655 = vpop.f32.mrb[0].mxu0
    %v3656 = vpop.f32.mrb[0].mxu0
    %v3657 = vadd.f32 %v3599, %v3656
    %v3658 = vpop.f32.mrb[0].mxu0
    %3659 = vmatprep.mubr.bf16.mxu0 0
    %3660 = vmatmul.mubr.bf16.gmra.mrb[0].mxu0 %v3617
    %v3661 = vpop.f32.mrb[0].mxu0
    %v3662 = vadd.f32 %v3599, %v3661
    %v3663 = vpop.f32.mrb[0].mxu0
    %v3664 = vpop.f32.mrb[0].mxu0
    %v3665 = vadd.f32 %v3599, %v3664
    %v3666 = vpop.f32.mrb[0].mxu0
    %3667 = vdwg.mxu0
    %v3668 = vmul.f32 %v3654, 0.01
    %v3669 = vmul.f32 %v3657, 0.01
    %v3670 = vmul.f32 %v3662, 0.01
    %v3671 = vmul.f32 %v3665, 0.01
    %v3672 = vmax.f32 %v3654, %v3668
    %v3673 = vmax.f32 %v3657, %v3669
    %v3674 = vmax.f32 %v3662, %v3670
    %v3675 = vmax.f32 %v3665, %v3671
    %v3676 = vpack.c.bf16 %v3673, %v3672
    %v3677 = vpack.c.bf16 %v3675, %v3674
    %v3678 = vld [vmem:[%s143] sm:$0xf]
    %v3679 = vld [vmem:[%s143 + $0x4] sm:$0xf]
    %v3680 = vld [vmem:[%s143 + $0x8] sm:$0xf]
    %v3681 = vld [vmem:[%s143 + $0xc] sm:$0xf]
    %v3682 = vld [vmem:[#allocation52] sm:$0x1]
    %v3684 = vlaneseq
    %v3685 = vshrl.u32 %v3684, 7
    %v3686 = vsub.s32 0, %v3685
    %v3687 = vrot.slane %v3682, %v3686
    %v3693 = vunpack.c.l.b16 %v3678
    %v3694 = vunpack.c.l.b16 %v3679
    %v3695 = vunpack.c.l.b16 %v3680
    %v3696 = vunpack.c.l.b16 %v3681
    %v3697 = vpack.c.b16 %v3694, %v3693
    %v3698 = vpack.c.b16 %v3696, %v3695
    %v3702 = vsel %vm1017, %v3676, 0
    %v3705 = vsel %vm1017, %v3677, 0
    %3707 = vmatprep.subr.bf16.mxu0 0
    %3708 = vmatpush1.bf16.msra.mxu0 %v3697
    %3709 = vmatprep.subr.bf16.mxu0 0
    %3710 = vmatpush1.bf16.msra.mxu0 %v3698
    %3711 = vmatprep.subr.bf16.mxu0 0
    %3712 = vmatpush1.bf16.msra.mxu0 0
    %3713 = vmatprep.subr.bf16.mxu0 0
    %3714 = vmatpush1.bf16.msra.mxu0 0
    %3715 = vmatprep.subr.bf16.mxu0 0
    %3716 = vmatpush1.bf16.msra.mxu0 0
    %3717 = vmatprep.subr.bf16.mxu0 0
    %3718 = vmatpush1.bf16.msra.mxu0 0
    %3719 = vmatprep.subr.bf16.mxu0 0
    %3720 = vmatpush1.bf16.msra.mxu0 0
    %3721 = vmatprep.subr.bf16.mxu0 0
    %3722 = vmatpush1.bf16.msra.mxu0 0
    %3723 = vmatprep.subr.bf16.mxu0 0
    %3724 = vmatpush1.bf16.msra.mxu0 0
    %3725 = vmatprep.subr.bf16.mxu0 0
    %3726 = vmatpush1.bf16.msra.mxu0 0
    %3727 = vmatprep.subr.bf16.mxu0 0
    %3728 = vmatpush1.bf16.msra.mxu0 0
    %3729 = vmatprep.subr.bf16.mxu0 0
    %3730 = vmatpush1.bf16.msra.mxu0 0
    %3731 = vmatprep.subr.bf16.mxu0 0
    %3732 = vmatpush1.bf16.msra.mxu0 0
    %3733 = vmatprep.subr.bf16.mxu0 0
    %3734 = vmatpush1.bf16.msra.mxu0 0
    %3735 = vmatprep.subr.bf16.mxu0 0
    %3736 = vmatpush1.bf16.msra.mxu0 0
    %3737 = vmatprep.subr.bf16.mxu0 0
    %3738 = vmatpush1.bf16.msra.mxu0 0
    %3739 = vmatprep.mubr.bf16.mxu0 0
    %3740 = vmatmul.mubr.bf16.gmra.mrb[0].mxu0 %v3702
    %v3741 = vpop.f32.mrb[0].mxu0
    %v3742 = vadd.f32 %v3687, %v3741
    %v3743 = vpop.f32.mrb[0].mxu0
    %v3744 = vpop.f32.mrb[0].mxu0
    %v3745 = vadd.f32 %v3687, %v3744
    %v3746 = vpop.f32.mrb[0].mxu0
    %3747 = vmatprep.mubr.bf16.mxu0 0
    %3748 = vmatmul.mubr.bf16.gmra.mrb[0].mxu0 %v3705
    %v3749 = vpop.f32.mrb[0].mxu0
    %v3750 = vadd.f32 %v3687, %v3749
    %v3751 = vpop.f32.mrb[0].mxu0
    %v3752 = vpop.f32.mrb[0].mxu0
    %v3753 = vadd.f32 %v3687, %v3752
    %v3754 = vpop.f32.mrb[0].mxu0
    %3755 = vdwg.mxu0
    %v3756 = vsel %vm1134, %v3742, 0.0
    %3757 = vadd.xlane.f32.xlu0 %v3756
    %v3758 = vpop.xlane.xlu0 %3757
    %v3759 = vsel %vm1134, %v3745, 0.0
    %3760 = vadd.xlane.f32.xlu0 %v3759
    %v3761 = vpop.xlane.xlu0 %3760
    %v3762 = vsel %vm1134, %v3750, 0.0
    %3763 = vadd.xlane.f32.xlu0 %v3762
    %v3764 = vpop.xlane.xlu0 %3763
    %v3765 = vsel %vm1134, %v3753, 0.0
    %3766 = vadd.xlane.f32.xlu0 %v3765
    %v3767 = vpop.xlane.xlu0 %3766
    %v3768 = vmul.f32 %v3758, %v1141
    %v3769 = vmul.f32 %v3761, %v1141
    %v3770 = vmul.f32 %v3764, %v1141
    %v3771 = vmul.f32 %v3767, %v1141
    %v3772 = vmul.f32 %v3742, %v3742
    %v3773 = vmul.f32 %v3745, %v3745
    %v3774 = vmul.f32 %v3750, %v3750
    %v3775 = vmul.f32 %v3753, %v3753
    %v3776 = vsel %vm1134, %v3772, 0.0
    %3777 = vadd.xlane.f32.xlu0 %v3776
    %v3778 = vpop.xlane.xlu0 %3777
    %v3779 = vsel %vm1134, %v3773, 0.0
    %3780 = vadd.xlane.f32.xlu0 %v3779
    %v3781 = vpop.xlane.xlu0 %3780
    %v3782 = vsel %vm1134, %v3774, 0.0
    %3783 = vadd.xlane.f32.xlu0 %v3782
    %v3784 = vpop.xlane.xlu0 %3783
    %v3785 = vsel %vm1134, %v3775, 0.0
    %3786 = vadd.xlane.f32.xlu0 %v3785
    %v3787 = vpop.xlane.xlu0 %3786
    %v3788 = vmul.f32 %v3778, %v1141
    %v3789 = vmul.f32 %v3781, %v1141
    %v3790 = vmul.f32 %v3784, %v1141
    %v3791 = vmul.f32 %v3787, %v1141
    %v3792 = vmul.f32 %v3768, %v3768
    %v3793 = vmul.f32 %v3769, %v3769
    %v3794 = vmul.f32 %v3770, %v3770
    %v3795 = vmul.f32 %v3771, %v3771
    %v3796 = vsub.f32 %v3788, %v3792
    %v3797 = vsub.f32 %v3789, %v3793
    %v3798 = vsub.f32 %v3790, %v3794
    %v3799 = vsub.f32 %v3791, %v3795
    %v3800 = vmax.f32 %v3796, 0.0
    %v3801 = vmax.f32 %v3797, 0.0
    %v3802 = vmax.f32 %v3798, 0.0
    %v3803 = vmax.f32 %v3799, 0.0
    %v3804 = vsub.f32 %v3742, %v3768
    %v3805 = vsub.f32 %v3745, %v3769
    %v3806 = vsub.f32 %v3750, %v3770
    %v3807 = vsub.f32 %v3753, %v3771
    %v3808 = vadd.f32 %v3800, 1e-05
    %v3809 = vadd.f32 %v3801, 1e-05
    %v3810 = vadd.f32 %v3802, 1e-05
    %v3811 = vadd.f32 %v3803, 1e-05
    %v3812 = vrsqrt.pop %v3808
    %v3813 = vrsqrt.pop %v3809
    %v3814 = vrsqrt.pop %v3810
    %v3815 = vrsqrt.pop %v3811
    %v3816 = vmul.f32 %v3804, %v3812
    %v3817 = vmul.f32 %v3805, %v3813
    %v3818 = vmul.f32 %v3806, %v3814
    %v3819 = vmul.f32 %v3807, %v3815
    %v3820 = vld [vmem:[#allocation55] sm:$0x1]
    %v3822 = vlaneseq
    %v3823 = vshrl.u32 %v3822, 7
    %v3824 = vsub.s32 0, %v3823
    %v3825 = vrot.slane %v3820, %v3824
    %v3827 = vmul.f32 %v3816, %v3825
    %v3828 = vmul.f32 %v3817, %v3825
    %v3829 = vmul.f32 %v3818, %v3825
    %v3830 = vmul.f32 %v3819, %v3825
    %v3831 = vld [vmem:[#allocation54] sm:$0x1]
    %v3833 = vlaneseq
    %v3834 = vshrl.u32 %v3833, 7
    %v3835 = vsub.s32 0, %v3834
    %v3836 = vrot.slane %v3831, %v3835
    %v3838 = vadd.f32 %v3827, %v3836
    %v3839 = vadd.f32 %v3828, %v3836
    %v3840 = vadd.f32 %v3829, %v3836
    %v3841 = vadd.f32 %v3830, %v3836
    %v3842 = vadd.f32 %v3838, %v2833
    %v3843 = vadd.f32 %v3839, %v2834
    %v3844 = vadd.f32 %v3840, %v2835
    %v3845 = vadd.f32 %v3841, %v2836
    %v3846 = vpack.c.bf16 %v3843, %v3842
    %v3847 = vpack.c.bf16 %v3845, %v3844
    %3848 = vmatprep.subr.bf16.mxu0 0
    %3849 = vmatpush1.bf16.msra.mxu0 %v3846
    %3850 = vmatprep.subr.bf16.mxu0 0
    %3851 = vmatpush1.bf16.msra.mxu0 %v3847
    %3852 = vmatprep.subr.bf16.mxu0 0
    %3853 = vmatpush1.bf16.msra.mxu0 0
    %3854 = vmatprep.subr.bf16.mxu0 0
    %3855 = vmatpush1.bf16.msra.mxu0 0
    %3856 = vmatprep.subr.bf16.mxu0 0
    %3857 = vmatpush1.bf16.msra.mxu0 0
    %3858 = vmatprep.subr.bf16.mxu0 0
    %3859 = vmatpush1.bf16.msra.mxu0 0
    %3860 = vmatprep.subr.bf16.mxu0 0
    %3861 = vmatpush1.bf16.msra.mxu0 0
    %3862 = vmatprep.subr.bf16.mxu0 0
    %3863 = vmatpush1.bf16.msra.mxu0 0
    %3864 = vmatprep.subr.bf16.mxu0 0
    %3865 = vmatpush1.bf16.msra.mxu0 0
    %3866 = vmatprep.subr.bf16.mxu0 0
    %3867 = vmatpush1.bf16.msra.mxu0 0
    %3868 = vmatprep.subr.bf16.mxu0 0
    %3869 = vmatpush1.bf16.msra.mxu0 0
    %3870 = vmatprep.subr.bf16.mxu0 0
    %3871 = vmatpush1.bf16.msra.mxu0 0
    %3872 = vmatprep.subr.bf16.mxu0 0
    %3873 = vmatpush1.bf16.msra.mxu0 0
    %3874 = vmatprep.subr.bf16.mxu0 0
    %3875 = vmatpush1.bf16.msra.mxu0 0
    %3876 = vmatprep.subr.bf16.mxu0 0
    %3877 = vmatpush1.bf16.msra.mxu0 0
    %3878 = vmatprep.subr.bf16.mxu0 0
    %3879 = vmatpush1.bf16.msra.mxu0 0
    %3880 = vmatprep.mubr.bf16.mxu0 0
    %3881 = vmatmul.mubr.bf16.gmra.mrb[0].mxu0 %v2845
    %v3882 = vpop.f32.mrb[0].mxu0
    %v3883 = vadd.f32 0.0, %v3882
    %v3884 = vpop.f32.mrb[0].mxu0
    %v3885 = vpop.f32.mrb[0].mxu0
    %v3886 = vadd.f32 0.0, %v3885
    %v3887 = vpop.f32.mrb[0].mxu0
    %3888 = vdwg.mxu0
    %v3889 = vld [vmem:[#allocation64] sm:$0x1]
    %v3890 = vld [vmem:[%s177] sm:$0xf]
    %v3891 = vld [vmem:[%s177 + $0x4] sm:$0xf]
    %v3894 = vunpack.c.l.b16 %v3890
    %v3895 = vunpack.c.l.b16 %v3891
    %v3896 = vpack.c.b16 %v3895, %v3894
    %v3899 = vsel %vm1134, %v3302, 0
    %3901 = vmatprep.subr.bf16.mxu0 0
    %3902 = vmatpush1.bf16.msra.mxu0 %v3896
    %3903 = vmatprep.subr.bf16.mxu0 0
    %3904 = vmatpush1.bf16.msra.mxu0 0
    %3905 = vmatprep.subr.bf16.mxu0 0
    %3906 = vmatpush1.bf16.msra.mxu0 0
    %3907 = vmatprep.subr.bf16.mxu0 0
    %3908 = vmatpush1.bf16.msra.mxu0 0
    %3909 = vmatprep.subr.bf16.mxu0 0
    %3910 = vmatpush1.bf16.msra.mxu0 0
    %3911 = vmatprep.subr.bf16.mxu0 0
    %3912 = vmatpush1.bf16.msra.mxu0 0
    %3913 = vmatprep.subr.bf16.mxu0 0
    %3914 = vmatpush1.bf16.msra.mxu0 0
    %3915 = vmatprep.subr.bf16.mxu0 0
    %3916 = vmatpush1.bf16.msra.mxu0 0
    %3917 = vmatprep.subr.bf16.mxu0 0
    %3918 = vmatpush1.bf16.msra.mxu0 0
    %3919 = vmatprep.subr.bf16.mxu0 0
    %3920 = vmatpush1.bf16.msra.mxu0 0
    %3921 = vmatprep.subr.bf16.mxu0 0
    %3922 = vmatpush1.bf16.msra.mxu0 0
    %3923 = vmatprep.subr.bf16.mxu0 0
    %3924 = vmatpush1.bf16.msra.mxu0 0
    %3925 = vmatprep.subr.bf16.mxu0 0
    %3926 = vmatpush1.bf16.msra.mxu0 0
    %3927 = vmatprep.subr.bf16.mxu0 0
    %3928 = vmatpush1.bf16.msra.mxu0 0
    %3929 = vmatprep.subr.bf16.mxu0 0
    %3930 = vmatpush1.bf16.msra.mxu0 0
    %3931 = vmatprep.subr.bf16.mxu0 0
    %3932 = vmatpush1.bf16.msra.mxu0 0
    %3933 = vmatprep.mubr.bf16.mxu0 0
    %3934 = vmatmul.mubr.bf16.gmra.mrb[0].mxu0 %v3899
    %v3935 = vpop.f32.mrb[0].mxu0
    %v3936 = vadd.f32 0.0, %v3935
    %v3937 = vpop.f32.mrb[0].mxu0
    %v3938 = vpop.f32.mrb[0].mxu0
    %v3939 = vadd.f32 0.0, %v3938
    %v3940 = vpop.f32.mrb[0].mxu0
    %3941 = vdwg.mxu0
    %v3943 = vlaneseq
    %v3944 = vshrl.u32 %v3943, 7
    %v3945 = vsub.s32 0, %v3944
    %v3946 = vrot.slane %v3889, %v3945
    %v3948 = vadd.f32 %v3946, %v3936
    %v3949 = vadd.f32 %v3946, %v3939
    %v3950 = vpack.c.bf16 %v3886, %v3883
    %v3951 = vld [vmem:[%s179] sm:$0xf]
    %v3952 = vld [vmem:[%s179 + $0x4] sm:$0xf]
    %v3955 = vunpack.c.l.b16 %v3951
    %v3956 = vunpack.c.l.b16 %v3952
    %v3957 = vpack.c.b16 %v3956, %v3955
    %v3960 = vsel %vm1134, %v3950, 0
    %3962 = vmatprep.subr.bf16.mxu0 0
    %3963 = vmatpush1.bf16.msra.mxu0 %v3957
    %3964 = vmatprep.subr.bf16.mxu0 0
    %3965 = vmatpush1.bf16.msra.mxu0 0
    %3966 = vmatprep.subr.bf16.mxu0 0
    %3967 = vmatpush1.bf16.msra.mxu0 0
    %3968 = vmatprep.subr.bf16.mxu0 0
    %3969 = vmatpush1.bf16.msra.mxu0 0
    %3970 = vmatprep.subr.bf16.mxu0 0
    %3971 = vmatpush1.bf16.msra.mxu0 0
    %3972 = vmatprep.subr.bf16.mxu0 0
    %3973 = vmatpush1.bf16.msra.mxu0 0
    %3974 = vmatprep.subr.bf16.mxu0 0
    %3975 = vmatpush1.bf16.msra.mxu0 0
    %3976 = vmatprep.subr.bf16.mxu0 0
    %3977 = vmatpush1.bf16.msra.mxu0 0
    %3978 = vmatprep.subr.bf16.mxu0 0
    %3979 = vmatpush1.bf16.msra.mxu0 0
    %3980 = vmatprep.subr.bf16.mxu0 0
    %3981 = vmatpush1.bf16.msra.mxu0 0
    %3982 = vmatprep.subr.bf16.mxu0 0
    %3983 = vmatpush1.bf16.msra.mxu0 0
    %3984 = vmatprep.subr.bf16.mxu0 0
    %3985 = vmatpush1.bf16.msra.mxu0 0
    %3986 = vmatprep.subr.bf16.mxu0 0
    %3987 = vmatpush1.bf16.msra.mxu0 0
    %3988 = vmatprep.subr.bf16.mxu0 0
    %3989 = vmatpush1.bf16.msra.mxu0 0
    %3990 = vmatprep.subr.bf16.mxu0 0
    %3991 = vmatpush1.bf16.msra.mxu0 0
    %3992 = vmatprep.subr.bf16.mxu0 0
    %3993 = vmatpush1.bf16.msra.mxu0 0
    %3994 = vmatprep.mubr.bf16.mxu0 0
    %3995 = vmatmul.mubr.bf16.gmra.mrb[0].mxu0 %v3960
    %v3996 = vpop.f32.mrb[0].mxu0
    %v3997 = vadd.f32 0.0, %v3996
    %v3998 = vpop.f32.mrb[0].mxu0
    %v3999 = vpop.f32.mrb[0].mxu0
    %v4000 = vadd.f32 0.0, %v3999
    %v4001 = vpop.f32.mrb[0].mxu0
    %4002 = vdwg.mxu0
    %v4003 = vadd.f32 %v3948, %v3997
    %v4004 = vadd.f32 %v3949, %v4000
    %v4005 = vld [vmem:[%s181] sm:$0xf]
    %v4007 = vsel %vm936, %v4005, 0
    %4009 = vmatprep.subr.bf16.mxu0 0
    %4010 = vmatpush1.bf16.msra.mxu0 %v4007
    %4011 = vmatprep.subr.bf16.mxu0 0
    %4012 = vmatpush1.bf16.msra.mxu0 0
    %4013 = vmatprep.subr.bf16.mxu0 0
    %4014 = vmatpush1.bf16.msra.mxu0 0
    %4015 = vmatprep.subr.bf16.mxu0 0
    %4016 = vmatpush1.bf16.msra.mxu0 0
    %4017 = vmatprep.subr.bf16.mxu0 0
    %4018 = vmatpush1.bf16.msra.mxu0 0
    %4019 = vmatprep.subr.bf16.mxu0 0
    %4020 = vmatpush1.bf16.msra.mxu0 0
    %4021 = vmatprep.subr.bf16.mxu0 0
    %4022 = vmatpush1.bf16.msra.mxu0 0
    %4023 = vmatprep.subr.bf16.mxu0 0
    %4024 = vmatpush1.bf16.msra.mxu0 0
    %4025 = vmatprep.subr.bf16.mxu0 0
    %4026 = vmatpush1.bf16.msra.mxu0 0
    %4027 = vmatprep.subr.bf16.mxu0 0
    %4028 = vmatpush1.bf16.msra.mxu0 0
    %4029 = vmatprep.subr.bf16.mxu0 0
    %4030 = vmatpush1.bf16.msra.mxu0 0
    %4031 = vmatprep.subr.bf16.mxu0 0
    %4032 = vmatpush1.bf16.msra.mxu0 0
    %4033 = vmatprep.subr.bf16.mxu0 0
    %4034 = vmatpush1.bf16.msra.mxu0 0
    %4035 = vmatprep.subr.bf16.mxu0 0
    %4036 = vmatpush1.bf16.msra.mxu0 0
    %4037 = vmatprep.subr.bf16.mxu0 0
    %4038 = vmatpush1.bf16.msra.mxu0 0
    %4039 = vmatprep.subr.bf16.mxu0 0
    %4040 = vmatpush1.bf16.msra.mxu0 0
    %4041 = vmatprep.mubr.bf16.mxu0 0
    %4042 = vmatmul.mubr.bf16.gmra.mrb[0].mxu0 %v3007
    %v4043 = vpop.f32.mrb[0].mxu0
    %v4044 = vadd.f32 0.0, %v4043
    %v4045 = vpop.f32.mrb[0].mxu0
    %v4046 = vpop.f32.mrb[0].mxu0
    %v4047 = vadd.f32 0.0, %v4046
    %v4048 = vpop.f32.mrb[0].mxu0
    %4049 = vdwg.mxu0
    %v4050 = vadd.f32 %v4003, %v4044
    %v4051 = vadd.f32 %v4004, %v4047
    %v4052 = vld [vmem:[%s183] sm:$0xf]
    %v4054 = vsel %vm936, %v4052, 0
    %4056 = vmatprep.subr.bf16.mxu0 0
    %4057 = vmatpush1.bf16.msra.mxu0 %v4054
    %4058 = vmatprep.subr.bf16.mxu0 0
    %4059 = vmatpush1.bf16.msra.mxu0 0
    %4060 = vmatprep.subr.bf16.mxu0 0
    %4061 = vmatpush1.bf16.msra.mxu0 0
    %4062 = vmatprep.subr.bf16.mxu0 0
    %4063 = vmatpush1.bf16.msra.mxu0 0
    %4064 = vmatprep.subr.bf16.mxu0 0
    %4065 = vmatpush1.bf16.msra.mxu0 0
    %4066 = vmatprep.subr.bf16.mxu0 0
    %4067 = vmatpush1.bf16.msra.mxu0 0
    %4068 = vmatprep.subr.bf16.mxu0 0
    %4069 = vmatpush1.bf16.msra.mxu0 0
    %4070 = vmatprep.subr.bf16.mxu0 0
    %4071 = vmatpush1.bf16.msra.mxu0 0
    %4072 = vmatprep.subr.bf16.mxu0 0
    %4073 = vmatpush1.bf16.msra.mxu0 0
    %4074 = vmatprep.subr.bf16.mxu0 0
    %4075 = vmatpush1.bf16.msra.mxu0 0
    %4076 = vmatprep.subr.bf16.mxu0 0
    %4077 = vmatpush1.bf16.msra.mxu0 0
    %4078 = vmatprep.subr.bf16.mxu0 0
    %4079 = vmatpush1.bf16.msra.mxu0 0
    %4080 = vmatprep.subr.bf16.mxu0 0
    %4081 = vmatpush1.bf16.msra.mxu0 0
    %4082 = vmatprep.subr.bf16.mxu0 0
    %4083 = vmatpush1.bf16.msra.mxu0 0
    %4084 = vmatprep.subr.bf16.mxu0 0
    %4085 = vmatpush1.bf16.msra.mxu0 0
    %4086 = vmatprep.subr.bf16.mxu0 0
    %4087 = vmatpush1.bf16.msra.mxu0 0
    %4088 = vmatprep.mubr.bf16.mxu0 0
    %4089 = vmatmul.mubr.bf16.gmra.mrb[0].mxu0 %v3058
    %v4090 = vpop.f32.mrb[0].mxu0
    %v4091 = vadd.f32 0.0, %v4090
    %v4092 = vpop.f32.mrb[0].mxu0
    %v4093 = vpop.f32.mrb[0].mxu0
    %v4094 = vadd.f32 0.0, %v4093
    %v4095 = vpop.f32.mrb[0].mxu0
    %4096 = vdwg.mxu0
    %v4097 = vadd.f32 %v4050, %v4091
    %v4098 = vadd.f32 %v4051, %v4094
    %v4099 = vmul.f32 %v4097, 0.01
    %v4100 = vmul.f32 %v4098, 0.01
    %v4101 = vmax.f32 %v4097, %v4099
    %v4102 = vmax.f32 %v4098, %v4100
    %v4103 = vpack.c.bf16 %v4102, %v4101
    %v4104 = vld [vmem:[%s185] sm:$0xf]
    %v4105 = vld [vmem:[%s185 + $0x4] sm:$0xf]
    %v4106 = vld [vmem:[%s185 + $0x8] sm:$0xf]
    %v4107 = vld [vmem:[%s185 + $0xc] sm:$0xf]
    %v4108 = vld [vmem:[#allocation66] sm:$0x1]
    %v4110 = vlaneseq
    %v4111 = vshrl.u32 %v4110, 7
    %v4112 = vsub.s32 0, %v4111
    %v4113 = vrot.slane %v4108, %v4112
    %v4119 = vunpack.c.l.b16 %v4104
    %v4120 = vunpack.c.l.b16 %v4105
    %v4121 = vunpack.c.l.b16 %v4106
    %v4122 = vunpack.c.l.b16 %v4107
    %v4123 = vpack.c.b16 %v4120, %v4119
    %v4124 = vpack.c.b16 %v4122, %v4121
    %v4128 = vsel %vm1017, %v4103, 0
    %4130 = vmatprep.subr.bf16.mxu0 0
    %4131 = vmatpush1.bf16.msra.mxu0 %v4123
    %4132 = vmatprep.subr.bf16.mxu0 0
    %4133 = vmatpush1.bf16.msra.mxu0 %v4124
    %4134 = vmatprep.subr.bf16.mxu0 0
    %4135 = vmatpush1.bf16.msra.mxu0 0
    %4136 = vmatprep.subr.bf16.mxu0 0
    %4137 = vmatpush1.bf16.msra.mxu0 0
    %4138 = vmatprep.subr.bf16.mxu0 0
    %4139 = vmatpush1.bf16.msra.mxu0 0
    %4140 = vmatprep.subr.bf16.mxu0 0
    %4141 = vmatpush1.bf16.msra.mxu0 0
    %4142 = vmatprep.subr.bf16.mxu0 0
    %4143 = vmatpush1.bf16.msra.mxu0 0
    %4144 = vmatprep.subr.bf16.mxu0 0
    %4145 = vmatpush1.bf16.msra.mxu0 0
    %4146 = vmatprep.subr.bf16.mxu0 0
    %4147 = vmatpush1.bf16.msra.mxu0 0
    %4148 = vmatprep.subr.bf16.mxu0 0
    %4149 = vmatpush1.bf16.msra.mxu0 0
    %4150 = vmatprep.subr.bf16.mxu0 0
    %4151 = vmatpush1.bf16.msra.mxu0 0
    %4152 = vmatprep.subr.bf16.mxu0 0
    %4153 = vmatpush1.bf16.msra.mxu0 0
    %4154 = vmatprep.subr.bf16.mxu0 0
    %4155 = vmatpush1.bf16.msra.mxu0 0
    %4156 = vmatprep.subr.bf16.mxu0 0
    %4157 = vmatpush1.bf16.msra.mxu0 0
    %4158 = vmatprep.subr.bf16.mxu0 0
    %4159 = vmatpush1.bf16.msra.mxu0 0
    %4160 = vmatprep.subr.bf16.mxu0 0
    %4161 = vmatpush1.bf16.msra.mxu0 0
    %4162 = vmatprep.mubr.bf16.mxu0 0
    %4163 = vmatmul.mubr.bf16.gmra.mrb[0].mxu0 %v4128
    %v4164 = vpop.f32.mrb[0].mxu0
    %v4165 = vadd.f32 %v4113, %v4164
    %v4166 = vpop.f32.mrb[0].mxu0
    %v4167 = vpop.f32.mrb[0].mxu0
    %v4168 = vadd.f32 %v4113, %v4167
    %v4169 = vpop.f32.mrb[0].mxu0
    %4170 = vdwg.mxu0
    %v4171 = vmul.f32 %v4165, 0.01
    %v4172 = vmul.f32 %v4168, 0.01
    %v4173 = vmax.f32 %v4165, %v4171
    %v4174 = vmax.f32 %v4168, %v4172
    %v4175 = vpack.c.bf16 %v4174, %v4173
    %v4176 = vld [vmem:[%s187] sm:$0xf]
    %v4177 = vld [vmem:[%s187 + $0x4] sm:$0xf]
    %v4178 = vld [vmem:[%s187 + $0x8] sm:$0xf]
    %v4179 = vld [vmem:[%s187 + $0xc] sm:$0xf]
    %v4180 = vld [vmem:[#allocation67] sm:$0x1]
    %v4182 = vlaneseq
    %v4183 = vshrl.u32 %v4182, 7
    %v4184 = vsub.s32 0, %v4183
    %v4185 = vrot.slane %v4180, %v4184
    %v4191 = vunpack.c.l.b16 %v4176
    %v4192 = vunpack.c.l.b16 %v4177
    %v4193 = vunpack.c.l.b16 %v4178
    %v4194 = vunpack.c.l.b16 %v4179
    %v4195 = vpack.c.b16 %v4192, %v4191
    %v4196 = vpack.c.b16 %v4194, %v4193
    %v4200 = vsel %vm1017, %v4175, 0
    %4202 = vmatprep.subr.bf16.mxu0 0
    %4203 = vmatpush1.bf16.msra.mxu0 %v4195
    %4204 = vmatprep.subr.bf16.mxu0 0
    %4205 = vmatpush1.bf16.msra.mxu0 %v4196
    %4206 = vmatprep.subr.bf16.mxu0 0
    %4207 = vmatpush1.bf16.msra.mxu0 0
    %4208 = vmatprep.subr.bf16.mxu0 0
    %4209 = vmatpush1.bf16.msra.mxu0 0
    %4210 = vmatprep.subr.bf16.mxu0 0
    %4211 = vmatpush1.bf16.msra.mxu0 0
    %4212 = vmatprep.subr.bf16.mxu0 0
    %4213 = vmatpush1.bf16.msra.mxu0 0
    %4214 = vmatprep.subr.bf16.mxu0 0
    %4215 = vmatpush1.bf16.msra.mxu0 0
    %4216 = vmatprep.subr.bf16.mxu0 0
    %4217 = vmatpush1.bf16.msra.mxu0 0
    %4218 = vmatprep.subr.bf16.mxu0 0
    %4219 = vmatpush1.bf16.msra.mxu0 0
    %4220 = vmatprep.subr.bf16.mxu0 0
    %4221 = vmatpush1.bf16.msra.mxu0 0
    %4222 = vmatprep.subr.bf16.mxu0 0
    %4223 = vmatpush1.bf16.msra.mxu0 0
    %4224 = vmatprep.subr.bf16.mxu0 0
    %4225 = vmatpush1.bf16.msra.mxu0 0
    %4226 = vmatprep.subr.bf16.mxu0 0
    %4227 = vmatpush1.bf16.msra.mxu0 0
    %4228 = vmatprep.subr.bf16.mxu0 0
    %4229 = vmatpush1.bf16.msra.mxu0 0
    %4230 = vmatprep.subr.bf16.mxu0 0
    %4231 = vmatpush1.bf16.msra.mxu0 0
    %4232 = vmatprep.subr.bf16.mxu0 0
    %4233 = vmatpush1.bf16.msra.mxu0 0
    %4234 = vmatprep.mubr.bf16.mxu0 0
    %4235 = vmatmul.mubr.bf16.gmra.mrb[0].mxu0 %v4200
    %v4236 = vpop.f32.mrb[0].mxu0
    %v4237 = vadd.f32 %v4185, %v4236
    %v4238 = vpop.f32.mrb[0].mxu0
    %v4239 = vpop.f32.mrb[0].mxu0
    %v4240 = vadd.f32 %v4185, %v4239
    %v4241 = vpop.f32.mrb[0].mxu0
    %4242 = vdwg.mxu0
    %v4243 = vsel %vm1134, %v4237, 0.0
    %4244 = vadd.xlane.f32.xlu0 %v4243
    %v4245 = vpop.xlane.xlu0 %4244
    %v4246 = vsel %vm1134, %v4240, 0.0
    %4247 = vadd.xlane.f32.xlu0 %v4246
    %v4248 = vpop.xlane.xlu0 %4247
    %v4249 = vmul.f32 %v4245, %v1141
    %v4250 = vmul.f32 %v4248, %v1141
    %v4251 = vmul.f32 %v4237, %v4237
    %v4252 = vmul.f32 %v4240, %v4240
    %v4253 = vsel %vm1134, %v4251, 0.0
    %4254 = vadd.xlane.f32.xlu0 %v4253
    %v4255 = vpop.xlane.xlu0 %4254
    %v4256 = vsel %vm1134, %v4252, 0.0
    %4257 = vadd.xlane.f32.xlu0 %v4256
    %v4258 = vpop.xlane.xlu0 %4257
    %v4259 = vmul.f32 %v4255, %v1141
    %v4260 = vmul.f32 %v4258, %v1141
    %v4261 = vmul.f32 %v4249, %v4249
    %v4262 = vmul.f32 %v4250, %v4250
    %v4263 = vsub.f32 %v4259, %v4261
    %v4264 = vsub.f32 %v4260, %v4262
    %v4265 = vmax.f32 %v4263, 0.0
    %v4266 = vmax.f32 %v4264, 0.0
    %v4267 = vsub.f32 %v4237, %v4249
    %v4268 = vsub.f32 %v4240, %v4250
    %v4269 = vadd.f32 %v4265, 1e-05
    %v4270 = vadd.f32 %v4266, 1e-05
    %v4271 = vrsqrt.pop %v4269
    %v4272 = vrsqrt.pop %v4270
    %v4273 = vmul.f32 %v4267, %v4271
    %v4274 = vmul.f32 %v4268, %v4272
    %v4275 = vld [vmem:[#allocation70] sm:$0x1]
    %v4277 = vlaneseq
    %v4278 = vshrl.u32 %v4277, 7
    %v4279 = vsub.s32 0, %v4278
    %v4280 = vrot.slane %v4275, %v4279
    %v4282 = vmul.f32 %v4273, %v4280
    %v4283 = vmul.f32 %v4274, %v4280
    %v4284 = vld [vmem:[#allocation69] sm:$0x1]
    %v4286 = vlaneseq
    %v4287 = vshrl.u32 %v4286, 7
    %v4288 = vsub.s32 0, %v4287
    %v4289 = vrot.slane %v4284, %v4288
    %v4291 = vadd.f32 %v4282, %v4289
    %v4292 = vadd.f32 %v4283, %v4289
    %v4293 = vadd.f32 %v4291, %v3300
    %v4294 = vadd.f32 %v4292, %v3301
    %v4295 = vld [vmem:[#allocation37] sm:$0x1]
    %v4296 = vpack.c.bf16 %v4294, %v4293
    %v4297 = vld [vmem:[%s99] sm:$0xf]
    %v4298 = vld [vmem:[%s99 + $0x4] sm:$0xf]
    %v4301 = vunpack.c.l.b16 %v4297
    %v4302 = vunpack.c.l.b16 %v4298
    %v4303 = vpack.c.b16 %v4302, %v4301
    %v4306 = vsel %vm1134, %v4296, 0
    %4308 = vmatprep.subr.bf16.mxu0 0
    %4309 = vmatpush1.bf16.msra.mxu0 %v4303
    %4310 = vmatprep.subr.bf16.mxu0 0
    %4311 = vmatpush1.bf16.msra.mxu0 0
    %4312 = vmatprep.subr.bf16.mxu0 0
    %4313 = vmatpush1.bf16.msra.mxu0 0
    %4314 = vmatprep.subr.bf16.mxu0 0
    %4315 = vmatpush1.bf16.msra.mxu0 0
    %4316 = vmatprep.subr.bf16.mxu0 0
    %4317 = vmatpush1.bf16.msra.mxu0 0
    %4318 = vmatprep.subr.bf16.mxu0 0
    %4319 = vmatpush1.bf16.msra.mxu0 0
    %4320 = vmatprep.subr.bf16.mxu0 0
    %4321 = vmatpush1.bf16.msra.mxu0 0
    %4322 = vmatprep.subr.bf16.mxu0 0
    %4323 = vmatpush1.bf16.msra.mxu0 0
    %4324 = vmatprep.subr.bf16.mxu0 0
    %4325 = vmatpush1.bf16.msra.mxu0 0
    %4326 = vmatprep.subr.bf16.mxu0 0
    %4327 = vmatpush1.bf16.msra.mxu0 0
    %4328 = vmatprep.subr.bf16.mxu0 0
    %4329 = vmatpush1.bf16.msra.mxu0 0
    %4330 = vmatprep.subr.bf16.mxu0 0
    %4331 = vmatpush1.bf16.msra.mxu0 0
    %4332 = vmatprep.subr.bf16.mxu0 0
    %4333 = vmatpush1.bf16.msra.mxu0 0
    %4334 = vmatprep.subr.bf16.mxu0 0
    %4335 = vmatpush1.bf16.msra.mxu0 0
    %4336 = vmatprep.subr.bf16.mxu0 0
    %4337 = vmatpush1.bf16.msra.mxu0 0
    %4338 = vmatprep.subr.bf16.mxu0 0
    %4339 = vmatpush1.bf16.msra.mxu0 0
    %4340 = vmatprep.mubr.bf16.mxu0 0
    %4341 = vmatmul.mubr.bf16.gmra.mrb[0].mxu0 %v4306
    %v4342 = vpop.f32.mrb[0].mxu0
    %v4343 = vadd.f32 0.0, %v4342
    %v4344 = vpop.f32.mrb[0].mxu0
    %v4345 = vpop.f32.mrb[0].mxu0
    %v4346 = vadd.f32 0.0, %v4345
    %v4347 = vpop.f32.mrb[0].mxu0
    %4348 = vdwg.mxu0
    %v4350 = vlaneseq
    %v4351 = vshrl.u32 %v4350, 7
    %v4352 = vsub.s32 0, %v4351
    %v4353 = vrot.slane %v4295, %v4352
    %v4355 = vadd.f32 %v4353, %v4343
    %v4356 = vadd.f32 %v4353, %v4346
    %v4357 = vmul.f32 %v4355, 0.01
    %v4358 = vmul.f32 %v4356, 0.01
    %v4359 = vmax.f32 %v4355, %v4357
    %v4360 = vmax.f32 %v4356, %v4358
    %v4361 = vpack.c.bf16 %v4360, %v4359
    %v4362 = vld [vmem:[%s101] sm:$0xf]
    %v4363 = vld [vmem:[%s101 + $0x4] sm:$0xf]
    %v4364 = vld [vmem:[%s101 + $0x8] sm:$0xf]
    %v4365 = vld [vmem:[%s101 + $0xc] sm:$0xf]
    %v4366 = vld [vmem:[#allocation39] sm:$0x1]
    %v4368 = vlaneseq
    %v4369 = vshrl.u32 %v4368, 7
    %v4370 = vsub.s32 0, %v4369
    %v4371 = vrot.slane %v4366, %v4370
    %v4377 = vunpack.c.l.b16 %v4362
    %v4378 = vunpack.c.l.b16 %v4363
    %v4379 = vunpack.c.l.b16 %v4364
    %v4380 = vunpack.c.l.b16 %v4365
    %v4381 = vpack.c.b16 %v4378, %v4377
    %v4382 = vpack.c.b16 %v4380, %v4379
    %v4386 = vsel %vm1017, %v4361, 0
    %4388 = vmatprep.subr.bf16.mxu0 0
    %4389 = vmatpush1.bf16.msra.mxu0 %v4381
    %4390 = vmatprep.subr.bf16.mxu0 0
    %4391 = vmatpush1.bf16.msra.mxu0 %v4382
    %4392 = vmatprep.subr.bf16.mxu0 0
    %4393 = vmatpush1.bf16.msra.mxu0 0
    %4394 = vmatprep.subr.bf16.mxu0 0
    %4395 = vmatpush1.bf16.msra.mxu0 0
    %4396 = vmatprep.subr.bf16.mxu0 0
    %4397 = vmatpush1.bf16.msra.mxu0 0
    %4398 = vmatprep.subr.bf16.mxu0 0
    %4399 = vmatpush1.bf16.msra.mxu0 0
    %4400 = vmatprep.subr.bf16.mxu0 0
    %4401 = vmatpush1.bf16.msra.mxu0 0
    %4402 = vmatprep.subr.bf16.mxu0 0
    %4403 = vmatpush1.bf16.msra.mxu0 0
    %4404 = vmatprep.subr.bf16.mxu0 0
    %4405 = vmatpush1.bf16.msra.mxu0 0
    %4406 = vmatprep.subr.bf16.mxu0 0
    %4407 = vmatpush1.bf16.msra.mxu0 0
    %4408 = vmatprep.subr.bf16.mxu0 0
    %4409 = vmatpush1.bf16.msra.mxu0 0
    %4410 = vmatprep.subr.bf16.mxu0 0
    %4411 = vmatpush1.bf16.msra.mxu0 0
    %4412 = vmatprep.subr.bf16.mxu0 0
    %4413 = vmatpush1.bf16.msra.mxu0 0
    %4414 = vmatprep.subr.bf16.mxu0 0
    %4415 = vmatpush1.bf16.msra.mxu0 0
    %4416 = vmatprep.subr.bf16.mxu0 0
    %4417 = vmatpush1.bf16.msra.mxu0 0
    %4418 = vmatprep.subr.bf16.mxu0 0
    %4419 = vmatpush1.bf16.msra.mxu0 0
    %4420 = vmatprep.mubr.bf16.mxu0 0
    %4421 = vmatmul.mubr.bf16.gmra.mrb[0].mxu0 %v4386
    %v4422 = vpop.f32.mrb[0].mxu0
    %v4423 = vadd.f32 %v4371, %v4422
    %v4424 = vpop.f32.mrb[0].mxu0
    %v4425 = vpop.f32.mrb[0].mxu0
    %v4426 = vadd.f32 %v4371, %v4425
    %v4427 = vpop.f32.mrb[0].mxu0
    %4428 = vdwg.mxu0
    %v4429 = vmul.f32 %v4423, 0.01
    %v4430 = vmul.f32 %v4426, 0.01
    %v4431 = vmax.f32 %v4423, %v4429
    %v4432 = vmax.f32 %v4426, %v4430
    %v4433 = vpack.c.bf16 %v4432, %v4431
    %v4434 = vld [vmem:[%s103] sm:$0xf]
    %v4435 = vld [vmem:[%s103 + $0x4] sm:$0xf]
    %v4436 = vld [vmem:[%s103 + $0x8] sm:$0xf]
    %v4437 = vld [vmem:[%s103 + $0xc] sm:$0xf]
    %v4438 = vld [vmem:[#allocation40] sm:$0x1]
    %v4440 = vlaneseq
    %v4441 = vshrl.u32 %v4440, 7
    %v4442 = vsub.s32 0, %v4441
    %v4443 = vrot.slane %v4438, %v4442
    %v4449 = vunpack.c.l.b16 %v4434
    %v4450 = vunpack.c.l.b16 %v4435
    %v4451 = vunpack.c.l.b16 %v4436
    %v4452 = vunpack.c.l.b16 %v4437
    %v4453 = vpack.c.b16 %v4450, %v4449
    %v4454 = vpack.c.b16 %v4452, %v4451
    %v4458 = vsel %vm1017, %v4433, 0
    %4460 = vmatprep.subr.bf16.mxu0 0
    %4461 = vmatpush1.bf16.msra.mxu0 %v4453
    %4462 = vmatprep.subr.bf16.mxu0 0
    %4463 = vmatpush1.bf16.msra.mxu0 %v4454
    %4464 = vmatprep.subr.bf16.mxu0 0
    %4465 = vmatpush1.bf16.msra.mxu0 0
    %4466 = vmatprep.subr.bf16.mxu0 0
    %4467 = vmatpush1.bf16.msra.mxu0 0
    %4468 = vmatprep.subr.bf16.mxu0 0
    %4469 = vmatpush1.bf16.msra.mxu0 0
    %4470 = vmatprep.subr.bf16.mxu0 0
    %4471 = vmatpush1.bf16.msra.mxu0 0
    %4472 = vmatprep.subr.bf16.mxu0 0
    %4473 = vmatpush1.bf16.msra.mxu0 0
    %4474 = vmatprep.subr.bf16.mxu0 0
    %4475 = vmatpush1.bf16.msra.mxu0 0
    %4476 = vmatprep.subr.bf16.mxu0 0
    %4477 = vmatpush1.bf16.msra.mxu0 0
    %4478 = vmatprep.subr.bf16.mxu0 0
    %4479 = vmatpush1.bf16.msra.mxu0 0
    %4480 = vmatprep.subr.bf16.mxu0 0
    %4481 = vmatpush1.bf16.msra.mxu0 0
    %4482 = vmatprep.subr.bf16.mxu0 0
    %4483 = vmatpush1.bf16.msra.mxu0 0
    %4484 = vmatprep.subr.bf16.mxu0 0
    %4485 = vmatpush1.bf16.msra.mxu0 0
    %4486 = vmatprep.subr.bf16.mxu0 0
    %4487 = vmatpush1.bf16.msra.mxu0 0
    %4488 = vmatprep.subr.bf16.mxu0 0
    %4489 = vmatpush1.bf16.msra.mxu0 0
    %4490 = vmatprep.subr.bf16.mxu0 0
    %4491 = vmatpush1.bf16.msra.mxu0 0
    %4492 = vmatprep.mubr.bf16.mxu0 0
    %4493 = vmatmul.mubr.bf16.gmra.mrb[0].mxu0 %v4458
    %v4494 = vpop.f32.mrb[0].mxu0
    %v4495 = vadd.f32 %v4443, %v4494
    %v4496 = vpop.f32.mrb[0].mxu0
    %v4497 = vpop.f32.mrb[0].mxu0
    %v4498 = vadd.f32 %v4443, %v4497
    %v4499 = vpop.f32.mrb[0].mxu0
    %4500 = vdwg.mxu0
    %4501 = vst.msk [vmem:[%s189] sm:$0xff] %vm1578, %v4495
    %4502 = vst.msk [vmem:[%s189 + $0x8] sm:$0xff] %vm1578, %v4498
    // Predicated region
    $region562: #{graphnet_forward.1} parent=1 // pred_check
      _
    $region563: #{graphnet_forward.1} parent=1 // pred_check_branch
      %4504 = sbr.rel (0) target = $region565
    $region564: #{graphnet_forward.1} parent=1 // pred_region
      _
    $region565: #{graphnet_forward.1} parent=1 // pred_fallthru
      _
    // Predicated region
    $region566: #{graphnet_forward.1} parent=1 // pred_check
      _
    $region567: #{graphnet_forward.1} parent=1 // pred_check_branch
      %4506 = sbr.rel (0) target = $region569
    $region568: #{graphnet_forward.1} parent=1 // pred_region
      _
    $region569: #{graphnet_forward.1} parent=1 // pred_fallthru
      _
    %4507 = vsyncpa [#allocation3], 1
    %4508 = vsyncpa [#allocation5], 1
    %4509 = vsyncpa [#allocation8], 1
    %4510 = vsyncpa [#allocation11], 1
    %4511 = vsyncpa [#allocation14], 1
    %4512 = vsyncpa [#allocation17], 1
    %4513 = vsyncpa [#allocation20], 1
    %4514 = vsyncpa [#allocation23], 1
    %4515 = vsyncpa [#allocation26], 1
    %4516 = vsyncpa [#allocation29], 1
    %4517 = vsyncpa [#allocation32], 1
    %4518 = vsyncpa [#allocation35], 1
    %4519 = vsyncpa [#allocation38], 1
    %4520 = vsyncpa [#allocation41], 1
    %4521 = vsyncpa [#allocation44], 1
    %4522 = vsyncpa [#allocation47], 1
    %4523 = vsyncpa [#allocation50], 1
    %4524 = vsyncpa [#allocation53], 1
    %4525 = vsyncpa [#allocation56], 1
    %4526 = vsyncpa [#allocation59], 1
    %4527 = vsyncpa [#allocation62], 1
    %4528 = vsyncpa [#allocation65], 1
    %4529 = vsyncpa [#allocation68], 1
    %4530 = vsyncpa [#allocation71], 1

</llo_original>
